<compile_context>
chip_gen: v7x
topology: tpu7x:2x2x1
jax: 0.10.0
libtpu: 0.0.40
codegen_flags: <defaults>
</compile_context>

<pallas_src>
import functools

import jax
import jax.numpy as jnp
from jax import lax
from jax.experimental import pallas as pl
from jax.experimental.pallas import tpu as pltpu

BN_EPS = 1e-5


def _round_up(x, m):
    return (x + m - 1) // m * m


def _vmem_capacity_bytes():
    """Per-core VMEM capacity; conservative (v7x) fallback if the query fails."""
    try:
        info = pltpu.get_tpu_info()
        cap = int(getattr(info, "vmem_capacity_bytes", 0))
        if cap > 0:
            return cap
    except Exception:
        pass
    return 64 * 1024 * 1024


def _pick_tiling(n, h, w, c_in, ceff_pad):
    """Generation-aware row-tile height (a divisor of H) and scoped-VMEM limit."""
    cap = _vmem_capacity_bytes()
    # ~52 MiB on v7x (64 MiB physical), ~100 MiB on v5e/v6e (128 MiB physical).
    vmem_limit = max(32 * 1024 * 1024, min(int(0.80 * cap), 100 * 1024 * 1024))
    budget = int(0.55 * vmem_limit)        # headroom for compiler scratch / semaphores

    def working_set(th):
        m_tile = th * w
        return (2 * (th + 2) * (w + 2) * c_in * 2      # halo slab, double-buffered, bf16
                + 2 * m_tile * ceff_pad * 2            # y tile, double-buffered, bf16
                + m_tile * ceff_pad * 4                # f32 accumulator
                + 2 * m_tile * c_in * 2                # tap slice / relayout temps
                + 2 * 9 * c_in * ceff_pad * 2          # resident weights (worst case 2 bufs)
                + (2 << 20))                           # bias / stats / misc slack

    th = 1
    for d in range(1, h + 1):
        if h % d == 0 and working_set(d) <= budget:
            th = d
    # v7x has 2 TensorCores: keep at least 2 grid steps so the 'parallel' axis balances.
    if n == 1 and th == h and h % 2 == 0:
        th = h // 2
    return th, vmem_limit


def _upconv_conv_stats_kernel(x_ref, w_ref, b_ref, y_ref, stats_ref, *,
                              th, w_img, c_in, ceff_pad):
    """One row-tile of the fused (upsample x2 + 3x3 conv):

    9 shifted-tap matmuls (bf16 in, f32 accumulation on the MXU) over a (th+2)-row halo
    slab, per-channel BatchNorm partial sums from the pre-bias f32 accumulator, then
    bias add and bf16 writeback of y (lane-dense 4*C_out, padded to a 128 multiple).
    """
    m_tile = th * w_img
    acc = jnp.zeros((m_tile, ceff_pad), jnp.float32)
    for t in range(9):                                  # static unroll over the 3x3 taps
        ky, kx = divmod(t, 3)
        xs = x_ref[0, ky:ky + th, kx:kx + w_img, :].reshape(m_tile, c_in)
        acc = acc + jnp.dot(xs, w_ref[t], preferred_element_type=jnp.float32)
    # BN partials BEFORE the bias add (bias is re-added to the mean in the reduction),
    # which keeps E[y^2] - E[y]^2 better conditioned.
    psum = jnp.sum(acc, axis=0, keepdims=True)          # [1, ceff_pad]
    psq = jnp.sum(acc * acc, axis=0, keepdims=True)     # [1, ceff_pad]
    stats_ref[0] = jnp.concatenate([psum, psq], axis=0)
    y_ref[0] = (acc + b_ref[...]).astype(y_ref.dtype)


@functools.partial(jax.jit,
                   static_argnames=("th", "vmem_limit", "single_buffer_resident"))
def _up_conv_impl(x_nchw, w_conv, b_conv, gamma, beta, *, th, vmem_limit,
                  single_buffer_resident):
    n, c_in, h, w = x_nchw.shape
    c_out = w_conv.shape[0]
    ho, wo = 2 * h, 2 * w
    ceff = 4 * c_out                        # (py, px) parity groups packed into channels
    ceff_pad = _round_up(ceff, 128)         # unmasked lane-dense stores / full MXU width
    if h % th != 0:
        raise ValueError(f"row tile th={th} must divide H={h}")
    nht = h // th
    ntiles = n * nht
    m_tile = th * w

    # ---- weight algebra: fold nearest-x2 upsample into the 3x3 conv (tiny, XLA) ----
    A = jnp.array([[[1., 0., 0.], [0., 1., 1.], [0., 0., 0.]],
                   [[0., 0., 0.], [1., 1., 0.], [0., 0., 1.]]], dtype=jnp.float32)
    w3 = jnp.transpose(w_conv.astype(jnp.float32), (2, 3, 1, 0))       # [ku, lu, c, o]
    w_eff = jnp.einsum('pau,qbv,uvco->abcpqo', A, A, w3)               # [ky,kx,c,py,px,o]
    w_taps = w_eff.reshape(9, c_in, ceff)
    w_taps = jnp.pad(w_taps, ((0, 0), (0, 0), (0, ceff_pad - ceff))).astype(jnp.bfloat16)
    b_eff = jnp.pad(jnp.tile(b_conv.astype(jnp.float32), 4),
                    (0, ceff_pad - ceff)).reshape(1, ceff_pad)

    # ---- input layout: NHWC bf16, spatial pad, overlapping (th+2)-row halo slabs ----
    # One fused XLA pass (transpose + cast + pad + row gather); halo duplication adds
    # only ~2/th extra bytes vs the raw input (vs 9x for the old im2col).
    x_nhwc = jnp.transpose(x_nchw, (0, 2, 3, 1)).astype(jnp.bfloat16)   # [N, H, W, C]
    xp = jnp.pad(x_nhwc, ((0, 0), (1, 1), (1, 1), (0, 0)))              # [N, H+2, W+2, C]
    row_idx = jnp.arange(nht)[:, None] * th + jnp.arange(th + 2)[None, :]
    x_tiles = xp[:, row_idx].reshape(ntiles, th + 2, w + 2, c_in)       # halo slabs

    # Resident operands: constant index_map; single-buffer them to save VMEM at large
    # C_in (the review's v7x item).  Fallback path uses plain (double-buffered) specs.
    if single_buffer_resident:
        w_spec = pl.BlockSpec((9, c_in, ceff_pad), lambda i: (0, 0, 0),
                              pipeline_mode=pl.Buffered(1))
        b_spec = pl.BlockSpec((1, ceff_pad), lambda i: (0, 0),
                              pipeline_mode=pl.Buffered(1))
    else:
        w_spec = pl.BlockSpec((9, c_in, ceff_pad), lambda i: (0, 0, 0))
        b_spec = pl.BlockSpec((1, ceff_pad), lambda i: (0, 0))

    flops = 2 * n * h * w * 9 * c_in * ceff_pad
    bytes_accessed = (x_tiles.size * 2 + w_taps.size * 2 + b_eff.size * 4
                      + ntiles * m_tile * ceff_pad * 2 + ntiles * 2 * ceff_pad * 4)

    y, stats = pl.pallas_call(
        functools.partial(_upconv_conv_stats_kernel, th=th, w_img=w, c_in=c_in,
                          ceff_pad=ceff_pad),
        grid=(ntiles,),
        in_specs=[
            pl.BlockSpec((1, th + 2, w + 2, c_in), lambda i: (i, 0, 0, 0)),  # halo slabs
            w_spec,                                                           # resident
            b_spec,                                                           # resident
        ],
        out_specs=(
            pl.BlockSpec((1, m_tile, ceff_pad), lambda i: (i, 0, 0)),  # y (bf16)
            pl.BlockSpec((1, 2, ceff_pad), lambda i: (i, 0, 0)),       # BN partials
        ),
        out_shape=(
            jax.ShapeDtypeStruct((ntiles, m_tile, ceff_pad), jnp.bfloat16),
            jax.ShapeDtypeStruct((ntiles, 2, ceff_pad), jnp.float32),
        ),
        compiler_params=pltpu.CompilerParams(
            dimension_semantics=("parallel",),         # megacore-shardable on v7x
            vmem_limit_bytes=vmem_limit),
        cost_estimate=pl.CostEstimate(flops=flops, transcendentals=0,
                                      bytes_accessed=bytes_accessed),
    )(x_tiles, w_taps, b_eff)

    # ---- tiny BN reduction (per-channel) + fused XLA epilogue -----------------------
    s = stats[..., :ceff]
    sum_c = jnp.sum(s[:, 0, :], axis=0).reshape(4, c_out).sum(axis=0)   # pre-bias sums
    sq_c = jnp.sum(s[:, 1, :], axis=0).reshape(4, c_out).sum(axis=0)
    count = jnp.float32(n * ho * wo)                   # N * 2H * 2W output pixels
    mu0 = sum_c / count                                # E[y - b] per channel
    var_c = jnp.maximum(sq_c / count - mu0 * mu0, 0.0)  # biased (training-mode) variance
    mean_c = mu0 + b_conv.astype(jnp.float32)
    inv_std = lax.rsqrt(var_c + BN_EPS)
    scale_c = gamma.astype(jnp.float32) * inv_std
    shift_c = beta.astype(jnp.float32) - mean_c * scale_c
    scale6 = jnp.tile(scale_c, 4).reshape(1, 1, 1, 2, 2, c_out)
    shift6 = jnp.tile(shift_c, 4).reshape(1, 1, 1, 2, 2, c_out)

    # Affine + ReLU fused by XLA with the depth-to-space shuffle and the NCHW transpose:
    # one pass over the bf16 y, one write of the final f32 output.
    y6 = y[..., :ceff].reshape(n, h, w, 2, 2, c_out).astype(jnp.float32)
    out = jnp.maximum(y6 * scale6 + shift6, 0.0)
    out = jnp.transpose(out, (0, 5, 1, 3, 2, 4)).reshape(n, c_out, ho, wo)
    return out


def up_conv_forward(x_nchw, w_conv, b_conv, gamma, beta, th=None):
    """x: [N, C_in, H, W]; w_conv: [C_out, C_in, 3, 3]; returns [N, C_out, 2H, 2W]."""
    n, c_in, h, w = x_nchw.shape
    c_out = w_conv.shape[0]
    ceff_pad = _round_up(4 * c_out, 128)
    auto_th, vmem_limit = _pick_tiling(n, h, w, c_in, ceff_pad)
    if th is None:
        th = auto_th
    if h % th != 0:
        raise ValueError(f"row tile th={th} must divide H={h}")
    kwargs = dict(th=int(th), vmem_limit=int(vmem_limit))
    try:
        return _up_conv_impl(x_nchw, w_conv, b_conv, gamma, beta,
                             single_buffer_resident=True, **kwargs)
    except Exception:
        # pl.Buffered(1) unavailable/rejected on this jax/libtpu: fall back to the
        # default double-buffered resident specs (same semantics, a bit more VMEM).
        return _up_conv_impl(x_nchw, w_conv, b_conv, gamma, beta,
                             single_buffer_resident=False, **kwargs)


def _reference_forward(x_nchw, w_conv, b_conv, gamma, beta):
    """Pure-JAX reference matching PyTorch up_conv.forward (training-mode BN)."""
    x_up = jnp.repeat(jnp.repeat(x_nchw, 2, axis=2), 2, axis=3)
    y = lax.conv_general_dilated(
        x_up, w_conv, window_strides=(1, 1), padding=((1, 1), (1, 1)),
        dimension_numbers=("NCHW", "OIHW", "NCHW"))
    y = y + b_conv.reshape(1, -1, 1, 1)
    mean = jnp.mean(y, axis=(0, 2, 3), keepdims=True)
    var = jnp.mean((y - mean) ** 2, axis=(0, 2, 3), keepdims=True)
    y = (y - mean) / jnp.sqrt(var + BN_EPS)
    y = y * gamma.reshape(1, -1, 1, 1) + beta.reshape(1, -1, 1, 1)
    return jnp.maximum(y, 0.0)


if __name__ == "__main__":
    N, C_IN, C_OUT, H, W = 2, 4, 8, 16, 16

    key = jax.random.PRNGKey(0)
    kx, kw, kb, kg, kbeta = jax.random.split(key, 5)

    x = jax.random.normal(kx, (N, C_IN, H, W), dtype=jnp.float32)
    # Deterministic synthetic parameters (shapes match nn.Conv2d / nn.BatchNorm2d).
    w_conv = jax.random.normal(kw, (C_OUT, C_IN, 3, 3), dtype=jnp.float32) * 0.1
    b_conv = jax.random.normal(kb, (C_OUT,), dtype=jnp.float32) * 0.1
    gamma = 1.0 + 0.1 * jax.random.normal(kg, (C_OUT,), dtype=jnp.float32)
    beta = 0.1 * jax.random.normal(kbeta, (C_OUT,), dtype=jnp.float32)

    ref = jax.block_until_ready(_reference_forward(x, w_conv, b_conv, gamma, beta))

    # Auto-tiled path: TH picked from the hardware VMEM budget (TH=H here).
    out = jax.block_until_ready(up_conv_forward(x, w_conv, b_conv, gamma, beta))
    assert out.shape == (N, C_OUT, 2 * H, 2 * W), out.shape
    # bf16 MXU operands + bf16 intermediate y -> slightly loose tolerance.
    assert jnp.allclose(out, ref, rtol=2e-2, atol=2e-2), float(jnp.max(jnp.abs(out - ref)))

    # Forced multi-tile path: TH=8 -> 4 grid steps, exercising the halo row slabs and
    # the cross-tile BatchNorm reduction.
    out2 = jax.block_until_ready(up_conv_forward(x, w_conv, b_conv, gamma, beta, th=8))
    assert jnp.allclose(out2, ref, rtol=2e-2, atol=2e-2), float(jnp.max(jnp.abs(out2 - ref)))

    print("KERNEL_OK")
</pallas_src>

<mosaic_0001>
module attributes {stable_mosaic.version = 11 : i64} {
  func.func @_upconv_conv_stats_kernel(%arg0: i32, %arg1: memref<1x18x18x4xbf16, #tpu.memory_space<vmem>>, %arg2: memref<9x4x128xbf16, #tpu.memory_space<vmem>>, %arg3: memref<1x128xf32, #tpu.memory_space<vmem>>, %arg4: memref<1x256x128xbf16, #tpu.memory_space<vmem>>, %arg5: memref<1x2x128xf32, #tpu.memory_space<vmem>>) attributes {dimension_semantics = [#tpu.dimension_semantics<parallel>], iteration_bounds = array<i64: 2>, scalar_prefetch = 0 : i64, scratch_operands = 0 : i64, tpu.core_type = #tpu.core_type<tc>, window_params = [{transform_indices = @transform_0, window_bounds = array<i64: 1, 18, 18, 4>}, {pipeline_mode = #tpu.pipeline_mode<synchronous>, transform_indices = @transform_1, window_bounds = array<i64: 9, 4, 128>}, {pipeline_mode = #tpu.pipeline_mode<synchronous>, transform_indices = @transform_2, window_bounds = array<i64: 1, 128>}, {transform_indices = @transform_3, window_bounds = array<i64: 1, 256, 128>}, {transform_indices = @transform_4, window_bounds = array<i64: 1, 2, 128>}]} {
    %cst = arith.constant 0.000000e+00 : f32
    %0 = vector.broadcast %cst : f32 to vector<256x128xf32>
    %c0 = arith.constant 0 : index
    %c0_0 = arith.constant 0 : index
    %c0_1 = arith.constant 0 : index
    %c0_2 = arith.constant 0 : index
    %1 = vector.load %arg1[%c0, %c0_0, %c0_1, %c0_2] : memref<1x18x18x4xbf16, #tpu.memory_space<vmem>>, vector<1x16x16x4xbf16>
    %2 = vector.shape_cast %1 : vector<1x16x16x4xbf16> to vector<16x16x4xbf16>
    %3 = vector.shape_cast %2 : vector<16x16x4xbf16> to vector<256x4xbf16>
    %c0_3 = arith.constant 0 : index
    %c0_4 = arith.constant 0 : index
    %c0_5 = arith.constant 0 : index
    %4 = vector.load %arg2[%c0_3, %c0_4, %c0_5] : memref<9x4x128xbf16, #tpu.memory_space<vmem>>, vector<1x4x128xbf16>
    %5 = vector.shape_cast %4 : vector<1x4x128xbf16> to vector<4x128xbf16>
    %cst_6 = arith.constant dense<0.000000e+00> : vector<256x128xf32>
    %6 = tpu.matmul %3, %5, %cst_6 {dimension_numbers = #tpu.dot_dimension_numbers<[1], [0], [0], [1], [0, 0, 1, 1], [], []>} : vector<256x4xbf16>, vector<4x128xbf16>, vector<256x128xf32> -> vector<256x128xf32>
    %7 = arith.addf %0, %6 : vector<256x128xf32>
    %c0_7 = arith.constant 0 : index
    %c0_8 = arith.constant 0 : index
    %c1 = arith.constant 1 : index
    %c0_9 = arith.constant 0 : index
    %8 = vector.load %arg1[%c0_7, %c0_8, %c1, %c0_9] : memref<1x18x18x4xbf16, #tpu.memory_space<vmem>>, vector<1x16x16x4xbf16>
    %9 = vector.shape_cast %8 : vector<1x16x16x4xbf16> to vector<16x16x4xbf16>
    %10 = vector.shape_cast %9 : vector<16x16x4xbf16> to vector<256x4xbf16>
    %c1_10 = arith.constant 1 : index
    %c0_11 = arith.constant 0 : index
    %c0_12 = arith.constant 0 : index
    %11 = vector.load %arg2[%c1_10, %c0_11, %c0_12] : memref<9x4x128xbf16, #tpu.memory_space<vmem>>, vector<1x4x128xbf16>
    %12 = vector.shape_cast %11 : vector<1x4x128xbf16> to vector<4x128xbf16>
    %cst_13 = arith.constant dense<0.000000e+00> : vector<256x128xf32>
    %13 = tpu.matmul %10, %12, %cst_13 {dimension_numbers = #tpu.dot_dimension_numbers<[1], [0], [0], [1], [0, 0, 1, 1], [], []>} : vector<256x4xbf16>, vector<4x128xbf16>, vector<256x128xf32> -> vector<256x128xf32>
    %14 = arith.addf %7, %13 : vector<256x128xf32>
    %c0_14 = arith.constant 0 : index
    %c0_15 = arith.constant 0 : index
    %c2 = arith.constant 2 : index
    %c0_16 = arith.constant 0 : index
    %15 = vector.load %arg1[%c0_14, %c0_15, %c2, %c0_16] : memref<1x18x18x4xbf16, #tpu.memory_space<vmem>>, vector<1x16x16x4xbf16>
    %16 = vector.shape_cast %15 : vector<1x16x16x4xbf16> to vector<16x16x4xbf16>
    %17 = vector.shape_cast %16 : vector<16x16x4xbf16> to vector<256x4xbf16>
    %c2_17 = arith.constant 2 : index
    %c0_18 = arith.constant 0 : index
    %c0_19 = arith.constant 0 : index
    %18 = vector.load %arg2[%c2_17, %c0_18, %c0_19] : memref<9x4x128xbf16, #tpu.memory_space<vmem>>, vector<1x4x128xbf16>
    %19 = vector.shape_cast %18 : vector<1x4x128xbf16> to vector<4x128xbf16>
    %cst_20 = arith.constant dense<0.000000e+00> : vector<256x128xf32>
    %20 = tpu.matmul %17, %19, %cst_20 {dimension_numbers = #tpu.dot_dimension_numbers<[1], [0], [0], [1], [0, 0, 1, 1], [], []>} : vector<256x4xbf16>, vector<4x128xbf16>, vector<256x128xf32> -> vector<256x128xf32>
    %21 = arith.addf %14, %20 : vector<256x128xf32>
    %c0_21 = arith.constant 0 : index
    %c1_22 = arith.constant 1 : index
    %c0_23 = arith.constant 0 : index
    %c0_24 = arith.constant 0 : index
    %22 = vector.load %arg1[%c0_21, %c1_22, %c0_23, %c0_24] : memref<1x18x18x4xbf16, #tpu.memory_space<vmem>>, vector<1x16x16x4xbf16>
    %23 = vector.shape_cast %22 : vector<1x16x16x4xbf16> to vector<16x16x4xbf16>
    %24 = vector.shape_cast %23 : vector<16x16x4xbf16> to vector<256x4xbf16>
    %c3 = arith.constant 3 : index
    %c0_25 = arith.constant 0 : index
    %c0_26 = arith.constant 0 : index
    %25 = vector.load %arg2[%c3, %c0_25, %c0_26] : memref<9x4x128xbf16, #tpu.memory_space<vmem>>, vector<1x4x128xbf16>
    %26 = vector.shape_cast %25 : vector<1x4x128xbf16> to vector<4x128xbf16>
    %cst_27 = arith.constant dense<0.000000e+00> : vector<256x128xf32>
    %27 = tpu.matmul %24, %26, %cst_27 {dimension_numbers = #tpu.dot_dimension_numbers<[1], [0], [0], [1], [0, 0, 1, 1], [], []>} : vector<256x4xbf16>, vector<4x128xbf16>, vector<256x128xf32> -> vector<256x128xf32>
    %28 = arith.addf %21, %27 : vector<256x128xf32>
    %c0_28 = arith.constant 0 : index
    %c1_29 = arith.constant 1 : index
    %c1_30 = arith.constant 1 : index
    %c0_31 = arith.constant 0 : index
    %29 = vector.load %arg1[%c0_28, %c1_29, %c1_30, %c0_31] : memref<1x18x18x4xbf16, #tpu.memory_space<vmem>>, vector<1x16x16x4xbf16>
    %30 = vector.shape_cast %29 : vector<1x16x16x4xbf16> to vector<16x16x4xbf16>
    %31 = vector.shape_cast %30 : vector<16x16x4xbf16> to vector<256x4xbf16>
    %c4 = arith.constant 4 : index
    %c0_32 = arith.constant 0 : index
    %c0_33 = arith.constant 0 : index
    %32 = vector.load %arg2[%c4, %c0_32, %c0_33] : memref<9x4x128xbf16, #tpu.memory_space<vmem>>, vector<1x4x128xbf16>
    %33 = vector.shape_cast %32 : vector<1x4x128xbf16> to vector<4x128xbf16>
    %cst_34 = arith.constant dense<0.000000e+00> : vector<256x128xf32>
    %34 = tpu.matmul %31, %33, %cst_34 {dimension_numbers = #tpu.dot_dimension_numbers<[1], [0], [0], [1], [0, 0, 1, 1], [], []>} : vector<256x4xbf16>, vector<4x128xbf16>, vector<256x128xf32> -> vector<256x128xf32>
    %35 = arith.addf %28, %34 : vector<256x128xf32>
    %c0_35 = arith.constant 0 : index
    %c1_36 = arith.constant 1 : index
    %c2_37 = arith.constant 2 : index
    %c0_38 = arith.constant 0 : index
    %36 = vector.load %arg1[%c0_35, %c1_36, %c2_37, %c0_38] : memref<1x18x18x4xbf16, #tpu.memory_space<vmem>>, vector<1x16x16x4xbf16>
    %37 = vector.shape_cast %36 : vector<1x16x16x4xbf16> to vector<16x16x4xbf16>
    %38 = vector.shape_cast %37 : vector<16x16x4xbf16> to vector<256x4xbf16>
    %c5 = arith.constant 5 : index
    %c0_39 = arith.constant 0 : index
    %c0_40 = arith.constant 0 : index
    %39 = vector.load %arg2[%c5, %c0_39, %c0_40] : memref<9x4x128xbf16, #tpu.memory_space<vmem>>, vector<1x4x128xbf16>
    %40 = vector.shape_cast %39 : vector<1x4x128xbf16> to vector<4x128xbf16>
    %cst_41 = arith.constant dense<0.000000e+00> : vector<256x128xf32>
    %41 = tpu.matmul %38, %40, %cst_41 {dimension_numbers = #tpu.dot_dimension_numbers<[1], [0], [0], [1], [0, 0, 1, 1], [], []>} : vector<256x4xbf16>, vector<4x128xbf16>, vector<256x128xf32> -> vector<256x128xf32>
    %42 = arith.addf %35, %41 : vector<256x128xf32>
    %c0_42 = arith.constant 0 : index
    %c2_43 = arith.constant 2 : index
    %c0_44 = arith.constant 0 : index
    %c0_45 = arith.constant 0 : index
    %43 = vector.load %arg1[%c0_42, %c2_43, %c0_44, %c0_45] : memref<1x18x18x4xbf16, #tpu.memory_space<vmem>>, vector<1x16x16x4xbf16>
    %44 = vector.shape_cast %43 : vector<1x16x16x4xbf16> to vector<16x16x4xbf16>
    %45 = vector.shape_cast %44 : vector<16x16x4xbf16> to vector<256x4xbf16>
    %c6 = arith.constant 6 : index
    %c0_46 = arith.constant 0 : index
    %c0_47 = arith.constant 0 : index
    %46 = vector.load %arg2[%c6, %c0_46, %c0_47] : memref<9x4x128xbf16, #tpu.memory_space<vmem>>, vector<1x4x128xbf16>
    %47 = vector.shape_cast %46 : vector<1x4x128xbf16> to vector<4x128xbf16>
    %cst_48 = arith.constant dense<0.000000e+00> : vector<256x128xf32>
    %48 = tpu.matmul %45, %47, %cst_48 {dimension_numbers = #tpu.dot_dimension_numbers<[1], [0], [0], [1], [0, 0, 1, 1], [], []>} : vector<256x4xbf16>, vector<4x128xbf16>, vector<256x128xf32> -> vector<256x128xf32>
    %49 = arith.addf %42, %48 : vector<256x128xf32>
    %c0_49 = arith.constant 0 : index
    %c2_50 = arith.constant 2 : index
    %c1_51 = arith.constant 1 : index
    %c0_52 = arith.constant 0 : index
    %50 = vector.load %arg1[%c0_49, %c2_50, %c1_51, %c0_52] : memref<1x18x18x4xbf16, #tpu.memory_space<vmem>>, vector<1x16x16x4xbf16>
    %51 = vector.shape_cast %50 : vector<1x16x16x4xbf16> to vector<16x16x4xbf16>
    %52 = vector.shape_cast %51 : vector<16x16x4xbf16> to vector<256x4xbf16>
    %c7 = arith.constant 7 : index
    %c0_53 = arith.constant 0 : index
    %c0_54 = arith.constant 0 : index
    %53 = vector.load %arg2[%c7, %c0_53, %c0_54] : memref<9x4x128xbf16, #tpu.memory_space<vmem>>, vector<1x4x128xbf16>
    %54 = vector.shape_cast %53 : vector<1x4x128xbf16> to vector<4x128xbf16>
    %cst_55 = arith.constant dense<0.000000e+00> : vector<256x128xf32>
    %55 = tpu.matmul %52, %54, %cst_55 {dimension_numbers = #tpu.dot_dimension_numbers<[1], [0], [0], [1], [0, 0, 1, 1], [], []>} : vector<256x4xbf16>, vector<4x128xbf16>, vector<256x128xf32> -> vector<256x128xf32>
    %56 = arith.addf %49, %55 : vector<256x128xf32>
    %c0_56 = arith.constant 0 : index
    %c2_57 = arith.constant 2 : index
    %c2_58 = arith.constant 2 : index
    %c0_59 = arith.constant 0 : index
    %57 = vector.load %arg1[%c0_56, %c2_57, %c2_58, %c0_59] : memref<1x18x18x4xbf16, #tpu.memory_space<vmem>>, vector<1x16x16x4xbf16>
    %58 = vector.shape_cast %57 : vector<1x16x16x4xbf16> to vector<16x16x4xbf16>
    %59 = vector.shape_cast %58 : vector<16x16x4xbf16> to vector<256x4xbf16>
    %c8 = arith.constant 8 : index
    %c0_60 = arith.constant 0 : index
    %c0_61 = arith.constant 0 : index
    %60 = vector.load %arg2[%c8, %c0_60, %c0_61] : memref<9x4x128xbf16, #tpu.memory_space<vmem>>, vector<1x4x128xbf16>
    %61 = vector.shape_cast %60 : vector<1x4x128xbf16> to vector<4x128xbf16>
    %cst_62 = arith.constant dense<0.000000e+00> : vector<256x128xf32>
    %62 = tpu.matmul %59, %61, %cst_62 {dimension_numbers = #tpu.dot_dimension_numbers<[1], [0], [0], [1], [0, 0, 1, 1], [], []>} : vector<256x4xbf16>, vector<4x128xbf16>, vector<256x128xf32> -> vector<256x128xf32>
    %63 = arith.addf %56, %62 : vector<256x128xf32>
    %cst_63 = arith.constant dense<0.000000e+00> : vector<128xf32>
    %64 = vector.multi_reduction <add>, %63, %cst_63 [0] : vector<256x128xf32> to vector<128xf32>
    %65 = vector.shape_cast %64 : vector<128xf32> to vector<1x128xf32>
    %66 = arith.mulf %63, %63 : vector<256x128xf32>
    %cst_64 = arith.constant dense<0.000000e+00> : vector<128xf32>
    %67 = vector.multi_reduction <add>, %66, %cst_64 [0] : vector<256x128xf32> to vector<128xf32>
    %68 = vector.shape_cast %67 : vector<128xf32> to vector<1x128xf32>
    %69 = tpu.concatenate %65, %68 in 0 : vector<1x128xf32>, vector<1x128xf32> -> vector<2x128xf32>
    %c0_65 = arith.constant 0 : index
    %c0_66 = arith.constant 0 : index
    %c0_67 = arith.constant 0 : index
    %70 = vector.load %arg5[%c0_65, %c0_66, %c0_67] : memref<1x2x128xf32, #tpu.memory_space<vmem>>, vector<1x2x128xf32>
    %71 = vector.shape_cast %70 : vector<1x2x128xf32> to vector<2x128xf32>
    %72 = vector.shape_cast %69 : vector<2x128xf32> to vector<1x2x128xf32>
    tpu.vector_store %arg5[%c0_65, %c0_66, %c0_67], %72 {strides = array<i32>} : memref<1x2x128xf32, #tpu.memory_space<vmem>>, vector<1x2x128xf32>,
    %c0_68 = arith.constant 0 : index
    %c0_69 = arith.constant 0 : index
    %73 = vector.load %arg3[%c0_68, %c0_69] : memref<1x128xf32, #tpu.memory_space<vmem>>, vector<1x128xf32>
    %74 = vector.broadcast %73 : vector<1x128xf32> to vector<256x128xf32>
    %75 = arith.addf %63, %74 : vector<256x128xf32>
    %76 = arith.truncf %75 : vector<256x128xf32> to vector<256x128xbf16>
    %c0_70 = arith.constant 0 : index
    %c0_71 = arith.constant 0 : index
    %c0_72 = arith.constant 0 : index
    %77 = vector.load %arg4[%c0_70, %c0_71, %c0_72] : memref<1x256x128xbf16, #tpu.memory_space<vmem>>, vector<1x256x128xbf16>
    %78 = vector.shape_cast %77 : vector<1x256x128xbf16> to vector<256x128xbf16>
    %79 = vector.shape_cast %76 : vector<256x128xbf16> to vector<1x256x128xbf16>
    tpu.vector_store %arg4[%c0_70, %c0_71, %c0_72], %79 {strides = array<i32>} : memref<1x256x128xbf16, #tpu.memory_space<vmem>>, vector<1x256x128xbf16>,
    return
  }
  func.func @transform_0(%arg0: i32) -> (i32, i32, i32, i32) {
    %c0_i32 = arith.constant 0 : i32
    %c0_i32_0 = arith.constant 0 : i32
    %c0_i32_1 = arith.constant 0 : i32
    %c0_i32_2 = arith.constant 0 : i32
    return %arg0, %c0_i32, %c0_i32_0, %c0_i32_1 : i32, i32, i32, i32
  }
  func.func @transform_1(%arg0: i32) -> (i32, i32, i32) {
    %c0_i32 = arith.constant 0 : i32
    %c0_i32_0 = arith.constant 0 : i32
    %c0_i32_1 = arith.constant 0 : i32
    %c0_i32_2 = arith.constant 0 : i32
    return %c0_i32, %c0_i32_0, %c0_i32_1 : i32, i32, i32
  }
  func.func @transform_2(%arg0: i32) -> (i32, i32) {
    %c0_i32 = arith.constant 0 : i32
    %c0_i32_0 = arith.constant 0 : i32
    %c0_i32_1 = arith.constant 0 : i32
    return %c0_i32, %c0_i32_0 : i32, i32
  }
  func.func @transform_3(%arg0: i32) -> (i32, i32, i32) {
    %c0_i32 = arith.constant 0 : i32
    %c0_i32_0 = arith.constant 0 : i32
    %c0_i32_1 = arith.constant 0 : i32
    return %arg0, %c0_i32, %c0_i32_0 : i32, i32, i32
  }
  func.func @transform_4(%arg0: i32) -> (i32, i32, i32) {
    %c0_i32 = arith.constant 0 : i32
    %c0_i32_0 = arith.constant 0 : i32
    %c0_i32_1 = arith.constant 0 : i32
    return %arg0, %c0_i32, %c0_i32_0 : i32, i32, i32
  }
}

module attributes {stable_mosaic.version = 11 : i64} {
  func.func @_upconv_conv_stats_kernel(%arg0: i32, %arg1: memref<1x18x18x4xbf16, #tpu.memory_space<vmem>>, %arg2: memref<9x4x128xbf16, #tpu.memory_space<vmem>>, %arg3: memref<1x128xf32, #tpu.memory_space<vmem>>, %arg4: memref<1x256x128xbf16, #tpu.memory_space<vmem>>, %arg5: memref<1x2x128xf32, #tpu.memory_space<vmem>>) attributes {dimension_semantics = [#tpu.dimension_semantics<parallel>], iteration_bounds = array<i64: 2>, scalar_prefetch = 0 : i64, scratch_operands = 0 : i64, tpu.core_type = #tpu.core_type<tc>, window_params = [{transform_indices = @transform_0, window_bounds = array<i64: 1, 18, 18, 4>}, {pipeline_mode = #tpu.pipeline_mode<synchronous>, transform_indices = @transform_1, window_bounds = array<i64: 9, 4, 128>}, {pipeline_mode = #tpu.pipeline_mode<synchronous>, transform_indices = @transform_2, window_bounds = array<i64: 1, 128>}, {transform_indices = @transform_3, window_bounds = array<i64: 1, 256, 128>}, {transform_indices = @transform_4, window_bounds = array<i64: 1, 2, 128>}]} {
    %cst = arith.constant 0.000000e+00 : f32
    %0 = vector.broadcast %cst : f32 to vector<256x128xf32>
    %c0 = arith.constant 0 : index
    %c0_0 = arith.constant 0 : index
    %c0_1 = arith.constant 0 : index
    %c0_2 = arith.constant 0 : index
    %1 = vector.load %arg1[%c0, %c0_0, %c0_1, %c0_2] : memref<1x18x18x4xbf16, #tpu.memory_space<vmem>>, vector<1x16x16x4xbf16>
    %2 = vector.shape_cast %1 : vector<1x16x16x4xbf16> to vector<16x16x4xbf16>
    %3 = vector.shape_cast %2 : vector<16x16x4xbf16> to vector<256x4xbf16>
    %c0_3 = arith.constant 0 : index
    %c0_4 = arith.constant 0 : index
    %c0_5 = arith.constant 0 : index
    %4 = vector.load %arg2[%c0_3, %c0_4, %c0_5] : memref<9x4x128xbf16, #tpu.memory_space<vmem>>, vector<1x4x128xbf16>
    %5 = vector.shape_cast %4 : vector<1x4x128xbf16> to vector<4x128xbf16>
    %cst_6 = arith.constant dense<0.000000e+00> : vector<256x128xf32>
    %6 = tpu.matmul %3, %5, %cst_6 {dimension_numbers = #tpu.dot_dimension_numbers<[1], [0], [0], [1], [0, 0, 1, 1], [], []>} : vector<256x4xbf16>, vector<4x128xbf16>, vector<256x128xf32> -> vector<256x128xf32>
    %7 = arith.addf %0, %6 : vector<256x128xf32>
    %c0_7 = arith.constant 0 : index
    %c0_8 = arith.constant 0 : index
    %c1 = arith.constant 1 : index
    %c0_9 = arith.constant 0 : index
    %8 = vector.load %arg1[%c0_7, %c0_8, %c1, %c0_9] : memref<1x18x18x4xbf16, #tpu.memory_space<vmem>>, vector<1x16x16x4xbf16>
    %9 = vector.shape_cast %8 : vector<1x16x16x4xbf16> to vector<16x16x4xbf16>
    %10 = vector.shape_cast %9 : vector<16x16x4xbf16> to vector<256x4xbf16>
    %c1_10 = arith.constant 1 : index
    %c0_11 = arith.constant 0 : index
    %c0_12 = arith.constant 0 : index
    %11 = vector.load %arg2[%c1_10, %c0_11, %c0_12] : memref<9x4x128xbf16, #tpu.memory_space<vmem>>, vector<1x4x128xbf16>
    %12 = vector.shape_cast %11 : vector<1x4x128xbf16> to vector<4x128xbf16>
    %cst_13 = arith.constant dense<0.000000e+00> : vector<256x128xf32>
    %13 = tpu.matmul %10, %12, %cst_13 {dimension_numbers = #tpu.dot_dimension_numbers<[1], [0], [0], [1], [0, 0, 1, 1], [], []>} : vector<256x4xbf16>, vector<4x128xbf16>, vector<256x128xf32> -> vector<256x128xf32>
    %14 = arith.addf %7, %13 : vector<256x128xf32>
    %c0_14 = arith.constant 0 : index
    %c0_15 = arith.constant 0 : index
    %c2 = arith.constant 2 : index
    %c0_16 = arith.constant 0 : index
    %15 = vector.load %arg1[%c0_14, %c0_15, %c2, %c0_16] : memref<1x18x18x4xbf16, #tpu.memory_space<vmem>>, vector<1x16x16x4xbf16>
    %16 = vector.shape_cast %15 : vector<1x16x16x4xbf16> to vector<16x16x4xbf16>
    %17 = vector.shape_cast %16 : vector<16x16x4xbf16> to vector<256x4xbf16>
    %c2_17 = arith.constant 2 : index
    %c0_18 = arith.constant 0 : index
    %c0_19 = arith.constant 0 : index
    %18 = vector.load %arg2[%c2_17, %c0_18, %c0_19] : memref<9x4x128xbf16, #tpu.memory_space<vmem>>, vector<1x4x128xbf16>
    %19 = vector.shape_cast %18 : vector<1x4x128xbf16> to vector<4x128xbf16>
    %cst_20 = arith.constant dense<0.000000e+00> : vector<256x128xf32>
    %20 = tpu.matmul %17, %19, %cst_20 {dimension_numbers = #tpu.dot_dimension_numbers<[1], [0], [0], [1], [0, 0, 1, 1], [], []>} : vector<256x4xbf16>, vector<4x128xbf16>, vector<256x128xf32> -> vector<256x128xf32>
    %21 = arith.addf %14, %20 : vector<256x128xf32>
    %c0_21 = arith.constant 0 : index
    %c1_22 = arith.constant 1 : index
    %c0_23 = arith.constant 0 : index
    %c0_24 = arith.constant 0 : index
    %22 = vector.load %arg1[%c0_21, %c1_22, %c0_23, %c0_24] : memref<1x18x18x4xbf16, #tpu.memory_space<vmem>>, vector<1x16x16x4xbf16>
    %23 = vector.shape_cast %22 : vector<1x16x16x4xbf16> to vector<16x16x4xbf16>
    %24 = vector.shape_cast %23 : vector<16x16x4xbf16> to vector<256x4xbf16>
    %c3 = arith.constant 3 : index
    %c0_25 = arith.constant 0 : index
    %c0_26 = arith.constant 0 : index
    %25 = vector.load %arg2[%c3, %c0_25, %c0_26] : memref<9x4x128xbf16, #tpu.memory_space<vmem>>, vector<1x4x128xbf16>
    %26 = vector.shape_cast %25 : vector<1x4x128xbf16> to vector<4x128xbf16>
    %cst_27 = arith.constant dense<0.000000e+00> : vector<256x128xf32>
    %27 = tpu.matmul %24, %26, %cst_27 {dimension_numbers = #tpu.dot_dimension_numbers<[1], [0], [0], [1], [0, 0, 1, 1], [], []>} : vector<256x4xbf16>, vector<4x128xbf16>, vector<256x128xf32> -> vector<256x128xf32>
    %28 = arith.addf %21, %27 : vector<256x128xf32>
    %c0_28 = arith.constant 0 : index
    %c1_29 = arith.constant 1 : index
    %c1_30 = arith.constant 1 : index
    %c0_31 = arith.constant 0 : index
    %29 = vector.load %arg1[%c0_28, %c1_29, %c1_30, %c0_31] : memref<1x18x18x4xbf16, #tpu.memory_space<vmem>>, vector<1x16x16x4xbf16>
    %30 = vector.shape_cast %29 : vector<1x16x16x4xbf16> to vector<16x16x4xbf16>
    %31 = vector.shape_cast %30 : vector<16x16x4xbf16> to vector<256x4xbf16>
    %c4 = arith.constant 4 : index
    %c0_32 = arith.constant 0 : index
    %c0_33 = arith.constant 0 : index
    %32 = vector.load %arg2[%c4, %c0_32, %c0_33] : memref<9x4x128xbf16, #tpu.memory_space<vmem>>, vector<1x4x128xbf16>
    %33 = vector.shape_cast %32 : vector<1x4x128xbf16> to vector<4x128xbf16>
    %cst_34 = arith.constant dense<0.000000e+00> : vector<256x128xf32>
    %34 = tpu.matmul %31, %33, %cst_34 {dimension_numbers = #tpu.dot_dimension_numbers<[1], [0], [0], [1], [0, 0, 1, 1], [], []>} : vector<256x4xbf16>, vector<4x128xbf16>, vector<256x128xf32> -> vector<256x128xf32>
    %35 = arith.addf %28, %34 : vector<256x128xf32>
    %c0_35 = arith.constant 0 : index
    %c1_36 = arith.constant 1 : index
    %c2_37 = arith.constant 2 : index
    %c0_38 = arith.constant 0 : index
    %36 = vector.load %arg1[%c0_35, %c1_36, %c2_37, %c0_38] : memref<1x18x18x4xbf16, #tpu.memory_space<vmem>>, vector<1x16x16x4xbf16>
    %37 = vector.shape_cast %36 : vector<1x16x16x4xbf16> to vector<16x16x4xbf16>
    %38 = vector.shape_cast %37 : vector<16x16x4xbf16> to vector<256x4xbf16>
    %c5 = arith.constant 5 : index
    %c0_39 = arith.constant 0 : index
    %c0_40 = arith.constant 0 : index
    %39 = vector.load %arg2[%c5, %c0_39, %c0_40] : memref<9x4x128xbf16, #tpu.memory_space<vmem>>, vector<1x4x128xbf16>
    %40 = vector.shape_cast %39 : vector<1x4x128xbf16> to vector<4x128xbf16>
    %cst_41 = arith.constant dense<0.000000e+00> : vector<256x128xf32>
    %41 = tpu.matmul %38, %40, %cst_41 {dimension_numbers = #tpu.dot_dimension_numbers<[1], [0], [0], [1], [0, 0, 1, 1], [], []>} : vector<256x4xbf16>, vector<4x128xbf16>, vector<256x128xf32> -> vector<256x128xf32>
    %42 = arith.addf %35, %41 : vector<256x128xf32>
    %c0_42 = arith.constant 0 : index
    %c2_43 = arith.constant 2 : index
    %c0_44 = arith.constant 0 : index
    %c0_45 = arith.constant 0 : index
    %43 = vector.load %arg1[%c0_42, %c2_43, %c0_44, %c0_45] : memref<1x18x18x4xbf16, #tpu.memory_space<vmem>>, vector<1x16x16x4xbf16>
    %44 = vector.shape_cast %43 : vector<1x16x16x4xbf16> to vector<16x16x4xbf16>
    %45 = vector.shape_cast %44 : vector<16x16x4xbf16> to vector<256x4xbf16>
    %c6 = arith.constant 6 : index
    %c0_46 = arith.constant 0 : index
    %c0_47 = arith.constant 0 : index
    %46 = vector.load %arg2[%c6, %c0_46, %c0_47] : memref<9x4x128xbf16, #tpu.memory_space<vmem>>, vector<1x4x128xbf16>
    %47 = vector.shape_cast %46 : vector<1x4x128xbf16> to vector<4x128xbf16>
    %cst_48 = arith.constant dense<0.000000e+00> : vector<256x128xf32>
    %48 = tpu.matmul %45, %47, %cst_48 {dimension_numbers = #tpu.dot_dimension_numbers<[1], [0], [0], [1], [0, 0, 1, 1], [], []>} : vector<256x4xbf16>, vector<4x128xbf16>, vector<256x128xf32> -> vector<256x128xf32>
    %49 = arith.addf %42, %48 : vector<256x128xf32>
    %c0_49 = arith.constant 0 : index
    %c2_50 = arith.constant 2 : index
    %c1_51 = arith.constant 1 : index
    %c0_52 = arith.constant 0 : index
    %50 = vector.load %arg1[%c0_49, %c2_50, %c1_51, %c0_52] : memref<1x18x18x4xbf16, #tpu.memory_space<vmem>>, vector<1x16x16x4xbf16>
    %51 = vector.shape_cast %50 : vector<1x16x16x4xbf16> to vector<16x16x4xbf16>
    %52 = vector.shape_cast %51 : vector<16x16x4xbf16> to vector<256x4xbf16>
    %c7 = arith.constant 7 : index
    %c0_53 = arith.constant 0 : index
    %c0_54 = arith.constant 0 : index
    %53 = vector.load %arg2[%c7, %c0_53, %c0_54] : memref<9x4x128xbf16, #tpu.memory_space<vmem>>, vector<1x4x128xbf16>
    %54 = vector.shape_cast %53 : vector<1x4x128xbf16> to vector<4x128xbf16>
    %cst_55 = arith.constant dense<0.000000e+00> : vector<256x128xf32>
    %55 = tpu.matmul %52, %54, %cst_55 {dimension_numbers = #tpu.dot_dimension_numbers<[1], [0], [0], [1], [0, 0, 1, 1], [], []>} : vector<256x4xbf16>, vector<4x128xbf16>, vector<256x128xf32> -> vector<256x128xf32>
    %56 = arith.addf %49, %55 : vector<256x128xf32>
    %c0_56 = arith.constant 0 : index
    %c2_57 = arith.constant 2 : index
    %c2_58 = arith.constant 2 : index
    %c0_59 = arith.constant 0 : index
    %57 = vector.load %arg1[%c0_56, %c2_57, %c2_58, %c0_59] : memref<1x18x18x4xbf16, #tpu.memory_space<vmem>>, vector<1x16x16x4xbf16>
    %58 = vector.shape_cast %57 : vector<1x16x16x4xbf16> to vector<16x16x4xbf16>
    %59 = vector.shape_cast %58 : vector<16x16x4xbf16> to vector<256x4xbf16>
    %c8 = arith.constant 8 : index
    %c0_60 = arith.constant 0 : index
    %c0_61 = arith.constant 0 : index
    %60 = vector.load %arg2[%c8, %c0_60, %c0_61] : memref<9x4x128xbf16, #tpu.memory_space<vmem>>, vector<1x4x128xbf16>
    %61 = vector.shape_cast %60 : vector<1x4x128xbf16> to vector<4x128xbf16>
    %cst_62 = arith.constant dense<0.000000e+00> : vector<256x128xf32>
    %62 = tpu.matmul %59, %61, %cst_62 {dimension_numbers = #tpu.dot_dimension_numbers<[1], [0], [0], [1], [0, 0, 1, 1], [], []>} : vector<256x4xbf16>, vector<4x128xbf16>, vector<256x128xf32> -> vector<256x128xf32>
    %63 = arith.addf %56, %62 : vector<256x128xf32>
    %cst_63 = arith.constant dense<0.000000e+00> : vector<128xf32>
    %64 = vector.multi_reduction <add>, %63, %cst_63 [0] : vector<256x128xf32> to vector<128xf32>
    %65 = vector.shape_cast %64 : vector<128xf32> to vector<1x128xf32>
    %66 = arith.mulf %63, %63 : vector<256x128xf32>
    %cst_64 = arith.constant dense<0.000000e+00> : vector<128xf32>
    %67 = vector.multi_reduction <add>, %66, %cst_64 [0] : vector<256x128xf32> to vector<128xf32>
    %68 = vector.shape_cast %67 : vector<128xf32> to vector<1x128xf32>
    %69 = tpu.concatenate %65, %68 in 0 : vector<1x128xf32>, vector<1x128xf32> -> vector<2x128xf32>
    %c0_65 = arith.constant 0 : index
    %c0_66 = arith.constant 0 : index
    %c0_67 = arith.constant 0 : index
    %70 = vector.load %arg5[%c0_65, %c0_66, %c0_67] : memref<1x2x128xf32, #tpu.memory_space<vmem>>, vector<1x2x128xf32>
    %71 = vector.shape_cast %70 : vector<1x2x128xf32> to vector<2x128xf32>
    %72 = vector.shape_cast %69 : vector<2x128xf32> to vector<1x2x128xf32>
    tpu.vector_store %arg5[%c0_65, %c0_66, %c0_67], %72 {strides = array<i32>} : memref<1x2x128xf32, #tpu.memory_space<vmem>>, vector<1x2x128xf32>,
    %c0_68 = arith.constant 0 : index
    %c0_69 = arith.constant 0 : index
    %73 = vector.load %arg3[%c0_68, %c0_69] : memref<1x128xf32, #tpu.memory_space<vmem>>, vector<1x128xf32>
    %74 = vector.broadcast %73 : vector<1x128xf32> to vector<256x128xf32>
    %75 = arith.addf %63, %74 : vector<256x128xf32>
    %76 = arith.truncf %75 : vector<256x128xf32> to vector<256x128xbf16>
    %c0_70 = arith.constant 0 : index
    %c0_71 = arith.constant 0 : index
    %c0_72 = arith.constant 0 : index
    %77 = vector.load %arg4[%c0_70, %c0_71, %c0_72] : memref<1x256x128xbf16, #tpu.memory_space<vmem>>, vector<1x256x128xbf16>
    %78 = vector.shape_cast %77 : vector<1x256x128xbf16> to vector<256x128xbf16>
    %79 = vector.shape_cast %76 : vector<256x128xbf16> to vector<1x256x128xbf16>
    tpu.vector_store %arg4[%c0_70, %c0_71, %c0_72], %79 {strides = array<i32>} : memref<1x256x128xbf16, #tpu.memory_space<vmem>>, vector<1x256x128xbf16>,
    return
  }
  func.func @transform_0(%arg0: i32) -> (i32, i32, i32, i32) {
    %c0_i32 = arith.constant 0 : i32
    %c0_i32_0 = arith.constant 0 : i32
    %c0_i32_1 = arith.constant 0 : i32
    %c0_i32_2 = arith.constant 0 : i32
    return %arg0, %c0_i32, %c0_i32_0, %c0_i32_1 : i32, i32, i32, i32
  }
  func.func @transform_1(%arg0: i32) -> (i32, i32, i32) {
    %c0_i32 = arith.constant 0 : i32
    %c0_i32_0 = arith.constant 0 : i32
    %c0_i32_1 = arith.constant 0 : i32
    %c0_i32_2 = arith.constant 0 : i32
    return %c0_i32, %c0_i32_0, %c0_i32_1 : i32, i32, i32
  }
  func.func @transform_2(%arg0: i32) -> (i32, i32) {
    %c0_i32 = arith.constant 0 : i32
    %c0_i32_0 = arith.constant 0 : i32
    %c0_i32_1 = arith.constant 0 : i32
    return %c0_i32, %c0_i32_0 : i32, i32
  }
  func.func @transform_3(%arg0: i32) -> (i32, i32, i32) {
    %c0_i32 = arith.constant 0 : i32
    %c0_i32_0 = arith.constant 0 : i32
    %c0_i32_1 = arith.constant 0 : i32
    return %arg0, %c0_i32, %c0_i32_0 : i32, i32, i32
  }
  func.func @transform_4(%arg0: i32) -> (i32, i32, i32) {
    %c0_i32 = arith.constant 0 : i32
    %c0_i32_0 = arith.constant 0 : i32
    %c0_i32_1 = arith.constant 0 : i32
    return %arg0, %c0_i32, %c0_i32_0 : i32, i32, i32
  }
}

</mosaic_0001>

<llo_original>
// kernel: tile.19
$region0: #{tile.19}
  %s0 = inlined_call_operand.vmem [shape: f32[4,8], index: 0, kind: input, shape index: {}]
  %s1 = inlined_call_operand.vmem [shape: f32[32], index: 1, kind: output, shape index: {}]
  $region1: #{tile.19} parent=0
    #allocation0 [shape = 'u8[4096]{0}', space=vmem, size = 0x1000, scoped, tag = 'scoped mem for output reshape']
    #allocation1 [shape = 'u8[4096]{0}', space=vmem, size = 0x1000, scoped, tag = 'scoped mem for input reshape']
    %s3 = sshllo.u32 0, 4
    %v4 = vld [vmem:[%s0] sm:%s3]
    %5 = vst [vmem:[#allocation1] sm:%s3] %v4
    %v6 = vld [vmem:[#allocation1] sm:$0x1]
    %vm7 = vcmask 64512
    %8 = vst.msk [vmem:[#allocation0] sm:$0x1] %vm7, %v6
    %s9 = scalar_lea.vmem [#allocation1], 3
    %v10 = vld [vmem:[%s9] sm:$0x1]
    %11 = vrot.lane.b32.xlu0 %v10, 24
    %v12 = vpop.permute.xlu0 %11
    %vm13 = vcmask 261312
    %14 = vst.msk [vmem:[#allocation0] sm:$0x1] %vm13, %v12
    %s15 = scalar_lea.vmem [#allocation1], 2
    %v16 = vld [vmem:[%s15] sm:$0x1]
    %17 = vrot.lane.b32.xlu0 %v16, 16
    %v18 = vpop.permute.xlu0 %17
    %vm19 = vcmask 195712
    %20 = vst.msk [vmem:[#allocation0] sm:$0x1] %vm19, %v18
    %s21 = scalar_lea.vmem [#allocation1], 1
    %v22 = vld [vmem:[%s21] sm:$0x1]
    %23 = vrot.lane.b32.xlu0 %v22, 8
    %v24 = vpop.permute.xlu0 %23
    %vm25 = vcmask 130112
    %26 = vst.msk [vmem:[#allocation0] sm:$0x1] %vm25, %v24
    %s28 = sshllo.u32 0, 1
    %v30 = vld [vmem:[#allocation0] sm:%s28]
    %s31 = sshllo.u32 0, 1
    %32 = vst [vmem:[%s1] sm:%s31] %v30

// kernel: tile.18
$region0: #{tile.18}
  #allocation0 [shape = 's32[1]{0}', space=sflag, size = 0x4, scoped, tag = 'scoped memory for tile.18']
  %s0 = inlined_call_operand.vmem [shape: f32[8], index: 0, kind: input, shape index: {}]
  %s1 = inlined_call_operand.vmem [shape: f32[4,8], index: 1, kind: output, shape index: {}]
  // Predicated region
  $region2: #{tile.18} parent=0 // pred_check
    _
  $region3: #{tile.18} parent=0 // pred_check_branch
    %3 = sbr.rel (0) target = $region5
  $region4: #{tile.18} parent=0 // pred_region
    _
  $region5: #{tile.18} parent=0 // pred_fallthru
    _
  %v4 = vld [vmem:[%s0] ss:$0 sm:$0xff]
  %5 = vst [vmem:[%s1] sm:$0xf] %v4

// kernel: _up_conv_impl.1
$region0: #{_up_conv_impl.1}
  #allocation0 [shape = 'u32[]', space=smem, size = 0x4, offset = 0x4, fixed_abs, tag = 'smem constant byte address 0x4 - core index']
  #allocation1 [shape = 'u32[144,128]{1,0:T(1,128)}', space=vmem, size = 0x12000, scoped, tag = 'internal scratch']
  %s0 = inlined_call_operand.vmem [shape: bf16[2,18,18,4], index: 0, kind: input, shape index: {}]
  %s1 = inlined_call_operand.vmem [shape: bf16[9,4,128], index: 1, kind: input, shape index: {}]
  %s2 = inlined_call_operand.vmem [shape: f32[1,128], index: 2, kind: input, shape index: {}]
  %s3 = inlined_call_operand.vmem [shape: bf16[2,256,128], index: 3, kind: output, shape index: {0}]
  %s4 = inlined_call_operand.vmem [shape: f32[2,2,128], index: 4, kind: output, shape index: {1}]
  %5 = xla_tuple %s3, %s4
  %s6 = sld [smem:[#allocation0]]
  $region53: #{_up_conv_impl.1} parent=0
    _
  %s8 = ssub.s32 1, %s6
  %s9 = scalar_select 0, %s8, %s6
  loop: start=0, step=1, limit=4
  $region2: #{_up_conv_impl.1} parent=0 // loop_pre_header
    _
  $region3: #{_up_conv_impl.1} parent=0 // loop_header
    %s11 = sphi 0, %s15
    %p12 = scmp.ge.s32.totalorder %s11, 4
    %s21 = sphi 0, %s23
    %s24 = sphi 0, %s21
    %s25 = sphi 0, %s24
    %s41 = sphi 0, %s25
    %s45 = sphi 0, %s45
    %s47 = sphi 0, %s45
    %s48 = sphi 0, %s47
    %s62 = sphi 0, %s48
    %s66 = sphi 0, %s66
    %s68 = sphi 0, %s66
    %s69 = sphi 0, %s68
    %s83 = sphi 0, %s69
    %s89 = sphi 0, %s91
    %s92 = sphi 0, %s89
    %s93 = sphi 0, %s92
    %s109 = sphi 0, %s93
    %s115 = sphi 0, %s117
    %s118 = sphi 0, %s115
    %s119 = sphi 0, %s118
    %s135 = sphi 0, %s119
  $region4: #{_up_conv_impl.1} parent=0 // loop_header_branch
    %14 = sbr.rel (%p12) target = $region8
  $region5: #{_up_conv_impl.1} parent=0 // loop_body
    %s16 = ssub.s32 %s11, 1
    %s17 = ssub.s32 %s11, 2
    %s18 = sadd.s32 %s11, 1
    %s19 = ssub.s32 %s11, %s18
    %p20 = scmp.eq.s32.totalorder %s19, 0
    %s22 = sadd.s32 %s21, 1
    %s23 = scalar_select %p20, %s21, %s22
    %p26 = pneg %p20
    %p27 = scmp.eq.s32.totalorder %s11, 1
    %p28 = por %p26, %p27
    %p29 = scmp.ne.s32.totalorder %s21, %s24
    %p30 = scmp.eq.s32.totalorder %s11, 0
    %p31 = por %p29, %p30
    %p32 = scmp.ne.s32.totalorder %s21, %s24
    %p33 = scmp.eq.s32.totalorder %s16, 1
    %p34 = por %p32, %p33
    %p35 = scmp.ne.s32.totalorder %s24, %s25
    %p36 = scmp.eq.s32.totalorder %s16, 0
    %p37 = por %p35, %p36
    %p38 = scmp.ne.s32.totalorder %s24, %s25
    %p39 = scmp.eq.s32.totalorder %s17, 1
    %p40 = por %p38, %p39
    %p42 = scmp.ne.s32.totalorder %s25, %s41
    %p43 = scmp.eq.s32.totalorder %s17, 0
    %p44 = por %p42, %p43
    %s46 = sadd.s32 %s45, 1
    %p49 = scmp.eq.s32.totalorder %s11, 1
    %p50 = scmp.ne.s32.totalorder %s45, %s47
    %p51 = scmp.eq.s32.totalorder %s11, 0
    %p52 = por %p50, %p51
    %p53 = scmp.ne.s32.totalorder %s45, %s47
    %p54 = scmp.eq.s32.totalorder %s16, 1
    %p55 = por %p53, %p54
    %p56 = scmp.ne.s32.totalorder %s47, %s48
    %p57 = scmp.eq.s32.totalorder %s16, 0
    %p58 = por %p56, %p57
    %p59 = scmp.ne.s32.totalorder %s47, %s48
    %p60 = scmp.eq.s32.totalorder %s17, 1
    %p61 = por %p59, %p60
    %p63 = scmp.ne.s32.totalorder %s48, %s62
    %p64 = scmp.eq.s32.totalorder %s17, 0
    %p65 = por %p63, %p64
    %s67 = sadd.s32 %s66, 1
    %p70 = scmp.eq.s32.totalorder %s11, 1
    %p71 = scmp.ne.s32.totalorder %s66, %s68
    %p72 = scmp.eq.s32.totalorder %s11, 0
    %p73 = por %p71, %p72
    %p74 = scmp.ne.s32.totalorder %s66, %s68
    %p75 = scmp.eq.s32.totalorder %s16, 1
    %p76 = por %p74, %p75
    %p77 = scmp.ne.s32.totalorder %s68, %s69
    %p78 = scmp.eq.s32.totalorder %s16, 0
    %p79 = por %p77, %p78
    %p80 = scmp.ne.s32.totalorder %s68, %s69
    %p81 = scmp.eq.s32.totalorder %s17, 1
    %p82 = por %p80, %p81
    %p84 = scmp.ne.s32.totalorder %s69, %s83
    %p85 = scmp.eq.s32.totalorder %s17, 0
    %p86 = por %p84, %p85
    %s87 = ssub.s32 %s11, %s18
    %p88 = scmp.eq.s32.totalorder %s87, 0
    %s90 = sadd.s32 %s89, 1
    %s91 = scalar_select %p88, %s89, %s90
    %p94 = pneg %p88
    %p95 = scmp.eq.s32.totalorder %s11, 1
    %p96 = por %p94, %p95
    %p97 = scmp.ne.s32.totalorder %s89, %s92
    %p98 = scmp.eq.s32.totalorder %s11, 0
    %p99 = por %p97, %p98
    %p100 = scmp.ne.s32.totalorder %s89, %s92
    %p101 = scmp.eq.s32.totalorder %s16, 1
    %p102 = por %p100, %p101
    %p103 = scmp.ne.s32.totalorder %s92, %s93
    %p104 = scmp.eq.s32.totalorder %s16, 0
    %p105 = por %p103, %p104
    %p106 = scmp.ne.s32.totalorder %s92, %s93
    %p107 = scmp.eq.s32.totalorder %s17, 1
    %p108 = por %p106, %p107
    %p110 = scmp.ne.s32.totalorder %s93, %s109
    %p111 = scmp.eq.s32.totalorder %s17, 0
    %p112 = por %p110, %p111
    %s113 = ssub.s32 %s11, %s18
    %p114 = scmp.eq.s32.totalorder %s113, 0
    %s116 = sadd.s32 %s115, 1
    %s117 = scalar_select %p114, %s115, %s116
    %p120 = pneg %p114
    %p121 = scmp.eq.s32.totalorder %s11, 1
    %p122 = por %p120, %p121
    %p123 = scmp.ne.s32.totalorder %s115, %s118
    %p124 = scmp.eq.s32.totalorder %s11, 0
    %p125 = por %p123, %p124
    %p126 = scmp.ne.s32.totalorder %s115, %s118
    %p127 = scmp.eq.s32.totalorder %s16, 1
    %p128 = por %p126, %p127
    %p129 = scmp.ne.s32.totalorder %s118, %s119
    %p130 = scmp.eq.s32.totalorder %s16, 0
    %p131 = por %p129, %p130
    %p132 = scmp.ne.s32.totalorder %s118, %s119
    %p133 = scmp.eq.s32.totalorder %s17, 1
    %p134 = por %p132, %p133
    %p136 = scmp.ne.s32.totalorder %s119, %s135
    %p137 = scmp.eq.s32.totalorder %s17, 0
    %p138 = por %p136, %p137
    %p139 = scmp.le.s32.totalorder 1, %s11
    %p140 = scmp.lt.s32.totalorder %s11, 3
    %p141 = pnand %p139, %p140
    %p142 = pneg %p141
    // Predicated region
    $region9: #{_up_conv_impl.1} parent=5 // pred_check
      _
    $region10: #{_up_conv_impl.1} parent=5 // pred_check_branch
      %144 = sbr.rel (%p141) target = $region12
    $region11: #{_up_conv_impl.1} parent=5 // pred_region
      %s145 = ssub.s32 %s11, 1
      // Predicated region
      $region13: #{_up_conv_impl.1} parent=11 // pred_check
        %p146 = pneg %p58
      $region14: #{_up_conv_impl.1} parent=11 // pred_check_branch
        %148 = sbr.rel (%p146) target = $region16
      $region15: #{_up_conv_impl.1} parent=11 // pred_region
        _
      $region16: #{_up_conv_impl.1} parent=11 // pred_fallthru
        _
      // Predicated region
      $region17: #{_up_conv_impl.1} parent=11 // pred_check
        %p149 = pneg %p79
      $region18: #{_up_conv_impl.1} parent=11 // pred_check_branch
        %151 = sbr.rel (%p149) target = $region20
      $region19: #{_up_conv_impl.1} parent=11 // pred_region
        _
      $region20: #{_up_conv_impl.1} parent=11 // pred_fallthru
        _
    $region12: #{_up_conv_impl.1} parent=5 // pred_fallthru
      _
    %p152 = scmp.lt.s32.totalorder %s11, 2
    // Predicated region
    $region21: #{_up_conv_impl.1} parent=5 // pred_check
      %p153 = pneg %p152
    $region22: #{_up_conv_impl.1} parent=5 // pred_check_branch
      %155 = sbr.rel (%p153) target = $region24
    $region23: #{_up_conv_impl.1} parent=5 // pred_region
      // Predicated region
      $region25: #{_up_conv_impl.1} parent=23 // pred_check
        %p156 = pneg %p31
      $region26: #{_up_conv_impl.1} parent=23 // pred_check_branch
        %158 = sbr.rel (%p156) target = $region28
      $region27: #{_up_conv_impl.1} parent=23 // pred_region
        %p159 = scmp.lt.s32.totalorder %s11, 1
        %s160 = scalar_select %p159, %s11, 1
        %s161 = smul.addr %s160, 54
        %s162 = smul.addr %s161, 4
        %s163 = scalar_lea.vmem %s0, %s162
      $region28: #{_up_conv_impl.1} parent=23 // pred_fallthru
        _
    $region24: #{_up_conv_impl.1} parent=5 // pred_fallthru
      _
    %p164 = scmp.le.s32.totalorder 1, %s11
    %p165 = scmp.lt.s32.totalorder %s11, 3
    %p166 = pnand %p164, %p165
    %p167 = pneg %p166
    // Predicated region
    $region29: #{_up_conv_impl.1} parent=5 // pred_check
      _
    $region30: #{_up_conv_impl.1} parent=5 // pred_check_branch
      %169 = sbr.rel (%p166) target = $region32
    $region31: #{_up_conv_impl.1} parent=5 // pred_region
      %s170 = ssub.s32 %s11, 1
      %p171 = scmp.lt.s32.totalorder %s16, 1
      %s172 = scalar_select %p171, %s16, 1
      %s173 = smul.addr %s172, 54
      %s174 = smul.addr %s173, 4
      %s175 = scalar_lea.vmem %s0, %s174
      %p176 = pneg %p37
      %p177 = pneg %p34
      %p178 = pneg %p58
      %p179 = pneg %p55
      %p180 = pneg %p79
      %p181 = pneg %p76
      %p182 = pneg %p105
      %p183 = pneg %p102
      %p184 = scmp.lt.s32.totalorder %s16, 1
      %s185 = scalar_select %p184, %s16, 1
      %s186 = smul.addr %s185, 32
      %s187 = smul.addr %s186, 4
      %s188 = scalar_lea.vmem %s3, %s187
      %p189 = pneg %p131
      %p190 = pneg %p128
      %p191 = scmp.lt.s32.totalorder %s16, 1
      %s192 = scalar_select %p191, %s16, 1
      %s193 = smul.addr %s192, 2
      %s194 = scalar_lea.vmem %s4, %s193
      %p195 = scmp.lt.s32.totalorder %s16, 1
      %s196 = scalar_select %p195, %s16, 1
      %s197 = smul.addr %s196, 54
      %s198 = smul.addr %s197, 4
      %s199 = scalar_lea.vmem %s0, %s198
      %p200 = scmp.lt.s32.totalorder %s16, 1
      %s201 = scalar_select %p200, %s16, 1
      %s202 = smul.addr %s201, 32
      %s203 = smul.addr %s202, 4
      %s204 = scalar_lea.vmem %s3, %s203
      %p205 = scmp.lt.s32.totalorder %s16, 1
      %s206 = scalar_select %p205, %s16, 1
      %s207 = smul.addr %s206, 2
      %s208 = scalar_lea.vmem %s4, %s207
      %v210 = vld [vmem:[%s199] sm:$0xf]
      %v211 = vld [vmem:[%s199 + $0x4] sm:$0xf]
      %v212 = vld [vmem:[%s199 + $0xc] sm:$0xf]
      %v213 = vld [vmem:[%s199 + $0x10] sm:$0xf]
      %v214 = vld [vmem:[%s199 + $0x18] sm:$0xf]
      %v215 = vld [vmem:[%s199 + $0x1c] sm:$0xf]
      %v216 = vld [vmem:[%s199 + $0x24] sm:$0xf]
      %v217 = vld [vmem:[%s199 + $0x28] sm:$0xf]
      %v218 = vld [vmem:[%s199 + $0x30] sm:$0xf]
      %v219 = vld [vmem:[%s199 + $0x34] sm:$0xf]
      %v220 = vld [vmem:[%s199 + $0x3c] sm:$0xf]
      %v221 = vld [vmem:[%s199 + $0x40] sm:$0xf]
      %v222 = vld [vmem:[%s199 + $0x48] sm:$0xf]
      %v223 = vld [vmem:[%s199 + $0x4c] sm:$0xf]
      %v224 = vld [vmem:[%s199 + $0x54] sm:$0xf]
      %v225 = vld [vmem:[%s199 + $0x58] sm:$0xf]
      %v226 = vld [vmem:[%s199 + $0x60] sm:$0xf]
      %v227 = vld [vmem:[%s199 + $0x64] sm:$0xf]
      %v228 = vld [vmem:[%s199 + $0x6c] sm:$0xf]
      %v229 = vld [vmem:[%s199 + $0x70] sm:$0xf]
      %v230 = vld [vmem:[%s199 + $0x78] sm:$0xf]
      %v231 = vld [vmem:[%s199 + $0x7c] sm:$0xf]
      %v232 = vld [vmem:[%s199 + $0x84] sm:$0xf]
      %v233 = vld [vmem:[%s199 + $0x88] sm:$0xf]
      %v234 = vld [vmem:[%s199 + $0x90] sm:$0xf]
      %v235 = vld [vmem:[%s199 + $0x94] sm:$0xf]
      %v236 = vld [vmem:[%s199 + $0x9c] sm:$0xf]
      %v237 = vld [vmem:[%s199 + $0xa0] sm:$0xf]
      %v238 = vld [vmem:[%s199 + $0xa8] sm:$0xf]
      %v239 = vld [vmem:[%s199 + $0xac] sm:$0xf]
      %v240 = vld [vmem:[%s199 + $0xb4] sm:$0xf]
      %v241 = vld [vmem:[%s199 + $0xb8] sm:$0xf]
      %v242 = vld [vmem:[%s1] sm:$0x3]
      %v243 = vld [vmem:[%s199 + $0x8] sm:$0x1]
      %v244 = vld [vmem:[%s199 + $0x14] sm:$0x1]
      %v245 = vld [vmem:[%s199 + $0x20] sm:$0x1]
      %v246 = vld [vmem:[%s199 + $0x2c] sm:$0x1]
      %v247 = vld [vmem:[%s199 + $0x38] sm:$0x1]
      %v248 = vld [vmem:[%s199 + $0x44] sm:$0x1]
      %v249 = vld [vmem:[%s199 + $0x50] sm:$0x1]
      %v250 = vld [vmem:[%s199 + $0x5c] sm:$0x1]
      %v251 = vld [vmem:[%s199 + $0x68] sm:$0x1]
      %v252 = vld [vmem:[%s199 + $0x74] sm:$0x1]
      %v253 = vld [vmem:[%s199 + $0x80] sm:$0x1]
      %v254 = vld [vmem:[%s199 + $0x8c] sm:$0x1]
      %v255 = vld [vmem:[%s199 + $0x98] sm:$0x1]
      %v256 = vld [vmem:[%s199 + $0xa4] sm:$0x1]
      %v257 = vld [vmem:[%s199 + $0xb0] sm:$0x1]
      %v258 = vld [vmem:[%s199 + $0xbc] sm:$0x1]
      %vm259 = vsmask.f32 3328
      %vm260 = vsmask.f32 7440
      %vm261 = vmor %vm259, %vm260
      %v263 = vshrl.u32 %v210, 16
      %v265 = vrot.slane %v263, 4
      %v266 = vshll.u32 %v210, 16
      %v268 = vrot.slane %v266, 5
      %v269 = vor.u32 %v265, %v268
      %v270 = vrot.slane %v269, 4
      %v272 = vshll.u32 %v211, 16
      %v274 = vrot.slane %v272, 5
      %v275 = vsel %vm261, %v270, %v274
      %v276 = vshrl.u32 %v211, 16
      %v278 = vrot.slane %v276, 4
      %v279 = vor.u32 %v278, %v274
      %v280 = vrot.slane %v279, 4
      %v282 = vshll.u32 %v243, 16
      %v284 = vrot.slane %v282, 5
      %v285 = vsel %vm261, %v280, %v284
      %v287 = vshrl.u32 %v212, 16
      %v289 = vrot.slane %v287, 4
      %v290 = vshll.u32 %v212, 16
      %v292 = vrot.slane %v290, 5
      %v293 = vor.u32 %v289, %v292
      %v294 = vrot.slane %v293, 4
      %v296 = vshll.u32 %v213, 16
      %v298 = vrot.slane %v296, 5
      %v299 = vsel %vm261, %v294, %v298
      %v300 = vshrl.u32 %v213, 16
      %v302 = vrot.slane %v300, 4
      %v303 = vor.u32 %v302, %v298
      %v304 = vrot.slane %v303, 4
      %v306 = vshll.u32 %v244, 16
      %v308 = vrot.slane %v306, 5
      %v309 = vsel %vm261, %v304, %v308
      %v311 = vshrl.u32 %v214, 16
      %v313 = vrot.slane %v311, 4
      %v314 = vshll.u32 %v214, 16
      %v316 = vrot.slane %v314, 5
      %v317 = vor.u32 %v313, %v316
      %v318 = vrot.slane %v317, 4
      %v320 = vshll.u32 %v215, 16
      %v322 = vrot.slane %v320, 5
      %v323 = vsel %vm261, %v318, %v322
      %v324 = vshrl.u32 %v215, 16
      %v326 = vrot.slane %v324, 4
      %v327 = vor.u32 %v326, %v322
      %v328 = vrot.slane %v327, 4
      %v330 = vshll.u32 %v245, 16
      %v332 = vrot.slane %v330, 5
      %v333 = vsel %vm261, %v328, %v332
      %v335 = vshrl.u32 %v216, 16
      %v337 = vrot.slane %v335, 4
      %v338 = vshll.u32 %v216, 16
      %v340 = vrot.slane %v338, 5
      %v341 = vor.u32 %v337, %v340
      %v342 = vrot.slane %v341, 4
      %v344 = vshll.u32 %v217, 16
      %v346 = vrot.slane %v344, 5
      %v347 = vsel %vm261, %v342, %v346
      %v348 = vshrl.u32 %v217, 16
      %v350 = vrot.slane %v348, 4
      %v351 = vor.u32 %v350, %v346
      %v352 = vrot.slane %v351, 4
      %v354 = vshll.u32 %v246, 16
      %v356 = vrot.slane %v354, 5
      %v357 = vsel %vm261, %v352, %v356
      %v359 = vshrl.u32 %v218, 16
      %v361 = vrot.slane %v359, 4
      %v362 = vshll.u32 %v218, 16
      %v364 = vrot.slane %v362, 5
      %v365 = vor.u32 %v361, %v364
      %v366 = vrot.slane %v365, 4
      %v368 = vshll.u32 %v219, 16
      %v370 = vrot.slane %v368, 5
      %v371 = vsel %vm261, %v366, %v370
      %v372 = vshrl.u32 %v219, 16
      %v374 = vrot.slane %v372, 4
      %v375 = vor.u32 %v374, %v370
      %v376 = vrot.slane %v375, 4
      %v378 = vshll.u32 %v247, 16
      %v380 = vrot.slane %v378, 5
      %v381 = vsel %vm261, %v376, %v380
      %v383 = vshrl.u32 %v220, 16
      %v385 = vrot.slane %v383, 4
      %v386 = vshll.u32 %v220, 16
      %v388 = vrot.slane %v386, 5
      %v389 = vor.u32 %v385, %v388
      %v390 = vrot.slane %v389, 4
      %v392 = vshll.u32 %v221, 16
      %v394 = vrot.slane %v392, 5
      %v395 = vsel %vm261, %v390, %v394
      %v396 = vshrl.u32 %v221, 16
      %v398 = vrot.slane %v396, 4
      %v399 = vor.u32 %v398, %v394
      %v400 = vrot.slane %v399, 4
      %v402 = vshll.u32 %v248, 16
      %v404 = vrot.slane %v402, 5
      %v405 = vsel %vm261, %v400, %v404
      %v407 = vshrl.u32 %v222, 16
      %v409 = vrot.slane %v407, 4
      %v410 = vshll.u32 %v222, 16
      %v412 = vrot.slane %v410, 5
      %v413 = vor.u32 %v409, %v412
      %v414 = vrot.slane %v413, 4
      %v416 = vshll.u32 %v223, 16
      %v418 = vrot.slane %v416, 5
      %v419 = vsel %vm261, %v414, %v418
      %v420 = vshrl.u32 %v223, 16
      %v422 = vrot.slane %v420, 4
      %v423 = vor.u32 %v422, %v418
      %v424 = vrot.slane %v423, 4
      %v426 = vshll.u32 %v249, 16
      %v428 = vrot.slane %v426, 5
      %v429 = vsel %vm261, %v424, %v428
      %v431 = vshrl.u32 %v224, 16
      %v433 = vrot.slane %v431, 4
      %v434 = vshll.u32 %v224, 16
      %v436 = vrot.slane %v434, 5
      %v437 = vor.u32 %v433, %v436
      %v438 = vrot.slane %v437, 4
      %v440 = vshll.u32 %v225, 16
      %v442 = vrot.slane %v440, 5
      %v443 = vsel %vm261, %v438, %v442
      %v444 = vshrl.u32 %v225, 16
      %v446 = vrot.slane %v444, 4
      %v447 = vor.u32 %v446, %v442
      %v448 = vrot.slane %v447, 4
      %v450 = vshll.u32 %v250, 16
      %v452 = vrot.slane %v450, 5
      %v453 = vsel %vm261, %v448, %v452
      %v455 = vshrl.u32 %v226, 16
      %v457 = vrot.slane %v455, 4
      %v458 = vshll.u32 %v226, 16
      %v460 = vrot.slane %v458, 5
      %v461 = vor.u32 %v457, %v460
      %v462 = vrot.slane %v461, 4
      %v464 = vshll.u32 %v227, 16
      %v466 = vrot.slane %v464, 5
      %v467 = vsel %vm261, %v462, %v466
      %v468 = vshrl.u32 %v227, 16
      %v470 = vrot.slane %v468, 4
      %v471 = vor.u32 %v470, %v466
      %v472 = vrot.slane %v471, 4
      %v474 = vshll.u32 %v251, 16
      %v476 = vrot.slane %v474, 5
      %v477 = vsel %vm261, %v472, %v476
      %v479 = vshrl.u32 %v228, 16
      %v481 = vrot.slane %v479, 4
      %v482 = vshll.u32 %v228, 16
      %v484 = vrot.slane %v482, 5
      %v485 = vor.u32 %v481, %v484
      %v486 = vrot.slane %v485, 4
      %v488 = vshll.u32 %v229, 16
      %v490 = vrot.slane %v488, 5
      %v491 = vsel %vm261, %v486, %v490
      %v492 = vshrl.u32 %v229, 16
      %v494 = vrot.slane %v492, 4
      %v495 = vor.u32 %v494, %v490
      %v496 = vrot.slane %v495, 4
      %v498 = vshll.u32 %v252, 16
      %v500 = vrot.slane %v498, 5
      %v501 = vsel %vm261, %v496, %v500
      %v503 = vshrl.u32 %v230, 16
      %v505 = vrot.slane %v503, 4
      %v506 = vshll.u32 %v230, 16
      %v508 = vrot.slane %v506, 5
      %v509 = vor.u32 %v505, %v508
      %v510 = vrot.slane %v509, 4
      %v512 = vshll.u32 %v231, 16
      %v514 = vrot.slane %v512, 5
      %v515 = vsel %vm261, %v510, %v514
      %v516 = vshrl.u32 %v231, 16
      %v518 = vrot.slane %v516, 4
      %v519 = vor.u32 %v518, %v514
      %v520 = vrot.slane %v519, 4
      %v522 = vshll.u32 %v253, 16
      %v524 = vrot.slane %v522, 5
      %v525 = vsel %vm261, %v520, %v524
      %v527 = vshrl.u32 %v232, 16
      %v529 = vrot.slane %v527, 4
      %v530 = vshll.u32 %v232, 16
      %v532 = vrot.slane %v530, 5
      %v533 = vor.u32 %v529, %v532
      %v534 = vrot.slane %v533, 4
      %v536 = vshll.u32 %v233, 16
      %v538 = vrot.slane %v536, 5
      %v539 = vsel %vm261, %v534, %v538
      %v540 = vshrl.u32 %v233, 16
      %v542 = vrot.slane %v540, 4
      %v543 = vor.u32 %v542, %v538
      %v544 = vrot.slane %v543, 4
      %v546 = vshll.u32 %v254, 16
      %v548 = vrot.slane %v546, 5
      %v549 = vsel %vm261, %v544, %v548
      %v551 = vshrl.u32 %v234, 16
      %v553 = vrot.slane %v551, 4
      %v554 = vshll.u32 %v234, 16
      %v556 = vrot.slane %v554, 5
      %v557 = vor.u32 %v553, %v556
      %v558 = vrot.slane %v557, 4
      %v560 = vshll.u32 %v235, 16
      %v562 = vrot.slane %v560, 5
      %v563 = vsel %vm261, %v558, %v562
      %v564 = vshrl.u32 %v235, 16
      %v566 = vrot.slane %v564, 4
      %v567 = vor.u32 %v566, %v562
      %v568 = vrot.slane %v567, 4
      %v570 = vshll.u32 %v255, 16
      %v572 = vrot.slane %v570, 5
      %v573 = vsel %vm261, %v568, %v572
      %v575 = vshrl.u32 %v236, 16
      %v577 = vrot.slane %v575, 4
      %v578 = vshll.u32 %v236, 16
      %v580 = vrot.slane %v578, 5
      %v581 = vor.u32 %v577, %v580
      %v582 = vrot.slane %v581, 4
      %v584 = vshll.u32 %v237, 16
      %v586 = vrot.slane %v584, 5
      %v587 = vsel %vm261, %v582, %v586
      %v588 = vshrl.u32 %v237, 16
      %v590 = vrot.slane %v588, 4
      %v591 = vor.u32 %v590, %v586
      %v592 = vrot.slane %v591, 4
      %v594 = vshll.u32 %v256, 16
      %v596 = vrot.slane %v594, 5
      %v597 = vsel %vm261, %v592, %v596
      %v599 = vshrl.u32 %v238, 16
      %v601 = vrot.slane %v599, 4
      %v602 = vshll.u32 %v238, 16
      %v604 = vrot.slane %v602, 5
      %v605 = vor.u32 %v601, %v604
      %v606 = vrot.slane %v605, 4
      %v608 = vshll.u32 %v239, 16
      %v610 = vrot.slane %v608, 5
      %v611 = vsel %vm261, %v606, %v610
      %v612 = vshrl.u32 %v239, 16
      %v614 = vrot.slane %v612, 4
      %v615 = vor.u32 %v614, %v610
      %v616 = vrot.slane %v615, 4
      %v618 = vshll.u32 %v257, 16
      %v620 = vrot.slane %v618, 5
      %v621 = vsel %vm261, %v616, %v620
      %v623 = vshrl.u32 %v240, 16
      %v625 = vrot.slane %v623, 4
      %v626 = vshll.u32 %v240, 16
      %v628 = vrot.slane %v626, 5
      %v629 = vor.u32 %v625, %v628
      %v630 = vrot.slane %v629, 4
      %v632 = vshll.u32 %v241, 16
      %v634 = vrot.slane %v632, 5
      %v635 = vsel %vm261, %v630, %v634
      %v636 = vshrl.u32 %v241, 16
      %v638 = vrot.slane %v636, 4
      %v639 = vor.u32 %v638, %v634
      %v640 = vrot.slane %v639, 4
      %v642 = vshll.u32 %v258, 16
      %v644 = vrot.slane %v642, 5
      %v645 = vsel %vm261, %v640, %v644
      %s646 = scalar_lea.vmem %s1, 2
      %v647 = vld [vmem:[%s646] sm:$0x3]
      %v648 = vunpack.c.l.b16 %v275
      %v649 = vunpack.c.l.b16 %v285
      %v650 = vunpack.c.l.b16 %v299
      %v651 = vunpack.c.l.b16 %v309
      %v652 = vunpack.c.l.b16 %v323
      %v653 = vunpack.c.l.b16 %v333
      %v654 = vunpack.c.l.b16 %v347
      %v655 = vunpack.c.l.b16 %v357
      %v656 = vunpack.c.l.b16 %v371
      %v657 = vunpack.c.l.b16 %v381
      %v658 = vunpack.c.l.b16 %v395
      %v659 = vunpack.c.l.b16 %v405
      %v660 = vunpack.c.l.b16 %v419
      %v661 = vunpack.c.l.b16 %v429
      %v662 = vunpack.c.l.b16 %v443
      %v663 = vunpack.c.l.b16 %v453
      %v664 = vunpack.c.l.b16 %v467
      %v665 = vunpack.c.l.b16 %v477
      %v666 = vunpack.c.l.b16 %v491
      %v667 = vunpack.c.l.b16 %v501
      %v668 = vunpack.c.l.b16 %v515
      %v669 = vunpack.c.l.b16 %v525
      %v670 = vunpack.c.l.b16 %v539
      %v671 = vunpack.c.l.b16 %v549
      %v672 = vunpack.c.l.b16 %v563
      %v673 = vunpack.c.l.b16 %v573
      %v674 = vunpack.c.l.b16 %v587
      %v675 = vunpack.c.l.b16 %v597
      %v676 = vunpack.c.l.b16 %v611
      %v677 = vunpack.c.l.b16 %v621
      %v678 = vunpack.c.l.b16 %v635
      %v679 = vunpack.c.l.b16 %v645
      %v680 = vpack.c.b16 %v649, %v648
      %v681 = vpack.c.b16 %v651, %v650
      %v682 = vpack.c.b16 %v653, %v652
      %v683 = vpack.c.b16 %v655, %v654
      %v684 = vpack.c.b16 %v657, %v656
      %v685 = vpack.c.b16 %v659, %v658
      %v686 = vpack.c.b16 %v661, %v660
      %v687 = vpack.c.b16 %v663, %v662
      %v688 = vpack.c.b16 %v665, %v664
      %v689 = vpack.c.b16 %v667, %v666
      %v690 = vpack.c.b16 %v669, %v668
      %v691 = vpack.c.b16 %v671, %v670
      %v692 = vpack.c.b16 %v673, %v672
      %v693 = vpack.c.b16 %v675, %v674
      %v694 = vpack.c.b16 %v677, %v676
      %v695 = vpack.c.b16 %v679, %v678
      %vm696 = vcmask 31744
      %v698 = vsel %vm696, %v680, 0
      %v701 = vsel %vm696, %v681, 0
      %v704 = vsel %vm696, %v682, 0
      %v707 = vsel %vm696, %v683, 0
      %v710 = vsel %vm696, %v684, 0
      %v713 = vsel %vm696, %v685, 0
      %v716 = vsel %vm696, %v686, 0
      %v719 = vsel %vm696, %v687, 0
      %v722 = vsel %vm696, %v688, 0
      %v725 = vsel %vm696, %v689, 0
      %v728 = vsel %vm696, %v690, 0
      %v731 = vsel %vm696, %v691, 0
      %v734 = vsel %vm696, %v692, 0
      %v737 = vsel %vm696, %v693, 0
      %v740 = vsel %vm696, %v694, 0
      %v743 = vsel %vm696, %v695, 0
      %vm745 = vcmask 1041408
      %v747 = vsel %vm745, %v647, 0
      %749 = vmatprep.subr.bf16.mxu0 0
      %750 = vmatpush1.bf16.msra.mxu0 %v747
      %751 = vmatprep.subr.bf16.mxu0 0
      %752 = vmatpush1.bf16.msra.mxu0 0
      %753 = vmatprep.subr.bf16.mxu0 0
      %754 = vmatpush1.bf16.msra.mxu0 0
      %755 = vmatprep.subr.bf16.mxu0 0
      %756 = vmatpush1.bf16.msra.mxu0 0
      %757 = vmatprep.subr.bf16.mxu0 0
      %758 = vmatpush1.bf16.msra.mxu0 0
      %759 = vmatprep.subr.bf16.mxu0 0
      %760 = vmatpush1.bf16.msra.mxu0 0
      %761 = vmatprep.subr.bf16.mxu0 0
      %762 = vmatpush1.bf16.msra.mxu0 0
      %763 = vmatprep.subr.bf16.mxu0 0
      %764 = vmatpush1.bf16.msra.mxu0 0
      %765 = vmatprep.subr.bf16.mxu0 0
      %766 = vmatpush1.bf16.msra.mxu0 0
      %767 = vmatprep.subr.bf16.mxu0 0
      %768 = vmatpush1.bf16.msra.mxu0 0
      %769 = vmatprep.subr.bf16.mxu0 0
      %770 = vmatpush1.bf16.msra.mxu0 0
      %771 = vmatprep.subr.bf16.mxu0 0
      %772 = vmatpush1.bf16.msra.mxu0 0
      %773 = vmatprep.subr.bf16.mxu0 0
      %774 = vmatpush1.bf16.msra.mxu0 0
      %775 = vmatprep.subr.bf16.mxu0 0
      %776 = vmatpush1.bf16.msra.mxu0 0
      %777 = vmatprep.subr.bf16.mxu0 0
      %778 = vmatpush1.bf16.msra.mxu0 0
      %779 = vmatprep.subr.bf16.mxu0 0
      %780 = vmatpush1.bf16.msra.mxu0 0
      %781 = vmatprep.mubr.bf16.mxu0 0
      %782 = vmatmul.mubr.bf16.gmra.mrb[0].mxu0 %v698
      %v783 = vpop.f32.mrb[0].mxu0
      %v784 = vadd.f32 0.0, %v783
      %v785 = vpop.f32.mrb[0].mxu0
      %v786 = vpop.f32.mrb[0].mxu0
      %v787 = vadd.f32 0.0, %v786
      %v788 = vpop.f32.mrb[0].mxu0
      %789 = vmatprep.mubr.bf16.mxu0 0
      %790 = vmatmul.mubr.bf16.gmra.mrb[0].mxu0 %v701
      %v791 = vpop.f32.mrb[0].mxu0
      %v792 = vadd.f32 0.0, %v791
      %v793 = vpop.f32.mrb[0].mxu0
      %v794 = vpop.f32.mrb[0].mxu0
      %v795 = vadd.f32 0.0, %v794
      %v796 = vpop.f32.mrb[0].mxu0
      %797 = vmatprep.mubr.bf16.mxu0 0
      %798 = vmatmul.mubr.bf16.gmra.mrb[0].mxu0 %v704
      %v799 = vpop.f32.mrb[0].mxu0
      %v800 = vadd.f32 0.0, %v799
      %v801 = vpop.f32.mrb[0].mxu0
      %v802 = vpop.f32.mrb[0].mxu0
      %v803 = vadd.f32 0.0, %v802
      %v804 = vpop.f32.mrb[0].mxu0
      %805 = vmatprep.mubr.bf16.mxu0 0
      %806 = vmatmul.mubr.bf16.gmra.mrb[0].mxu0 %v707
      %v807 = vpop.f32.mrb[0].mxu0
      %v808 = vadd.f32 0.0, %v807
      %v809 = vpop.f32.mrb[0].mxu0
      %v810 = vpop.f32.mrb[0].mxu0
      %v811 = vadd.f32 0.0, %v810
      %v812 = vpop.f32.mrb[0].mxu0
      %813 = vmatprep.mubr.bf16.mxu0 0
      %814 = vmatmul.mubr.bf16.gmra.mrb[0].mxu0 %v710
      %v815 = vpop.f32.mrb[0].mxu0
      %v816 = vadd.f32 0.0, %v815
      %v817 = vpop.f32.mrb[0].mxu0
      %v818 = vpop.f32.mrb[0].mxu0
      %v819 = vadd.f32 0.0, %v818
      %v820 = vpop.f32.mrb[0].mxu0
      %821 = vmatprep.mubr.bf16.mxu0 0
      %822 = vmatmul.mubr.bf16.gmra.mrb[0].mxu0 %v713
      %v823 = vpop.f32.mrb[0].mxu0
      %v824 = vadd.f32 0.0, %v823
      %v825 = vpop.f32.mrb[0].mxu0
      %v826 = vpop.f32.mrb[0].mxu0
      %v827 = vadd.f32 0.0, %v826
      %v828 = vpop.f32.mrb[0].mxu0
      %829 = vmatprep.mubr.bf16.mxu0 0
      %830 = vmatmul.mubr.bf16.gmra.mrb[0].mxu0 %v716
      %v831 = vpop.f32.mrb[0].mxu0
      %v832 = vadd.f32 0.0, %v831
      %v833 = vpop.f32.mrb[0].mxu0
      %v834 = vpop.f32.mrb[0].mxu0
      %v835 = vadd.f32 0.0, %v834
      %v836 = vpop.f32.mrb[0].mxu0
      %837 = vmatprep.mubr.bf16.mxu0 0
      %838 = vmatmul.mubr.bf16.gmra.mrb[0].mxu0 %v719
      %v839 = vpop.f32.mrb[0].mxu0
      %v840 = vadd.f32 0.0, %v839
      %v841 = vpop.f32.mrb[0].mxu0
      %v842 = vpop.f32.mrb[0].mxu0
      %v843 = vadd.f32 0.0, %v842
      %v844 = vpop.f32.mrb[0].mxu0
      %845 = vmatprep.mubr.bf16.mxu0 0
      %846 = vmatmul.mubr.bf16.gmra.mrb[0].mxu0 %v722
      %v847 = vpop.f32.mrb[0].mxu0
      %v848 = vadd.f32 0.0, %v847
      %v849 = vpop.f32.mrb[0].mxu0
      %v850 = vpop.f32.mrb[0].mxu0
      %v851 = vadd.f32 0.0, %v850
      %v852 = vpop.f32.mrb[0].mxu0
      %853 = vmatprep.mubr.bf16.mxu0 0
      %854 = vmatmul.mubr.bf16.gmra.mrb[0].mxu0 %v725
      %v855 = vpop.f32.mrb[0].mxu0
      %v856 = vadd.f32 0.0, %v855
      %v857 = vpop.f32.mrb[0].mxu0
      %v858 = vpop.f32.mrb[0].mxu0
      %v859 = vadd.f32 0.0, %v858
      %v860 = vpop.f32.mrb[0].mxu0
      %861 = vmatprep.mubr.bf16.mxu0 0
      %862 = vmatmul.mubr.bf16.gmra.mrb[0].mxu0 %v728
      %v863 = vpop.f32.mrb[0].mxu0
      %v864 = vadd.f32 0.0, %v863
      %v865 = vpop.f32.mrb[0].mxu0
      %v866 = vpop.f32.mrb[0].mxu0
      %v867 = vadd.f32 0.0, %v866
      %v868 = vpop.f32.mrb[0].mxu0
      %869 = vmatprep.mubr.bf16.mxu0 0
      %870 = vmatmul.mubr.bf16.gmra.mrb[0].mxu0 %v731
      %v871 = vpop.f32.mrb[0].mxu0
      %v872 = vadd.f32 0.0, %v871
      %v873 = vpop.f32.mrb[0].mxu0
      %v874 = vpop.f32.mrb[0].mxu0
      %v875 = vadd.f32 0.0, %v874
      %v876 = vpop.f32.mrb[0].mxu0
      %877 = vmatprep.mubr.bf16.mxu0 0
      %878 = vmatmul.mubr.bf16.gmra.mrb[0].mxu0 %v734
      %v879 = vpop.f32.mrb[0].mxu0
      %v880 = vadd.f32 0.0, %v879
      %v881 = vpop.f32.mrb[0].mxu0
      %v882 = vpop.f32.mrb[0].mxu0
      %v883 = vadd.f32 0.0, %v882
      %v884 = vpop.f32.mrb[0].mxu0
      %885 = vmatprep.mubr.bf16.mxu0 0
      %886 = vmatmul.mubr.bf16.gmra.mrb[0].mxu0 %v737
      %v887 = vpop.f32.mrb[0].mxu0
      %v888 = vadd.f32 0.0, %v887
      %v889 = vpop.f32.mrb[0].mxu0
      %v890 = vpop.f32.mrb[0].mxu0
      %v891 = vadd.f32 0.0, %v890
      %v892 = vpop.f32.mrb[0].mxu0
      %893 = vmatprep.mubr.bf16.mxu0 0
      %894 = vmatmul.mubr.bf16.gmra.mrb[0].mxu0 %v740
      %v895 = vpop.f32.mrb[0].mxu0
      %v896 = vadd.f32 0.0, %v895
      %v897 = vpop.f32.mrb[0].mxu0
      %v898 = vpop.f32.mrb[0].mxu0
      %v899 = vadd.f32 0.0, %v898
      %v900 = vpop.f32.mrb[0].mxu0
      %901 = vmatprep.mubr.bf16.mxu0 0
      %902 = vmatmul.mubr.bf16.gmra.mrb[0].mxu0 %v743
      %v903 = vpop.f32.mrb[0].mxu0
      %v904 = vadd.f32 0.0, %v903
      %v905 = vpop.f32.mrb[0].mxu0
      %v906 = vpop.f32.mrb[0].mxu0
      %v907 = vadd.f32 0.0, %v906
      %v908 = vpop.f32.mrb[0].mxu0
      %909 = vdwg.mxu0
      %v942 = vunpack.c.l.b16 %v210
      %v943 = vunpack.c.l.b16 %v211
      %v944 = vunpack.c.l.b16 %v212
      %v945 = vunpack.c.l.b16 %v213
      %v946 = vunpack.c.l.b16 %v214
      %v947 = vunpack.c.l.b16 %v215
      %v948 = vunpack.c.l.b16 %v216
      %v949 = vunpack.c.l.b16 %v217
      %v950 = vunpack.c.l.b16 %v218
      %v951 = vunpack.c.l.b16 %v219
      %v952 = vunpack.c.l.b16 %v220
      %v953 = vunpack.c.l.b16 %v221
      %v954 = vunpack.c.l.b16 %v222
      %v955 = vunpack.c.l.b16 %v223
      %v956 = vunpack.c.l.b16 %v224
      %v957 = vunpack.c.l.b16 %v225
      %v958 = vunpack.c.l.b16 %v226
      %v959 = vunpack.c.l.b16 %v227
      %v960 = vunpack.c.l.b16 %v228
      %v961 = vunpack.c.l.b16 %v229
      %v962 = vunpack.c.l.b16 %v230
      %v963 = vunpack.c.l.b16 %v231
      %v964 = vunpack.c.l.b16 %v232
      %v965 = vunpack.c.l.b16 %v233
      %v966 = vunpack.c.l.b16 %v234
      %v967 = vunpack.c.l.b16 %v235
      %v968 = vunpack.c.l.b16 %v236
      %v969 = vunpack.c.l.b16 %v237
      %v970 = vunpack.c.l.b16 %v238
      %v971 = vunpack.c.l.b16 %v239
      %v972 = vunpack.c.l.b16 %v240
      %v973 = vunpack.c.l.b16 %v241
      %v974 = vpack.c.b16 %v943, %v942
      %v975 = vpack.c.b16 %v945, %v944
      %v976 = vpack.c.b16 %v947, %v946
      %v977 = vpack.c.b16 %v949, %v948
      %v978 = vpack.c.b16 %v951, %v950
      %v979 = vpack.c.b16 %v953, %v952
      %v980 = vpack.c.b16 %v955, %v954
      %v981 = vpack.c.b16 %v957, %v956
      %v982 = vpack.c.b16 %v959, %v958
      %v983 = vpack.c.b16 %v961, %v960
      %v984 = vpack.c.b16 %v963, %v962
      %v985 = vpack.c.b16 %v965, %v964
      %v986 = vpack.c.b16 %v967, %v966
      %v987 = vpack.c.b16 %v969, %v968
      %v988 = vpack.c.b16 %v971, %v970
      %v989 = vpack.c.b16 %v973, %v972
      %v991 = vsel %vm696, %v974, 0
      %v994 = vsel %vm696, %v975, 0
      %v997 = vsel %vm696, %v976, 0
      %v1000 = vsel %vm696, %v977, 0
      %v1003 = vsel %vm696, %v978, 0
      %v1006 = vsel %vm696, %v979, 0
      %v1009 = vsel %vm696, %v980, 0
      %v1012 = vsel %vm696, %v981, 0
      %v1015 = vsel %vm696, %v982, 0
      %v1018 = vsel %vm696, %v983, 0
      %v1021 = vsel %vm696, %v984, 0
      %v1024 = vsel %vm696, %v985, 0
      %v1027 = vsel %vm696, %v986, 0
      %v1030 = vsel %vm696, %v987, 0
      %v1033 = vsel %vm696, %v988, 0
      %v1036 = vsel %vm696, %v989, 0
      %v1039 = vsel %vm745, %v242, 0
      %1041 = vmatprep.subr.bf16.mxu0 0
      %1042 = vmatpush1.bf16.msra.mxu0 %v1039
      %1043 = vmatprep.subr.bf16.mxu0 0
      %1044 = vmatpush1.bf16.msra.mxu0 0
      %1045 = vmatprep.subr.bf16.mxu0 0
      %1046 = vmatpush1.bf16.msra.mxu0 0
      %1047 = vmatprep.subr.bf16.mxu0 0
      %1048 = vmatpush1.bf16.msra.mxu0 0
      %1049 = vmatprep.subr.bf16.mxu0 0
      %1050 = vmatpush1.bf16.msra.mxu0 0
      %1051 = vmatprep.subr.bf16.mxu0 0
      %1052 = vmatpush1.bf16.msra.mxu0 0
      %1053 = vmatprep.subr.bf16.mxu0 0
      %1054 = vmatpush1.bf16.msra.mxu0 0
      %1055 = vmatprep.subr.bf16.mxu0 0
      %1056 = vmatpush1.bf16.msra.mxu0 0
      %1057 = vmatprep.subr.bf16.mxu0 0
      %1058 = vmatpush1.bf16.msra.mxu0 0
      %1059 = vmatprep.subr.bf16.mxu0 0
      %1060 = vmatpush1.bf16.msra.mxu0 0
      %1061 = vmatprep.subr.bf16.mxu0 0
      %1062 = vmatpush1.bf16.msra.mxu0 0
      %1063 = vmatprep.subr.bf16.mxu0 0
      %1064 = vmatpush1.bf16.msra.mxu0 0
      %1065 = vmatprep.subr.bf16.mxu0 0
      %1066 = vmatpush1.bf16.msra.mxu0 0
      %1067 = vmatprep.subr.bf16.mxu0 0
      %1068 = vmatpush1.bf16.msra.mxu0 0
      %1069 = vmatprep.subr.bf16.mxu0 0
      %1070 = vmatpush1.bf16.msra.mxu0 0
      %1071 = vmatprep.subr.bf16.mxu0 0
      %1072 = vmatpush1.bf16.msra.mxu0 0
      %1073 = vmatprep.mubr.bf16.mxu0 0
      %1074 = vmatmul.mubr.bf16.gmra.mrb[0].mxu0 %v991
      %v1075 = vpop.f32.mrb[0].mxu0
      %v1076 = vadd.f32 %v784, %v1075
      %v1077 = vpop.f32.mrb[0].mxu0
      %v1078 = vpop.f32.mrb[0].mxu0
      %v1079 = vadd.f32 %v787, %v1078
      %v1080 = vpop.f32.mrb[0].mxu0
      %1081 = vmatprep.mubr.bf16.mxu0 0
      %1082 = vmatmul.mubr.bf16.gmra.mrb[0].mxu0 %v994
      %v1083 = vpop.f32.mrb[0].mxu0
      %v1084 = vadd.f32 %v792, %v1083
      %v1085 = vpop.f32.mrb[0].mxu0
      %v1086 = vpop.f32.mrb[0].mxu0
      %v1087 = vadd.f32 %v795, %v1086
      %v1088 = vpop.f32.mrb[0].mxu0
      %1089 = vmatprep.mubr.bf16.mxu0 0
      %1090 = vmatmul.mubr.bf16.gmra.mrb[0].mxu0 %v997
      %v1091 = vpop.f32.mrb[0].mxu0
      %v1092 = vadd.f32 %v800, %v1091
      %v1093 = vpop.f32.mrb[0].mxu0
      %v1094 = vpop.f32.mrb[0].mxu0
      %v1095 = vadd.f32 %v803, %v1094
      %v1096 = vpop.f32.mrb[0].mxu0
      %1097 = vmatprep.mubr.bf16.mxu0 0
      %1098 = vmatmul.mubr.bf16.gmra.mrb[0].mxu0 %v1000
      %v1099 = vpop.f32.mrb[0].mxu0
      %v1100 = vadd.f32 %v808, %v1099
      %v1101 = vpop.f32.mrb[0].mxu0
      %v1102 = vpop.f32.mrb[0].mxu0
      %v1103 = vadd.f32 %v811, %v1102
      %v1104 = vpop.f32.mrb[0].mxu0
      %1105 = vmatprep.mubr.bf16.mxu0 0
      %1106 = vmatmul.mubr.bf16.gmra.mrb[0].mxu0 %v1003
      %v1107 = vpop.f32.mrb[0].mxu0
      %v1108 = vadd.f32 %v816, %v1107
      %v1109 = vpop.f32.mrb[0].mxu0
      %v1110 = vpop.f32.mrb[0].mxu0
      %v1111 = vadd.f32 %v819, %v1110
      %v1112 = vpop.f32.mrb[0].mxu0
      %1113 = vmatprep.mubr.bf16.mxu0 0
      %1114 = vmatmul.mubr.bf16.gmra.mrb[0].mxu0 %v1006
      %v1115 = vpop.f32.mrb[0].mxu0
      %v1116 = vadd.f32 %v824, %v1115
      %v1117 = vpop.f32.mrb[0].mxu0
      %v1118 = vpop.f32.mrb[0].mxu0
      %v1119 = vadd.f32 %v827, %v1118
      %v1120 = vpop.f32.mrb[0].mxu0
      %1121 = vmatprep.mubr.bf16.mxu0 0
      %1122 = vmatmul.mubr.bf16.gmra.mrb[0].mxu0 %v1009
      %v1123 = vpop.f32.mrb[0].mxu0
      %v1124 = vadd.f32 %v832, %v1123
      %v1125 = vpop.f32.mrb[0].mxu0
      %v1126 = vpop.f32.mrb[0].mxu0
      %v1127 = vadd.f32 %v835, %v1126
      %v1128 = vpop.f32.mrb[0].mxu0
      %1129 = vmatprep.mubr.bf16.mxu0 0
      %1130 = vmatmul.mubr.bf16.gmra.mrb[0].mxu0 %v1012
      %v1131 = vpop.f32.mrb[0].mxu0
      %v1132 = vadd.f32 %v840, %v1131
      %v1133 = vpop.f32.mrb[0].mxu0
      %v1134 = vpop.f32.mrb[0].mxu0
      %v1135 = vadd.f32 %v843, %v1134
      %v1136 = vpop.f32.mrb[0].mxu0
      %1137 = vmatprep.mubr.bf16.mxu0 0
      %1138 = vmatmul.mubr.bf16.gmra.mrb[0].mxu0 %v1015
      %v1139 = vpop.f32.mrb[0].mxu0
      %v1140 = vadd.f32 %v848, %v1139
      %v1141 = vpop.f32.mrb[0].mxu0
      %v1142 = vpop.f32.mrb[0].mxu0
      %v1143 = vadd.f32 %v851, %v1142
      %v1144 = vpop.f32.mrb[0].mxu0
      %1145 = vmatprep.mubr.bf16.mxu0 0
      %1146 = vmatmul.mubr.bf16.gmra.mrb[0].mxu0 %v1018
      %v1147 = vpop.f32.mrb[0].mxu0
      %v1148 = vadd.f32 %v856, %v1147
      %v1149 = vpop.f32.mrb[0].mxu0
      %v1150 = vpop.f32.mrb[0].mxu0
      %v1151 = vadd.f32 %v859, %v1150
      %v1152 = vpop.f32.mrb[0].mxu0
      %1153 = vmatprep.mubr.bf16.mxu0 0
      %1154 = vmatmul.mubr.bf16.gmra.mrb[0].mxu0 %v1021
      %v1155 = vpop.f32.mrb[0].mxu0
      %v1156 = vadd.f32 %v864, %v1155
      %v1157 = vpop.f32.mrb[0].mxu0
      %v1158 = vpop.f32.mrb[0].mxu0
      %v1159 = vadd.f32 %v867, %v1158
      %v1160 = vpop.f32.mrb[0].mxu0
      %1161 = vmatprep.mubr.bf16.mxu0 0
      %1162 = vmatmul.mubr.bf16.gmra.mrb[0].mxu0 %v1024
      %v1163 = vpop.f32.mrb[0].mxu0
      %v1164 = vadd.f32 %v872, %v1163
      %v1165 = vpop.f32.mrb[0].mxu0
      %v1166 = vpop.f32.mrb[0].mxu0
      %v1167 = vadd.f32 %v875, %v1166
      %v1168 = vpop.f32.mrb[0].mxu0
      %1169 = vmatprep.mubr.bf16.mxu0 0
      %1170 = vmatmul.mubr.bf16.gmra.mrb[0].mxu0 %v1027
      %v1171 = vpop.f32.mrb[0].mxu0
      %v1172 = vadd.f32 %v880, %v1171
      %v1173 = vpop.f32.mrb[0].mxu0
      %v1174 = vpop.f32.mrb[0].mxu0
      %v1175 = vadd.f32 %v883, %v1174
      %v1176 = vpop.f32.mrb[0].mxu0
      %1177 = vmatprep.mubr.bf16.mxu0 0
      %1178 = vmatmul.mubr.bf16.gmra.mrb[0].mxu0 %v1030
      %v1179 = vpop.f32.mrb[0].mxu0
      %v1180 = vadd.f32 %v888, %v1179
      %v1181 = vpop.f32.mrb[0].mxu0
      %v1182 = vpop.f32.mrb[0].mxu0
      %v1183 = vadd.f32 %v891, %v1182
      %v1184 = vpop.f32.mrb[0].mxu0
      %1185 = vmatprep.mubr.bf16.mxu0 0
      %1186 = vmatmul.mubr.bf16.gmra.mrb[0].mxu0 %v1033
      %v1187 = vpop.f32.mrb[0].mxu0
      %v1188 = vadd.f32 %v896, %v1187
      %v1189 = vpop.f32.mrb[0].mxu0
      %v1190 = vpop.f32.mrb[0].mxu0
      %v1191 = vadd.f32 %v899, %v1190
      %v1192 = vpop.f32.mrb[0].mxu0
      %1193 = vmatprep.mubr.bf16.mxu0 0
      %1194 = vmatmul.mubr.bf16.gmra.mrb[0].mxu0 %v1036
      %v1195 = vpop.f32.mrb[0].mxu0
      %v1196 = vadd.f32 %v904, %v1195
      %v1197 = vpop.f32.mrb[0].mxu0
      %v1198 = vpop.f32.mrb[0].mxu0
      %v1199 = vadd.f32 %v907, %v1198
      %v1200 = vpop.f32.mrb[0].mxu0
      %1201 = vdwg.mxu0
      %v1202 = vld [vmem:[%s199] sm:$0xe]
      %v1203 = vld [vmem:[%s199 + $0xc] sm:$0xe]
      %v1204 = vld [vmem:[%s199 + $0x18] sm:$0xe]
      %v1205 = vld [vmem:[%s199 + $0x24] sm:$0xe]
      %v1206 = vld [vmem:[%s199 + $0x30] sm:$0xe]
      %v1207 = vld [vmem:[%s199 + $0x3c] sm:$0xe]
      %v1208 = vld [vmem:[%s199 + $0x48] sm:$0xe]
      %v1209 = vld [vmem:[%s199 + $0x54] sm:$0xe]
      %v1210 = vld [vmem:[%s199 + $0x60] sm:$0xe]
      %v1211 = vld [vmem:[%s199 + $0x6c] sm:$0xe]
      %v1212 = vld [vmem:[%s199 + $0x78] sm:$0xe]
      %v1213 = vld [vmem:[%s199 + $0x84] sm:$0xe]
      %v1214 = vld [vmem:[%s199 + $0x90] sm:$0xe]
      %v1215 = vld [vmem:[%s199 + $0x9c] sm:$0xe]
      %v1216 = vld [vmem:[%s199 + $0xa8] sm:$0xe]
      %v1217 = vld [vmem:[%s199 + $0xb4] sm:$0xe]
      %vm1250 = vcmask 1042432
      %vm1251 = vcmask 1046532
      %vm1252 = vmor %vm1250, %vm1251
      %v1253 = vrot.slane %v1202, 5
      %v1254 = vrot.slane %v1253, 4
      %v1255 = vrot.slane %v211, 5
      %v1256 = vsel %vm1252, %v1254, %v1255
      %v1257 = vrot.slane %v1255, 4
      %v1258 = vrot.slane %v243, 5
      %v1259 = vsel %vm1252, %v1257, %v1258
      %v1260 = vrot.slane %v1203, 5
      %v1261 = vrot.slane %v1260, 4
      %v1262 = vrot.slane %v213, 5
      %v1263 = vsel %vm1252, %v1261, %v1262
      %v1264 = vrot.slane %v1262, 4
      %v1265 = vrot.slane %v244, 5
      %v1266 = vsel %vm1252, %v1264, %v1265
      %v1267 = vrot.slane %v1204, 5
      %v1268 = vrot.slane %v1267, 4
      %v1269 = vrot.slane %v215, 5
      %v1270 = vsel %vm1252, %v1268, %v1269
      %v1271 = vrot.slane %v1269, 4
      %v1272 = vrot.slane %v245, 5
      %v1273 = vsel %vm1252, %v1271, %v1272
      %v1274 = vrot.slane %v1205, 5
      %v1275 = vrot.slane %v1274, 4
      %v1276 = vrot.slane %v217, 5
      %v1277 = vsel %vm1252, %v1275, %v1276
      %v1278 = vrot.slane %v1276, 4
      %v1279 = vrot.slane %v246, 5
      %v1280 = vsel %vm1252, %v1278, %v1279
      %v1281 = vrot.slane %v1206, 5
      %v1282 = vrot.slane %v1281, 4
      %v1283 = vrot.slane %v219, 5
      %v1284 = vsel %vm1252, %v1282, %v1283
      %v1285 = vrot.slane %v1283, 4
      %v1286 = vrot.slane %v247, 5
      %v1287 = vsel %vm1252, %v1285, %v1286
      %v1288 = vrot.slane %v1207, 5
      %v1289 = vrot.slane %v1288, 4
      %v1290 = vrot.slane %v221, 5
      %v1291 = vsel %vm1252, %v1289, %v1290
      %v1292 = vrot.slane %v1290, 4
      %v1293 = vrot.slane %v248, 5
      %v1294 = vsel %vm1252, %v1292, %v1293
      %v1295 = vrot.slane %v1208, 5
      %v1296 = vrot.slane %v1295, 4
      %v1297 = vrot.slane %v223, 5
      %v1298 = vsel %vm1252, %v1296, %v1297
      %v1299 = vrot.slane %v1297, 4
      %v1300 = vrot.slane %v249, 5
      %v1301 = vsel %vm1252, %v1299, %v1300
      %v1302 = vrot.slane %v1209, 5
      %v1303 = vrot.slane %v1302, 4
      %v1304 = vrot.slane %v225, 5
      %v1305 = vsel %vm1252, %v1303, %v1304
      %v1306 = vrot.slane %v1304, 4
      %v1307 = vrot.slane %v250, 5
      %v1308 = vsel %vm1252, %v1306, %v1307
      %v1309 = vrot.slane %v1210, 5
      %v1310 = vrot.slane %v1309, 4
      %v1311 = vrot.slane %v227, 5
      %v1312 = vsel %vm1252, %v1310, %v1311
      %v1313 = vrot.slane %v1311, 4
      %v1314 = vrot.slane %v251, 5
      %v1315 = vsel %vm1252, %v1313, %v1314
      %v1316 = vrot.slane %v1211, 5
      %v1317 = vrot.slane %v1316, 4
      %v1318 = vrot.slane %v229, 5
      %v1319 = vsel %vm1252, %v1317, %v1318
      %v1320 = vrot.slane %v1318, 4
      %v1321 = vrot.slane %v252, 5
      %v1322 = vsel %vm1252, %v1320, %v1321
      %v1323 = vrot.slane %v1212, 5
      %v1324 = vrot.slane %v1323, 4
      %v1325 = vrot.slane %v231, 5
      %v1326 = vsel %vm1252, %v1324, %v1325
      %v1327 = vrot.slane %v1325, 4
      %v1328 = vrot.slane %v253, 5
      %v1329 = vsel %vm1252, %v1327, %v1328
      %v1330 = vrot.slane %v1213, 5
      %v1331 = vrot.slane %v1330, 4
      %v1332 = vrot.slane %v233, 5
      %v1333 = vsel %vm1252, %v1331, %v1332
      %v1334 = vrot.slane %v1332, 4
      %v1335 = vrot.slane %v254, 5
      %v1336 = vsel %vm1252, %v1334, %v1335
      %v1337 = vrot.slane %v1214, 5
      %v1338 = vrot.slane %v1337, 4
      %v1339 = vrot.slane %v235, 5
      %v1340 = vsel %vm1252, %v1338, %v1339
      %v1341 = vrot.slane %v1339, 4
      %v1342 = vrot.slane %v255, 5
      %v1343 = vsel %vm1252, %v1341, %v1342
      %v1344 = vrot.slane %v1215, 5
      %v1345 = vrot.slane %v1344, 4
      %v1346 = vrot.slane %v237, 5
      %v1347 = vsel %vm1252, %v1345, %v1346
      %v1348 = vrot.slane %v1346, 4
      %v1349 = vrot.slane %v256, 5
      %v1350 = vsel %vm1252, %v1348, %v1349
      %v1351 = vrot.slane %v1216, 5
      %v1352 = vrot.slane %v1351, 4
      %v1353 = vrot.slane %v239, 5
      %v1354 = vsel %vm1252, %v1352, %v1353
      %v1355 = vrot.slane %v1353, 4
      %v1356 = vrot.slane %v257, 5
      %v1357 = vsel %vm1252, %v1355, %v1356
      %v1358 = vrot.slane %v1217, 5
      %v1359 = vrot.slane %v1358, 4
      %v1360 = vrot.slane %v241, 5
      %v1361 = vsel %vm1252, %v1359, %v1360
      %v1362 = vrot.slane %v1360, 4
      %v1363 = vrot.slane %v258, 5
      %v1364 = vsel %vm1252, %v1362, %v1363
      %s1365 = scalar_lea.vmem %s1, 4
      %v1366 = vld [vmem:[%s1365] sm:$0x3]
      %v1367 = vunpack.c.l.b16 %v1256
      %v1368 = vunpack.c.l.b16 %v1259
      %v1369 = vunpack.c.l.b16 %v1263
      %v1370 = vunpack.c.l.b16 %v1266
      %v1371 = vunpack.c.l.b16 %v1270
      %v1372 = vunpack.c.l.b16 %v1273
      %v1373 = vunpack.c.l.b16 %v1277
      %v1374 = vunpack.c.l.b16 %v1280
      %v1375 = vunpack.c.l.b16 %v1284
      %v1376 = vunpack.c.l.b16 %v1287
      %v1377 = vunpack.c.l.b16 %v1291
      %v1378 = vunpack.c.l.b16 %v1294
      %v1379 = vunpack.c.l.b16 %v1298
      %v1380 = vunpack.c.l.b16 %v1301
      %v1381 = vunpack.c.l.b16 %v1305
      %v1382 = vunpack.c.l.b16 %v1308
      %v1383 = vunpack.c.l.b16 %v1312
      %v1384 = vunpack.c.l.b16 %v1315
      %v1385 = vunpack.c.l.b16 %v1319
      %v1386 = vunpack.c.l.b16 %v1322
      %v1387 = vunpack.c.l.b16 %v1326
      %v1388 = vunpack.c.l.b16 %v1329
      %v1389 = vunpack.c.l.b16 %v1333
      %v1390 = vunpack.c.l.b16 %v1336
      %v1391 = vunpack.c.l.b16 %v1340
      %v1392 = vunpack.c.l.b16 %v1343
      %v1393 = vunpack.c.l.b16 %v1347
      %v1394 = vunpack.c.l.b16 %v1350
      %v1395 = vunpack.c.l.b16 %v1354
      %v1396 = vunpack.c.l.b16 %v1357
      %v1397 = vunpack.c.l.b16 %v1361
      %v1398 = vunpack.c.l.b16 %v1364
      %v1399 = vpack.c.b16 %v1368, %v1367
      %v1400 = vpack.c.b16 %v1370, %v1369
      %v1401 = vpack.c.b16 %v1372, %v1371
      %v1402 = vpack.c.b16 %v1374, %v1373
      %v1403 = vpack.c.b16 %v1376, %v1375
      %v1404 = vpack.c.b16 %v1378, %v1377
      %v1405 = vpack.c.b16 %v1380, %v1379
      %v1406 = vpack.c.b16 %v1382, %v1381
      %v1407 = vpack.c.b16 %v1384, %v1383
      %v1408 = vpack.c.b16 %v1386, %v1385
      %v1409 = vpack.c.b16 %v1388, %v1387
      %v1410 = vpack.c.b16 %v1390, %v1389
      %v1411 = vpack.c.b16 %v1392, %v1391
      %v1412 = vpack.c.b16 %v1394, %v1393
      %v1413 = vpack.c.b16 %v1396, %v1395
      %v1414 = vpack.c.b16 %v1398, %v1397
      %v1416 = vsel %vm696, %v1399, 0
      %v1419 = vsel %vm696, %v1400, 0
      %v1422 = vsel %vm696, %v1401, 0
      %v1425 = vsel %vm696, %v1402, 0
      %v1428 = vsel %vm696, %v1403, 0
      %v1431 = vsel %vm696, %v1404, 0
      %v1434 = vsel %vm696, %v1405, 0
      %v1437 = vsel %vm696, %v1406, 0
      %v1440 = vsel %vm696, %v1407, 0
      %v1443 = vsel %vm696, %v1408, 0
      %v1446 = vsel %vm696, %v1409, 0
      %v1449 = vsel %vm696, %v1410, 0
      %v1452 = vsel %vm696, %v1411, 0
      %v1455 = vsel %vm696, %v1412, 0
      %v1458 = vsel %vm696, %v1413, 0
      %v1461 = vsel %vm696, %v1414, 0
      %v1464 = vsel %vm745, %v1366, 0
      %1466 = vmatprep.subr.bf16.mxu0 0
      %1467 = vmatpush1.bf16.msra.mxu0 %v1464
      %1468 = vmatprep.subr.bf16.mxu0 0
      %1469 = vmatpush1.bf16.msra.mxu0 0
      %1470 = vmatprep.subr.bf16.mxu0 0
      %1471 = vmatpush1.bf16.msra.mxu0 0
      %1472 = vmatprep.subr.bf16.mxu0 0
      %1473 = vmatpush1.bf16.msra.mxu0 0
      %1474 = vmatprep.subr.bf16.mxu0 0
      %1475 = vmatpush1.bf16.msra.mxu0 0
      %1476 = vmatprep.subr.bf16.mxu0 0
      %1477 = vmatpush1.bf16.msra.mxu0 0
      %1478 = vmatprep.subr.bf16.mxu0 0
      %1479 = vmatpush1.bf16.msra.mxu0 0
      %1480 = vmatprep.subr.bf16.mxu0 0
      %1481 = vmatpush1.bf16.msra.mxu0 0
      %1482 = vmatprep.subr.bf16.mxu0 0
      %1483 = vmatpush1.bf16.msra.mxu0 0
      %1484 = vmatprep.subr.bf16.mxu0 0
      %1485 = vmatpush1.bf16.msra.mxu0 0
      %1486 = vmatprep.subr.bf16.mxu0 0
      %1487 = vmatpush1.bf16.msra.mxu0 0
      %1488 = vmatprep.subr.bf16.mxu0 0
      %1489 = vmatpush1.bf16.msra.mxu0 0
      %1490 = vmatprep.subr.bf16.mxu0 0
      %1491 = vmatpush1.bf16.msra.mxu0 0
      %1492 = vmatprep.subr.bf16.mxu0 0
      %1493 = vmatpush1.bf16.msra.mxu0 0
      %1494 = vmatprep.subr.bf16.mxu0 0
      %1495 = vmatpush1.bf16.msra.mxu0 0
      %1496 = vmatprep.subr.bf16.mxu0 0
      %1497 = vmatpush1.bf16.msra.mxu0 0
      %1498 = vmatprep.mubr.bf16.mxu0 0
      %1499 = vmatmul.mubr.bf16.gmra.mrb[0].mxu0 %v1416
      %v1500 = vpop.f32.mrb[0].mxu0
      %v1501 = vadd.f32 0.0, %v1500
      %v1502 = vpop.f32.mrb[0].mxu0
      %v1503 = vpop.f32.mrb[0].mxu0
      %v1504 = vadd.f32 0.0, %v1503
      %v1505 = vpop.f32.mrb[0].mxu0
      %1506 = vmatprep.mubr.bf16.mxu0 0
      %1507 = vmatmul.mubr.bf16.gmra.mrb[0].mxu0 %v1419
      %v1508 = vpop.f32.mrb[0].mxu0
      %v1509 = vadd.f32 0.0, %v1508
      %v1510 = vpop.f32.mrb[0].mxu0
      %v1511 = vpop.f32.mrb[0].mxu0
      %v1512 = vadd.f32 0.0, %v1511
      %v1513 = vpop.f32.mrb[0].mxu0
      %1514 = vmatprep.mubr.bf16.mxu0 0
      %1515 = vmatmul.mubr.bf16.gmra.mrb[0].mxu0 %v1422
      %v1516 = vpop.f32.mrb[0].mxu0
      %v1517 = vadd.f32 0.0, %v1516
      %v1518 = vpop.f32.mrb[0].mxu0
      %v1519 = vpop.f32.mrb[0].mxu0
      %v1520 = vadd.f32 0.0, %v1519
      %v1521 = vpop.f32.mrb[0].mxu0
      %1522 = vmatprep.mubr.bf16.mxu0 0
      %1523 = vmatmul.mubr.bf16.gmra.mrb[0].mxu0 %v1425
      %v1524 = vpop.f32.mrb[0].mxu0
      %v1525 = vadd.f32 0.0, %v1524
      %v1526 = vpop.f32.mrb[0].mxu0
      %v1527 = vpop.f32.mrb[0].mxu0
      %v1528 = vadd.f32 0.0, %v1527
      %v1529 = vpop.f32.mrb[0].mxu0
      %1530 = vmatprep.mubr.bf16.mxu0 0
      %1531 = vmatmul.mubr.bf16.gmra.mrb[0].mxu0 %v1428
      %v1532 = vpop.f32.mrb[0].mxu0
      %v1533 = vadd.f32 0.0, %v1532
      %v1534 = vpop.f32.mrb[0].mxu0
      %v1535 = vpop.f32.mrb[0].mxu0
      %v1536 = vadd.f32 0.0, %v1535
      %v1537 = vpop.f32.mrb[0].mxu0
      %1538 = vmatprep.mubr.bf16.mxu0 0
      %1539 = vmatmul.mubr.bf16.gmra.mrb[0].mxu0 %v1431
      %v1540 = vpop.f32.mrb[0].mxu0
      %v1541 = vadd.f32 0.0, %v1540
      %v1542 = vpop.f32.mrb[0].mxu0
      %v1543 = vpop.f32.mrb[0].mxu0
      %v1544 = vadd.f32 0.0, %v1543
      %v1545 = vpop.f32.mrb[0].mxu0
      %1546 = vmatprep.mubr.bf16.mxu0 0
      %1547 = vmatmul.mubr.bf16.gmra.mrb[0].mxu0 %v1434
      %v1548 = vpop.f32.mrb[0].mxu0
      %v1549 = vadd.f32 0.0, %v1548
      %v1550 = vpop.f32.mrb[0].mxu0
      %v1551 = vpop.f32.mrb[0].mxu0
      %v1552 = vadd.f32 0.0, %v1551
      %v1553 = vpop.f32.mrb[0].mxu0
      %1554 = vmatprep.mubr.bf16.mxu0 0
      %1555 = vmatmul.mubr.bf16.gmra.mrb[0].mxu0 %v1437
      %v1556 = vpop.f32.mrb[0].mxu0
      %v1557 = vadd.f32 0.0, %v1556
      %v1558 = vpop.f32.mrb[0].mxu0
      %v1559 = vpop.f32.mrb[0].mxu0
      %v1560 = vadd.f32 0.0, %v1559
      %v1561 = vpop.f32.mrb[0].mxu0
      %1562 = vmatprep.mubr.bf16.mxu0 0
      %1563 = vmatmul.mubr.bf16.gmra.mrb[0].mxu0 %v1440
      %v1564 = vpop.f32.mrb[0].mxu0
      %v1565 = vadd.f32 0.0, %v1564
      %v1566 = vpop.f32.mrb[0].mxu0
      %v1567 = vpop.f32.mrb[0].mxu0
      %v1568 = vadd.f32 0.0, %v1567
      %v1569 = vpop.f32.mrb[0].mxu0
      %1570 = vmatprep.mubr.bf16.mxu0 0
      %1571 = vmatmul.mubr.bf16.gmra.mrb[0].mxu0 %v1443
      %v1572 = vpop.f32.mrb[0].mxu0
      %v1573 = vadd.f32 0.0, %v1572
      %v1574 = vpop.f32.mrb[0].mxu0
      %v1575 = vpop.f32.mrb[0].mxu0
      %v1576 = vadd.f32 0.0, %v1575
      %v1577 = vpop.f32.mrb[0].mxu0
      %1578 = vmatprep.mubr.bf16.mxu0 0
      %1579 = vmatmul.mubr.bf16.gmra.mrb[0].mxu0 %v1446
      %v1580 = vpop.f32.mrb[0].mxu0
      %v1581 = vadd.f32 0.0, %v1580
      %v1582 = vpop.f32.mrb[0].mxu0
      %v1583 = vpop.f32.mrb[0].mxu0
      %v1584 = vadd.f32 0.0, %v1583
      %v1585 = vpop.f32.mrb[0].mxu0
      %1586 = vmatprep.mubr.bf16.mxu0 0
      %1587 = vmatmul.mubr.bf16.gmra.mrb[0].mxu0 %v1449
      %v1588 = vpop.f32.mrb[0].mxu0
      %v1589 = vadd.f32 0.0, %v1588
      %v1590 = vpop.f32.mrb[0].mxu0
      %v1591 = vpop.f32.mrb[0].mxu0
      %v1592 = vadd.f32 0.0, %v1591
      %v1593 = vpop.f32.mrb[0].mxu0
      %1594 = vmatprep.mubr.bf16.mxu0 0
      %1595 = vmatmul.mubr.bf16.gmra.mrb[0].mxu0 %v1452
      %v1596 = vpop.f32.mrb[0].mxu0
      %v1597 = vadd.f32 0.0, %v1596
      %v1598 = vpop.f32.mrb[0].mxu0
      %v1599 = vpop.f32.mrb[0].mxu0
      %v1600 = vadd.f32 0.0, %v1599
      %v1601 = vpop.f32.mrb[0].mxu0
      %1602 = vmatprep.mubr.bf16.mxu0 0
      %1603 = vmatmul.mubr.bf16.gmra.mrb[0].mxu0 %v1455
      %v1604 = vpop.f32.mrb[0].mxu0
      %v1605 = vadd.f32 0.0, %v1604
      %v1606 = vpop.f32.mrb[0].mxu0
      %v1607 = vpop.f32.mrb[0].mxu0
      %v1608 = vadd.f32 0.0, %v1607
      %v1609 = vpop.f32.mrb[0].mxu0
      %1610 = vmatprep.mubr.bf16.mxu0 0
      %1611 = vmatmul.mubr.bf16.gmra.mrb[0].mxu0 %v1458
      %v1612 = vpop.f32.mrb[0].mxu0
      %v1613 = vadd.f32 0.0, %v1612
      %v1614 = vpop.f32.mrb[0].mxu0
      %v1615 = vpop.f32.mrb[0].mxu0
      %v1616 = vadd.f32 0.0, %v1615
      %v1617 = vpop.f32.mrb[0].mxu0
      %1618 = vmatprep.mubr.bf16.mxu0 0
      %1619 = vmatmul.mubr.bf16.gmra.mrb[0].mxu0 %v1461
      %v1620 = vpop.f32.mrb[0].mxu0
      %v1621 = vadd.f32 0.0, %v1620
      %v1622 = vpop.f32.mrb[0].mxu0
      %v1623 = vpop.f32.mrb[0].mxu0
      %v1624 = vadd.f32 0.0, %v1623
      %v1625 = vpop.f32.mrb[0].mxu0
      %1626 = vdwg.mxu0
      %v1627 = vadd.f32 %v1076, %v1501
      %v1628 = vadd.f32 %v1079, %v1504
      %v1629 = vadd.f32 %v1084, %v1509
      %v1630 = vadd.f32 %v1087, %v1512
      %v1631 = vadd.f32 %v1092, %v1517
      %v1632 = vadd.f32 %v1095, %v1520
      %v1633 = vadd.f32 %v1100, %v1525
      %v1634 = vadd.f32 %v1103, %v1528
      %v1635 = vadd.f32 %v1108, %v1533
      %v1636 = vadd.f32 %v1111, %v1536
      %v1637 = vadd.f32 %v1116, %v1541
      %v1638 = vadd.f32 %v1119, %v1544
      %v1639 = vadd.f32 %v1124, %v1549
      %v1640 = vadd.f32 %v1127, %v1552
      %v1641 = vadd.f32 %v1132, %v1557
      %v1642 = vadd.f32 %v1135, %v1560
      %v1643 = vadd.f32 %v1140, %v1565
      %v1644 = vadd.f32 %v1143, %v1568
      %v1645 = vadd.f32 %v1148, %v1573
      %v1646 = vadd.f32 %v1151, %v1576
      %v1647 = vadd.f32 %v1156, %v1581
      %v1648 = vadd.f32 %v1159, %v1584
      %v1649 = vadd.f32 %v1164, %v1589
      %v1650 = vadd.f32 %v1167, %v1592
      %v1651 = vadd.f32 %v1172, %v1597
      %v1652 = vadd.f32 %v1175, %v1600
      %v1653 = vadd.f32 %v1180, %v1605
      %v1654 = vadd.f32 %v1183, %v1608
      %v1655 = vadd.f32 %v1188, %v1613
      %v1656 = vadd.f32 %v1191, %v1616
      %v1657 = vadd.f32 %v1196, %v1621
      %v1658 = vadd.f32 %v1199, %v1624
      %s1659 = scalar_lea.vmem %s199, 12
      %v1660 = vld [vmem:[%s1659] sm:$0xf]
      %v1661 = vld [vmem:[%s1659 + $0x4] sm:$0xf]
      %v1662 = vld [vmem:[%s1659 + $0xc] sm:$0xf]
      %v1663 = vld [vmem:[%s1659 + $0x10] sm:$0xf]
      %v1664 = vld [vmem:[%s1659 + $0x18] sm:$0xf]
      %v1665 = vld [vmem:[%s1659 + $0x1c] sm:$0xf]
      %v1666 = vld [vmem:[%s1659 + $0x24] sm:$0xf]
      %v1667 = vld [vmem:[%s1659 + $0x28] sm:$0xf]
      %v1668 = vld [vmem:[%s1659 + $0x30] sm:$0xf]
      %v1669 = vld [vmem:[%s1659 + $0x34] sm:$0xf]
      %v1670 = vld [vmem:[%s1659 + $0x3c] sm:$0xf]
      %v1671 = vld [vmem:[%s1659 + $0x40] sm:$0xf]
      %v1672 = vld [vmem:[%s1659 + $0x48] sm:$0xf]
      %v1673 = vld [vmem:[%s1659 + $0x4c] sm:$0xf]
      %v1674 = vld [vmem:[%s1659 + $0x54] sm:$0xf]
      %v1675 = vld [vmem:[%s1659 + $0x58] sm:$0xf]
      %v1676 = vld [vmem:[%s1659 + $0x60] sm:$0xf]
      %v1677 = vld [vmem:[%s1659 + $0x64] sm:$0xf]
      %v1678 = vld [vmem:[%s1659 + $0x6c] sm:$0xf]
      %v1679 = vld [vmem:[%s1659 + $0x70] sm:$0xf]
      %v1680 = vld [vmem:[%s1659 + $0x78] sm:$0xf]
      %v1681 = vld [vmem:[%s1659 + $0x7c] sm:$0xf]
      %v1682 = vld [vmem:[%s1659 + $0x84] sm:$0xf]
      %v1683 = vld [vmem:[%s1659 + $0x88] sm:$0xf]
      %v1684 = vld [vmem:[%s1659 + $0x90] sm:$0xf]
      %v1685 = vld [vmem:[%s1659 + $0x94] sm:$0xf]
      %v1686 = vld [vmem:[%s1659 + $0x9c] sm:$0xf]
      %v1687 = vld [vmem:[%s1659 + $0xa0] sm:$0xf]
      %v1688 = vld [vmem:[%s1659 + $0xa8] sm:$0xf]
      %v1689 = vld [vmem:[%s1659 + $0xac] sm:$0xf]
      %v1690 = vld [vmem:[%s1659 + $0xb4] sm:$0xf]
      %v1691 = vld [vmem:[%s1659 + $0xb8] sm:$0xf]
      %s1692 = scalar_lea.vmem %s1, 6
      %v1693 = vld [vmem:[%s1692] sm:$0x3]
      %v1726 = vunpack.c.l.b16 %v1660
      %v1727 = vunpack.c.l.b16 %v1661
      %v1728 = vunpack.c.l.b16 %v1662
      %v1729 = vunpack.c.l.b16 %v1663
      %v1730 = vunpack.c.l.b16 %v1664
      %v1731 = vunpack.c.l.b16 %v1665
      %v1732 = vunpack.c.l.b16 %v1666
      %v1733 = vunpack.c.l.b16 %v1667
      %v1734 = vunpack.c.l.b16 %v1668
      %v1735 = vunpack.c.l.b16 %v1669
      %v1736 = vunpack.c.l.b16 %v1670
      %v1737 = vunpack.c.l.b16 %v1671
      %v1738 = vunpack.c.l.b16 %v1672
      %v1739 = vunpack.c.l.b16 %v1673
      %v1740 = vunpack.c.l.b16 %v1674
      %v1741 = vunpack.c.l.b16 %v1675
      %v1742 = vunpack.c.l.b16 %v1676
      %v1743 = vunpack.c.l.b16 %v1677
      %v1744 = vunpack.c.l.b16 %v1678
      %v1745 = vunpack.c.l.b16 %v1679
      %v1746 = vunpack.c.l.b16 %v1680
      %v1747 = vunpack.c.l.b16 %v1681
      %v1748 = vunpack.c.l.b16 %v1682
      %v1749 = vunpack.c.l.b16 %v1683
      %v1750 = vunpack.c.l.b16 %v1684
      %v1751 = vunpack.c.l.b16 %v1685
      %v1752 = vunpack.c.l.b16 %v1686
      %v1753 = vunpack.c.l.b16 %v1687
      %v1754 = vunpack.c.l.b16 %v1688
      %v1755 = vunpack.c.l.b16 %v1689
      %v1756 = vunpack.c.l.b16 %v1690
      %v1757 = vunpack.c.l.b16 %v1691
      %v1758 = vpack.c.b16 %v1727, %v1726
      %v1759 = vpack.c.b16 %v1729, %v1728
      %v1760 = vpack.c.b16 %v1731, %v1730
      %v1761 = vpack.c.b16 %v1733, %v1732
      %v1762 = vpack.c.b16 %v1735, %v1734
      %v1763 = vpack.c.b16 %v1737, %v1736
      %v1764 = vpack.c.b16 %v1739, %v1738
      %v1765 = vpack.c.b16 %v1741, %v1740
      %v1766 = vpack.c.b16 %v1743, %v1742
      %v1767 = vpack.c.b16 %v1745, %v1744
      %v1768 = vpack.c.b16 %v1747, %v1746
      %v1769 = vpack.c.b16 %v1749, %v1748
      %v1770 = vpack.c.b16 %v1751, %v1750
      %v1771 = vpack.c.b16 %v1753, %v1752
      %v1772 = vpack.c.b16 %v1755, %v1754
      %v1773 = vpack.c.b16 %v1757, %v1756
      %v1775 = vsel %vm696, %v1758, 0
      %v1778 = vsel %vm696, %v1759, 0
      %v1781 = vsel %vm696, %v1760, 0
      %v1784 = vsel %vm696, %v1761, 0
      %v1787 = vsel %vm696, %v1762, 0
      %v1790 = vsel %vm696, %v1763, 0
      %v1793 = vsel %vm696, %v1764, 0
      %v1796 = vsel %vm696, %v1765, 0
      %v1799 = vsel %vm696, %v1766, 0
      %v1802 = vsel %vm696, %v1767, 0
      %v1805 = vsel %vm696, %v1768, 0
      %v1808 = vsel %vm696, %v1769, 0
      %v1811 = vsel %vm696, %v1770, 0
      %v1814 = vsel %vm696, %v1771, 0
      %v1817 = vsel %vm696, %v1772, 0
      %v1820 = vsel %vm696, %v1773, 0
      %v1823 = vsel %vm745, %v1693, 0
      %1825 = vmatprep.subr.bf16.mxu0 0
      %1826 = vmatpush1.bf16.msra.mxu0 %v1823
      %1827 = vmatprep.subr.bf16.mxu0 0
      %1828 = vmatpush1.bf16.msra.mxu0 0
      %1829 = vmatprep.subr.bf16.mxu0 0
      %1830 = vmatpush1.bf16.msra.mxu0 0
      %1831 = vmatprep.subr.bf16.mxu0 0
      %1832 = vmatpush1.bf16.msra.mxu0 0
      %1833 = vmatprep.subr.bf16.mxu0 0
      %1834 = vmatpush1.bf16.msra.mxu0 0
      %1835 = vmatprep.subr.bf16.mxu0 0
      %1836 = vmatpush1.bf16.msra.mxu0 0
      %1837 = vmatprep.subr.bf16.mxu0 0
      %1838 = vmatpush1.bf16.msra.mxu0 0
      %1839 = vmatprep.subr.bf16.mxu0 0
      %1840 = vmatpush1.bf16.msra.mxu0 0
      %1841 = vmatprep.subr.bf16.mxu0 0
      %1842 = vmatpush1.bf16.msra.mxu0 0
      %1843 = vmatprep.subr.bf16.mxu0 0
      %1844 = vmatpush1.bf16.msra.mxu0 0
      %1845 = vmatprep.subr.bf16.mxu0 0
      %1846 = vmatpush1.bf16.msra.mxu0 0
      %1847 = vmatprep.subr.bf16.mxu0 0
      %1848 = vmatpush1.bf16.msra.mxu0 0
      %1849 = vmatprep.subr.bf16.mxu0 0
      %1850 = vmatpush1.bf16.msra.mxu0 0
      %1851 = vmatprep.subr.bf16.mxu0 0
      %1852 = vmatpush1.bf16.msra.mxu0 0
      %1853 = vmatprep.subr.bf16.mxu0 0
      %1854 = vmatpush1.bf16.msra.mxu0 0
      %1855 = vmatprep.subr.bf16.mxu0 0
      %1856 = vmatpush1.bf16.msra.mxu0 0
      %1857 = vmatprep.mubr.bf16.mxu0 0
      %1858 = vmatmul.mubr.bf16.gmra.mrb[0].mxu0 %v1775
      %v1859 = vpop.f32.mrb[0].mxu0
      %v1860 = vadd.f32 0.0, %v1859
      %v1861 = vpop.f32.mrb[0].mxu0
      %v1862 = vpop.f32.mrb[0].mxu0
      %v1863 = vadd.f32 0.0, %v1862
      %v1864 = vpop.f32.mrb[0].mxu0
      %1865 = vmatprep.mubr.bf16.mxu0 0
      %1866 = vmatmul.mubr.bf16.gmra.mrb[0].mxu0 %v1778
      %v1867 = vpop.f32.mrb[0].mxu0
      %v1868 = vadd.f32 0.0, %v1867
      %v1869 = vpop.f32.mrb[0].mxu0
      %v1870 = vpop.f32.mrb[0].mxu0
      %v1871 = vadd.f32 0.0, %v1870
      %v1872 = vpop.f32.mrb[0].mxu0
      %1873 = vmatprep.mubr.bf16.mxu0 0
      %1874 = vmatmul.mubr.bf16.gmra.mrb[0].mxu0 %v1781
      %v1875 = vpop.f32.mrb[0].mxu0
      %v1876 = vadd.f32 0.0, %v1875
      %v1877 = vpop.f32.mrb[0].mxu0
      %v1878 = vpop.f32.mrb[0].mxu0
      %v1879 = vadd.f32 0.0, %v1878
      %v1880 = vpop.f32.mrb[0].mxu0
      %1881 = vmatprep.mubr.bf16.mxu0 0
      %1882 = vmatmul.mubr.bf16.gmra.mrb[0].mxu0 %v1784
      %v1883 = vpop.f32.mrb[0].mxu0
      %v1884 = vadd.f32 0.0, %v1883
      %v1885 = vpop.f32.mrb[0].mxu0
      %v1886 = vpop.f32.mrb[0].mxu0
      %v1887 = vadd.f32 0.0, %v1886
      %v1888 = vpop.f32.mrb[0].mxu0
      %1889 = vmatprep.mubr.bf16.mxu0 0
      %1890 = vmatmul.mubr.bf16.gmra.mrb[0].mxu0 %v1787
      %v1891 = vpop.f32.mrb[0].mxu0
      %v1892 = vadd.f32 0.0, %v1891
      %v1893 = vpop.f32.mrb[0].mxu0
      %v1894 = vpop.f32.mrb[0].mxu0
      %v1895 = vadd.f32 0.0, %v1894
      %v1896 = vpop.f32.mrb[0].mxu0
      %1897 = vmatprep.mubr.bf16.mxu0 0
      %1898 = vmatmul.mubr.bf16.gmra.mrb[0].mxu0 %v1790
      %v1899 = vpop.f32.mrb[0].mxu0
      %v1900 = vadd.f32 0.0, %v1899
      %v1901 = vpop.f32.mrb[0].mxu0
      %v1902 = vpop.f32.mrb[0].mxu0
      %v1903 = vadd.f32 0.0, %v1902
      %v1904 = vpop.f32.mrb[0].mxu0
      %1905 = vmatprep.mubr.bf16.mxu0 0
      %1906 = vmatmul.mubr.bf16.gmra.mrb[0].mxu0 %v1793
      %v1907 = vpop.f32.mrb[0].mxu0
      %v1908 = vadd.f32 0.0, %v1907
      %v1909 = vpop.f32.mrb[0].mxu0
      %v1910 = vpop.f32.mrb[0].mxu0
      %v1911 = vadd.f32 0.0, %v1910
      %v1912 = vpop.f32.mrb[0].mxu0
      %1913 = vmatprep.mubr.bf16.mxu0 0
      %1914 = vmatmul.mubr.bf16.gmra.mrb[0].mxu0 %v1796
      %v1915 = vpop.f32.mrb[0].mxu0
      %v1916 = vadd.f32 0.0, %v1915
      %v1917 = vpop.f32.mrb[0].mxu0
      %v1918 = vpop.f32.mrb[0].mxu0
      %v1919 = vadd.f32 0.0, %v1918
      %v1920 = vpop.f32.mrb[0].mxu0
      %1921 = vmatprep.mubr.bf16.mxu0 0
      %1922 = vmatmul.mubr.bf16.gmra.mrb[0].mxu0 %v1799
      %v1923 = vpop.f32.mrb[0].mxu0
      %v1924 = vadd.f32 0.0, %v1923
      %v1925 = vpop.f32.mrb[0].mxu0
      %v1926 = vpop.f32.mrb[0].mxu0
      %v1927 = vadd.f32 0.0, %v1926
      %v1928 = vpop.f32.mrb[0].mxu0
      %1929 = vmatprep.mubr.bf16.mxu0 0
      %1930 = vmatmul.mubr.bf16.gmra.mrb[0].mxu0 %v1802
      %v1931 = vpop.f32.mrb[0].mxu0
      %v1932 = vadd.f32 0.0, %v1931
      %v1933 = vpop.f32.mrb[0].mxu0
      %v1934 = vpop.f32.mrb[0].mxu0
      %v1935 = vadd.f32 0.0, %v1934
      %v1936 = vpop.f32.mrb[0].mxu0
      %1937 = vmatprep.mubr.bf16.mxu0 0
      %1938 = vmatmul.mubr.bf16.gmra.mrb[0].mxu0 %v1805
      %v1939 = vpop.f32.mrb[0].mxu0
      %v1940 = vadd.f32 0.0, %v1939
      %v1941 = vpop.f32.mrb[0].mxu0
      %v1942 = vpop.f32.mrb[0].mxu0
      %v1943 = vadd.f32 0.0, %v1942
      %v1944 = vpop.f32.mrb[0].mxu0
      %1945 = vmatprep.mubr.bf16.mxu0 0
      %1946 = vmatmul.mubr.bf16.gmra.mrb[0].mxu0 %v1808
      %v1947 = vpop.f32.mrb[0].mxu0
      %v1948 = vadd.f32 0.0, %v1947
      %v1949 = vpop.f32.mrb[0].mxu0
      %v1950 = vpop.f32.mrb[0].mxu0
      %v1951 = vadd.f32 0.0, %v1950
      %v1952 = vpop.f32.mrb[0].mxu0
      %1953 = vmatprep.mubr.bf16.mxu0 0
      %1954 = vmatmul.mubr.bf16.gmra.mrb[0].mxu0 %v1811
      %v1955 = vpop.f32.mrb[0].mxu0
      %v1956 = vadd.f32 0.0, %v1955
      %v1957 = vpop.f32.mrb[0].mxu0
      %v1958 = vpop.f32.mrb[0].mxu0
      %v1959 = vadd.f32 0.0, %v1958
      %v1960 = vpop.f32.mrb[0].mxu0
      %1961 = vmatprep.mubr.bf16.mxu0 0
      %1962 = vmatmul.mubr.bf16.gmra.mrb[0].mxu0 %v1814
      %v1963 = vpop.f32.mrb[0].mxu0
      %v1964 = vadd.f32 0.0, %v1963
      %v1965 = vpop.f32.mrb[0].mxu0
      %v1966 = vpop.f32.mrb[0].mxu0
      %v1967 = vadd.f32 0.0, %v1966
      %v1968 = vpop.f32.mrb[0].mxu0
      %1969 = vmatprep.mubr.bf16.mxu0 0
      %1970 = vmatmul.mubr.bf16.gmra.mrb[0].mxu0 %v1817
      %v1971 = vpop.f32.mrb[0].mxu0
      %v1972 = vadd.f32 0.0, %v1971
      %v1973 = vpop.f32.mrb[0].mxu0
      %v1974 = vpop.f32.mrb[0].mxu0
      %v1975 = vadd.f32 0.0, %v1974
      %v1976 = vpop.f32.mrb[0].mxu0
      %1977 = vmatprep.mubr.bf16.mxu0 0
      %1978 = vmatmul.mubr.bf16.gmra.mrb[0].mxu0 %v1820
      %v1979 = vpop.f32.mrb[0].mxu0
      %v1980 = vadd.f32 0.0, %v1979
      %v1981 = vpop.f32.mrb[0].mxu0
      %v1982 = vpop.f32.mrb[0].mxu0
      %v1983 = vadd.f32 0.0, %v1982
      %v1984 = vpop.f32.mrb[0].mxu0
      %1985 = vdwg.mxu0
      %v1986 = vadd.f32 %v1627, %v1860
      %v1987 = vadd.f32 %v1628, %v1863
      %v1988 = vadd.f32 %v1629, %v1868
      %v1989 = vadd.f32 %v1630, %v1871
      %v1990 = vadd.f32 %v1631, %v1876
      %v1991 = vadd.f32 %v1632, %v1879
      %v1992 = vadd.f32 %v1633, %v1884
      %v1993 = vadd.f32 %v1634, %v1887
      %v1994 = vadd.f32 %v1635, %v1892
      %v1995 = vadd.f32 %v1636, %v1895
      %v1996 = vadd.f32 %v1637, %v1900
      %v1997 = vadd.f32 %v1638, %v1903
      %v1998 = vadd.f32 %v1639, %v1908
      %v1999 = vadd.f32 %v1640, %v1911
      %v2000 = vadd.f32 %v1641, %v1916
      %v2001 = vadd.f32 %v1642, %v1919
      %v2002 = vadd.f32 %v1643, %v1924
      %v2003 = vadd.f32 %v1644, %v1927
      %v2004 = vadd.f32 %v1645, %v1932
      %v2005 = vadd.f32 %v1646, %v1935
      %v2006 = vadd.f32 %v1647, %v1940
      %v2007 = vadd.f32 %v1648, %v1943
      %v2008 = vadd.f32 %v1649, %v1948
      %v2009 = vadd.f32 %v1650, %v1951
      %v2010 = vadd.f32 %v1651, %v1956
      %v2011 = vadd.f32 %v1652, %v1959
      %v2012 = vadd.f32 %v1653, %v1964
      %v2013 = vadd.f32 %v1654, %v1967
      %v2014 = vadd.f32 %v1655, %v1972
      %v2015 = vadd.f32 %v1656, %v1975
      %v2016 = vadd.f32 %v1657, %v1980
      %v2017 = vadd.f32 %v1658, %v1983
      %v2018 = vld [vmem:[%s1659] sm:$0xf]
      %v2019 = vld [vmem:[%s1659 + $0x4] sm:$0xf]
      %v2020 = vld [vmem:[%s1659 + $0x8] sm:$0x1]
      %v2021 = vld [vmem:[%s1659 + $0xc] sm:$0xf]
      %v2022 = vld [vmem:[%s1659 + $0x10] sm:$0xf]
      %v2023 = vld [vmem:[%s1659 + $0x14] sm:$0x1]
      %v2024 = vld [vmem:[%s1659 + $0x18] sm:$0xf]
      %v2025 = vld [vmem:[%s1659 + $0x1c] sm:$0xf]
      %v2026 = vld [vmem:[%s1659 + $0x20] sm:$0x1]
      %v2027 = vld [vmem:[%s1659 + $0x24] sm:$0xf]
      %v2028 = vld [vmem:[%s1659 + $0x28] sm:$0xf]
      %v2029 = vld [vmem:[%s1659 + $0x2c] sm:$0x1]
      %v2030 = vld [vmem:[%s1659 + $0x30] sm:$0xf]
      %v2031 = vld [vmem:[%s1659 + $0x34] sm:$0xf]
      %v2032 = vld [vmem:[%s1659 + $0x38] sm:$0x1]
      %v2033 = vld [vmem:[%s1659 + $0x3c] sm:$0xf]
      %v2034 = vld [vmem:[%s1659 + $0x40] sm:$0xf]
      %v2035 = vld [vmem:[%s1659 + $0x44] sm:$0x1]
      %v2036 = vld [vmem:[%s1659 + $0x48] sm:$0xf]
      %v2037 = vld [vmem:[%s1659 + $0x4c] sm:$0xf]
      %v2038 = vld [vmem:[%s1659 + $0x50] sm:$0x1]
      %v2039 = vld [vmem:[%s1659 + $0x54] sm:$0xf]
      %v2040 = vld [vmem:[%s1659 + $0x58] sm:$0xf]
      %v2041 = vld [vmem:[%s1659 + $0x5c] sm:$0x1]
      %v2042 = vld [vmem:[%s1659 + $0x60] sm:$0xf]
      %v2043 = vld [vmem:[%s1659 + $0x64] sm:$0xf]
      %v2044 = vld [vmem:[%s1659 + $0x68] sm:$0x1]
      %v2045 = vld [vmem:[%s1659 + $0x6c] sm:$0xf]
      %v2046 = vld [vmem:[%s1659 + $0x70] sm:$0xf]
      %v2047 = vld [vmem:[%s1659 + $0x74] sm:$0x1]
      %v2048 = vld [vmem:[%s1659 + $0x78] sm:$0xf]
      %v2049 = vld [vmem:[%s1659 + $0x7c] sm:$0xf]
      %v2050 = vld [vmem:[%s1659 + $0x80] sm:$0x1]
      %v2051 = vld [vmem:[%s1659 + $0x84] sm:$0xf]
      %v2052 = vld [vmem:[%s1659 + $0x88] sm:$0xf]
      %v2053 = vld [vmem:[%s1659 + $0x8c] sm:$0x1]
      %v2054 = vld [vmem:[%s1659 + $0x90] sm:$0xf]
      %v2055 = vld [vmem:[%s1659 + $0x94] sm:$0xf]
      %v2056 = vld [vmem:[%s1659 + $0x98] sm:$0x1]
      %v2057 = vld [vmem:[%s1659 + $0x9c] sm:$0xf]
      %v2058 = vld [vmem:[%s1659 + $0xa0] sm:$0xf]
      %v2059 = vld [vmem:[%s1659 + $0xa4] sm:$0x1]
      %v2060 = vld [vmem:[%s1659 + $0xa8] sm:$0xf]
      %v2061 = vld [vmem:[%s1659 + $0xac] sm:$0xf]
      %v2062 = vld [vmem:[%s1659 + $0xb0] sm:$0x1]
      %v2063 = vld [vmem:[%s1659 + $0xb4] sm:$0xf]
      %v2064 = vld [vmem:[%s1659 + $0xb8] sm:$0xf]
      %v2065 = vld [vmem:[%s1659 + $0xbc] sm:$0x1]
      %v2067 = vshrl.u32 %v2018, 16
      %v2069 = vrot.slane %v2067, 4
      %v2070 = vshll.u32 %v2018, 16
      %v2072 = vrot.slane %v2070, 5
      %v2073 = vor.u32 %v2069, %v2072
      %v2074 = vrot.slane %v2073, 4
      %v2076 = vshll.u32 %v2019, 16
      %v2078 = vrot.slane %v2076, 5
      %v2079 = vsel %vm261, %v2074, %v2078
      %v2080 = vshrl.u32 %v2019, 16
      %v2082 = vrot.slane %v2080, 4
      %v2083 = vor.u32 %v2082, %v2078
      %v2084 = vrot.slane %v2083, 4
      %v2086 = vshll.u32 %v2020, 16
      %v2088 = vrot.slane %v2086, 5
      %v2089 = vsel %vm261, %v2084, %v2088
      %v2091 = vshrl.u32 %v2021, 16
      %v2093 = vrot.slane %v2091, 4
      %v2094 = vshll.u32 %v2021, 16
      %v2096 = vrot.slane %v2094, 5
      %v2097 = vor.u32 %v2093, %v2096
      %v2098 = vrot.slane %v2097, 4
      %v2100 = vshll.u32 %v2022, 16
      %v2102 = vrot.slane %v2100, 5
      %v2103 = vsel %vm261, %v2098, %v2102
      %v2104 = vshrl.u32 %v2022, 16
      %v2106 = vrot.slane %v2104, 4
      %v2107 = vor.u32 %v2106, %v2102
      %v2108 = vrot.slane %v2107, 4
      %v2110 = vshll.u32 %v2023, 16
      %v2112 = vrot.slane %v2110, 5
      %v2113 = vsel %vm261, %v2108, %v2112
      %v2115 = vshrl.u32 %v2024, 16
      %v2117 = vrot.slane %v2115, 4
      %v2118 = vshll.u32 %v2024, 16
      %v2120 = vrot.slane %v2118, 5
      %v2121 = vor.u32 %v2117, %v2120
      %v2122 = vrot.slane %v2121, 4
      %v2124 = vshll.u32 %v2025, 16
      %v2126 = vrot.slane %v2124, 5
      %v2127 = vsel %vm261, %v2122, %v2126
      %v2128 = vshrl.u32 %v2025, 16
      %v2130 = vrot.slane %v2128, 4
      %v2131 = vor.u32 %v2130, %v2126
      %v2132 = vrot.slane %v2131, 4
      %v2134 = vshll.u32 %v2026, 16
      %v2136 = vrot.slane %v2134, 5
      %v2137 = vsel %vm261, %v2132, %v2136
      %v2139 = vshrl.u32 %v2027, 16
      %v2141 = vrot.slane %v2139, 4
      %v2142 = vshll.u32 %v2027, 16
      %v2144 = vrot.slane %v2142, 5
      %v2145 = vor.u32 %v2141, %v2144
      %v2146 = vrot.slane %v2145, 4
      %v2148 = vshll.u32 %v2028, 16
      %v2150 = vrot.slane %v2148, 5
      %v2151 = vsel %vm261, %v2146, %v2150
      %v2152 = vshrl.u32 %v2028, 16
      %v2154 = vrot.slane %v2152, 4
      %v2155 = vor.u32 %v2154, %v2150
      %v2156 = vrot.slane %v2155, 4
      %v2158 = vshll.u32 %v2029, 16
      %v2160 = vrot.slane %v2158, 5
      %v2161 = vsel %vm261, %v2156, %v2160
      %v2163 = vshrl.u32 %v2030, 16
      %v2165 = vrot.slane %v2163, 4
      %v2166 = vshll.u32 %v2030, 16
      %v2168 = vrot.slane %v2166, 5
      %v2169 = vor.u32 %v2165, %v2168
      %v2170 = vrot.slane %v2169, 4
      %v2172 = vshll.u32 %v2031, 16
      %v2174 = vrot.slane %v2172, 5
      %v2175 = vsel %vm261, %v2170, %v2174
      %v2176 = vshrl.u32 %v2031, 16
      %v2178 = vrot.slane %v2176, 4
      %v2179 = vor.u32 %v2178, %v2174
      %v2180 = vrot.slane %v2179, 4
      %v2182 = vshll.u32 %v2032, 16
      %v2184 = vrot.slane %v2182, 5
      %v2185 = vsel %vm261, %v2180, %v2184
      %v2187 = vshrl.u32 %v2033, 16
      %v2189 = vrot.slane %v2187, 4
      %v2190 = vshll.u32 %v2033, 16
      %v2192 = vrot.slane %v2190, 5
      %v2193 = vor.u32 %v2189, %v2192
      %v2194 = vrot.slane %v2193, 4
      %v2196 = vshll.u32 %v2034, 16
      %v2198 = vrot.slane %v2196, 5
      %v2199 = vsel %vm261, %v2194, %v2198
      %v2200 = vshrl.u32 %v2034, 16
      %v2202 = vrot.slane %v2200, 4
      %v2203 = vor.u32 %v2202, %v2198
      %v2204 = vrot.slane %v2203, 4
      %v2206 = vshll.u32 %v2035, 16
      %v2208 = vrot.slane %v2206, 5
      %v2209 = vsel %vm261, %v2204, %v2208
      %v2211 = vshrl.u32 %v2036, 16
      %v2213 = vrot.slane %v2211, 4
      %v2214 = vshll.u32 %v2036, 16
      %v2216 = vrot.slane %v2214, 5
      %v2217 = vor.u32 %v2213, %v2216
      %v2218 = vrot.slane %v2217, 4
      %v2220 = vshll.u32 %v2037, 16
      %v2222 = vrot.slane %v2220, 5
      %v2223 = vsel %vm261, %v2218, %v2222
      %v2224 = vshrl.u32 %v2037, 16
      %v2226 = vrot.slane %v2224, 4
      %v2227 = vor.u32 %v2226, %v2222
      %v2228 = vrot.slane %v2227, 4
      %v2230 = vshll.u32 %v2038, 16
      %v2232 = vrot.slane %v2230, 5
      %v2233 = vsel %vm261, %v2228, %v2232
      %v2235 = vshrl.u32 %v2039, 16
      %v2237 = vrot.slane %v2235, 4
      %v2238 = vshll.u32 %v2039, 16
      %v2240 = vrot.slane %v2238, 5
      %v2241 = vor.u32 %v2237, %v2240
      %v2242 = vrot.slane %v2241, 4
      %v2244 = vshll.u32 %v2040, 16
      %v2246 = vrot.slane %v2244, 5
      %v2247 = vsel %vm261, %v2242, %v2246
      %v2248 = vshrl.u32 %v2040, 16
      %v2250 = vrot.slane %v2248, 4
      %v2251 = vor.u32 %v2250, %v2246
      %v2252 = vrot.slane %v2251, 4
      %v2254 = vshll.u32 %v2041, 16
      %v2256 = vrot.slane %v2254, 5
      %v2257 = vsel %vm261, %v2252, %v2256
      %v2259 = vshrl.u32 %v2042, 16
      %v2261 = vrot.slane %v2259, 4
      %v2262 = vshll.u32 %v2042, 16
      %v2264 = vrot.slane %v2262, 5
      %v2265 = vor.u32 %v2261, %v2264
      %v2266 = vrot.slane %v2265, 4
      %v2268 = vshll.u32 %v2043, 16
      %v2270 = vrot.slane %v2268, 5
      %v2271 = vsel %vm261, %v2266, %v2270
      %v2272 = vshrl.u32 %v2043, 16
      %v2274 = vrot.slane %v2272, 4
      %v2275 = vor.u32 %v2274, %v2270
      %v2276 = vrot.slane %v2275, 4
      %v2278 = vshll.u32 %v2044, 16
      %v2280 = vrot.slane %v2278, 5
      %v2281 = vsel %vm261, %v2276, %v2280
      %v2283 = vshrl.u32 %v2045, 16
      %v2285 = vrot.slane %v2283, 4
      %v2286 = vshll.u32 %v2045, 16
      %v2288 = vrot.slane %v2286, 5
      %v2289 = vor.u32 %v2285, %v2288
      %v2290 = vrot.slane %v2289, 4
      %v2292 = vshll.u32 %v2046, 16
      %v2294 = vrot.slane %v2292, 5
      %v2295 = vsel %vm261, %v2290, %v2294
      %v2296 = vshrl.u32 %v2046, 16
      %v2298 = vrot.slane %v2296, 4
      %v2299 = vor.u32 %v2298, %v2294
      %v2300 = vrot.slane %v2299, 4
      %v2302 = vshll.u32 %v2047, 16
      %v2304 = vrot.slane %v2302, 5
      %v2305 = vsel %vm261, %v2300, %v2304
      %v2307 = vshrl.u32 %v2048, 16
      %v2309 = vrot.slane %v2307, 4
      %v2310 = vshll.u32 %v2048, 16
      %v2312 = vrot.slane %v2310, 5
      %v2313 = vor.u32 %v2309, %v2312
      %v2314 = vrot.slane %v2313, 4
      %v2316 = vshll.u32 %v2049, 16
      %v2318 = vrot.slane %v2316, 5
      %v2319 = vsel %vm261, %v2314, %v2318
      %v2320 = vshrl.u32 %v2049, 16
      %v2322 = vrot.slane %v2320, 4
      %v2323 = vor.u32 %v2322, %v2318
      %v2324 = vrot.slane %v2323, 4
      %v2326 = vshll.u32 %v2050, 16
      %v2328 = vrot.slane %v2326, 5
      %v2329 = vsel %vm261, %v2324, %v2328
      %v2331 = vshrl.u32 %v2051, 16
      %v2333 = vrot.slane %v2331, 4
      %v2334 = vshll.u32 %v2051, 16
      %v2336 = vrot.slane %v2334, 5
      %v2337 = vor.u32 %v2333, %v2336
      %v2338 = vrot.slane %v2337, 4
      %v2340 = vshll.u32 %v2052, 16
      %v2342 = vrot.slane %v2340, 5
      %v2343 = vsel %vm261, %v2338, %v2342
      %v2344 = vshrl.u32 %v2052, 16
      %v2346 = vrot.slane %v2344, 4
      %v2347 = vor.u32 %v2346, %v2342
      %v2348 = vrot.slane %v2347, 4
      %v2350 = vshll.u32 %v2053, 16
      %v2352 = vrot.slane %v2350, 5
      %v2353 = vsel %vm261, %v2348, %v2352
      %v2355 = vshrl.u32 %v2054, 16
      %v2357 = vrot.slane %v2355, 4
      %v2358 = vshll.u32 %v2054, 16
      %v2360 = vrot.slane %v2358, 5
      %v2361 = vor.u32 %v2357, %v2360
      %v2362 = vrot.slane %v2361, 4
      %v2364 = vshll.u32 %v2055, 16
      %v2366 = vrot.slane %v2364, 5
      %v2367 = vsel %vm261, %v2362, %v2366
      %v2368 = vshrl.u32 %v2055, 16
      %v2370 = vrot.slane %v2368, 4
      %v2371 = vor.u32 %v2370, %v2366
      %v2372 = vrot.slane %v2371, 4
      %v2374 = vshll.u32 %v2056, 16
      %v2376 = vrot.slane %v2374, 5
      %v2377 = vsel %vm261, %v2372, %v2376
      %v2379 = vshrl.u32 %v2057, 16
      %v2381 = vrot.slane %v2379, 4
      %v2382 = vshll.u32 %v2057, 16
      %v2384 = vrot.slane %v2382, 5
      %v2385 = vor.u32 %v2381, %v2384
      %v2386 = vrot.slane %v2385, 4
      %v2388 = vshll.u32 %v2058, 16
      %v2390 = vrot.slane %v2388, 5
      %v2391 = vsel %vm261, %v2386, %v2390
      %v2392 = vshrl.u32 %v2058, 16
      %v2394 = vrot.slane %v2392, 4
      %v2395 = vor.u32 %v2394, %v2390
      %v2396 = vrot.slane %v2395, 4
      %v2398 = vshll.u32 %v2059, 16
      %v2400 = vrot.slane %v2398, 5
      %v2401 = vsel %vm261, %v2396, %v2400
      %v2403 = vshrl.u32 %v2060, 16
      %v2405 = vrot.slane %v2403, 4
      %v2406 = vshll.u32 %v2060, 16
      %v2408 = vrot.slane %v2406, 5
      %v2409 = vor.u32 %v2405, %v2408
      %v2410 = vrot.slane %v2409, 4
      %v2412 = vshll.u32 %v2061, 16
      %v2414 = vrot.slane %v2412, 5
      %v2415 = vsel %vm261, %v2410, %v2414
      %v2416 = vshrl.u32 %v2061, 16
      %v2418 = vrot.slane %v2416, 4
      %v2419 = vor.u32 %v2418, %v2414
      %v2420 = vrot.slane %v2419, 4
      %v2422 = vshll.u32 %v2062, 16
      %v2424 = vrot.slane %v2422, 5
      %v2425 = vsel %vm261, %v2420, %v2424
      %v2427 = vshrl.u32 %v2063, 16
      %v2429 = vrot.slane %v2427, 4
      %v2430 = vshll.u32 %v2063, 16
      %v2432 = vrot.slane %v2430, 5
      %v2433 = vor.u32 %v2429, %v2432
      %v2434 = vrot.slane %v2433, 4
      %v2436 = vshll.u32 %v2064, 16
      %v2438 = vrot.slane %v2436, 5
      %v2439 = vsel %vm261, %v2434, %v2438
      %v2440 = vshrl.u32 %v2064, 16
      %v2442 = vrot.slane %v2440, 4
      %v2443 = vor.u32 %v2442, %v2438
      %v2444 = vrot.slane %v2443, 4
      %v2446 = vshll.u32 %v2065, 16
      %v2448 = vrot.slane %v2446, 5
      %v2449 = vsel %vm261, %v2444, %v2448
      %s2450 = scalar_lea.vmem %s1, 8
      %v2451 = vld [vmem:[%s2450] sm:$0x3]
      %v2452 = vunpack.c.l.b16 %v2079
      %v2453 = vunpack.c.l.b16 %v2089
      %v2454 = vunpack.c.l.b16 %v2103
      %v2455 = vunpack.c.l.b16 %v2113
      %v2456 = vunpack.c.l.b16 %v2127
      %v2457 = vunpack.c.l.b16 %v2137
      %v2458 = vunpack.c.l.b16 %v2151
      %v2459 = vunpack.c.l.b16 %v2161
      %v2460 = vunpack.c.l.b16 %v2175
      %v2461 = vunpack.c.l.b16 %v2185
      %v2462 = vunpack.c.l.b16 %v2199
      %v2463 = vunpack.c.l.b16 %v2209
      %v2464 = vunpack.c.l.b16 %v2223
      %v2465 = vunpack.c.l.b16 %v2233
      %v2466 = vunpack.c.l.b16 %v2247
      %v2467 = vunpack.c.l.b16 %v2257
      %v2468 = vunpack.c.l.b16 %v2271
      %v2469 = vunpack.c.l.b16 %v2281
      %v2470 = vunpack.c.l.b16 %v2295
      %v2471 = vunpack.c.l.b16 %v2305
      %v2472 = vunpack.c.l.b16 %v2319
      %v2473 = vunpack.c.l.b16 %v2329
      %v2474 = vunpack.c.l.b16 %v2343
      %v2475 = vunpack.c.l.b16 %v2353
      %v2476 = vunpack.c.l.b16 %v2367
      %v2477 = vunpack.c.l.b16 %v2377
      %v2478 = vunpack.c.l.b16 %v2391
      %v2479 = vunpack.c.l.b16 %v2401
      %v2480 = vunpack.c.l.b16 %v2415
      %v2481 = vunpack.c.l.b16 %v2425
      %v2482 = vunpack.c.l.b16 %v2439
      %v2483 = vunpack.c.l.b16 %v2449
      %v2484 = vpack.c.b16 %v2453, %v2452
      %v2485 = vpack.c.b16 %v2455, %v2454
      %v2486 = vpack.c.b16 %v2457, %v2456
      %v2487 = vpack.c.b16 %v2459, %v2458
      %v2488 = vpack.c.b16 %v2461, %v2460
      %v2489 = vpack.c.b16 %v2463, %v2462
      %v2490 = vpack.c.b16 %v2465, %v2464
      %v2491 = vpack.c.b16 %v2467, %v2466
      %v2492 = vpack.c.b16 %v2469, %v2468
      %v2493 = vpack.c.b16 %v2471, %v2470
      %v2494 = vpack.c.b16 %v2473, %v2472
      %v2495 = vpack.c.b16 %v2475, %v2474
      %v2496 = vpack.c.b16 %v2477, %v2476
      %v2497 = vpack.c.b16 %v2479, %v2478
      %v2498 = vpack.c.b16 %v2481, %v2480
      %v2499 = vpack.c.b16 %v2483, %v2482
      %v2501 = vsel %vm696, %v2484, 0
      %v2504 = vsel %vm696, %v2485, 0
      %v2507 = vsel %vm696, %v2486, 0
      %v2510 = vsel %vm696, %v2487, 0
      %v2513 = vsel %vm696, %v2488, 0
      %v2516 = vsel %vm696, %v2489, 0
      %v2519 = vsel %vm696, %v2490, 0
      %v2522 = vsel %vm696, %v2491, 0
      %v2525 = vsel %vm696, %v2492, 0
      %v2528 = vsel %vm696, %v2493, 0
      %v2531 = vsel %vm696, %v2494, 0
      %v2534 = vsel %vm696, %v2495, 0
      %v2537 = vsel %vm696, %v2496, 0
      %v2540 = vsel %vm696, %v2497, 0
      %v2543 = vsel %vm696, %v2498, 0
      %v2546 = vsel %vm696, %v2499, 0
      %v2549 = vsel %vm745, %v2451, 0
      %2551 = vmatprep.subr.bf16.mxu0 0
      %2552 = vmatpush1.bf16.msra.mxu0 %v2549
      %2553 = vmatprep.subr.bf16.mxu0 0
      %2554 = vmatpush1.bf16.msra.mxu0 0
      %2555 = vmatprep.subr.bf16.mxu0 0
      %2556 = vmatpush1.bf16.msra.mxu0 0
      %2557 = vmatprep.subr.bf16.mxu0 0
      %2558 = vmatpush1.bf16.msra.mxu0 0
      %2559 = vmatprep.subr.bf16.mxu0 0
      %2560 = vmatpush1.bf16.msra.mxu0 0
      %2561 = vmatprep.subr.bf16.mxu0 0
      %2562 = vmatpush1.bf16.msra.mxu0 0
      %2563 = vmatprep.subr.bf16.mxu0 0
      %2564 = vmatpush1.bf16.msra.mxu0 0
      %2565 = vmatprep.subr.bf16.mxu0 0
      %2566 = vmatpush1.bf16.msra.mxu0 0
      %2567 = vmatprep.subr.bf16.mxu0 0
      %2568 = vmatpush1.bf16.msra.mxu0 0
      %2569 = vmatprep.subr.bf16.mxu0 0
      %2570 = vmatpush1.bf16.msra.mxu0 0
      %2571 = vmatprep.subr.bf16.mxu0 0
      %2572 = vmatpush1.bf16.msra.mxu0 0
      %2573 = vmatprep.subr.bf16.mxu0 0
      %2574 = vmatpush1.bf16.msra.mxu0 0
      %2575 = vmatprep.subr.bf16.mxu0 0
      %2576 = vmatpush1.bf16.msra.mxu0 0
      %2577 = vmatprep.subr.bf16.mxu0 0
      %2578 = vmatpush1.bf16.msra.mxu0 0
      %2579 = vmatprep.subr.bf16.mxu0 0
      %2580 = vmatpush1.bf16.msra.mxu0 0
      %2581 = vmatprep.subr.bf16.mxu0 0
      %2582 = vmatpush1.bf16.msra.mxu0 0
      %2583 = vmatprep.mubr.bf16.mxu0 0
      %2584 = vmatmul.mubr.bf16.gmra.mrb[0].mxu0 %v2501
      %v2585 = vpop.f32.mrb[0].mxu0
      %v2586 = vadd.f32 0.0, %v2585
      %v2587 = vpop.f32.mrb[0].mxu0
      %v2588 = vpop.f32.mrb[0].mxu0
      %v2589 = vadd.f32 0.0, %v2588
      %v2590 = vpop.f32.mrb[0].mxu0
      %2591 = vmatprep.mubr.bf16.mxu0 0
      %2592 = vmatmul.mubr.bf16.gmra.mrb[0].mxu0 %v2504
      %v2593 = vpop.f32.mrb[0].mxu0
      %v2594 = vadd.f32 0.0, %v2593
      %v2595 = vpop.f32.mrb[0].mxu0
      %v2596 = vpop.f32.mrb[0].mxu0
      %v2597 = vadd.f32 0.0, %v2596
      %v2598 = vpop.f32.mrb[0].mxu0
      %2599 = vmatprep.mubr.bf16.mxu0 0
      %2600 = vmatmul.mubr.bf16.gmra.mrb[0].mxu0 %v2507
      %v2601 = vpop.f32.mrb[0].mxu0
      %v2602 = vadd.f32 0.0, %v2601
      %v2603 = vpop.f32.mrb[0].mxu0
      %v2604 = vpop.f32.mrb[0].mxu0
      %v2605 = vadd.f32 0.0, %v2604
      %v2606 = vpop.f32.mrb[0].mxu0
      %2607 = vmatprep.mubr.bf16.mxu0 0
      %2608 = vmatmul.mubr.bf16.gmra.mrb[0].mxu0 %v2510
      %v2609 = vpop.f32.mrb[0].mxu0
      %v2610 = vadd.f32 0.0, %v2609
      %v2611 = vpop.f32.mrb[0].mxu0
      %v2612 = vpop.f32.mrb[0].mxu0
      %v2613 = vadd.f32 0.0, %v2612
      %v2614 = vpop.f32.mrb[0].mxu0
      %2615 = vmatprep.mubr.bf16.mxu0 0
      %2616 = vmatmul.mubr.bf16.gmra.mrb[0].mxu0 %v2513
      %v2617 = vpop.f32.mrb[0].mxu0
      %v2618 = vadd.f32 0.0, %v2617
      %v2619 = vpop.f32.mrb[0].mxu0
      %v2620 = vpop.f32.mrb[0].mxu0
      %v2621 = vadd.f32 0.0, %v2620
      %v2622 = vpop.f32.mrb[0].mxu0
      %2623 = vmatprep.mubr.bf16.mxu0 0
      %2624 = vmatmul.mubr.bf16.gmra.mrb[0].mxu0 %v2516
      %v2625 = vpop.f32.mrb[0].mxu0
      %v2626 = vadd.f32 0.0, %v2625
      %v2627 = vpop.f32.mrb[0].mxu0
      %v2628 = vpop.f32.mrb[0].mxu0
      %v2629 = vadd.f32 0.0, %v2628
      %v2630 = vpop.f32.mrb[0].mxu0
      %2631 = vmatprep.mubr.bf16.mxu0 0
      %2632 = vmatmul.mubr.bf16.gmra.mrb[0].mxu0 %v2519
      %v2633 = vpop.f32.mrb[0].mxu0
      %v2634 = vadd.f32 0.0, %v2633
      %v2635 = vpop.f32.mrb[0].mxu0
      %v2636 = vpop.f32.mrb[0].mxu0
      %v2637 = vadd.f32 0.0, %v2636
      %v2638 = vpop.f32.mrb[0].mxu0
      %2639 = vmatprep.mubr.bf16.mxu0 0
      %2640 = vmatmul.mubr.bf16.gmra.mrb[0].mxu0 %v2522
      %v2641 = vpop.f32.mrb[0].mxu0
      %v2642 = vadd.f32 0.0, %v2641
      %v2643 = vpop.f32.mrb[0].mxu0
      %v2644 = vpop.f32.mrb[0].mxu0
      %v2645 = vadd.f32 0.0, %v2644
      %v2646 = vpop.f32.mrb[0].mxu0
      %2647 = vmatprep.mubr.bf16.mxu0 0
      %2648 = vmatmul.mubr.bf16.gmra.mrb[0].mxu0 %v2525
      %v2649 = vpop.f32.mrb[0].mxu0
      %v2650 = vadd.f32 0.0, %v2649
      %v2651 = vpop.f32.mrb[0].mxu0
      %v2652 = vpop.f32.mrb[0].mxu0
      %v2653 = vadd.f32 0.0, %v2652
      %v2654 = vpop.f32.mrb[0].mxu0
      %2655 = vmatprep.mubr.bf16.mxu0 0
      %2656 = vmatmul.mubr.bf16.gmra.mrb[0].mxu0 %v2528
      %v2657 = vpop.f32.mrb[0].mxu0
      %v2658 = vadd.f32 0.0, %v2657
      %v2659 = vpop.f32.mrb[0].mxu0
      %v2660 = vpop.f32.mrb[0].mxu0
      %v2661 = vadd.f32 0.0, %v2660
      %v2662 = vpop.f32.mrb[0].mxu0
      %2663 = vmatprep.mubr.bf16.mxu0 0
      %2664 = vmatmul.mubr.bf16.gmra.mrb[0].mxu0 %v2531
      %v2665 = vpop.f32.mrb[0].mxu0
      %v2666 = vadd.f32 0.0, %v2665
      %v2667 = vpop.f32.mrb[0].mxu0
      %v2668 = vpop.f32.mrb[0].mxu0
      %v2669 = vadd.f32 0.0, %v2668
      %v2670 = vpop.f32.mrb[0].mxu0
      %2671 = vmatprep.mubr.bf16.mxu0 0
      %2672 = vmatmul.mubr.bf16.gmra.mrb[0].mxu0 %v2534
      %v2673 = vpop.f32.mrb[0].mxu0
      %v2674 = vadd.f32 0.0, %v2673
      %v2675 = vpop.f32.mrb[0].mxu0
      %v2676 = vpop.f32.mrb[0].mxu0
      %v2677 = vadd.f32 0.0, %v2676
      %v2678 = vpop.f32.mrb[0].mxu0
      %2679 = vmatprep.mubr.bf16.mxu0 0
      %2680 = vmatmul.mubr.bf16.gmra.mrb[0].mxu0 %v2537
      %v2681 = vpop.f32.mrb[0].mxu0
      %v2682 = vadd.f32 0.0, %v2681
      %v2683 = vpop.f32.mrb[0].mxu0
      %v2684 = vpop.f32.mrb[0].mxu0
      %v2685 = vadd.f32 0.0, %v2684
      %v2686 = vpop.f32.mrb[0].mxu0
      %2687 = vmatprep.mubr.bf16.mxu0 0
      %2688 = vmatmul.mubr.bf16.gmra.mrb[0].mxu0 %v2540
      %v2689 = vpop.f32.mrb[0].mxu0
      %v2690 = vadd.f32 0.0, %v2689
      %v2691 = vpop.f32.mrb[0].mxu0
      %v2692 = vpop.f32.mrb[0].mxu0
      %v2693 = vadd.f32 0.0, %v2692
      %v2694 = vpop.f32.mrb[0].mxu0
      %2695 = vmatprep.mubr.bf16.mxu0 0
      %2696 = vmatmul.mubr.bf16.gmra.mrb[0].mxu0 %v2543
      %v2697 = vpop.f32.mrb[0].mxu0
      %v2698 = vadd.f32 0.0, %v2697
      %v2699 = vpop.f32.mrb[0].mxu0
      %v2700 = vpop.f32.mrb[0].mxu0
      %v2701 = vadd.f32 0.0, %v2700
      %v2702 = vpop.f32.mrb[0].mxu0
      %2703 = vmatprep.mubr.bf16.mxu0 0
      %2704 = vmatmul.mubr.bf16.gmra.mrb[0].mxu0 %v2546
      %v2705 = vpop.f32.mrb[0].mxu0
      %v2706 = vadd.f32 0.0, %v2705
      %v2707 = vpop.f32.mrb[0].mxu0
      %v2708 = vpop.f32.mrb[0].mxu0
      %v2709 = vadd.f32 0.0, %v2708
      %v2710 = vpop.f32.mrb[0].mxu0
      %2711 = vdwg.mxu0
      %v2712 = vadd.f32 %v1986, %v2586
      %v2713 = vadd.f32 %v1987, %v2589
      %v2714 = vadd.f32 %v1988, %v2594
      %v2715 = vadd.f32 %v1989, %v2597
      %v2716 = vadd.f32 %v1990, %v2602
      %v2717 = vadd.f32 %v1991, %v2605
      %v2718 = vadd.f32 %v1992, %v2610
      %v2719 = vadd.f32 %v1993, %v2613
      %v2720 = vadd.f32 %v1994, %v2618
      %v2721 = vadd.f32 %v1995, %v2621
      %v2722 = vadd.f32 %v1996, %v2626
      %v2723 = vadd.f32 %v1997, %v2629
      %v2724 = vadd.f32 %v1998, %v2634
      %v2725 = vadd.f32 %v1999, %v2637
      %v2726 = vadd.f32 %v2000, %v2642
      %v2727 = vadd.f32 %v2001, %v2645
      %v2728 = vadd.f32 %v2002, %v2650
      %v2729 = vadd.f32 %v2003, %v2653
      %v2730 = vadd.f32 %v2004, %v2658
      %v2731 = vadd.f32 %v2005, %v2661
      %v2732 = vadd.f32 %v2006, %v2666
      %v2733 = vadd.f32 %v2007, %v2669
      %v2734 = vadd.f32 %v2008, %v2674
      %v2735 = vadd.f32 %v2009, %v2677
      %v2736 = vadd.f32 %v2010, %v2682
      %v2737 = vadd.f32 %v2011, %v2685
      %v2738 = vadd.f32 %v2012, %v2690
      %v2739 = vadd.f32 %v2013, %v2693
      %v2740 = vadd.f32 %v2014, %v2698
      %v2741 = vadd.f32 %v2015, %v2701
      %v2742 = vadd.f32 %v2016, %v2706
      %v2743 = vadd.f32 %v2017, %v2709
      %v2744 = vld [vmem:[%s1659] sm:$0xe]
      %v2745 = vld [vmem:[%s1659 + $0xc] sm:$0xe]
      %v2746 = vld [vmem:[%s1659 + $0x18] sm:$0xe]
      %v2747 = vld [vmem:[%s1659 + $0x24] sm:$0xe]
      %v2748 = vld [vmem:[%s1659 + $0x30] sm:$0xe]
      %v2749 = vld [vmem:[%s1659 + $0x3c] sm:$0xe]
      %v2750 = vld [vmem:[%s1659 + $0x48] sm:$0xe]
      %v2751 = vld [vmem:[%s1659 + $0x54] sm:$0xe]
      %v2752 = vld [vmem:[%s1659 + $0x60] sm:$0xe]
      %v2753 = vld [vmem:[%s1659 + $0x6c] sm:$0xe]
      %v2754 = vld [vmem:[%s1659 + $0x78] sm:$0xe]
      %v2755 = vld [vmem:[%s1659 + $0x84] sm:$0xe]
      %v2756 = vld [vmem:[%s1659 + $0x90] sm:$0xe]
      %v2757 = vld [vmem:[%s1659 + $0x9c] sm:$0xe]
      %v2758 = vld [vmem:[%s1659 + $0xa8] sm:$0xe]
      %v2759 = vld [vmem:[%s1659 + $0xb4] sm:$0xe]
      %v2808 = vrot.slane %v2744, 5
      %v2809 = vrot.slane %v2808, 4
      %v2810 = vrot.slane %v2019, 5
      %v2811 = vsel %vm1252, %v2809, %v2810
      %v2812 = vrot.slane %v2810, 4
      %v2813 = vrot.slane %v2020, 5
      %v2814 = vsel %vm1252, %v2812, %v2813
      %v2815 = vrot.slane %v2745, 5
      %v2816 = vrot.slane %v2815, 4
      %v2817 = vrot.slane %v2022, 5
      %v2818 = vsel %vm1252, %v2816, %v2817
      %v2819 = vrot.slane %v2817, 4
      %v2820 = vrot.slane %v2023, 5
      %v2821 = vsel %vm1252, %v2819, %v2820
      %v2822 = vrot.slane %v2746, 5
      %v2823 = vrot.slane %v2822, 4
      %v2824 = vrot.slane %v2025, 5
      %v2825 = vsel %vm1252, %v2823, %v2824
      %v2826 = vrot.slane %v2824, 4
      %v2827 = vrot.slane %v2026, 5
      %v2828 = vsel %vm1252, %v2826, %v2827
      %v2829 = vrot.slane %v2747, 5
      %v2830 = vrot.slane %v2829, 4
      %v2831 = vrot.slane %v2028, 5
      %v2832 = vsel %vm1252, %v2830, %v2831
      %v2833 = vrot.slane %v2831, 4
      %v2834 = vrot.slane %v2029, 5
      %v2835 = vsel %vm1252, %v2833, %v2834
      %v2836 = vrot.slane %v2748, 5
      %v2837 = vrot.slane %v2836, 4
      %v2838 = vrot.slane %v2031, 5
      %v2839 = vsel %vm1252, %v2837, %v2838
      %v2840 = vrot.slane %v2838, 4
      %v2841 = vrot.slane %v2032, 5
      %v2842 = vsel %vm1252, %v2840, %v2841
      %v2843 = vrot.slane %v2749, 5
      %v2844 = vrot.slane %v2843, 4
      %v2845 = vrot.slane %v2034, 5
      %v2846 = vsel %vm1252, %v2844, %v2845
      %v2847 = vrot.slane %v2845, 4
      %v2848 = vrot.slane %v2035, 5
      %v2849 = vsel %vm1252, %v2847, %v2848
      %v2850 = vrot.slane %v2750, 5
      %v2851 = vrot.slane %v2850, 4
      %v2852 = vrot.slane %v2037, 5
      %v2853 = vsel %vm1252, %v2851, %v2852
      %v2854 = vrot.slane %v2852, 4
      %v2855 = vrot.slane %v2038, 5
      %v2856 = vsel %vm1252, %v2854, %v2855
      %v2857 = vrot.slane %v2751, 5
      %v2858 = vrot.slane %v2857, 4
      %v2859 = vrot.slane %v2040, 5
      %v2860 = vsel %vm1252, %v2858, %v2859
      %v2861 = vrot.slane %v2859, 4
      %v2862 = vrot.slane %v2041, 5
      %v2863 = vsel %vm1252, %v2861, %v2862
      %v2864 = vrot.slane %v2752, 5
      %v2865 = vrot.slane %v2864, 4
      %v2866 = vrot.slane %v2043, 5
      %v2867 = vsel %vm1252, %v2865, %v2866
      %v2868 = vrot.slane %v2866, 4
      %v2869 = vrot.slane %v2044, 5
      %v2870 = vsel %vm1252, %v2868, %v2869
      %v2871 = vrot.slane %v2753, 5
      %v2872 = vrot.slane %v2871, 4
      %v2873 = vrot.slane %v2046, 5
      %v2874 = vsel %vm1252, %v2872, %v2873
      %v2875 = vrot.slane %v2873, 4
      %v2876 = vrot.slane %v2047, 5
      %v2877 = vsel %vm1252, %v2875, %v2876
      %v2878 = vrot.slane %v2754, 5
      %v2879 = vrot.slane %v2878, 4
      %v2880 = vrot.slane %v2049, 5
      %v2881 = vsel %vm1252, %v2879, %v2880
      %v2882 = vrot.slane %v2880, 4
      %v2883 = vrot.slane %v2050, 5
      %v2884 = vsel %vm1252, %v2882, %v2883
      %v2885 = vrot.slane %v2755, 5
      %v2886 = vrot.slane %v2885, 4
      %v2887 = vrot.slane %v2052, 5
      %v2888 = vsel %vm1252, %v2886, %v2887
      %v2889 = vrot.slane %v2887, 4
      %v2890 = vrot.slane %v2053, 5
      %v2891 = vsel %vm1252, %v2889, %v2890
      %v2892 = vrot.slane %v2756, 5
      %v2893 = vrot.slane %v2892, 4
      %v2894 = vrot.slane %v2055, 5
      %v2895 = vsel %vm1252, %v2893, %v2894
      %v2896 = vrot.slane %v2894, 4
      %v2897 = vrot.slane %v2056, 5
      %v2898 = vsel %vm1252, %v2896, %v2897
      %v2899 = vrot.slane %v2757, 5
      %v2900 = vrot.slane %v2899, 4
      %v2901 = vrot.slane %v2058, 5
      %v2902 = vsel %vm1252, %v2900, %v2901
      %v2903 = vrot.slane %v2901, 4
      %v2904 = vrot.slane %v2059, 5
      %v2905 = vsel %vm1252, %v2903, %v2904
      %v2906 = vrot.slane %v2758, 5
      %v2907 = vrot.slane %v2906, 4
      %v2908 = vrot.slane %v2061, 5
      %v2909 = vsel %vm1252, %v2907, %v2908
      %v2910 = vrot.slane %v2908, 4
      %v2911 = vrot.slane %v2062, 5
      %v2912 = vsel %vm1252, %v2910, %v2911
      %v2913 = vrot.slane %v2759, 5
      %v2914 = vrot.slane %v2913, 4
      %v2915 = vrot.slane %v2064, 5
      %v2916 = vsel %vm1252, %v2914, %v2915
      %v2917 = vrot.slane %v2915, 4
      %v2918 = vrot.slane %v2065, 5
      %v2919 = vsel %vm1252, %v2917, %v2918
      %s2920 = scalar_lea.vmem %s1, 10
      %v2921 = vld [vmem:[%s2920] sm:$0x3]
      %v2922 = vunpack.c.l.b16 %v2811
      %v2923 = vunpack.c.l.b16 %v2814
      %v2924 = vunpack.c.l.b16 %v2818
      %v2925 = vunpack.c.l.b16 %v2821
      %v2926 = vunpack.c.l.b16 %v2825
      %v2927 = vunpack.c.l.b16 %v2828
      %v2928 = vunpack.c.l.b16 %v2832
      %v2929 = vunpack.c.l.b16 %v2835
      %v2930 = vunpack.c.l.b16 %v2839
      %v2931 = vunpack.c.l.b16 %v2842
      %v2932 = vunpack.c.l.b16 %v2846
      %v2933 = vunpack.c.l.b16 %v2849
      %v2934 = vunpack.c.l.b16 %v2853
      %v2935 = vunpack.c.l.b16 %v2856
      %v2936 = vunpack.c.l.b16 %v2860
      %v2937 = vunpack.c.l.b16 %v2863
      %v2938 = vunpack.c.l.b16 %v2867
      %v2939 = vunpack.c.l.b16 %v2870
      %v2940 = vunpack.c.l.b16 %v2874
      %v2941 = vunpack.c.l.b16 %v2877
      %v2942 = vunpack.c.l.b16 %v2881
      %v2943 = vunpack.c.l.b16 %v2884
      %v2944 = vunpack.c.l.b16 %v2888
      %v2945 = vunpack.c.l.b16 %v2891
      %v2946 = vunpack.c.l.b16 %v2895
      %v2947 = vunpack.c.l.b16 %v2898
      %v2948 = vunpack.c.l.b16 %v2902
      %v2949 = vunpack.c.l.b16 %v2905
      %v2950 = vunpack.c.l.b16 %v2909
      %v2951 = vunpack.c.l.b16 %v2912
      %v2952 = vunpack.c.l.b16 %v2916
      %v2953 = vunpack.c.l.b16 %v2919
      %v2954 = vpack.c.b16 %v2923, %v2922
      %v2955 = vpack.c.b16 %v2925, %v2924
      %v2956 = vpack.c.b16 %v2927, %v2926
      %v2957 = vpack.c.b16 %v2929, %v2928
      %v2958 = vpack.c.b16 %v2931, %v2930
      %v2959 = vpack.c.b16 %v2933, %v2932
      %v2960 = vpack.c.b16 %v2935, %v2934
      %v2961 = vpack.c.b16 %v2937, %v2936
      %v2962 = vpack.c.b16 %v2939, %v2938
      %v2963 = vpack.c.b16 %v2941, %v2940
      %v2964 = vpack.c.b16 %v2943, %v2942
      %v2965 = vpack.c.b16 %v2945, %v2944
      %v2966 = vpack.c.b16 %v2947, %v2946
      %v2967 = vpack.c.b16 %v2949, %v2948
      %v2968 = vpack.c.b16 %v2951, %v2950
      %v2969 = vpack.c.b16 %v2953, %v2952
      %v2971 = vsel %vm696, %v2954, 0
      %v2974 = vsel %vm696, %v2955, 0
      %v2977 = vsel %vm696, %v2956, 0
      %v2980 = vsel %vm696, %v2957, 0
      %v2983 = vsel %vm696, %v2958, 0
      %v2986 = vsel %vm696, %v2959, 0
      %v2989 = vsel %vm696, %v2960, 0
      %v2992 = vsel %vm696, %v2961, 0
      %v2995 = vsel %vm696, %v2962, 0
      %v2998 = vsel %vm696, %v2963, 0
      %v3001 = vsel %vm696, %v2964, 0
      %v3004 = vsel %vm696, %v2965, 0
      %v3007 = vsel %vm696, %v2966, 0
      %v3010 = vsel %vm696, %v2967, 0
      %v3013 = vsel %vm696, %v2968, 0
      %v3016 = vsel %vm696, %v2969, 0
      %v3019 = vsel %vm745, %v2921, 0
      %3021 = vmatprep.subr.bf16.mxu0 0
      %3022 = vmatpush1.bf16.msra.mxu0 %v3019
      %3023 = vmatprep.subr.bf16.mxu0 0
      %3024 = vmatpush1.bf16.msra.mxu0 0
      %3025 = vmatprep.subr.bf16.mxu0 0
      %3026 = vmatpush1.bf16.msra.mxu0 0
      %3027 = vmatprep.subr.bf16.mxu0 0
      %3028 = vmatpush1.bf16.msra.mxu0 0
      %3029 = vmatprep.subr.bf16.mxu0 0
      %3030 = vmatpush1.bf16.msra.mxu0 0
      %3031 = vmatprep.subr.bf16.mxu0 0
      %3032 = vmatpush1.bf16.msra.mxu0 0
      %3033 = vmatprep.subr.bf16.mxu0 0
      %3034 = vmatpush1.bf16.msra.mxu0 0
      %3035 = vmatprep.subr.bf16.mxu0 0
      %3036 = vmatpush1.bf16.msra.mxu0 0
      %3037 = vmatprep.subr.bf16.mxu0 0
      %3038 = vmatpush1.bf16.msra.mxu0 0
      %3039 = vmatprep.subr.bf16.mxu0 0
      %3040 = vmatpush1.bf16.msra.mxu0 0
      %3041 = vmatprep.subr.bf16.mxu0 0
      %3042 = vmatpush1.bf16.msra.mxu0 0
      %3043 = vmatprep.subr.bf16.mxu0 0
      %3044 = vmatpush1.bf16.msra.mxu0 0
      %3045 = vmatprep.subr.bf16.mxu0 0
      %3046 = vmatpush1.bf16.msra.mxu0 0
      %3047 = vmatprep.subr.bf16.mxu0 0
      %3048 = vmatpush1.bf16.msra.mxu0 0
      %3049 = vmatprep.subr.bf16.mxu0 0
      %3050 = vmatpush1.bf16.msra.mxu0 0
      %3051 = vmatprep.subr.bf16.mxu0 0
      %3052 = vmatpush1.bf16.msra.mxu0 0
      %3053 = vmatprep.mubr.bf16.mxu0 0
      %3054 = vmatmul.mubr.bf16.gmra.mrb[0].mxu0 %v2971
      %v3055 = vpop.f32.mrb[0].mxu0
      %v3056 = vadd.f32 0.0, %v3055
      %v3057 = vpop.f32.mrb[0].mxu0
      %v3058 = vpop.f32.mrb[0].mxu0
      %v3059 = vadd.f32 0.0, %v3058
      %v3060 = vpop.f32.mrb[0].mxu0
      %3061 = vmatprep.mubr.bf16.mxu0 0
      %3062 = vmatmul.mubr.bf16.gmra.mrb[0].mxu0 %v2974
      %v3063 = vpop.f32.mrb[0].mxu0
      %v3064 = vadd.f32 0.0, %v3063
      %v3065 = vpop.f32.mrb[0].mxu0
      %v3066 = vpop.f32.mrb[0].mxu0
      %v3067 = vadd.f32 0.0, %v3066
      %v3068 = vpop.f32.mrb[0].mxu0
      %3069 = vmatprep.mubr.bf16.mxu0 0
      %3070 = vmatmul.mubr.bf16.gmra.mrb[0].mxu0 %v2977
      %v3071 = vpop.f32.mrb[0].mxu0
      %v3072 = vadd.f32 0.0, %v3071
      %v3073 = vpop.f32.mrb[0].mxu0
      %v3074 = vpop.f32.mrb[0].mxu0
      %v3075 = vadd.f32 0.0, %v3074
      %v3076 = vpop.f32.mrb[0].mxu0
      %3077 = vmatprep.mubr.bf16.mxu0 0
      %3078 = vmatmul.mubr.bf16.gmra.mrb[0].mxu0 %v2980
      %v3079 = vpop.f32.mrb[0].mxu0
      %v3080 = vadd.f32 0.0, %v3079
      %v3081 = vpop.f32.mrb[0].mxu0
      %v3082 = vpop.f32.mrb[0].mxu0
      %v3083 = vadd.f32 0.0, %v3082
      %v3084 = vpop.f32.mrb[0].mxu0
      %3085 = vmatprep.mubr.bf16.mxu0 0
      %3086 = vmatmul.mubr.bf16.gmra.mrb[0].mxu0 %v2983
      %v3087 = vpop.f32.mrb[0].mxu0
      %v3088 = vadd.f32 0.0, %v3087
      %v3089 = vpop.f32.mrb[0].mxu0
      %v3090 = vpop.f32.mrb[0].mxu0
      %v3091 = vadd.f32 0.0, %v3090
      %v3092 = vpop.f32.mrb[0].mxu0
      %3093 = vmatprep.mubr.bf16.mxu0 0
      %3094 = vmatmul.mubr.bf16.gmra.mrb[0].mxu0 %v2986
      %v3095 = vpop.f32.mrb[0].mxu0
      %v3096 = vadd.f32 0.0, %v3095
      %v3097 = vpop.f32.mrb[0].mxu0
      %v3098 = vpop.f32.mrb[0].mxu0
      %v3099 = vadd.f32 0.0, %v3098
      %v3100 = vpop.f32.mrb[0].mxu0
      %3101 = vmatprep.mubr.bf16.mxu0 0
      %3102 = vmatmul.mubr.bf16.gmra.mrb[0].mxu0 %v2989
      %v3103 = vpop.f32.mrb[0].mxu0
      %v3104 = vadd.f32 0.0, %v3103
      %v3105 = vpop.f32.mrb[0].mxu0
      %v3106 = vpop.f32.mrb[0].mxu0
      %v3107 = vadd.f32 0.0, %v3106
      %v3108 = vpop.f32.mrb[0].mxu0
      %3109 = vmatprep.mubr.bf16.mxu0 0
      %3110 = vmatmul.mubr.bf16.gmra.mrb[0].mxu0 %v2992
      %v3111 = vpop.f32.mrb[0].mxu0
      %v3112 = vadd.f32 0.0, %v3111
      %v3113 = vpop.f32.mrb[0].mxu0
      %v3114 = vpop.f32.mrb[0].mxu0
      %v3115 = vadd.f32 0.0, %v3114
      %v3116 = vpop.f32.mrb[0].mxu0
      %3117 = vmatprep.mubr.bf16.mxu0 0
      %3118 = vmatmul.mubr.bf16.gmra.mrb[0].mxu0 %v2995
      %v3119 = vpop.f32.mrb[0].mxu0
      %v3120 = vadd.f32 0.0, %v3119
      %v3121 = vpop.f32.mrb[0].mxu0
      %v3122 = vpop.f32.mrb[0].mxu0
      %v3123 = vadd.f32 0.0, %v3122
      %v3124 = vpop.f32.mrb[0].mxu0
      %3125 = vmatprep.mubr.bf16.mxu0 0
      %3126 = vmatmul.mubr.bf16.gmra.mrb[0].mxu0 %v2998
      %v3127 = vpop.f32.mrb[0].mxu0
      %v3128 = vadd.f32 0.0, %v3127
      %v3129 = vpop.f32.mrb[0].mxu0
      %v3130 = vpop.f32.mrb[0].mxu0
      %v3131 = vadd.f32 0.0, %v3130
      %v3132 = vpop.f32.mrb[0].mxu0
      %3133 = vmatprep.mubr.bf16.mxu0 0
      %3134 = vmatmul.mubr.bf16.gmra.mrb[0].mxu0 %v3001
      %v3135 = vpop.f32.mrb[0].mxu0
      %v3136 = vadd.f32 0.0, %v3135
      %v3137 = vpop.f32.mrb[0].mxu0
      %v3138 = vpop.f32.mrb[0].mxu0
      %v3139 = vadd.f32 0.0, %v3138
      %v3140 = vpop.f32.mrb[0].mxu0
      %3141 = vmatprep.mubr.bf16.mxu0 0
      %3142 = vmatmul.mubr.bf16.gmra.mrb[0].mxu0 %v3004
      %v3143 = vpop.f32.mrb[0].mxu0
      %v3144 = vadd.f32 0.0, %v3143
      %v3145 = vpop.f32.mrb[0].mxu0
      %v3146 = vpop.f32.mrb[0].mxu0
      %v3147 = vadd.f32 0.0, %v3146
      %v3148 = vpop.f32.mrb[0].mxu0
      %3149 = vmatprep.mubr.bf16.mxu0 0
      %3150 = vmatmul.mubr.bf16.gmra.mrb[0].mxu0 %v3007
      %v3151 = vpop.f32.mrb[0].mxu0
      %v3152 = vadd.f32 0.0, %v3151
      %v3153 = vpop.f32.mrb[0].mxu0
      %v3154 = vpop.f32.mrb[0].mxu0
      %v3155 = vadd.f32 0.0, %v3154
      %v3156 = vpop.f32.mrb[0].mxu0
      %3157 = vmatprep.mubr.bf16.mxu0 0
      %3158 = vmatmul.mubr.bf16.gmra.mrb[0].mxu0 %v3010
      %v3159 = vpop.f32.mrb[0].mxu0
      %v3160 = vadd.f32 0.0, %v3159
      %v3161 = vpop.f32.mrb[0].mxu0
      %v3162 = vpop.f32.mrb[0].mxu0
      %v3163 = vadd.f32 0.0, %v3162
      %v3164 = vpop.f32.mrb[0].mxu0
      %3165 = vmatprep.mubr.bf16.mxu0 0
      %3166 = vmatmul.mubr.bf16.gmra.mrb[0].mxu0 %v3013
      %v3167 = vpop.f32.mrb[0].mxu0
      %v3168 = vadd.f32 0.0, %v3167
      %v3169 = vpop.f32.mrb[0].mxu0
      %v3170 = vpop.f32.mrb[0].mxu0
      %v3171 = vadd.f32 0.0, %v3170
      %v3172 = vpop.f32.mrb[0].mxu0
      %3173 = vmatprep.mubr.bf16.mxu0 0
      %3174 = vmatmul.mubr.bf16.gmra.mrb[0].mxu0 %v3016
      %v3175 = vpop.f32.mrb[0].mxu0
      %v3176 = vadd.f32 0.0, %v3175
      %v3177 = vpop.f32.mrb[0].mxu0
      %v3178 = vpop.f32.mrb[0].mxu0
      %v3179 = vadd.f32 0.0, %v3178
      %v3180 = vpop.f32.mrb[0].mxu0
      %3181 = vdwg.mxu0
      %v3182 = vadd.f32 %v2712, %v3056
      %v3183 = vadd.f32 %v2713, %v3059
      %v3184 = vadd.f32 %v2714, %v3064
      %v3185 = vadd.f32 %v2715, %v3067
      %v3186 = vadd.f32 %v2716, %v3072
      %v3187 = vadd.f32 %v2717, %v3075
      %v3188 = vadd.f32 %v2718, %v3080
      %v3189 = vadd.f32 %v2719, %v3083
      %v3190 = vadd.f32 %v2720, %v3088
      %v3191 = vadd.f32 %v2721, %v3091
      %v3192 = vadd.f32 %v2722, %v3096
      %v3193 = vadd.f32 %v2723, %v3099
      %v3194 = vadd.f32 %v2724, %v3104
      %v3195 = vadd.f32 %v2725, %v3107
      %v3196 = vadd.f32 %v2726, %v3112
      %v3197 = vadd.f32 %v2727, %v3115
      %v3198 = vadd.f32 %v2728, %v3120
      %v3199 = vadd.f32 %v2729, %v3123
      %v3200 = vadd.f32 %v2730, %v3128
      %v3201 = vadd.f32 %v2731, %v3131
      %v3202 = vadd.f32 %v2732, %v3136
      %v3203 = vadd.f32 %v2733, %v3139
      %v3204 = vadd.f32 %v2734, %v3144
      %v3205 = vadd.f32 %v2735, %v3147
      %v3206 = vadd.f32 %v2736, %v3152
      %v3207 = vadd.f32 %v2737, %v3155
      %v3208 = vadd.f32 %v2738, %v3160
      %v3209 = vadd.f32 %v2739, %v3163
      %v3210 = vadd.f32 %v2740, %v3168
      %v3211 = vadd.f32 %v2741, %v3171
      %v3212 = vadd.f32 %v2742, %v3176
      %v3213 = vadd.f32 %v2743, %v3179
      %s3214 = scalar_lea.vmem %s199, 24
      %v3215 = vld [vmem:[%s3214] sm:$0xf]
      %v3216 = vld [vmem:[%s3214 + $0x4] sm:$0xf]
      %v3217 = vld [vmem:[%s3214 + $0xc] sm:$0xf]
      %v3218 = vld [vmem:[%s3214 + $0x10] sm:$0xf]
      %v3219 = vld [vmem:[%s3214 + $0x18] sm:$0xf]
      %v3220 = vld [vmem:[%s3214 + $0x1c] sm:$0xf]
      %v3221 = vld [vmem:[%s3214 + $0x24] sm:$0xf]
      %v3222 = vld [vmem:[%s3214 + $0x28] sm:$0xf]
      %v3223 = vld [vmem:[%s3214 + $0x30] sm:$0xf]
      %v3224 = vld [vmem:[%s3214 + $0x34] sm:$0xf]
      %v3225 = vld [vmem:[%s3214 + $0x3c] sm:$0xf]
      %v3226 = vld [vmem:[%s3214 + $0x40] sm:$0xf]
      %v3227 = vld [vmem:[%s3214 + $0x48] sm:$0xf]
      %v3228 = vld [vmem:[%s3214 + $0x4c] sm:$0xf]
      %v3229 = vld [vmem:[%s3214 + $0x54] sm:$0xf]
      %v3230 = vld [vmem:[%s3214 + $0x58] sm:$0xf]
      %v3231 = vld [vmem:[%s3214 + $0x60] sm:$0xf]
      %v3232 = vld [vmem:[%s3214 + $0x64] sm:$0xf]
      %v3233 = vld [vmem:[%s3214 + $0x6c] sm:$0xf]
      %v3234 = vld [vmem:[%s3214 + $0x70] sm:$0xf]
      %v3235 = vld [vmem:[%s3214 + $0x78] sm:$0xf]
      %v3236 = vld [vmem:[%s3214 + $0x7c] sm:$0xf]
      %v3237 = vld [vmem:[%s3214 + $0x84] sm:$0xf]
      %v3238 = vld [vmem:[%s3214 + $0x88] sm:$0xf]
      %v3239 = vld [vmem:[%s3214 + $0x90] sm:$0xf]
      %v3240 = vld [vmem:[%s3214 + $0x94] sm:$0xf]
      %v3241 = vld [vmem:[%s3214 + $0x9c] sm:$0xf]
      %v3242 = vld [vmem:[%s3214 + $0xa0] sm:$0xf]
      %v3243 = vld [vmem:[%s3214 + $0xa8] sm:$0xf]
      %v3244 = vld [vmem:[%s3214 + $0xac] sm:$0xf]
      %v3245 = vld [vmem:[%s3214 + $0xb4] sm:$0xf]
      %v3246 = vld [vmem:[%s3214 + $0xb8] sm:$0xf]
      %s3247 = scalar_lea.vmem %s1, 12
      %v3248 = vld [vmem:[%s3247] sm:$0x3]
      %v3281 = vunpack.c.l.b16 %v3215
      %v3282 = vunpack.c.l.b16 %v3216
      %v3283 = vunpack.c.l.b16 %v3217
      %v3284 = vunpack.c.l.b16 %v3218
      %v3285 = vunpack.c.l.b16 %v3219
      %v3286 = vunpack.c.l.b16 %v3220
      %v3287 = vunpack.c.l.b16 %v3221
      %v3288 = vunpack.c.l.b16 %v3222
      %v3289 = vunpack.c.l.b16 %v3223
      %v3290 = vunpack.c.l.b16 %v3224
      %v3291 = vunpack.c.l.b16 %v3225
      %v3292 = vunpack.c.l.b16 %v3226
      %v3293 = vunpack.c.l.b16 %v3227
      %v3294 = vunpack.c.l.b16 %v3228
      %v3295 = vunpack.c.l.b16 %v3229
      %v3296 = vunpack.c.l.b16 %v3230
      %v3297 = vunpack.c.l.b16 %v3231
      %v3298 = vunpack.c.l.b16 %v3232
      %v3299 = vunpack.c.l.b16 %v3233
      %v3300 = vunpack.c.l.b16 %v3234
      %v3301 = vunpack.c.l.b16 %v3235
      %v3302 = vunpack.c.l.b16 %v3236
      %v3303 = vunpack.c.l.b16 %v3237
      %v3304 = vunpack.c.l.b16 %v3238
      %v3305 = vunpack.c.l.b16 %v3239
      %v3306 = vunpack.c.l.b16 %v3240
      %v3307 = vunpack.c.l.b16 %v3241
      %v3308 = vunpack.c.l.b16 %v3242
      %v3309 = vunpack.c.l.b16 %v3243
      %v3310 = vunpack.c.l.b16 %v3244
      %v3311 = vunpack.c.l.b16 %v3245
      %v3312 = vunpack.c.l.b16 %v3246
      %v3313 = vpack.c.b16 %v3282, %v3281
      %v3314 = vpack.c.b16 %v3284, %v3283
      %v3315 = vpack.c.b16 %v3286, %v3285
      %v3316 = vpack.c.b16 %v3288, %v3287
      %v3317 = vpack.c.b16 %v3290, %v3289
      %v3318 = vpack.c.b16 %v3292, %v3291
      %v3319 = vpack.c.b16 %v3294, %v3293
      %v3320 = vpack.c.b16 %v3296, %v3295
      %v3321 = vpack.c.b16 %v3298, %v3297
      %v3322 = vpack.c.b16 %v3300, %v3299
      %v3323 = vpack.c.b16 %v3302, %v3301
      %v3324 = vpack.c.b16 %v3304, %v3303
      %v3325 = vpack.c.b16 %v3306, %v3305
      %v3326 = vpack.c.b16 %v3308, %v3307
      %v3327 = vpack.c.b16 %v3310, %v3309
      %v3328 = vpack.c.b16 %v3312, %v3311
      %v3330 = vsel %vm696, %v3313, 0
      %v3333 = vsel %vm696, %v3314, 0
      %v3336 = vsel %vm696, %v3315, 0
      %v3339 = vsel %vm696, %v3316, 0
      %v3342 = vsel %vm696, %v3317, 0
      %v3345 = vsel %vm696, %v3318, 0
      %v3348 = vsel %vm696, %v3319, 0
      %v3351 = vsel %vm696, %v3320, 0
      %v3354 = vsel %vm696, %v3321, 0
      %v3357 = vsel %vm696, %v3322, 0
      %v3360 = vsel %vm696, %v3323, 0
      %v3363 = vsel %vm696, %v3324, 0
      %v3366 = vsel %vm696, %v3325, 0
      %v3369 = vsel %vm696, %v3326, 0
      %v3372 = vsel %vm696, %v3327, 0
      %v3375 = vsel %vm696, %v3328, 0
      %v3378 = vsel %vm745, %v3248, 0
      %3380 = vmatprep.subr.bf16.mxu0 0
      %3381 = vmatpush1.bf16.msra.mxu0 %v3378
      %3382 = vmatprep.subr.bf16.mxu0 0
      %3383 = vmatpush1.bf16.msra.mxu0 0
      %3384 = vmatprep.subr.bf16.mxu0 0
      %3385 = vmatpush1.bf16.msra.mxu0 0
      %3386 = vmatprep.subr.bf16.mxu0 0
      %3387 = vmatpush1.bf16.msra.mxu0 0
      %3388 = vmatprep.subr.bf16.mxu0 0
      %3389 = vmatpush1.bf16.msra.mxu0 0
      %3390 = vmatprep.subr.bf16.mxu0 0
      %3391 = vmatpush1.bf16.msra.mxu0 0
      %3392 = vmatprep.subr.bf16.mxu0 0
      %3393 = vmatpush1.bf16.msra.mxu0 0
      %3394 = vmatprep.subr.bf16.mxu0 0
      %3395 = vmatpush1.bf16.msra.mxu0 0
      %3396 = vmatprep.subr.bf16.mxu0 0
      %3397 = vmatpush1.bf16.msra.mxu0 0
      %3398 = vmatprep.subr.bf16.mxu0 0
      %3399 = vmatpush1.bf16.msra.mxu0 0
      %3400 = vmatprep.subr.bf16.mxu0 0
      %3401 = vmatpush1.bf16.msra.mxu0 0
      %3402 = vmatprep.subr.bf16.mxu0 0
      %3403 = vmatpush1.bf16.msra.mxu0 0
      %3404 = vmatprep.subr.bf16.mxu0 0
      %3405 = vmatpush1.bf16.msra.mxu0 0
      %3406 = vmatprep.subr.bf16.mxu0 0
      %3407 = vmatpush1.bf16.msra.mxu0 0
      %3408 = vmatprep.subr.bf16.mxu0 0
      %3409 = vmatpush1.bf16.msra.mxu0 0
      %3410 = vmatprep.subr.bf16.mxu0 0
      %3411 = vmatpush1.bf16.msra.mxu0 0
      %3412 = vmatprep.mubr.bf16.mxu0 0
      %3413 = vmatmul.mubr.bf16.gmra.mrb[0].mxu0 %v3330
      %v3414 = vpop.f32.mrb[0].mxu0
      %v3415 = vadd.f32 0.0, %v3414
      %v3416 = vpop.f32.mrb[0].mxu0
      %v3417 = vpop.f32.mrb[0].mxu0
      %v3418 = vadd.f32 0.0, %v3417
      %v3419 = vpop.f32.mrb[0].mxu0
      %3420 = vmatprep.mubr.bf16.mxu0 0
      %3421 = vmatmul.mubr.bf16.gmra.mrb[0].mxu0 %v3333
      %v3422 = vpop.f32.mrb[0].mxu0
      %v3423 = vadd.f32 0.0, %v3422
      %v3424 = vpop.f32.mrb[0].mxu0
      %v3425 = vpop.f32.mrb[0].mxu0
      %v3426 = vadd.f32 0.0, %v3425
      %v3427 = vpop.f32.mrb[0].mxu0
      %3428 = vmatprep.mubr.bf16.mxu0 0
      %3429 = vmatmul.mubr.bf16.gmra.mrb[0].mxu0 %v3336
      %v3430 = vpop.f32.mrb[0].mxu0
      %v3431 = vadd.f32 0.0, %v3430
      %v3432 = vpop.f32.mrb[0].mxu0
      %v3433 = vpop.f32.mrb[0].mxu0
      %v3434 = vadd.f32 0.0, %v3433
      %v3435 = vpop.f32.mrb[0].mxu0
      %3436 = vmatprep.mubr.bf16.mxu0 0
      %3437 = vmatmul.mubr.bf16.gmra.mrb[0].mxu0 %v3339
      %v3438 = vpop.f32.mrb[0].mxu0
      %v3439 = vadd.f32 0.0, %v3438
      %v3440 = vpop.f32.mrb[0].mxu0
      %v3441 = vpop.f32.mrb[0].mxu0
      %v3442 = vadd.f32 0.0, %v3441
      %v3443 = vpop.f32.mrb[0].mxu0
      %3444 = vmatprep.mubr.bf16.mxu0 0
      %3445 = vmatmul.mubr.bf16.gmra.mrb[0].mxu0 %v3342
      %v3446 = vpop.f32.mrb[0].mxu0
      %v3447 = vadd.f32 0.0, %v3446
      %v3448 = vpop.f32.mrb[0].mxu0
      %v3449 = vpop.f32.mrb[0].mxu0
      %v3450 = vadd.f32 0.0, %v3449
      %v3451 = vpop.f32.mrb[0].mxu0
      %3452 = vmatprep.mubr.bf16.mxu0 0
      %3453 = vmatmul.mubr.bf16.gmra.mrb[0].mxu0 %v3345
      %v3454 = vpop.f32.mrb[0].mxu0
      %v3455 = vadd.f32 0.0, %v3454
      %v3456 = vpop.f32.mrb[0].mxu0
      %v3457 = vpop.f32.mrb[0].mxu0
      %v3458 = vadd.f32 0.0, %v3457
      %v3459 = vpop.f32.mrb[0].mxu0
      %3460 = vmatprep.mubr.bf16.mxu0 0
      %3461 = vmatmul.mubr.bf16.gmra.mrb[0].mxu0 %v3348
      %v3462 = vpop.f32.mrb[0].mxu0
      %v3463 = vadd.f32 0.0, %v3462
      %v3464 = vpop.f32.mrb[0].mxu0
      %v3465 = vpop.f32.mrb[0].mxu0
      %v3466 = vadd.f32 0.0, %v3465
      %v3467 = vpop.f32.mrb[0].mxu0
      %3468 = vmatprep.mubr.bf16.mxu0 0
      %3469 = vmatmul.mubr.bf16.gmra.mrb[0].mxu0 %v3351
      %v3470 = vpop.f32.mrb[0].mxu0
      %v3471 = vadd.f32 0.0, %v3470
      %v3472 = vpop.f32.mrb[0].mxu0
      %v3473 = vpop.f32.mrb[0].mxu0
      %v3474 = vadd.f32 0.0, %v3473
      %v3475 = vpop.f32.mrb[0].mxu0
      %3476 = vmatprep.mubr.bf16.mxu0 0
      %3477 = vmatmul.mubr.bf16.gmra.mrb[0].mxu0 %v3354
      %v3478 = vpop.f32.mrb[0].mxu0
      %v3479 = vadd.f32 0.0, %v3478
      %v3480 = vpop.f32.mrb[0].mxu0
      %v3481 = vpop.f32.mrb[0].mxu0
      %v3482 = vadd.f32 0.0, %v3481
      %v3483 = vpop.f32.mrb[0].mxu0
      %3484 = vmatprep.mubr.bf16.mxu0 0
      %3485 = vmatmul.mubr.bf16.gmra.mrb[0].mxu0 %v3357
      %v3486 = vpop.f32.mrb[0].mxu0
      %v3487 = vadd.f32 0.0, %v3486
      %v3488 = vpop.f32.mrb[0].mxu0
      %v3489 = vpop.f32.mrb[0].mxu0
      %v3490 = vadd.f32 0.0, %v3489
      %v3491 = vpop.f32.mrb[0].mxu0
      %3492 = vmatprep.mubr.bf16.mxu0 0
      %3493 = vmatmul.mubr.bf16.gmra.mrb[0].mxu0 %v3360
      %v3494 = vpop.f32.mrb[0].mxu0
      %v3495 = vadd.f32 0.0, %v3494
      %v3496 = vpop.f32.mrb[0].mxu0
      %v3497 = vpop.f32.mrb[0].mxu0
      %v3498 = vadd.f32 0.0, %v3497
      %v3499 = vpop.f32.mrb[0].mxu0
      %3500 = vmatprep.mubr.bf16.mxu0 0
      %3501 = vmatmul.mubr.bf16.gmra.mrb[0].mxu0 %v3363
      %v3502 = vpop.f32.mrb[0].mxu0
      %v3503 = vadd.f32 0.0, %v3502
      %v3504 = vpop.f32.mrb[0].mxu0
      %v3505 = vpop.f32.mrb[0].mxu0
      %v3506 = vadd.f32 0.0, %v3505
      %v3507 = vpop.f32.mrb[0].mxu0
      %3508 = vmatprep.mubr.bf16.mxu0 0
      %3509 = vmatmul.mubr.bf16.gmra.mrb[0].mxu0 %v3366
      %v3510 = vpop.f32.mrb[0].mxu0
      %v3511 = vadd.f32 0.0, %v3510
      %v3512 = vpop.f32.mrb[0].mxu0
      %v3513 = vpop.f32.mrb[0].mxu0
      %v3514 = vadd.f32 0.0, %v3513
      %v3515 = vpop.f32.mrb[0].mxu0
      %3516 = vmatprep.mubr.bf16.mxu0 0
      %3517 = vmatmul.mubr.bf16.gmra.mrb[0].mxu0 %v3369
      %v3518 = vpop.f32.mrb[0].mxu0
      %v3519 = vadd.f32 0.0, %v3518
      %v3520 = vpop.f32.mrb[0].mxu0
      %v3521 = vpop.f32.mrb[0].mxu0
      %v3522 = vadd.f32 0.0, %v3521
      %v3523 = vpop.f32.mrb[0].mxu0
      %3524 = vmatprep.mubr.bf16.mxu0 0
      %3525 = vmatmul.mubr.bf16.gmra.mrb[0].mxu0 %v3372
      %v3526 = vpop.f32.mrb[0].mxu0
      %v3527 = vadd.f32 0.0, %v3526
      %v3528 = vpop.f32.mrb[0].mxu0
      %v3529 = vpop.f32.mrb[0].mxu0
      %v3530 = vadd.f32 0.0, %v3529
      %v3531 = vpop.f32.mrb[0].mxu0
      %3532 = vmatprep.mubr.bf16.mxu0 0
      %3533 = vmatmul.mubr.bf16.gmra.mrb[0].mxu0 %v3375
      %v3534 = vpop.f32.mrb[0].mxu0
      %v3535 = vadd.f32 0.0, %v3534
      %v3536 = vpop.f32.mrb[0].mxu0
      %v3537 = vpop.f32.mrb[0].mxu0
      %v3538 = vadd.f32 0.0, %v3537
      %v3539 = vpop.f32.mrb[0].mxu0
      %3540 = vdwg.mxu0
      %v3541 = vadd.f32 %v3182, %v3415
      %v3542 = vadd.f32 %v3183, %v3418
      %v3543 = vadd.f32 %v3184, %v3423
      %v3544 = vadd.f32 %v3185, %v3426
      %v3545 = vadd.f32 %v3186, %v3431
      %v3546 = vadd.f32 %v3187, %v3434
      %v3547 = vadd.f32 %v3188, %v3439
      %v3548 = vadd.f32 %v3189, %v3442
      %v3549 = vadd.f32 %v3190, %v3447
      %v3550 = vadd.f32 %v3191, %v3450
      %v3551 = vadd.f32 %v3192, %v3455
      %v3552 = vadd.f32 %v3193, %v3458
      %v3553 = vadd.f32 %v3194, %v3463
      %v3554 = vadd.f32 %v3195, %v3466
      %v3555 = vadd.f32 %v3196, %v3471
      %v3556 = vadd.f32 %v3197, %v3474
      %v3557 = vadd.f32 %v3198, %v3479
      %v3558 = vadd.f32 %v3199, %v3482
      %v3559 = vadd.f32 %v3200, %v3487
      %v3560 = vadd.f32 %v3201, %v3490
      %v3561 = vadd.f32 %v3202, %v3495
      %v3562 = vadd.f32 %v3203, %v3498
      %v3563 = vadd.f32 %v3204, %v3503
      %v3564 = vadd.f32 %v3205, %v3506
      %v3565 = vadd.f32 %v3206, %v3511
      %v3566 = vadd.f32 %v3207, %v3514
      %v3567 = vadd.f32 %v3208, %v3519
      %v3568 = vadd.f32 %v3209, %v3522
      %v3569 = vadd.f32 %v3210, %v3527
      %v3570 = vadd.f32 %v3211, %v3530
      %v3571 = vadd.f32 %v3212, %v3535
      %v3572 = vadd.f32 %v3213, %v3538
      %v3573 = vld [vmem:[%s3214] sm:$0xf]
      %v3574 = vld [vmem:[%s3214 + $0x4] sm:$0xf]
      %v3575 = vld [vmem:[%s3214 + $0x8] sm:$0x1]
      %v3576 = vld [vmem:[%s3214 + $0xc] sm:$0xf]
      %v3577 = vld [vmem:[%s3214 + $0x10] sm:$0xf]
      %v3578 = vld [vmem:[%s3214 + $0x14] sm:$0x1]
      %v3579 = vld [vmem:[%s3214 + $0x18] sm:$0xf]
      %v3580 = vld [vmem:[%s3214 + $0x1c] sm:$0xf]
      %v3581 = vld [vmem:[%s3214 + $0x20] sm:$0x1]
      %v3582 = vld [vmem:[%s3214 + $0x24] sm:$0xf]
      %v3583 = vld [vmem:[%s3214 + $0x28] sm:$0xf]
      %v3584 = vld [vmem:[%s3214 + $0x2c] sm:$0x1]
      %v3585 = vld [vmem:[%s3214 + $0x30] sm:$0xf]
      %v3586 = vld [vmem:[%s3214 + $0x34] sm:$0xf]
      %v3587 = vld [vmem:[%s3214 + $0x38] sm:$0x1]
      %v3588 = vld [vmem:[%s3214 + $0x3c] sm:$0xf]
      %v3589 = vld [vmem:[%s3214 + $0x40] sm:$0xf]
      %v3590 = vld [vmem:[%s3214 + $0x44] sm:$0x1]
      %v3591 = vld [vmem:[%s3214 + $0x48] sm:$0xf]
      %v3592 = vld [vmem:[%s3214 + $0x4c] sm:$0xf]
      %v3593 = vld [vmem:[%s3214 + $0x50] sm:$0x1]
      %v3594 = vld [vmem:[%s3214 + $0x54] sm:$0xf]
      %v3595 = vld [vmem:[%s3214 + $0x58] sm:$0xf]
      %v3596 = vld [vmem:[%s3214 + $0x5c] sm:$0x1]
      %v3597 = vld [vmem:[%s3214 + $0x60] sm:$0xf]
      %v3598 = vld [vmem:[%s3214 + $0x64] sm:$0xf]
      %v3599 = vld [vmem:[%s3214 + $0x68] sm:$0x1]
      %v3600 = vld [vmem:[%s3214 + $0x6c] sm:$0xf]
      %v3601 = vld [vmem:[%s3214 + $0x70] sm:$0xf]
      %v3602 = vld [vmem:[%s3214 + $0x74] sm:$0x1]
      %v3603 = vld [vmem:[%s3214 + $0x78] sm:$0xf]
      %v3604 = vld [vmem:[%s3214 + $0x7c] sm:$0xf]
      %v3605 = vld [vmem:[%s3214 + $0x80] sm:$0x1]
      %v3606 = vld [vmem:[%s3214 + $0x84] sm:$0xf]
      %v3607 = vld [vmem:[%s3214 + $0x88] sm:$0xf]
      %v3608 = vld [vmem:[%s3214 + $0x8c] sm:$0x1]
      %v3609 = vld [vmem:[%s3214 + $0x90] sm:$0xf]
      %v3610 = vld [vmem:[%s3214 + $0x94] sm:$0xf]
      %v3611 = vld [vmem:[%s3214 + $0x98] sm:$0x1]
      %v3612 = vld [vmem:[%s3214 + $0x9c] sm:$0xf]
      %v3613 = vld [vmem:[%s3214 + $0xa0] sm:$0xf]
      %v3614 = vld [vmem:[%s3214 + $0xa4] sm:$0x1]
      %v3615 = vld [vmem:[%s3214 + $0xa8] sm:$0xf]
      %v3616 = vld [vmem:[%s3214 + $0xac] sm:$0xf]
      %v3617 = vld [vmem:[%s3214 + $0xb0] sm:$0x1]
      %v3618 = vld [vmem:[%s3214 + $0xb4] sm:$0xf]
      %v3619 = vld [vmem:[%s3214 + $0xb8] sm:$0xf]
      %v3620 = vld [vmem:[%s3214 + $0xbc] sm:$0x1]
      %v3622 = vshrl.u32 %v3573, 16
      %v3624 = vrot.slane %v3622, 4
      %v3625 = vshll.u32 %v3573, 16
      %v3627 = vrot.slane %v3625, 5
      %v3628 = vor.u32 %v3624, %v3627
      %v3629 = vrot.slane %v3628, 4
      %v3631 = vshll.u32 %v3574, 16
      %v3633 = vrot.slane %v3631, 5
      %v3634 = vsel %vm261, %v3629, %v3633
      %v3635 = vshrl.u32 %v3574, 16
      %v3637 = vrot.slane %v3635, 4
      %v3638 = vor.u32 %v3637, %v3633
      %v3639 = vrot.slane %v3638, 4
      %v3641 = vshll.u32 %v3575, 16
      %v3643 = vrot.slane %v3641, 5
      %v3644 = vsel %vm261, %v3639, %v3643
      %v3646 = vshrl.u32 %v3576, 16
      %v3648 = vrot.slane %v3646, 4
      %v3649 = vshll.u32 %v3576, 16
      %v3651 = vrot.slane %v3649, 5
      %v3652 = vor.u32 %v3648, %v3651
      %v3653 = vrot.slane %v3652, 4
      %v3655 = vshll.u32 %v3577, 16
      %v3657 = vrot.slane %v3655, 5
      %v3658 = vsel %vm261, %v3653, %v3657
      %v3659 = vshrl.u32 %v3577, 16
      %v3661 = vrot.slane %v3659, 4
      %v3662 = vor.u32 %v3661, %v3657
      %v3663 = vrot.slane %v3662, 4
      %v3665 = vshll.u32 %v3578, 16
      %v3667 = vrot.slane %v3665, 5
      %v3668 = vsel %vm261, %v3663, %v3667
      %v3670 = vshrl.u32 %v3579, 16
      %v3672 = vrot.slane %v3670, 4
      %v3673 = vshll.u32 %v3579, 16
      %v3675 = vrot.slane %v3673, 5
      %v3676 = vor.u32 %v3672, %v3675
      %v3677 = vrot.slane %v3676, 4
      %v3679 = vshll.u32 %v3580, 16
      %v3681 = vrot.slane %v3679, 5
      %v3682 = vsel %vm261, %v3677, %v3681
      %v3683 = vshrl.u32 %v3580, 16
      %v3685 = vrot.slane %v3683, 4
      %v3686 = vor.u32 %v3685, %v3681
      %v3687 = vrot.slane %v3686, 4
      %v3689 = vshll.u32 %v3581, 16
      %v3691 = vrot.slane %v3689, 5
      %v3692 = vsel %vm261, %v3687, %v3691
      %v3694 = vshrl.u32 %v3582, 16
      %v3696 = vrot.slane %v3694, 4
      %v3697 = vshll.u32 %v3582, 16
      %v3699 = vrot.slane %v3697, 5
      %v3700 = vor.u32 %v3696, %v3699
      %v3701 = vrot.slane %v3700, 4
      %v3703 = vshll.u32 %v3583, 16
      %v3705 = vrot.slane %v3703, 5
      %v3706 = vsel %vm261, %v3701, %v3705
      %v3707 = vshrl.u32 %v3583, 16
      %v3709 = vrot.slane %v3707, 4
      %v3710 = vor.u32 %v3709, %v3705
      %v3711 = vrot.slane %v3710, 4
      %v3713 = vshll.u32 %v3584, 16
      %v3715 = vrot.slane %v3713, 5
      %v3716 = vsel %vm261, %v3711, %v3715
      %v3718 = vshrl.u32 %v3585, 16
      %v3720 = vrot.slane %v3718, 4
      %v3721 = vshll.u32 %v3585, 16
      %v3723 = vrot.slane %v3721, 5
      %v3724 = vor.u32 %v3720, %v3723
      %v3725 = vrot.slane %v3724, 4
      %v3727 = vshll.u32 %v3586, 16
      %v3729 = vrot.slane %v3727, 5
      %v3730 = vsel %vm261, %v3725, %v3729
      %v3731 = vshrl.u32 %v3586, 16
      %v3733 = vrot.slane %v3731, 4
      %v3734 = vor.u32 %v3733, %v3729
      %v3735 = vrot.slane %v3734, 4
      %v3737 = vshll.u32 %v3587, 16
      %v3739 = vrot.slane %v3737, 5
      %v3740 = vsel %vm261, %v3735, %v3739
      %v3742 = vshrl.u32 %v3588, 16
      %v3744 = vrot.slane %v3742, 4
      %v3745 = vshll.u32 %v3588, 16
      %v3747 = vrot.slane %v3745, 5
      %v3748 = vor.u32 %v3744, %v3747
      %v3749 = vrot.slane %v3748, 4
      %v3751 = vshll.u32 %v3589, 16
      %v3753 = vrot.slane %v3751, 5
      %v3754 = vsel %vm261, %v3749, %v3753
      %v3755 = vshrl.u32 %v3589, 16
      %v3757 = vrot.slane %v3755, 4
      %v3758 = vor.u32 %v3757, %v3753
      %v3759 = vrot.slane %v3758, 4
      %v3761 = vshll.u32 %v3590, 16
      %v3763 = vrot.slane %v3761, 5
      %v3764 = vsel %vm261, %v3759, %v3763
      %v3766 = vshrl.u32 %v3591, 16
      %v3768 = vrot.slane %v3766, 4
      %v3769 = vshll.u32 %v3591, 16
      %v3771 = vrot.slane %v3769, 5
      %v3772 = vor.u32 %v3768, %v3771
      %v3773 = vrot.slane %v3772, 4
      %v3775 = vshll.u32 %v3592, 16
      %v3777 = vrot.slane %v3775, 5
      %v3778 = vsel %vm261, %v3773, %v3777
      %v3779 = vshrl.u32 %v3592, 16
      %v3781 = vrot.slane %v3779, 4
      %v3782 = vor.u32 %v3781, %v3777
      %v3783 = vrot.slane %v3782, 4
      %v3785 = vshll.u32 %v3593, 16
      %v3787 = vrot.slane %v3785, 5
      %v3788 = vsel %vm261, %v3783, %v3787
      %v3790 = vshrl.u32 %v3594, 16
      %v3792 = vrot.slane %v3790, 4
      %v3793 = vshll.u32 %v3594, 16
      %v3795 = vrot.slane %v3793, 5
      %v3796 = vor.u32 %v3792, %v3795
      %v3797 = vrot.slane %v3796, 4
      %v3799 = vshll.u32 %v3595, 16
      %v3801 = vrot.slane %v3799, 5
      %v3802 = vsel %vm261, %v3797, %v3801
      %v3803 = vshrl.u32 %v3595, 16
      %v3805 = vrot.slane %v3803, 4
      %v3806 = vor.u32 %v3805, %v3801
      %v3807 = vrot.slane %v3806, 4
      %v3809 = vshll.u32 %v3596, 16
      %v3811 = vrot.slane %v3809, 5
      %v3812 = vsel %vm261, %v3807, %v3811
      %v3814 = vshrl.u32 %v3597, 16
      %v3816 = vrot.slane %v3814, 4
      %v3817 = vshll.u32 %v3597, 16
      %v3819 = vrot.slane %v3817, 5
      %v3820 = vor.u32 %v3816, %v3819
      %v3821 = vrot.slane %v3820, 4
      %v3823 = vshll.u32 %v3598, 16
      %v3825 = vrot.slane %v3823, 5
      %v3826 = vsel %vm261, %v3821, %v3825
      %v3827 = vshrl.u32 %v3598, 16
      %v3829 = vrot.slane %v3827, 4
      %v3830 = vor.u32 %v3829, %v3825
      %v3831 = vrot.slane %v3830, 4
      %v3833 = vshll.u32 %v3599, 16
      %v3835 = vrot.slane %v3833, 5
      %v3836 = vsel %vm261, %v3831, %v3835
      %v3838 = vshrl.u32 %v3600, 16
      %v3840 = vrot.slane %v3838, 4
      %v3841 = vshll.u32 %v3600, 16
      %v3843 = vrot.slane %v3841, 5
      %v3844 = vor.u32 %v3840, %v3843
      %v3845 = vrot.slane %v3844, 4
      %v3847 = vshll.u32 %v3601, 16
      %v3849 = vrot.slane %v3847, 5
      %v3850 = vsel %vm261, %v3845, %v3849
      %v3851 = vshrl.u32 %v3601, 16
      %v3853 = vrot.slane %v3851, 4
      %v3854 = vor.u32 %v3853, %v3849
      %v3855 = vrot.slane %v3854, 4
      %v3857 = vshll.u32 %v3602, 16
      %v3859 = vrot.slane %v3857, 5
      %v3860 = vsel %vm261, %v3855, %v3859
      %v3862 = vshrl.u32 %v3603, 16
      %v3864 = vrot.slane %v3862, 4
      %v3865 = vshll.u32 %v3603, 16
      %v3867 = vrot.slane %v3865, 5
      %v3868 = vor.u32 %v3864, %v3867
      %v3869 = vrot.slane %v3868, 4
      %v3871 = vshll.u32 %v3604, 16
      %v3873 = vrot.slane %v3871, 5
      %v3874 = vsel %vm261, %v3869, %v3873
      %v3875 = vshrl.u32 %v3604, 16
      %v3877 = vrot.slane %v3875, 4
      %v3878 = vor.u32 %v3877, %v3873
      %v3879 = vrot.slane %v3878, 4
      %v3881 = vshll.u32 %v3605, 16
      %v3883 = vrot.slane %v3881, 5
      %v3884 = vsel %vm261, %v3879, %v3883
      %v3886 = vshrl.u32 %v3606, 16
      %v3888 = vrot.slane %v3886, 4
      %v3889 = vshll.u32 %v3606, 16
      %v3891 = vrot.slane %v3889, 5
      %v3892 = vor.u32 %v3888, %v3891
      %v3893 = vrot.slane %v3892, 4
      %v3895 = vshll.u32 %v3607, 16
      %v3897 = vrot.slane %v3895, 5
      %v3898 = vsel %vm261, %v3893, %v3897
      %v3899 = vshrl.u32 %v3607, 16
      %v3901 = vrot.slane %v3899, 4
      %v3902 = vor.u32 %v3901, %v3897
      %v3903 = vrot.slane %v3902, 4
      %v3905 = vshll.u32 %v3608, 16
      %v3907 = vrot.slane %v3905, 5
      %v3908 = vsel %vm261, %v3903, %v3907
      %v3910 = vshrl.u32 %v3609, 16
      %v3912 = vrot.slane %v3910, 4
      %v3913 = vshll.u32 %v3609, 16
      %v3915 = vrot.slane %v3913, 5
      %v3916 = vor.u32 %v3912, %v3915
      %v3917 = vrot.slane %v3916, 4
      %v3919 = vshll.u32 %v3610, 16
      %v3921 = vrot.slane %v3919, 5
      %v3922 = vsel %vm261, %v3917, %v3921
      %v3923 = vshrl.u32 %v3610, 16
      %v3925 = vrot.slane %v3923, 4
      %v3926 = vor.u32 %v3925, %v3921
      %v3927 = vrot.slane %v3926, 4
      %v3929 = vshll.u32 %v3611, 16
      %v3931 = vrot.slane %v3929, 5
      %v3932 = vsel %vm261, %v3927, %v3931
      %v3934 = vshrl.u32 %v3612, 16
      %v3936 = vrot.slane %v3934, 4
      %v3937 = vshll.u32 %v3612, 16
      %v3939 = vrot.slane %v3937, 5
      %v3940 = vor.u32 %v3936, %v3939
      %v3941 = vrot.slane %v3940, 4
      %v3943 = vshll.u32 %v3613, 16
      %v3945 = vrot.slane %v3943, 5
      %v3946 = vsel %vm261, %v3941, %v3945
      %v3947 = vshrl.u32 %v3613, 16
      %v3949 = vrot.slane %v3947, 4
      %v3950 = vor.u32 %v3949, %v3945
      %v3951 = vrot.slane %v3950, 4
      %v3953 = vshll.u32 %v3614, 16
      %v3955 = vrot.slane %v3953, 5
      %v3956 = vsel %vm261, %v3951, %v3955
      %v3958 = vshrl.u32 %v3615, 16
      %v3960 = vrot.slane %v3958, 4
      %v3961 = vshll.u32 %v3615, 16
      %v3963 = vrot.slane %v3961, 5
      %v3964 = vor.u32 %v3960, %v3963
      %v3965 = vrot.slane %v3964, 4
      %v3967 = vshll.u32 %v3616, 16
      %v3969 = vrot.slane %v3967, 5
      %v3970 = vsel %vm261, %v3965, %v3969
      %v3971 = vshrl.u32 %v3616, 16
      %v3973 = vrot.slane %v3971, 4
      %v3974 = vor.u32 %v3973, %v3969
      %v3975 = vrot.slane %v3974, 4
      %v3977 = vshll.u32 %v3617, 16
      %v3979 = vrot.slane %v3977, 5
      %v3980 = vsel %vm261, %v3975, %v3979
      %v3982 = vshrl.u32 %v3618, 16
      %v3984 = vrot.slane %v3982, 4
      %v3985 = vshll.u32 %v3618, 16
      %v3987 = vrot.slane %v3985, 5
      %v3988 = vor.u32 %v3984, %v3987
      %v3989 = vrot.slane %v3988, 4
      %v3991 = vshll.u32 %v3619, 16
      %v3993 = vrot.slane %v3991, 5
      %v3994 = vsel %vm261, %v3989, %v3993
      %v3995 = vshrl.u32 %v3619, 16
      %v3997 = vrot.slane %v3995, 4
      %v3998 = vor.u32 %v3997, %v3993
      %v3999 = vrot.slane %v3998, 4
      %v4001 = vshll.u32 %v3620, 16
      %v4003 = vrot.slane %v4001, 5
      %v4004 = vsel %vm261, %v3999, %v4003
      %s4005 = scalar_lea.vmem %s1, 14
      %v4006 = vld [vmem:[%s4005] sm:$0x3]
      %v4007 = vunpack.c.l.b16 %v3634
      %v4008 = vunpack.c.l.b16 %v3644
      %v4009 = vunpack.c.l.b16 %v3658
      %v4010 = vunpack.c.l.b16 %v3668
      %v4011 = vunpack.c.l.b16 %v3682
      %v4012 = vunpack.c.l.b16 %v3692
      %v4013 = vunpack.c.l.b16 %v3706
      %v4014 = vunpack.c.l.b16 %v3716
      %v4015 = vunpack.c.l.b16 %v3730
      %v4016 = vunpack.c.l.b16 %v3740
      %v4017 = vunpack.c.l.b16 %v3754
      %v4018 = vunpack.c.l.b16 %v3764
      %v4019 = vunpack.c.l.b16 %v3778
      %v4020 = vunpack.c.l.b16 %v3788
      %v4021 = vunpack.c.l.b16 %v3802
      %v4022 = vunpack.c.l.b16 %v3812
      %v4023 = vunpack.c.l.b16 %v3826
      %v4024 = vunpack.c.l.b16 %v3836
      %v4025 = vunpack.c.l.b16 %v3850
      %v4026 = vunpack.c.l.b16 %v3860
      %v4027 = vunpack.c.l.b16 %v3874
      %v4028 = vunpack.c.l.b16 %v3884
      %v4029 = vunpack.c.l.b16 %v3898
      %v4030 = vunpack.c.l.b16 %v3908
      %v4031 = vunpack.c.l.b16 %v3922
      %v4032 = vunpack.c.l.b16 %v3932
      %v4033 = vunpack.c.l.b16 %v3946
      %v4034 = vunpack.c.l.b16 %v3956
      %v4035 = vunpack.c.l.b16 %v3970
      %v4036 = vunpack.c.l.b16 %v3980
      %v4037 = vunpack.c.l.b16 %v3994
      %v4038 = vunpack.c.l.b16 %v4004
      %v4039 = vpack.c.b16 %v4008, %v4007
      %v4040 = vpack.c.b16 %v4010, %v4009
      %v4041 = vpack.c.b16 %v4012, %v4011
      %v4042 = vpack.c.b16 %v4014, %v4013
      %v4043 = vpack.c.b16 %v4016, %v4015
      %v4044 = vpack.c.b16 %v4018, %v4017
      %v4045 = vpack.c.b16 %v4020, %v4019
      %v4046 = vpack.c.b16 %v4022, %v4021
      %v4047 = vpack.c.b16 %v4024, %v4023
      %v4048 = vpack.c.b16 %v4026, %v4025
      %v4049 = vpack.c.b16 %v4028, %v4027
      %v4050 = vpack.c.b16 %v4030, %v4029
      %v4051 = vpack.c.b16 %v4032, %v4031
      %v4052 = vpack.c.b16 %v4034, %v4033
      %v4053 = vpack.c.b16 %v4036, %v4035
      %v4054 = vpack.c.b16 %v4038, %v4037
      %v4056 = vsel %vm696, %v4039, 0
      %v4059 = vsel %vm696, %v4040, 0
      %v4062 = vsel %vm696, %v4041, 0
      %v4065 = vsel %vm696, %v4042, 0
      %v4068 = vsel %vm696, %v4043, 0
      %v4071 = vsel %vm696, %v4044, 0
      %v4074 = vsel %vm696, %v4045, 0
      %v4077 = vsel %vm696, %v4046, 0
      %v4080 = vsel %vm696, %v4047, 0
      %v4083 = vsel %vm696, %v4048, 0
      %v4086 = vsel %vm696, %v4049, 0
      %v4089 = vsel %vm696, %v4050, 0
      %v4092 = vsel %vm696, %v4051, 0
      %v4095 = vsel %vm696, %v4052, 0
      %v4098 = vsel %vm696, %v4053, 0
      %v4101 = vsel %vm696, %v4054, 0
      %v4104 = vsel %vm745, %v4006, 0
      %4106 = vmatprep.subr.bf16.mxu0 0
      %4107 = vmatpush1.bf16.msra.mxu0 %v4104
      %4108 = vmatprep.subr.bf16.mxu0 0
      %4109 = vmatpush1.bf16.msra.mxu0 0
      %4110 = vmatprep.subr.bf16.mxu0 0
      %4111 = vmatpush1.bf16.msra.mxu0 0
      %4112 = vmatprep.subr.bf16.mxu0 0
      %4113 = vmatpush1.bf16.msra.mxu0 0
      %4114 = vmatprep.subr.bf16.mxu0 0
      %4115 = vmatpush1.bf16.msra.mxu0 0
      %4116 = vmatprep.subr.bf16.mxu0 0
      %4117 = vmatpush1.bf16.msra.mxu0 0
      %4118 = vmatprep.subr.bf16.mxu0 0
      %4119 = vmatpush1.bf16.msra.mxu0 0
      %4120 = vmatprep.subr.bf16.mxu0 0
      %4121 = vmatpush1.bf16.msra.mxu0 0
      %4122 = vmatprep.subr.bf16.mxu0 0
      %4123 = vmatpush1.bf16.msra.mxu0 0
      %4124 = vmatprep.subr.bf16.mxu0 0
      %4125 = vmatpush1.bf16.msra.mxu0 0
      %4126 = vmatprep.subr.bf16.mxu0 0
      %4127 = vmatpush1.bf16.msra.mxu0 0
      %4128 = vmatprep.subr.bf16.mxu0 0
      %4129 = vmatpush1.bf16.msra.mxu0 0
      %4130 = vmatprep.subr.bf16.mxu0 0
      %4131 = vmatpush1.bf16.msra.mxu0 0
      %4132 = vmatprep.subr.bf16.mxu0 0
      %4133 = vmatpush1.bf16.msra.mxu0 0
      %4134 = vmatprep.subr.bf16.mxu0 0
      %4135 = vmatpush1.bf16.msra.mxu0 0
      %4136 = vmatprep.subr.bf16.mxu0 0
      %4137 = vmatpush1.bf16.msra.mxu0 0
      %4138 = vmatprep.mubr.bf16.mxu0 0
      %4139 = vmatmul.mubr.bf16.gmra.mrb[0].mxu0 %v4056
      %v4140 = vpop.f32.mrb[0].mxu0
      %v4141 = vadd.f32 0.0, %v4140
      %v4142 = vpop.f32.mrb[0].mxu0
      %v4143 = vpop.f32.mrb[0].mxu0
      %v4144 = vadd.f32 0.0, %v4143
      %v4145 = vpop.f32.mrb[0].mxu0
      %4146 = vmatprep.mubr.bf16.mxu0 0
      %4147 = vmatmul.mubr.bf16.gmra.mrb[0].mxu0 %v4059
      %v4148 = vpop.f32.mrb[0].mxu0
      %v4149 = vadd.f32 0.0, %v4148
      %v4150 = vpop.f32.mrb[0].mxu0
      %v4151 = vpop.f32.mrb[0].mxu0
      %v4152 = vadd.f32 0.0, %v4151
      %v4153 = vpop.f32.mrb[0].mxu0
      %4154 = vmatprep.mubr.bf16.mxu0 0
      %4155 = vmatmul.mubr.bf16.gmra.mrb[0].mxu0 %v4062
      %v4156 = vpop.f32.mrb[0].mxu0
      %v4157 = vadd.f32 0.0, %v4156
      %v4158 = vpop.f32.mrb[0].mxu0
      %v4159 = vpop.f32.mrb[0].mxu0
      %v4160 = vadd.f32 0.0, %v4159
      %v4161 = vpop.f32.mrb[0].mxu0
      %4162 = vmatprep.mubr.bf16.mxu0 0
      %4163 = vmatmul.mubr.bf16.gmra.mrb[0].mxu0 %v4065
      %v4164 = vpop.f32.mrb[0].mxu0
      %v4165 = vadd.f32 0.0, %v4164
      %v4166 = vpop.f32.mrb[0].mxu0
      %v4167 = vpop.f32.mrb[0].mxu0
      %v4168 = vadd.f32 0.0, %v4167
      %v4169 = vpop.f32.mrb[0].mxu0
      %4170 = vmatprep.mubr.bf16.mxu0 0
      %4171 = vmatmul.mubr.bf16.gmra.mrb[0].mxu0 %v4068
      %v4172 = vpop.f32.mrb[0].mxu0
      %v4173 = vadd.f32 0.0, %v4172
      %v4174 = vpop.f32.mrb[0].mxu0
      %v4175 = vpop.f32.mrb[0].mxu0
      %v4176 = vadd.f32 0.0, %v4175
      %v4177 = vpop.f32.mrb[0].mxu0
      %4178 = vmatprep.mubr.bf16.mxu0 0
      %4179 = vmatmul.mubr.bf16.gmra.mrb[0].mxu0 %v4071
      %v4180 = vpop.f32.mrb[0].mxu0
      %v4181 = vadd.f32 0.0, %v4180
      %v4182 = vpop.f32.mrb[0].mxu0
      %v4183 = vpop.f32.mrb[0].mxu0
      %v4184 = vadd.f32 0.0, %v4183
      %v4185 = vpop.f32.mrb[0].mxu0
      %4186 = vmatprep.mubr.bf16.mxu0 0
      %4187 = vmatmul.mubr.bf16.gmra.mrb[0].mxu0 %v4074
      %v4188 = vpop.f32.mrb[0].mxu0
      %v4189 = vadd.f32 0.0, %v4188
      %v4190 = vpop.f32.mrb[0].mxu0
      %v4191 = vpop.f32.mrb[0].mxu0
      %v4192 = vadd.f32 0.0, %v4191
      %v4193 = vpop.f32.mrb[0].mxu0
      %4194 = vmatprep.mubr.bf16.mxu0 0
      %4195 = vmatmul.mubr.bf16.gmra.mrb[0].mxu0 %v4077
      %v4196 = vpop.f32.mrb[0].mxu0
      %v4197 = vadd.f32 0.0, %v4196
      %v4198 = vpop.f32.mrb[0].mxu0
      %v4199 = vpop.f32.mrb[0].mxu0
      %v4200 = vadd.f32 0.0, %v4199
      %v4201 = vpop.f32.mrb[0].mxu0
      %4202 = vmatprep.mubr.bf16.mxu0 0
      %4203 = vmatmul.mubr.bf16.gmra.mrb[0].mxu0 %v4080
      %v4204 = vpop.f32.mrb[0].mxu0
      %v4205 = vadd.f32 0.0, %v4204
      %v4206 = vpop.f32.mrb[0].mxu0
      %v4207 = vpop.f32.mrb[0].mxu0
      %v4208 = vadd.f32 0.0, %v4207
      %v4209 = vpop.f32.mrb[0].mxu0
      %4210 = vmatprep.mubr.bf16.mxu0 0
      %4211 = vmatmul.mubr.bf16.gmra.mrb[0].mxu0 %v4083
      %v4212 = vpop.f32.mrb[0].mxu0
      %v4213 = vadd.f32 0.0, %v4212
      %v4214 = vpop.f32.mrb[0].mxu0
      %v4215 = vpop.f32.mrb[0].mxu0
      %v4216 = vadd.f32 0.0, %v4215
      %v4217 = vpop.f32.mrb[0].mxu0
      %4218 = vmatprep.mubr.bf16.mxu0 0
      %4219 = vmatmul.mubr.bf16.gmra.mrb[0].mxu0 %v4086
      %v4220 = vpop.f32.mrb[0].mxu0
      %v4221 = vadd.f32 0.0, %v4220
      %v4222 = vpop.f32.mrb[0].mxu0
      %v4223 = vpop.f32.mrb[0].mxu0
      %v4224 = vadd.f32 0.0, %v4223
      %v4225 = vpop.f32.mrb[0].mxu0
      %4226 = vmatprep.mubr.bf16.mxu0 0
      %4227 = vmatmul.mubr.bf16.gmra.mrb[0].mxu0 %v4089
      %v4228 = vpop.f32.mrb[0].mxu0
      %v4229 = vadd.f32 0.0, %v4228
      %v4230 = vpop.f32.mrb[0].mxu0
      %v4231 = vpop.f32.mrb[0].mxu0
      %v4232 = vadd.f32 0.0, %v4231
      %v4233 = vpop.f32.mrb[0].mxu0
      %4234 = vmatprep.mubr.bf16.mxu0 0
      %4235 = vmatmul.mubr.bf16.gmra.mrb[0].mxu0 %v4092
      %v4236 = vpop.f32.mrb[0].mxu0
      %v4237 = vadd.f32 0.0, %v4236
      %v4238 = vpop.f32.mrb[0].mxu0
      %v4239 = vpop.f32.mrb[0].mxu0
      %v4240 = vadd.f32 0.0, %v4239
      %v4241 = vpop.f32.mrb[0].mxu0
      %4242 = vmatprep.mubr.bf16.mxu0 0
      %4243 = vmatmul.mubr.bf16.gmra.mrb[0].mxu0 %v4095
      %v4244 = vpop.f32.mrb[0].mxu0
      %v4245 = vadd.f32 0.0, %v4244
      %v4246 = vpop.f32.mrb[0].mxu0
      %v4247 = vpop.f32.mrb[0].mxu0
      %v4248 = vadd.f32 0.0, %v4247
      %v4249 = vpop.f32.mrb[0].mxu0
      %4250 = vmatprep.mubr.bf16.mxu0 0
      %4251 = vmatmul.mubr.bf16.gmra.mrb[0].mxu0 %v4098
      %v4252 = vpop.f32.mrb[0].mxu0
      %v4253 = vadd.f32 0.0, %v4252
      %v4254 = vpop.f32.mrb[0].mxu0
      %v4255 = vpop.f32.mrb[0].mxu0
      %v4256 = vadd.f32 0.0, %v4255
      %v4257 = vpop.f32.mrb[0].mxu0
      %4258 = vmatprep.mubr.bf16.mxu0 0
      %4259 = vmatmul.mubr.bf16.gmra.mrb[0].mxu0 %v4101
      %v4260 = vpop.f32.mrb[0].mxu0
      %v4261 = vadd.f32 0.0, %v4260
      %v4262 = vpop.f32.mrb[0].mxu0
      %v4263 = vpop.f32.mrb[0].mxu0
      %v4264 = vadd.f32 0.0, %v4263
      %v4265 = vpop.f32.mrb[0].mxu0
      %4266 = vdwg.mxu0
      %v4267 = vadd.f32 %v3541, %v4141
      %v4268 = vadd.f32 %v3542, %v4144
      %v4269 = vadd.f32 %v3543, %v4149
      %v4270 = vadd.f32 %v3544, %v4152
      %v4271 = vadd.f32 %v3545, %v4157
      %v4272 = vadd.f32 %v3546, %v4160
      %v4273 = vadd.f32 %v3547, %v4165
      %v4274 = vadd.f32 %v3548, %v4168
      %v4275 = vadd.f32 %v3549, %v4173
      %v4276 = vadd.f32 %v3550, %v4176
      %v4277 = vadd.f32 %v3551, %v4181
      %v4278 = vadd.f32 %v3552, %v4184
      %v4279 = vadd.f32 %v3553, %v4189
      %v4280 = vadd.f32 %v3554, %v4192
      %v4281 = vadd.f32 %v3555, %v4197
      %v4282 = vadd.f32 %v3556, %v4200
      %v4283 = vadd.f32 %v3557, %v4205
      %v4284 = vadd.f32 %v3558, %v4208
      %v4285 = vadd.f32 %v3559, %v4213
      %v4286 = vadd.f32 %v3560, %v4216
      %v4287 = vadd.f32 %v3561, %v4221
      %v4288 = vadd.f32 %v3562, %v4224
      %v4289 = vadd.f32 %v3563, %v4229
      %v4290 = vadd.f32 %v3564, %v4232
      %v4291 = vadd.f32 %v3565, %v4237
      %v4292 = vadd.f32 %v3566, %v4240
      %v4293 = vadd.f32 %v3567, %v4245
      %v4294 = vadd.f32 %v3568, %v4248
      %v4295 = vadd.f32 %v3569, %v4253
      %v4296 = vadd.f32 %v3570, %v4256
      %v4297 = vadd.f32 %v3571, %v4261
      %v4298 = vadd.f32 %v3572, %v4264
      %v4299 = vld [vmem:[%s3214] sm:$0xe]
      %v4300 = vld [vmem:[%s3214 + $0xc] sm:$0xe]
      %v4301 = vld [vmem:[%s3214 + $0x18] sm:$0xe]
      %v4302 = vld [vmem:[%s3214 + $0x24] sm:$0xe]
      %v4303 = vld [vmem:[%s3214 + $0x30] sm:$0xe]
      %v4304 = vld [vmem:[%s3214 + $0x3c] sm:$0xe]
      %v4305 = vld [vmem:[%s3214 + $0x48] sm:$0xe]
      %v4306 = vld [vmem:[%s3214 + $0x54] sm:$0xe]
      %v4307 = vld [vmem:[%s3214 + $0x60] sm:$0xe]
      %v4308 = vld [vmem:[%s3214 + $0x6c] sm:$0xe]
      %v4309 = vld [vmem:[%s3214 + $0x78] sm:$0xe]
      %v4310 = vld [vmem:[%s3214 + $0x84] sm:$0xe]
      %v4311 = vld [vmem:[%s3214 + $0x90] sm:$0xe]
      %v4312 = vld [vmem:[%s3214 + $0x9c] sm:$0xe]
      %v4313 = vld [vmem:[%s3214 + $0xa8] sm:$0xe]
      %v4314 = vld [vmem:[%s3214 + $0xb4] sm:$0xe]
      %v4363 = vrot.slane %v4299, 5
      %v4364 = vrot.slane %v4363, 4
      %v4365 = vrot.slane %v3574, 5
      %v4366 = vsel %vm1252, %v4364, %v4365
      %v4367 = vrot.slane %v4365, 4
      %v4368 = vrot.slane %v3575, 5
      %v4369 = vsel %vm1252, %v4367, %v4368
      %v4370 = vrot.slane %v4300, 5
      %v4371 = vrot.slane %v4370, 4
      %v4372 = vrot.slane %v3577, 5
      %v4373 = vsel %vm1252, %v4371, %v4372
      %v4374 = vrot.slane %v4372, 4
      %v4375 = vrot.slane %v3578, 5
      %v4376 = vsel %vm1252, %v4374, %v4375
      %v4377 = vrot.slane %v4301, 5
      %v4378 = vrot.slane %v4377, 4
      %v4379 = vrot.slane %v3580, 5
      %v4380 = vsel %vm1252, %v4378, %v4379
      %v4381 = vrot.slane %v4379, 4
      %v4382 = vrot.slane %v3581, 5
      %v4383 = vsel %vm1252, %v4381, %v4382
      %v4384 = vrot.slane %v4302, 5
      %v4385 = vrot.slane %v4384, 4
      %v4386 = vrot.slane %v3583, 5
      %v4387 = vsel %vm1252, %v4385, %v4386
      %v4388 = vrot.slane %v4386, 4
      %v4389 = vrot.slane %v3584, 5
      %v4390 = vsel %vm1252, %v4388, %v4389
      %v4391 = vrot.slane %v4303, 5
      %v4392 = vrot.slane %v4391, 4
      %v4393 = vrot.slane %v3586, 5
      %v4394 = vsel %vm1252, %v4392, %v4393
      %v4395 = vrot.slane %v4393, 4
      %v4396 = vrot.slane %v3587, 5
      %v4397 = vsel %vm1252, %v4395, %v4396
      %v4398 = vrot.slane %v4304, 5
      %v4399 = vrot.slane %v4398, 4
      %v4400 = vrot.slane %v3589, 5
      %v4401 = vsel %vm1252, %v4399, %v4400
      %v4402 = vrot.slane %v4400, 4
      %v4403 = vrot.slane %v3590, 5
      %v4404 = vsel %vm1252, %v4402, %v4403
      %v4405 = vrot.slane %v4305, 5
      %v4406 = vrot.slane %v4405, 4
      %v4407 = vrot.slane %v3592, 5
      %v4408 = vsel %vm1252, %v4406, %v4407
      %v4409 = vrot.slane %v4407, 4
      %v4410 = vrot.slane %v3593, 5
      %v4411 = vsel %vm1252, %v4409, %v4410
      %v4412 = vrot.slane %v4306, 5
      %v4413 = vrot.slane %v4412, 4
      %v4414 = vrot.slane %v3595, 5
      %v4415 = vsel %vm1252, %v4413, %v4414
      %v4416 = vrot.slane %v4414, 4
      %v4417 = vrot.slane %v3596, 5
      %v4418 = vsel %vm1252, %v4416, %v4417
      %v4419 = vrot.slane %v4307, 5
      %v4420 = vrot.slane %v4419, 4
      %v4421 = vrot.slane %v3598, 5
      %v4422 = vsel %vm1252, %v4420, %v4421
      %v4423 = vrot.slane %v4421, 4
      %v4424 = vrot.slane %v3599, 5
      %v4425 = vsel %vm1252, %v4423, %v4424
      %v4426 = vrot.slane %v4308, 5
      %v4427 = vrot.slane %v4426, 4
      %v4428 = vrot.slane %v3601, 5
      %v4429 = vsel %vm1252, %v4427, %v4428
      %v4430 = vrot.slane %v4428, 4
      %v4431 = vrot.slane %v3602, 5
      %v4432 = vsel %vm1252, %v4430, %v4431
      %v4433 = vrot.slane %v4309, 5
      %v4434 = vrot.slane %v4433, 4
      %v4435 = vrot.slane %v3604, 5
      %v4436 = vsel %vm1252, %v4434, %v4435
      %v4437 = vrot.slane %v4435, 4
      %v4438 = vrot.slane %v3605, 5
      %v4439 = vsel %vm1252, %v4437, %v4438
      %v4440 = vrot.slane %v4310, 5
      %v4441 = vrot.slane %v4440, 4
      %v4442 = vrot.slane %v3607, 5
      %v4443 = vsel %vm1252, %v4441, %v4442
      %v4444 = vrot.slane %v4442, 4
      %v4445 = vrot.slane %v3608, 5
      %v4446 = vsel %vm1252, %v4444, %v4445
      %v4447 = vrot.slane %v4311, 5
      %v4448 = vrot.slane %v4447, 4
      %v4449 = vrot.slane %v3610, 5
      %v4450 = vsel %vm1252, %v4448, %v4449
      %v4451 = vrot.slane %v4449, 4
      %v4452 = vrot.slane %v3611, 5
      %v4453 = vsel %vm1252, %v4451, %v4452
      %v4454 = vrot.slane %v4312, 5
      %v4455 = vrot.slane %v4454, 4
      %v4456 = vrot.slane %v3613, 5
      %v4457 = vsel %vm1252, %v4455, %v4456
      %v4458 = vrot.slane %v4456, 4
      %v4459 = vrot.slane %v3614, 5
      %v4460 = vsel %vm1252, %v4458, %v4459
      %v4461 = vrot.slane %v4313, 5
      %v4462 = vrot.slane %v4461, 4
      %v4463 = vrot.slane %v3616, 5
      %v4464 = vsel %vm1252, %v4462, %v4463
      %v4465 = vrot.slane %v4463, 4
      %v4466 = vrot.slane %v3617, 5
      %v4467 = vsel %vm1252, %v4465, %v4466
      %v4468 = vrot.slane %v4314, 5
      %v4469 = vrot.slane %v4468, 4
      %v4470 = vrot.slane %v3619, 5
      %v4471 = vsel %vm1252, %v4469, %v4470
      %v4472 = vrot.slane %v4470, 4
      %v4473 = vrot.slane %v3620, 5
      %v4474 = vsel %vm1252, %v4472, %v4473
      %s4475 = scalar_lea.vmem %s1, 16
      %v4476 = vld [vmem:[%s4475] sm:$0x3]
      %v4477 = vunpack.c.l.b16 %v4366
      %v4478 = vunpack.c.l.b16 %v4369
      %v4479 = vunpack.c.l.b16 %v4373
      %v4480 = vunpack.c.l.b16 %v4376
      %v4481 = vunpack.c.l.b16 %v4380
      %v4482 = vunpack.c.l.b16 %v4383
      %v4483 = vunpack.c.l.b16 %v4387
      %v4484 = vunpack.c.l.b16 %v4390
      %v4485 = vunpack.c.l.b16 %v4394
      %v4486 = vunpack.c.l.b16 %v4397
      %v4487 = vunpack.c.l.b16 %v4401
      %v4488 = vunpack.c.l.b16 %v4404
      %v4489 = vunpack.c.l.b16 %v4408
      %v4490 = vunpack.c.l.b16 %v4411
      %v4491 = vunpack.c.l.b16 %v4415
      %v4492 = vunpack.c.l.b16 %v4418
      %v4493 = vunpack.c.l.b16 %v4422
      %v4494 = vunpack.c.l.b16 %v4425
      %v4495 = vunpack.c.l.b16 %v4429
      %v4496 = vunpack.c.l.b16 %v4432
      %v4497 = vunpack.c.l.b16 %v4436
      %v4498 = vunpack.c.l.b16 %v4439
      %v4499 = vunpack.c.l.b16 %v4443
      %v4500 = vunpack.c.l.b16 %v4446
      %v4501 = vunpack.c.l.b16 %v4450
      %v4502 = vunpack.c.l.b16 %v4453
      %v4503 = vunpack.c.l.b16 %v4457
      %v4504 = vunpack.c.l.b16 %v4460
      %v4505 = vunpack.c.l.b16 %v4464
      %v4506 = vunpack.c.l.b16 %v4467
      %v4507 = vunpack.c.l.b16 %v4471
      %v4508 = vunpack.c.l.b16 %v4474
      %v4509 = vpack.c.b16 %v4478, %v4477
      %v4510 = vpack.c.b16 %v4480, %v4479
      %v4511 = vpack.c.b16 %v4482, %v4481
      %v4512 = vpack.c.b16 %v4484, %v4483
      %v4513 = vpack.c.b16 %v4486, %v4485
      %v4514 = vpack.c.b16 %v4488, %v4487
      %v4515 = vpack.c.b16 %v4490, %v4489
      %v4516 = vpack.c.b16 %v4492, %v4491
      %v4517 = vpack.c.b16 %v4494, %v4493
      %v4518 = vpack.c.b16 %v4496, %v4495
      %v4519 = vpack.c.b16 %v4498, %v4497
      %v4520 = vpack.c.b16 %v4500, %v4499
      %v4521 = vpack.c.b16 %v4502, %v4501
      %v4522 = vpack.c.b16 %v4504, %v4503
      %v4523 = vpack.c.b16 %v4506, %v4505
      %v4524 = vpack.c.b16 %v4508, %v4507
      %v4526 = vsel %vm696, %v4509, 0
      %v4529 = vsel %vm696, %v4510, 0
      %v4532 = vsel %vm696, %v4511, 0
      %v4535 = vsel %vm696, %v4512, 0
      %v4538 = vsel %vm696, %v4513, 0
      %v4541 = vsel %vm696, %v4514, 0
      %v4544 = vsel %vm696, %v4515, 0
      %v4547 = vsel %vm696, %v4516, 0
      %v4550 = vsel %vm696, %v4517, 0
      %v4553 = vsel %vm696, %v4518, 0
      %v4556 = vsel %vm696, %v4519, 0
      %v4559 = vsel %vm696, %v4520, 0
      %v4562 = vsel %vm696, %v4521, 0
      %v4565 = vsel %vm696, %v4522, 0
      %v4568 = vsel %vm696, %v4523, 0
      %v4571 = vsel %vm696, %v4524, 0
      %v4574 = vsel %vm745, %v4476, 0
      %4576 = vmatprep.subr.bf16.mxu0 0
      %4577 = vmatpush1.bf16.msra.mxu0 %v4574
      %4578 = vmatprep.subr.bf16.mxu0 0
      %4579 = vmatpush1.bf16.msra.mxu0 0
      %4580 = vmatprep.subr.bf16.mxu0 0
      %4581 = vmatpush1.bf16.msra.mxu0 0
      %4582 = vmatprep.subr.bf16.mxu0 0
      %4583 = vmatpush1.bf16.msra.mxu0 0
      %4584 = vmatprep.subr.bf16.mxu0 0
      %4585 = vmatpush1.bf16.msra.mxu0 0
      %4586 = vmatprep.subr.bf16.mxu0 0
      %4587 = vmatpush1.bf16.msra.mxu0 0
      %4588 = vmatprep.subr.bf16.mxu0 0
      %4589 = vmatpush1.bf16.msra.mxu0 0
      %4590 = vmatprep.subr.bf16.mxu0 0
      %4591 = vmatpush1.bf16.msra.mxu0 0
      %4592 = vmatprep.subr.bf16.mxu0 0
      %4593 = vmatpush1.bf16.msra.mxu0 0
      %4594 = vmatprep.subr.bf16.mxu0 0
      %4595 = vmatpush1.bf16.msra.mxu0 0
      %4596 = vmatprep.subr.bf16.mxu0 0
      %4597 = vmatpush1.bf16.msra.mxu0 0
      %4598 = vmatprep.subr.bf16.mxu0 0
      %4599 = vmatpush1.bf16.msra.mxu0 0
      %4600 = vmatprep.subr.bf16.mxu0 0
      %4601 = vmatpush1.bf16.msra.mxu0 0
      %4602 = vmatprep.subr.bf16.mxu0 0
      %4603 = vmatpush1.bf16.msra.mxu0 0
      %4604 = vmatprep.subr.bf16.mxu0 0
      %4605 = vmatpush1.bf16.msra.mxu0 0
      %4606 = vmatprep.subr.bf16.mxu0 0
      %4607 = vmatpush1.bf16.msra.mxu0 0
      %4608 = vmatprep.mubr.bf16.mxu0 0
      %4609 = vmatmul.mubr.bf16.gmra.mrb[0].mxu0 %v4526
      %v4610 = vpop.f32.mrb[0].mxu0
      %v4611 = vadd.f32 0.0, %v4610
      %v4612 = vpop.f32.mrb[0].mxu0
      %v4613 = vpop.f32.mrb[0].mxu0
      %v4614 = vadd.f32 0.0, %v4613
      %v4615 = vpop.f32.mrb[0].mxu0
      %4616 = vmatprep.mubr.bf16.mxu0 0
      %4617 = vmatmul.mubr.bf16.gmra.mrb[0].mxu0 %v4529
      %v4618 = vpop.f32.mrb[0].mxu0
      %v4619 = vadd.f32 0.0, %v4618
      %v4620 = vpop.f32.mrb[0].mxu0
      %v4621 = vpop.f32.mrb[0].mxu0
      %v4622 = vadd.f32 0.0, %v4621
      %v4623 = vpop.f32.mrb[0].mxu0
      %4624 = vmatprep.mubr.bf16.mxu0 0
      %4625 = vmatmul.mubr.bf16.gmra.mrb[0].mxu0 %v4532
      %v4626 = vpop.f32.mrb[0].mxu0
      %v4627 = vadd.f32 0.0, %v4626
      %v4628 = vpop.f32.mrb[0].mxu0
      %v4629 = vpop.f32.mrb[0].mxu0
      %v4630 = vadd.f32 0.0, %v4629
      %v4631 = vpop.f32.mrb[0].mxu0
      %4632 = vmatprep.mubr.bf16.mxu0 0
      %4633 = vmatmul.mubr.bf16.gmra.mrb[0].mxu0 %v4535
      %v4634 = vpop.f32.mrb[0].mxu0
      %v4635 = vadd.f32 0.0, %v4634
      %v4636 = vpop.f32.mrb[0].mxu0
      %v4637 = vpop.f32.mrb[0].mxu0
      %v4638 = vadd.f32 0.0, %v4637
      %v4639 = vpop.f32.mrb[0].mxu0
      %4640 = vmatprep.mubr.bf16.mxu0 0
      %4641 = vmatmul.mubr.bf16.gmra.mrb[0].mxu0 %v4538
      %v4642 = vpop.f32.mrb[0].mxu0
      %v4643 = vadd.f32 0.0, %v4642
      %v4644 = vpop.f32.mrb[0].mxu0
      %v4645 = vpop.f32.mrb[0].mxu0
      %v4646 = vadd.f32 0.0, %v4645
      %v4647 = vpop.f32.mrb[0].mxu0
      %4648 = vmatprep.mubr.bf16.mxu0 0
      %4649 = vmatmul.mubr.bf16.gmra.mrb[0].mxu0 %v4541
      %v4650 = vpop.f32.mrb[0].mxu0
      %v4651 = vadd.f32 0.0, %v4650
      %v4652 = vpop.f32.mrb[0].mxu0
      %v4653 = vpop.f32.mrb[0].mxu0
      %v4654 = vadd.f32 0.0, %v4653
      %v4655 = vpop.f32.mrb[0].mxu0
      %4656 = vmatprep.mubr.bf16.mxu0 0
      %4657 = vmatmul.mubr.bf16.gmra.mrb[0].mxu0 %v4544
      %v4658 = vpop.f32.mrb[0].mxu0
      %v4659 = vadd.f32 0.0, %v4658
      %v4660 = vpop.f32.mrb[0].mxu0
      %v4661 = vpop.f32.mrb[0].mxu0
      %v4662 = vadd.f32 0.0, %v4661
      %v4663 = vpop.f32.mrb[0].mxu0
      %4664 = vmatprep.mubr.bf16.mxu0 0
      %4665 = vmatmul.mubr.bf16.gmra.mrb[0].mxu0 %v4547
      %v4666 = vpop.f32.mrb[0].mxu0
      %v4667 = vadd.f32 0.0, %v4666
      %v4668 = vpop.f32.mrb[0].mxu0
      %v4669 = vpop.f32.mrb[0].mxu0
      %v4670 = vadd.f32 0.0, %v4669
      %v4671 = vpop.f32.mrb[0].mxu0
      %4672 = vmatprep.mubr.bf16.mxu0 0
      %4673 = vmatmul.mubr.bf16.gmra.mrb[0].mxu0 %v4550
      %v4674 = vpop.f32.mrb[0].mxu0
      %v4675 = vadd.f32 0.0, %v4674
      %v4676 = vpop.f32.mrb[0].mxu0
      %v4677 = vpop.f32.mrb[0].mxu0
      %v4678 = vadd.f32 0.0, %v4677
      %v4679 = vpop.f32.mrb[0].mxu0
      %4680 = vmatprep.mubr.bf16.mxu0 0
      %4681 = vmatmul.mubr.bf16.gmra.mrb[0].mxu0 %v4553
      %v4682 = vpop.f32.mrb[0].mxu0
      %v4683 = vadd.f32 0.0, %v4682
      %v4684 = vpop.f32.mrb[0].mxu0
      %v4685 = vpop.f32.mrb[0].mxu0
      %v4686 = vadd.f32 0.0, %v4685
      %v4687 = vpop.f32.mrb[0].mxu0
      %4688 = vmatprep.mubr.bf16.mxu0 0
      %4689 = vmatmul.mubr.bf16.gmra.mrb[0].mxu0 %v4556
      %v4690 = vpop.f32.mrb[0].mxu0
      %v4691 = vadd.f32 0.0, %v4690
      %v4692 = vpop.f32.mrb[0].mxu0
      %v4693 = vpop.f32.mrb[0].mxu0
      %v4694 = vadd.f32 0.0, %v4693
      %v4695 = vpop.f32.mrb[0].mxu0
      %4696 = vmatprep.mubr.bf16.mxu0 0
      %4697 = vmatmul.mubr.bf16.gmra.mrb[0].mxu0 %v4559
      %v4698 = vpop.f32.mrb[0].mxu0
      %v4699 = vadd.f32 0.0, %v4698
      %v4700 = vpop.f32.mrb[0].mxu0
      %v4701 = vpop.f32.mrb[0].mxu0
      %v4702 = vadd.f32 0.0, %v4701
      %v4703 = vpop.f32.mrb[0].mxu0
      %4704 = vmatprep.mubr.bf16.mxu0 0
      %4705 = vmatmul.mubr.bf16.gmra.mrb[0].mxu0 %v4562
      %v4706 = vpop.f32.mrb[0].mxu0
      %v4707 = vadd.f32 0.0, %v4706
      %v4708 = vpop.f32.mrb[0].mxu0
      %v4709 = vpop.f32.mrb[0].mxu0
      %v4710 = vadd.f32 0.0, %v4709
      %v4711 = vpop.f32.mrb[0].mxu0
      %4712 = vmatprep.mubr.bf16.mxu0 0
      %4713 = vmatmul.mubr.bf16.gmra.mrb[0].mxu0 %v4565
      %v4714 = vpop.f32.mrb[0].mxu0
      %v4715 = vadd.f32 0.0, %v4714
      %v4716 = vpop.f32.mrb[0].mxu0
      %v4717 = vpop.f32.mrb[0].mxu0
      %v4718 = vadd.f32 0.0, %v4717
      %v4719 = vpop.f32.mrb[0].mxu0
      %4720 = vmatprep.mubr.bf16.mxu0 0
      %4721 = vmatmul.mubr.bf16.gmra.mrb[0].mxu0 %v4568
      %v4722 = vpop.f32.mrb[0].mxu0
      %v4723 = vadd.f32 0.0, %v4722
      %v4724 = vpop.f32.mrb[0].mxu0
      %v4725 = vpop.f32.mrb[0].mxu0
      %v4726 = vadd.f32 0.0, %v4725
      %v4727 = vpop.f32.mrb[0].mxu0
      %4728 = vmatprep.mubr.bf16.mxu0 0
      %4729 = vmatmul.mubr.bf16.gmra.mrb[0].mxu0 %v4571
      %v4730 = vpop.f32.mrb[0].mxu0
      %v4731 = vadd.f32 0.0, %v4730
      %v4732 = vpop.f32.mrb[0].mxu0
      %v4733 = vpop.f32.mrb[0].mxu0
      %v4734 = vadd.f32 0.0, %v4733
      %v4735 = vpop.f32.mrb[0].mxu0
      %4736 = vdwg.mxu0
      %v4737 = vadd.f32 %v4267, %v4611
      %v4738 = vadd.f32 %v4268, %v4614
      %v4739 = vadd.f32 %v4269, %v4619
      %v4740 = vadd.f32 %v4270, %v4622
      %v4741 = vadd.f32 %v4271, %v4627
      %v4742 = vadd.f32 %v4272, %v4630
      %v4743 = vadd.f32 %v4273, %v4635
      %v4744 = vadd.f32 %v4274, %v4638
      %v4745 = vadd.f32 %v4275, %v4643
      %v4746 = vadd.f32 %v4276, %v4646
      %v4747 = vadd.f32 %v4277, %v4651
      %v4748 = vadd.f32 %v4278, %v4654
      %v4749 = vadd.f32 %v4279, %v4659
      %v4750 = vadd.f32 %v4280, %v4662
      %v4751 = vadd.f32 %v4281, %v4667
      %v4752 = vadd.f32 %v4282, %v4670
      %v4753 = vadd.f32 %v4283, %v4675
      %v4754 = vadd.f32 %v4284, %v4678
      %v4755 = vadd.f32 %v4285, %v4683
      %v4756 = vadd.f32 %v4286, %v4686
      %v4757 = vadd.f32 %v4287, %v4691
      %v4758 = vadd.f32 %v4288, %v4694
      %v4759 = vadd.f32 %v4289, %v4699
      %v4760 = vadd.f32 %v4290, %v4702
      %v4761 = vadd.f32 %v4291, %v4707
      %v4762 = vadd.f32 %v4292, %v4710
      %v4763 = vadd.f32 %v4293, %v4715
      %v4764 = vadd.f32 %v4294, %v4718
      %v4765 = vadd.f32 %v4295, %v4723
      %v4766 = vadd.f32 %v4296, %v4726
      %v4767 = vadd.f32 %v4297, %v4731
      %v4768 = vadd.f32 %v4298, %v4734
      %v4769 = vadd.f32 %v4737, %v4738
      %v4770 = vadd.f32 %v4769, %v4739
      %v4771 = vadd.f32 %v4770, %v4740
      %v4772 = vadd.f32 %v4771, %v4741
      %v4773 = vadd.f32 %v4772, %v4742
      %v4774 = vadd.f32 %v4773, %v4743
      %v4775 = vadd.f32 %v4774, %v4744
      %v4776 = vadd.f32 %v4775, %v4745
      %v4777 = vadd.f32 %v4776, %v4746
      %v4778 = vadd.f32 %v4777, %v4747
      %v4779 = vadd.f32 %v4778, %v4748
      %v4780 = vadd.f32 %v4779, %v4749
      %v4781 = vadd.f32 %v4780, %v4750
      %v4782 = vadd.f32 %v4781, %v4751
      %v4783 = vadd.f32 %v4782, %v4752
      %v4784 = vadd.f32 %v4783, %v4753
      %v4785 = vadd.f32 %v4784, %v4754
      %v4786 = vadd.f32 %v4785, %v4755
      %v4787 = vadd.f32 %v4786, %v4756
      %v4788 = vadd.f32 %v4787, %v4757
      %v4789 = vadd.f32 %v4788, %v4758
      %v4790 = vadd.f32 %v4789, %v4759
      %v4791 = vadd.f32 %v4790, %v4760
      %v4792 = vadd.f32 %v4791, %v4761
      %v4793 = vadd.f32 %v4792, %v4762
      %v4794 = vadd.f32 %v4793, %v4763
      %v4795 = vadd.f32 %v4794, %v4764
      %v4796 = vadd.f32 %v4795, %v4765
      %v4797 = vadd.f32 %v4796, %v4766
      %v4798 = vadd.f32 %v4797, %v4767
      %v4799 = vadd.f32 %v4798, %v4768
      %v4800 = vrot.slane %v4799, 4
      %v4801 = vadd.f32 %v4799, %v4800
      %v4802 = vrot.slane %v4801, 2
      %v4803 = vadd.f32 %v4801, %v4802
      %v4804 = vrot.slane %v4803, 1
      %v4805 = vadd.f32 %v4803, %v4804
      %v4806 = vmul.f32 %v4737, %v4737
      %v4807 = vmul.f32 %v4738, %v4738
      %v4808 = vmul.f32 %v4739, %v4739
      %v4809 = vmul.f32 %v4740, %v4740
      %v4810 = vmul.f32 %v4741, %v4741
      %v4811 = vmul.f32 %v4742, %v4742
      %v4812 = vmul.f32 %v4743, %v4743
      %v4813 = vmul.f32 %v4744, %v4744
      %v4814 = vmul.f32 %v4745, %v4745
      %v4815 = vmul.f32 %v4746, %v4746
      %v4816 = vmul.f32 %v4747, %v4747
      %v4817 = vmul.f32 %v4748, %v4748
      %v4818 = vmul.f32 %v4749, %v4749
      %v4819 = vmul.f32 %v4750, %v4750
      %v4820 = vmul.f32 %v4751, %v4751
      %v4821 = vmul.f32 %v4752, %v4752
      %v4822 = vmul.f32 %v4753, %v4753
      %v4823 = vmul.f32 %v4754, %v4754
      %v4824 = vmul.f32 %v4755, %v4755
      %v4825 = vmul.f32 %v4756, %v4756
      %v4826 = vmul.f32 %v4757, %v4757
      %v4827 = vmul.f32 %v4758, %v4758
      %v4828 = vmul.f32 %v4759, %v4759
      %v4829 = vmul.f32 %v4760, %v4760
      %v4830 = vmul.f32 %v4761, %v4761
      %v4831 = vmul.f32 %v4762, %v4762
      %v4832 = vmul.f32 %v4763, %v4763
      %v4833 = vmul.f32 %v4764, %v4764
      %v4834 = vmul.f32 %v4765, %v4765
      %v4835 = vmul.f32 %v4766, %v4766
      %v4836 = vmul.f32 %v4767, %v4767
      %v4837 = vmul.f32 %v4768, %v4768
      %v4838 = vadd.f32 %v4806, %v4807
      %v4839 = vadd.f32 %v4838, %v4808
      %v4840 = vadd.f32 %v4839, %v4809
      %v4841 = vadd.f32 %v4840, %v4810
      %v4842 = vadd.f32 %v4841, %v4811
      %v4843 = vadd.f32 %v4842, %v4812
      %v4844 = vadd.f32 %v4843, %v4813
      %v4845 = vadd.f32 %v4844, %v4814
      %v4846 = vadd.f32 %v4845, %v4815
      %v4847 = vadd.f32 %v4846, %v4816
      %v4848 = vadd.f32 %v4847, %v4817
      %v4849 = vadd.f32 %v4848, %v4818
      %v4850 = vadd.f32 %v4849, %v4819
      %v4851 = vadd.f32 %v4850, %v4820
      %v4852 = vadd.f32 %v4851, %v4821
      %v4853 = vadd.f32 %v4852, %v4822
      %v4854 = vadd.f32 %v4853, %v4823
      %v4855 = vadd.f32 %v4854, %v4824
      %v4856 = vadd.f32 %v4855, %v4825
      %v4857 = vadd.f32 %v4856, %v4826
      %v4858 = vadd.f32 %v4857, %v4827
      %v4859 = vadd.f32 %v4858, %v4828
      %v4860 = vadd.f32 %v4859, %v4829
      %v4861 = vadd.f32 %v4860, %v4830
      %v4862 = vadd.f32 %v4861, %v4831
      %v4863 = vadd.f32 %v4862, %v4832
      %v4864 = vadd.f32 %v4863, %v4833
      %v4865 = vadd.f32 %v4864, %v4834
      %v4866 = vadd.f32 %v4865, %v4835
      %v4867 = vadd.f32 %v4866, %v4836
      %v4868 = vadd.f32 %v4867, %v4837
      %v4869 = vrot.slane %v4868, 4
      %v4870 = vadd.f32 %v4868, %v4869
      %v4871 = vrot.slane %v4870, 2
      %v4872 = vadd.f32 %v4870, %v4871
      %v4873 = vrot.slane %v4872, 1
      %v4874 = vadd.f32 %v4872, %v4873
      %vm4875 = vcmask 1040384
      %v4876 = vsel %vm4875, %v4805, %v4874
      %4877 = vst [vmem:[%s208] sm:$0x3] %v4876
      %v4878 = vld [vmem:[%s2] sm:$0x1]
      %v4880 = vlaneseq
      %v4881 = vshrl.u32 %v4880, 7
      %v4882 = vsub.s32 0, %v4881
      %v4883 = vrot.slane %v4878, %v4882
      %v4885 = vadd.f32 %v4737, %v4883
      %v4886 = vadd.f32 %v4738, %v4883
      %v4887 = vadd.f32 %v4739, %v4883
      %v4888 = vadd.f32 %v4740, %v4883
      %v4889 = vadd.f32 %v4741, %v4883
      %v4890 = vadd.f32 %v4742, %v4883
      %v4891 = vadd.f32 %v4743, %v4883
      %v4892 = vadd.f32 %v4744, %v4883
      %v4893 = vadd.f32 %v4745, %v4883
      %v4894 = vadd.f32 %v4746, %v4883
      %v4895 = vadd.f32 %v4747, %v4883
      %v4896 = vadd.f32 %v4748, %v4883
      %v4897 = vadd.f32 %v4749, %v4883
      %v4898 = vadd.f32 %v4750, %v4883
      %v4899 = vadd.f32 %v4751, %v4883
      %v4900 = vadd.f32 %v4752, %v4883
      %v4901 = vadd.f32 %v4753, %v4883
      %v4902 = vadd.f32 %v4754, %v4883
      %v4903 = vadd.f32 %v4755, %v4883
      %v4904 = vadd.f32 %v4756, %v4883
      %v4905 = vadd.f32 %v4757, %v4883
      %v4906 = vadd.f32 %v4758, %v4883
      %v4907 = vadd.f32 %v4759, %v4883
      %v4908 = vadd.f32 %v4760, %v4883
      %v4909 = vadd.f32 %v4761, %v4883
      %v4910 = vadd.f32 %v4762, %v4883
      %v4911 = vadd.f32 %v4763, %v4883
      %v4912 = vadd.f32 %v4764, %v4883
      %v4913 = vadd.f32 %v4765, %v4883
      %v4914 = vadd.f32 %v4766, %v4883
      %v4915 = vadd.f32 %v4767, %v4883
      %v4916 = vadd.f32 %v4768, %v4883
      %v4917 = vpack.c.bf16 %v4886, %v4885
      %v4918 = vpack.c.bf16 %v4888, %v4887
      %v4919 = vpack.c.bf16 %v4890, %v4889
      %v4920 = vpack.c.bf16 %v4892, %v4891
      %v4921 = vpack.c.bf16 %v4894, %v4893
      %v4922 = vpack.c.bf16 %v4896, %v4895
      %v4923 = vpack.c.bf16 %v4898, %v4897
      %v4924 = vpack.c.bf16 %v4900, %v4899
      %v4925 = vpack.c.bf16 %v4902, %v4901
      %v4926 = vpack.c.bf16 %v4904, %v4903
      %v4927 = vpack.c.bf16 %v4906, %v4905
      %v4928 = vpack.c.bf16 %v4908, %v4907
      %v4929 = vpack.c.bf16 %v4910, %v4909
      %v4930 = vpack.c.bf16 %v4912, %v4911
      %v4931 = vpack.c.bf16 %v4914, %v4913
      %v4932 = vpack.c.bf16 %v4916, %v4915
      %v4949 = vunpack.c.l.b16 %v4917
      %v4950 = vunpack.c.h.b16 %v4917
      %v4951 = vunpack.c.l.b16 %v4918
      %v4952 = vunpack.c.h.b16 %v4918
      %v4953 = vunpack.c.l.b16 %v4919
      %v4954 = vunpack.c.h.b16 %v4919
      %v4955 = vunpack.c.l.b16 %v4920
      %v4956 = vunpack.c.h.b16 %v4920
      %v4957 = vunpack.c.l.b16 %v4921
      %v4958 = vunpack.c.h.b16 %v4921
      %v4959 = vunpack.c.l.b16 %v4922
      %v4960 = vunpack.c.h.b16 %v4922
      %v4961 = vunpack.c.l.b16 %v4923
      %v4962 = vunpack.c.h.b16 %v4923
      %v4963 = vunpack.c.l.b16 %v4924
      %v4964 = vunpack.c.h.b16 %v4924
      %v4965 = vunpack.c.l.b16 %v4925
      %v4966 = vunpack.c.h.b16 %v4925
      %v4967 = vunpack.c.l.b16 %v4926
      %v4968 = vunpack.c.h.b16 %v4926
      %v4969 = vunpack.c.l.b16 %v4927
      %v4970 = vunpack.c.h.b16 %v4927
      %v4971 = vunpack.c.l.b16 %v4928
      %v4972 = vunpack.c.h.b16 %v4928
      %v4973 = vunpack.c.l.b16 %v4929
      %v4974 = vunpack.c.h.b16 %v4929
      %v4975 = vunpack.c.l.b16 %v4930
      %v4976 = vunpack.c.h.b16 %v4930
      %v4977 = vunpack.c.l.b16 %v4931
      %v4978 = vunpack.c.h.b16 %v4931
      %v4979 = vunpack.c.l.b16 %v4932
      %v4980 = vunpack.c.h.b16 %v4932
      %v4981 = vpack.c.b16 %v4949, %v4949
      %v4982 = vpack.c.b16 %v4950, %v4950
      %v4983 = vpack.c.b16 %v4951, %v4951
      %v4984 = vpack.c.b16 %v4952, %v4952
      %v4985 = vpack.c.b16 %v4953, %v4953
      %v4986 = vpack.c.b16 %v4954, %v4954
      %v4987 = vpack.c.b16 %v4955, %v4955
      %v4988 = vpack.c.b16 %v4956, %v4956
      %v4989 = vpack.c.b16 %v4957, %v4957
      %v4990 = vpack.c.b16 %v4958, %v4958
      %v4991 = vpack.c.b16 %v4959, %v4959
      %v4992 = vpack.c.b16 %v4960, %v4960
      %v4993 = vpack.c.b16 %v4961, %v4961
      %v4994 = vpack.c.b16 %v4962, %v4962
      %v4995 = vpack.c.b16 %v4963, %v4963
      %v4996 = vpack.c.b16 %v4964, %v4964
      %v4997 = vpack.c.b16 %v4965, %v4965
      %v4998 = vpack.c.b16 %v4966, %v4966
      %v4999 = vpack.c.b16 %v4967, %v4967
      %v5000 = vpack.c.b16 %v4968, %v4968
      %v5001 = vpack.c.b16 %v4969, %v4969
      %v5002 = vpack.c.b16 %v4970, %v4970
      %v5003 = vpack.c.b16 %v4971, %v4971
      %v5004 = vpack.c.b16 %v4972, %v4972
      %v5005 = vpack.c.b16 %v4973, %v4973
      %v5006 = vpack.c.b16 %v4974, %v4974
      %v5007 = vpack.c.b16 %v4975, %v4975
      %v5008 = vpack.c.b16 %v4976, %v4976
      %v5009 = vpack.c.b16 %v4977, %v4977
      %v5010 = vpack.c.b16 %v4978, %v4978
      %v5011 = vpack.c.b16 %v4979, %v4979
      %v5012 = vpack.c.b16 %v4980, %v4980
      %5045 = vst [vmem:[%s204] sm:$0xf] %v4981
      %5046 = vst [vmem:[%s204 + $0x4] sm:$0xf] %v4982
      %5047 = vst [vmem:[%s204 + $0x8] sm:$0xf] %v4983
      %5048 = vst [vmem:[%s204 + $0xc] sm:$0xf] %v4984
      %5049 = vst [vmem:[%s204 + $0x10] sm:$0xf] %v4985
      %5050 = vst [vmem:[%s204 + $0x14] sm:$0xf] %v4986
      %5051 = vst [vmem:[%s204 + $0x18] sm:$0xf] %v4987
      %5052 = vst [vmem:[%s204 + $0x1c] sm:$0xf] %v4988
      %5053 = vst [vmem:[%s204 + $0x20] sm:$0xf] %v4989
      %5054 = vst [vmem:[%s204 + $0x24] sm:$0xf] %v4990
      %5055 = vst [vmem:[%s204 + $0x28] sm:$0xf] %v4991
      %5056 = vst [vmem:[%s204 + $0x2c] sm:$0xf] %v4992
      %5057 = vst [vmem:[%s204 + $0x30] sm:$0xf] %v4993
      %5058 = vst [vmem:[%s204 + $0x34] sm:$0xf] %v4994
      %5059 = vst [vmem:[%s204 + $0x38] sm:$0xf] %v4995
      %5060 = vst [vmem:[%s204 + $0x3c] sm:$0xf] %v4996
      %5061 = vst [vmem:[%s204 + $0x40] sm:$0xf] %v4997
      %5062 = vst [vmem:[%s204 + $0x44] sm:$0xf] %v4998
      %5063 = vst [vmem:[%s204 + $0x48] sm:$0xf] %v4999
      %5064 = vst [vmem:[%s204 + $0x4c] sm:$0xf] %v5000
      %5065 = vst [vmem:[%s204 + $0x50] sm:$0xf] %v5001
      %5066 = vst [vmem:[%s204 + $0x54] sm:$0xf] %v5002
      %5067 = vst [vmem:[%s204 + $0x58] sm:$0xf] %v5003
      %5068 = vst [vmem:[%s204 + $0x5c] sm:$0xf] %v5004
      %5069 = vst [vmem:[%s204 + $0x60] sm:$0xf] %v5005
      %5070 = vst [vmem:[%s204 + $0x64] sm:$0xf] %v5006
      %5071 = vst [vmem:[%s204 + $0x68] sm:$0xf] %v5007
      %5072 = vst [vmem:[%s204 + $0x6c] sm:$0xf] %v5008
      %5073 = vst [vmem:[%s204 + $0x70] sm:$0xf] %v5009
      %5074 = vst [vmem:[%s204 + $0x74] sm:$0xf] %v5010
      %5075 = vst [vmem:[%s204 + $0x78] sm:$0xf] %v5011
      %5076 = vst [vmem:[%s204 + $0x7c] sm:$0xf] %v5012
      %p5077 = scmp.lt.s32.totalorder %s16, 1
      %s5078 = scalar_select %p5077, %s16, 1
      %s5079 = smul.addr %s5078, 32
      %s5080 = smul.addr %s5079, 4
      %s5081 = scalar_lea.vmem %s3, %s5080
      %p5082 = scmp.lt.s32.totalorder %s16, 1
      %s5083 = scalar_select %p5082, %s16, 1
      %s5084 = smul.addr %s5083, 2
      %s5085 = scalar_lea.vmem %s4, %s5084
      // Predicated region
      $region33: #{_up_conv_impl.1} parent=31 // pred_check
        %p5086 = pneg %p102
      $region34: #{_up_conv_impl.1} parent=31 // pred_check_branch
        %5088 = sbr.rel (%p5086) target = $region36
      $region35: #{_up_conv_impl.1} parent=31 // pred_region
        _
      $region36: #{_up_conv_impl.1} parent=31 // pred_fallthru
        _
      // Predicated region
      $region37: #{_up_conv_impl.1} parent=31 // pred_check
        %p5089 = pneg %p128
      $region38: #{_up_conv_impl.1} parent=31 // pred_check_branch
        %5091 = sbr.rel (%p5089) target = $region40
      $region39: #{_up_conv_impl.1} parent=31 // pred_region
        _
      $region40: #{_up_conv_impl.1} parent=31 // pred_fallthru
        _
    $region32: #{_up_conv_impl.1} parent=5 // pred_fallthru
      _
    %p5092 = scmp.le.s32.totalorder 2, %s11
    // Predicated region
    $region41: #{_up_conv_impl.1} parent=5 // pred_check
      %p5093 = pneg %p5092
    $region42: #{_up_conv_impl.1} parent=5 // pred_check_branch
      %5095 = sbr.rel (%p5093) target = $region44
    $region43: #{_up_conv_impl.1} parent=5 // pred_region
      %s5096 = ssub.s32 %s11, 2
      // Predicated region
      $region45: #{_up_conv_impl.1} parent=43 // pred_check
        %p5097 = pneg %p108
      $region46: #{_up_conv_impl.1} parent=43 // pred_check_branch
        %5099 = sbr.rel (%p5097) target = $region48
      $region47: #{_up_conv_impl.1} parent=43 // pred_region
        %p5100 = scmp.lt.s32.totalorder %s17, 1
        %s5101 = scalar_select %p5100, %s17, 1
        %s5102 = smul.addr %s5101, 32
        %s5103 = smul.addr %s5102, 4
        %s5104 = scalar_lea.vmem %s3, %s5103
      $region48: #{_up_conv_impl.1} parent=43 // pred_fallthru
        _
      // Predicated region
      $region49: #{_up_conv_impl.1} parent=43 // pred_check
        %p5105 = pneg %p134
      $region50: #{_up_conv_impl.1} parent=43 // pred_check_branch
        %5107 = sbr.rel (%p5105) target = $region52
      $region51: #{_up_conv_impl.1} parent=43 // pred_region
        %p5108 = scmp.lt.s32.totalorder %s17, 1
        %s5109 = scalar_select %p5108, %s17, 1
        %s5110 = smul.addr %s5109, 2
        %s5111 = scalar_lea.vmem %s4, %s5110
      $region52: #{_up_conv_impl.1} parent=43 // pred_fallthru
        _
    $region44: #{_up_conv_impl.1} parent=5 // pred_fallthru
      _
  $region6: #{_up_conv_impl.1} parent=0 // loop_footer
    %s15 = sadd.s32 1, %s11
  $region7: #{_up_conv_impl.1} parent=0 // loop_footer_branch
    %10 = sbr.rel target = $region3
  $region8: #{_up_conv_impl.1} parent=0 // loop_exit
    _

// kernel: tile.19
$region0: #{tile.19}
  %s0 = inlined_call_operand.vmem [shape: f32[4,8], index: 0, kind: input, shape index: {}]
  %s1 = inlined_call_operand.vmem [shape: f32[32], index: 1, kind: output, shape index: {}]
  $region1: #{tile.19} parent=0
    #allocation0 [shape = 'u8[4096]{0}', space=vmem, size = 0x1000, scoped, tag = 'scoped mem for output reshape']
    #allocation1 [shape = 'u8[4096]{0}', space=vmem, size = 0x1000, scoped, tag = 'scoped mem for input reshape']
    %s3 = sshllo.u32 0, 4
    %v4 = vld [vmem:[%s0] sm:%s3]
    %5 = vst [vmem:[#allocation1] sm:%s3] %v4
    %v6 = vld [vmem:[#allocation1] sm:$0x1]
    %vm7 = vcmask 64512
    %8 = vst.msk [vmem:[#allocation0] sm:$0x1] %vm7, %v6
    %s9 = scalar_lea.vmem [#allocation1], 3
    %v10 = vld [vmem:[%s9] sm:$0x1]
    %11 = vrot.lane.b32.xlu0 %v10, 24
    %v12 = vpop.permute.xlu0 %11
    %vm13 = vcmask 261312
    %14 = vst.msk [vmem:[#allocation0] sm:$0x1] %vm13, %v12
    %s15 = scalar_lea.vmem [#allocation1], 2
    %v16 = vld [vmem:[%s15] sm:$0x1]
    %17 = vrot.lane.b32.xlu0 %v16, 16
    %v18 = vpop.permute.xlu0 %17
    %vm19 = vcmask 195712
    %20 = vst.msk [vmem:[#allocation0] sm:$0x1] %vm19, %v18
    %s21 = scalar_lea.vmem [#allocation1], 1
    %v22 = vld [vmem:[%s21] sm:$0x1]
    %23 = vrot.lane.b32.xlu0 %v22, 8
    %v24 = vpop.permute.xlu0 %23
    %vm25 = vcmask 130112
    %26 = vst.msk [vmem:[#allocation0] sm:$0x1] %vm25, %v24
    %s28 = sshllo.u32 0, 1
    %v30 = vld [vmem:[#allocation0] sm:%s28]
    %s31 = sshllo.u32 0, 1
    %32 = vst [vmem:[%s1] sm:%s31] %v30

// kernel: tile.18
$region0: #{tile.18}
  #allocation0 [shape = 's32[1]{0}', space=sflag, size = 0x4, scoped, tag = 'scoped memory for tile.18']
  %s0 = inlined_call_operand.vmem [shape: f32[8], index: 0, kind: input, shape index: {}]
  %s1 = inlined_call_operand.vmem [shape: f32[4,8], index: 1, kind: output, shape index: {}]
  // Predicated region
  $region2: #{tile.18} parent=0 // pred_check
    _
  $region3: #{tile.18} parent=0 // pred_check_branch
    %3 = sbr.rel (0) target = $region5
  $region4: #{tile.18} parent=0 // pred_region
    _
  $region5: #{tile.18} parent=0 // pred_fallthru
    _
  %v4 = vld [vmem:[%s0] ss:$0 sm:$0xff]
  %5 = vst [vmem:[%s1] sm:$0xf] %v4

// kernel: _up_conv_impl.1
$region0: #{_up_conv_impl.1}
  #allocation0 [shape = 'u32[]', space=smem, size = 0x4, offset = 0x4, fixed_abs, tag = 'smem constant byte address 0x4 - core index']
  #allocation1 [shape = 'u32[144,128]{1,0:T(1,128)}', space=vmem, size = 0x12000, scoped, tag = 'internal scratch']
  %s0 = inlined_call_operand.vmem [shape: bf16[2,18,18,4], index: 0, kind: input, shape index: {}]
  %s1 = inlined_call_operand.vmem [shape: bf16[9,4,128], index: 1, kind: input, shape index: {}]
  %s2 = inlined_call_operand.vmem [shape: f32[1,128], index: 2, kind: input, shape index: {}]
  %s3 = inlined_call_operand.vmem [shape: bf16[2,256,128], index: 3, kind: output, shape index: {0}]
  %s4 = inlined_call_operand.vmem [shape: f32[2,2,128], index: 4, kind: output, shape index: {1}]
  %5 = xla_tuple %s3, %s4
  %s6 = sld [smem:[#allocation0]]
  $region53: #{_up_conv_impl.1} parent=0
    _
  %s8 = ssub.s32 1, %s6
  %s9 = scalar_select 0, %s8, %s6
  loop: start=0, step=1, limit=4
  $region2: #{_up_conv_impl.1} parent=0 // loop_pre_header
    _
  $region3: #{_up_conv_impl.1} parent=0 // loop_header
    %s11 = sphi 0, %s15
    %p12 = scmp.ge.s32.totalorder %s11, 4
    %s21 = sphi 0, %s23
    %s24 = sphi 0, %s21
    %s25 = sphi 0, %s24
    %s41 = sphi 0, %s25
    %s45 = sphi 0, %s45
    %s47 = sphi 0, %s45
    %s48 = sphi 0, %s47
    %s62 = sphi 0, %s48
    %s66 = sphi 0, %s66
    %s68 = sphi 0, %s66
    %s69 = sphi 0, %s68
    %s83 = sphi 0, %s69
    %s89 = sphi 0, %s91
    %s92 = sphi 0, %s89
    %s93 = sphi 0, %s92
    %s109 = sphi 0, %s93
    %s115 = sphi 0, %s117
    %s118 = sphi 0, %s115
    %s119 = sphi 0, %s118
    %s135 = sphi 0, %s119
  $region4: #{_up_conv_impl.1} parent=0 // loop_header_branch
    %14 = sbr.rel (%p12) target = $region8
  $region5: #{_up_conv_impl.1} parent=0 // loop_body
    %s16 = ssub.s32 %s11, 1
    %s17 = ssub.s32 %s11, 2
    %s18 = sadd.s32 %s11, 1
    %s19 = ssub.s32 %s11, %s18
    %p20 = scmp.eq.s32.totalorder %s19, 0
    %s22 = sadd.s32 %s21, 1
    %s23 = scalar_select %p20, %s21, %s22
    %p26 = pneg %p20
    %p27 = scmp.eq.s32.totalorder %s11, 1
    %p28 = por %p26, %p27
    %p29 = scmp.ne.s32.totalorder %s21, %s24
    %p30 = scmp.eq.s32.totalorder %s11, 0
    %p31 = por %p29, %p30
    %p32 = scmp.ne.s32.totalorder %s21, %s24
    %p33 = scmp.eq.s32.totalorder %s16, 1
    %p34 = por %p32, %p33
    %p35 = scmp.ne.s32.totalorder %s24, %s25
    %p36 = scmp.eq.s32.totalorder %s16, 0
    %p37 = por %p35, %p36
    %p38 = scmp.ne.s32.totalorder %s24, %s25
    %p39 = scmp.eq.s32.totalorder %s17, 1
    %p40 = por %p38, %p39
    %p42 = scmp.ne.s32.totalorder %s25, %s41
    %p43 = scmp.eq.s32.totalorder %s17, 0
    %p44 = por %p42, %p43
    %s46 = sadd.s32 %s45, 1
    %p49 = scmp.eq.s32.totalorder %s11, 1
    %p50 = scmp.ne.s32.totalorder %s45, %s47
    %p51 = scmp.eq.s32.totalorder %s11, 0
    %p52 = por %p50, %p51
    %p53 = scmp.ne.s32.totalorder %s45, %s47
    %p54 = scmp.eq.s32.totalorder %s16, 1
    %p55 = por %p53, %p54
    %p56 = scmp.ne.s32.totalorder %s47, %s48
    %p57 = scmp.eq.s32.totalorder %s16, 0
    %p58 = por %p56, %p57
    %p59 = scmp.ne.s32.totalorder %s47, %s48
    %p60 = scmp.eq.s32.totalorder %s17, 1
    %p61 = por %p59, %p60
    %p63 = scmp.ne.s32.totalorder %s48, %s62
    %p64 = scmp.eq.s32.totalorder %s17, 0
    %p65 = por %p63, %p64
    %s67 = sadd.s32 %s66, 1
    %p70 = scmp.eq.s32.totalorder %s11, 1
    %p71 = scmp.ne.s32.totalorder %s66, %s68
    %p72 = scmp.eq.s32.totalorder %s11, 0
    %p73 = por %p71, %p72
    %p74 = scmp.ne.s32.totalorder %s66, %s68
    %p75 = scmp.eq.s32.totalorder %s16, 1
    %p76 = por %p74, %p75
    %p77 = scmp.ne.s32.totalorder %s68, %s69
    %p78 = scmp.eq.s32.totalorder %s16, 0
    %p79 = por %p77, %p78
    %p80 = scmp.ne.s32.totalorder %s68, %s69
    %p81 = scmp.eq.s32.totalorder %s17, 1
    %p82 = por %p80, %p81
    %p84 = scmp.ne.s32.totalorder %s69, %s83
    %p85 = scmp.eq.s32.totalorder %s17, 0
    %p86 = por %p84, %p85
    %s87 = ssub.s32 %s11, %s18
    %p88 = scmp.eq.s32.totalorder %s87, 0
    %s90 = sadd.s32 %s89, 1
    %s91 = scalar_select %p88, %s89, %s90
    %p94 = pneg %p88
    %p95 = scmp.eq.s32.totalorder %s11, 1
    %p96 = por %p94, %p95
    %p97 = scmp.ne.s32.totalorder %s89, %s92
    %p98 = scmp.eq.s32.totalorder %s11, 0
    %p99 = por %p97, %p98
    %p100 = scmp.ne.s32.totalorder %s89, %s92
    %p101 = scmp.eq.s32.totalorder %s16, 1
    %p102 = por %p100, %p101
    %p103 = scmp.ne.s32.totalorder %s92, %s93
    %p104 = scmp.eq.s32.totalorder %s16, 0
    %p105 = por %p103, %p104
    %p106 = scmp.ne.s32.totalorder %s92, %s93
    %p107 = scmp.eq.s32.totalorder %s17, 1
    %p108 = por %p106, %p107
    %p110 = scmp.ne.s32.totalorder %s93, %s109
    %p111 = scmp.eq.s32.totalorder %s17, 0
    %p112 = por %p110, %p111
    %s113 = ssub.s32 %s11, %s18
    %p114 = scmp.eq.s32.totalorder %s113, 0
    %s116 = sadd.s32 %s115, 1
    %s117 = scalar_select %p114, %s115, %s116
    %p120 = pneg %p114
    %p121 = scmp.eq.s32.totalorder %s11, 1
    %p122 = por %p120, %p121
    %p123 = scmp.ne.s32.totalorder %s115, %s118
    %p124 = scmp.eq.s32.totalorder %s11, 0
    %p125 = por %p123, %p124
    %p126 = scmp.ne.s32.totalorder %s115, %s118
    %p127 = scmp.eq.s32.totalorder %s16, 1
    %p128 = por %p126, %p127
    %p129 = scmp.ne.s32.totalorder %s118, %s119
    %p130 = scmp.eq.s32.totalorder %s16, 0
    %p131 = por %p129, %p130
    %p132 = scmp.ne.s32.totalorder %s118, %s119
    %p133 = scmp.eq.s32.totalorder %s17, 1
    %p134 = por %p132, %p133
    %p136 = scmp.ne.s32.totalorder %s119, %s135
    %p137 = scmp.eq.s32.totalorder %s17, 0
    %p138 = por %p136, %p137
    %p139 = scmp.le.s32.totalorder 1, %s11
    %p140 = scmp.lt.s32.totalorder %s11, 3
    %p141 = pnand %p139, %p140
    %p142 = pneg %p141
    // Predicated region
    $region9: #{_up_conv_impl.1} parent=5 // pred_check
      _
    $region10: #{_up_conv_impl.1} parent=5 // pred_check_branch
      %144 = sbr.rel (%p141) target = $region12
    $region11: #{_up_conv_impl.1} parent=5 // pred_region
      %s145 = ssub.s32 %s11, 1
      // Predicated region
      $region13: #{_up_conv_impl.1} parent=11 // pred_check
        %p146 = pneg %p58
      $region14: #{_up_conv_impl.1} parent=11 // pred_check_branch
        %148 = sbr.rel (%p146) target = $region16
      $region15: #{_up_conv_impl.1} parent=11 // pred_region
        _
      $region16: #{_up_conv_impl.1} parent=11 // pred_fallthru
        _
      // Predicated region
      $region17: #{_up_conv_impl.1} parent=11 // pred_check
        %p149 = pneg %p79
      $region18: #{_up_conv_impl.1} parent=11 // pred_check_branch
        %151 = sbr.rel (%p149) target = $region20
      $region19: #{_up_conv_impl.1} parent=11 // pred_region
        _
      $region20: #{_up_conv_impl.1} parent=11 // pred_fallthru
        _
    $region12: #{_up_conv_impl.1} parent=5 // pred_fallthru
      _
    %p152 = scmp.lt.s32.totalorder %s11, 2
    // Predicated region
    $region21: #{_up_conv_impl.1} parent=5 // pred_check
      %p153 = pneg %p152
    $region22: #{_up_conv_impl.1} parent=5 // pred_check_branch
      %155 = sbr.rel (%p153) target = $region24
    $region23: #{_up_conv_impl.1} parent=5 // pred_region
      // Predicated region
      $region25: #{_up_conv_impl.1} parent=23 // pred_check
        %p156 = pneg %p31
      $region26: #{_up_conv_impl.1} parent=23 // pred_check_branch
        %158 = sbr.rel (%p156) target = $region28
      $region27: #{_up_conv_impl.1} parent=23 // pred_region
        %p159 = scmp.lt.s32.totalorder %s11, 1
        %s160 = scalar_select %p159, %s11, 1
        %s161 = smul.addr %s160, 54
        %s162 = smul.addr %s161, 4
        %s163 = scalar_lea.vmem %s0, %s162
      $region28: #{_up_conv_impl.1} parent=23 // pred_fallthru
        _
    $region24: #{_up_conv_impl.1} parent=5 // pred_fallthru
      _
    %p164 = scmp.le.s32.totalorder 1, %s11
    %p165 = scmp.lt.s32.totalorder %s11, 3
    %p166 = pnand %p164, %p165
    %p167 = pneg %p166
    // Predicated region
    $region29: #{_up_conv_impl.1} parent=5 // pred_check
      _
    $region30: #{_up_conv_impl.1} parent=5 // pred_check_branch
      %169 = sbr.rel (%p166) target = $region32
    $region31: #{_up_conv_impl.1} parent=5 // pred_region
      %s170 = ssub.s32 %s11, 1
      %p171 = scmp.lt.s32.totalorder %s16, 1
      %s172 = scalar_select %p171, %s16, 1
      %s173 = smul.addr %s172, 54
      %s174 = smul.addr %s173, 4
      %s175 = scalar_lea.vmem %s0, %s174
      %p176 = pneg %p37
      %p177 = pneg %p34
      %p178 = pneg %p58
      %p179 = pneg %p55
      %p180 = pneg %p79
      %p181 = pneg %p76
      %p182 = pneg %p105
      %p183 = pneg %p102
      %p184 = scmp.lt.s32.totalorder %s16, 1
      %s185 = scalar_select %p184, %s16, 1
      %s186 = smul.addr %s185, 32
      %s187 = smul.addr %s186, 4
      %s188 = scalar_lea.vmem %s3, %s187
      %p189 = pneg %p131
      %p190 = pneg %p128
      %p191 = scmp.lt.s32.totalorder %s16, 1
      %s192 = scalar_select %p191, %s16, 1
      %s193 = smul.addr %s192, 2
      %s194 = scalar_lea.vmem %s4, %s193
      %p195 = scmp.lt.s32.totalorder %s16, 1
      %s196 = scalar_select %p195, %s16, 1
      %s197 = smul.addr %s196, 54
      %s198 = smul.addr %s197, 4
      %s199 = scalar_lea.vmem %s0, %s198
      %p200 = scmp.lt.s32.totalorder %s16, 1
      %s201 = scalar_select %p200, %s16, 1
      %s202 = smul.addr %s201, 32
      %s203 = smul.addr %s202, 4
      %s204 = scalar_lea.vmem %s3, %s203
      %p205 = scmp.lt.s32.totalorder %s16, 1
      %s206 = scalar_select %p205, %s16, 1
      %s207 = smul.addr %s206, 2
      %s208 = scalar_lea.vmem %s4, %s207
      %v210 = vld [vmem:[%s199] sm:$0xf]
      %v211 = vld [vmem:[%s199 + $0x4] sm:$0xf]
      %v212 = vld [vmem:[%s199 + $0xc] sm:$0xf]
      %v213 = vld [vmem:[%s199 + $0x10] sm:$0xf]
      %v214 = vld [vmem:[%s199 + $0x18] sm:$0xf]
      %v215 = vld [vmem:[%s199 + $0x1c] sm:$0xf]
      %v216 = vld [vmem:[%s199 + $0x24] sm:$0xf]
      %v217 = vld [vmem:[%s199 + $0x28] sm:$0xf]
      %v218 = vld [vmem:[%s199 + $0x30] sm:$0xf]
      %v219 = vld [vmem:[%s199 + $0x34] sm:$0xf]
      %v220 = vld [vmem:[%s199 + $0x3c] sm:$0xf]
      %v221 = vld [vmem:[%s199 + $0x40] sm:$0xf]
      %v222 = vld [vmem:[%s199 + $0x48] sm:$0xf]
      %v223 = vld [vmem:[%s199 + $0x4c] sm:$0xf]
      %v224 = vld [vmem:[%s199 + $0x54] sm:$0xf]
      %v225 = vld [vmem:[%s199 + $0x58] sm:$0xf]
      %v226 = vld [vmem:[%s199 + $0x60] sm:$0xf]
      %v227 = vld [vmem:[%s199 + $0x64] sm:$0xf]
      %v228 = vld [vmem:[%s199 + $0x6c] sm:$0xf]
      %v229 = vld [vmem:[%s199 + $0x70] sm:$0xf]
      %v230 = vld [vmem:[%s199 + $0x78] sm:$0xf]
      %v231 = vld [vmem:[%s199 + $0x7c] sm:$0xf]
      %v232 = vld [vmem:[%s199 + $0x84] sm:$0xf]
      %v233 = vld [vmem:[%s199 + $0x88] sm:$0xf]
      %v234 = vld [vmem:[%s199 + $0x90] sm:$0xf]
      %v235 = vld [vmem:[%s199 + $0x94] sm:$0xf]
      %v236 = vld [vmem:[%s199 + $0x9c] sm:$0xf]
      %v237 = vld [vmem:[%s199 + $0xa0] sm:$0xf]
      %v238 = vld [vmem:[%s199 + $0xa8] sm:$0xf]
      %v239 = vld [vmem:[%s199 + $0xac] sm:$0xf]
      %v240 = vld [vmem:[%s199 + $0xb4] sm:$0xf]
      %v241 = vld [vmem:[%s199 + $0xb8] sm:$0xf]
      %v242 = vld [vmem:[%s1] sm:$0x3]
      %v243 = vld [vmem:[%s199 + $0x8] sm:$0x1]
      %v244 = vld [vmem:[%s199 + $0x14] sm:$0x1]
      %v245 = vld [vmem:[%s199 + $0x20] sm:$0x1]
      %v246 = vld [vmem:[%s199 + $0x2c] sm:$0x1]
      %v247 = vld [vmem:[%s199 + $0x38] sm:$0x1]
      %v248 = vld [vmem:[%s199 + $0x44] sm:$0x1]
      %v249 = vld [vmem:[%s199 + $0x50] sm:$0x1]
      %v250 = vld [vmem:[%s199 + $0x5c] sm:$0x1]
      %v251 = vld [vmem:[%s199 + $0x68] sm:$0x1]
      %v252 = vld [vmem:[%s199 + $0x74] sm:$0x1]
      %v253 = vld [vmem:[%s199 + $0x80] sm:$0x1]
      %v254 = vld [vmem:[%s199 + $0x8c] sm:$0x1]
      %v255 = vld [vmem:[%s199 + $0x98] sm:$0x1]
      %v256 = vld [vmem:[%s199 + $0xa4] sm:$0x1]
      %v257 = vld [vmem:[%s199 + $0xb0] sm:$0x1]
      %v258 = vld [vmem:[%s199 + $0xbc] sm:$0x1]
      %vm259 = vsmask.f32 3328
      %vm260 = vsmask.f32 7440
      %vm261 = vmor %vm259, %vm260
      %v263 = vshrl.u32 %v210, 16
      %v265 = vrot.slane %v263, 4
      %v266 = vshll.u32 %v210, 16
      %v268 = vrot.slane %v266, 5
      %v269 = vor.u32 %v265, %v268
      %v270 = vrot.slane %v269, 4
      %v272 = vshll.u32 %v211, 16
      %v274 = vrot.slane %v272, 5
      %v275 = vsel %vm261, %v270, %v274
      %v276 = vshrl.u32 %v211, 16
      %v278 = vrot.slane %v276, 4
      %v279 = vor.u32 %v278, %v274
      %v280 = vrot.slane %v279, 4
      %v282 = vshll.u32 %v243, 16
      %v284 = vrot.slane %v282, 5
      %v285 = vsel %vm261, %v280, %v284
      %v287 = vshrl.u32 %v212, 16
      %v289 = vrot.slane %v287, 4
      %v290 = vshll.u32 %v212, 16
      %v292 = vrot.slane %v290, 5
      %v293 = vor.u32 %v289, %v292
      %v294 = vrot.slane %v293, 4
      %v296 = vshll.u32 %v213, 16
      %v298 = vrot.slane %v296, 5
      %v299 = vsel %vm261, %v294, %v298
      %v300 = vshrl.u32 %v213, 16
      %v302 = vrot.slane %v300, 4
      %v303 = vor.u32 %v302, %v298
      %v304 = vrot.slane %v303, 4
      %v306 = vshll.u32 %v244, 16
      %v308 = vrot.slane %v306, 5
      %v309 = vsel %vm261, %v304, %v308
      %v311 = vshrl.u32 %v214, 16
      %v313 = vrot.slane %v311, 4
      %v314 = vshll.u32 %v214, 16
      %v316 = vrot.slane %v314, 5
      %v317 = vor.u32 %v313, %v316
      %v318 = vrot.slane %v317, 4
      %v320 = vshll.u32 %v215, 16
      %v322 = vrot.slane %v320, 5
      %v323 = vsel %vm261, %v318, %v322
      %v324 = vshrl.u32 %v215, 16
      %v326 = vrot.slane %v324, 4
      %v327 = vor.u32 %v326, %v322
      %v328 = vrot.slane %v327, 4
      %v330 = vshll.u32 %v245, 16
      %v332 = vrot.slane %v330, 5
      %v333 = vsel %vm261, %v328, %v332
      %v335 = vshrl.u32 %v216, 16
      %v337 = vrot.slane %v335, 4
      %v338 = vshll.u32 %v216, 16
      %v340 = vrot.slane %v338, 5
      %v341 = vor.u32 %v337, %v340
      %v342 = vrot.slane %v341, 4
      %v344 = vshll.u32 %v217, 16
      %v346 = vrot.slane %v344, 5
      %v347 = vsel %vm261, %v342, %v346
      %v348 = vshrl.u32 %v217, 16
      %v350 = vrot.slane %v348, 4
      %v351 = vor.u32 %v350, %v346
      %v352 = vrot.slane %v351, 4
      %v354 = vshll.u32 %v246, 16
      %v356 = vrot.slane %v354, 5
      %v357 = vsel %vm261, %v352, %v356
      %v359 = vshrl.u32 %v218, 16
      %v361 = vrot.slane %v359, 4
      %v362 = vshll.u32 %v218, 16
      %v364 = vrot.slane %v362, 5
      %v365 = vor.u32 %v361, %v364
      %v366 = vrot.slane %v365, 4
      %v368 = vshll.u32 %v219, 16
      %v370 = vrot.slane %v368, 5
      %v371 = vsel %vm261, %v366, %v370
      %v372 = vshrl.u32 %v219, 16
      %v374 = vrot.slane %v372, 4
      %v375 = vor.u32 %v374, %v370
      %v376 = vrot.slane %v375, 4
      %v378 = vshll.u32 %v247, 16
      %v380 = vrot.slane %v378, 5
      %v381 = vsel %vm261, %v376, %v380
      %v383 = vshrl.u32 %v220, 16
      %v385 = vrot.slane %v383, 4
      %v386 = vshll.u32 %v220, 16
      %v388 = vrot.slane %v386, 5
      %v389 = vor.u32 %v385, %v388
      %v390 = vrot.slane %v389, 4
      %v392 = vshll.u32 %v221, 16
      %v394 = vrot.slane %v392, 5
      %v395 = vsel %vm261, %v390, %v394
      %v396 = vshrl.u32 %v221, 16
      %v398 = vrot.slane %v396, 4
      %v399 = vor.u32 %v398, %v394
      %v400 = vrot.slane %v399, 4
      %v402 = vshll.u32 %v248, 16
      %v404 = vrot.slane %v402, 5
      %v405 = vsel %vm261, %v400, %v404
      %v407 = vshrl.u32 %v222, 16
      %v409 = vrot.slane %v407, 4
      %v410 = vshll.u32 %v222, 16
      %v412 = vrot.slane %v410, 5
      %v413 = vor.u32 %v409, %v412
      %v414 = vrot.slane %v413, 4
      %v416 = vshll.u32 %v223, 16
      %v418 = vrot.slane %v416, 5
      %v419 = vsel %vm261, %v414, %v418
      %v420 = vshrl.u32 %v223, 16
      %v422 = vrot.slane %v420, 4
      %v423 = vor.u32 %v422, %v418
      %v424 = vrot.slane %v423, 4
      %v426 = vshll.u32 %v249, 16
      %v428 = vrot.slane %v426, 5
      %v429 = vsel %vm261, %v424, %v428
      %v431 = vshrl.u32 %v224, 16
      %v433 = vrot.slane %v431, 4
      %v434 = vshll.u32 %v224, 16
      %v436 = vrot.slane %v434, 5
      %v437 = vor.u32 %v433, %v436
      %v438 = vrot.slane %v437, 4
      %v440 = vshll.u32 %v225, 16
      %v442 = vrot.slane %v440, 5
      %v443 = vsel %vm261, %v438, %v442
      %v444 = vshrl.u32 %v225, 16
      %v446 = vrot.slane %v444, 4
      %v447 = vor.u32 %v446, %v442
      %v448 = vrot.slane %v447, 4
      %v450 = vshll.u32 %v250, 16
      %v452 = vrot.slane %v450, 5
      %v453 = vsel %vm261, %v448, %v452
      %v455 = vshrl.u32 %v226, 16
      %v457 = vrot.slane %v455, 4
      %v458 = vshll.u32 %v226, 16
      %v460 = vrot.slane %v458, 5
      %v461 = vor.u32 %v457, %v460
      %v462 = vrot.slane %v461, 4
      %v464 = vshll.u32 %v227, 16
      %v466 = vrot.slane %v464, 5
      %v467 = vsel %vm261, %v462, %v466
      %v468 = vshrl.u32 %v227, 16
      %v470 = vrot.slane %v468, 4
      %v471 = vor.u32 %v470, %v466
      %v472 = vrot.slane %v471, 4
      %v474 = vshll.u32 %v251, 16
      %v476 = vrot.slane %v474, 5
      %v477 = vsel %vm261, %v472, %v476
      %v479 = vshrl.u32 %v228, 16
      %v481 = vrot.slane %v479, 4
      %v482 = vshll.u32 %v228, 16
      %v484 = vrot.slane %v482, 5
      %v485 = vor.u32 %v481, %v484
      %v486 = vrot.slane %v485, 4
      %v488 = vshll.u32 %v229, 16
      %v490 = vrot.slane %v488, 5
      %v491 = vsel %vm261, %v486, %v490
      %v492 = vshrl.u32 %v229, 16
      %v494 = vrot.slane %v492, 4
      %v495 = vor.u32 %v494, %v490
      %v496 = vrot.slane %v495, 4
      %v498 = vshll.u32 %v252, 16
      %v500 = vrot.slane %v498, 5
      %v501 = vsel %vm261, %v496, %v500
      %v503 = vshrl.u32 %v230, 16
      %v505 = vrot.slane %v503, 4
      %v506 = vshll.u32 %v230, 16
      %v508 = vrot.slane %v506, 5
      %v509 = vor.u32 %v505, %v508
      %v510 = vrot.slane %v509, 4
      %v512 = vshll.u32 %v231, 16
      %v514 = vrot.slane %v512, 5
      %v515 = vsel %vm261, %v510, %v514
      %v516 = vshrl.u32 %v231, 16
      %v518 = vrot.slane %v516, 4
      %v519 = vor.u32 %v518, %v514
      %v520 = vrot.slane %v519, 4
      %v522 = vshll.u32 %v253, 16
      %v524 = vrot.slane %v522, 5
      %v525 = vsel %vm261, %v520, %v524
      %v527 = vshrl.u32 %v232, 16
      %v529 = vrot.slane %v527, 4
      %v530 = vshll.u32 %v232, 16
      %v532 = vrot.slane %v530, 5
      %v533 = vor.u32 %v529, %v532
      %v534 = vrot.slane %v533, 4
      %v536 = vshll.u32 %v233, 16
      %v538 = vrot.slane %v536, 5
      %v539 = vsel %vm261, %v534, %v538
      %v540 = vshrl.u32 %v233, 16
      %v542 = vrot.slane %v540, 4
      %v543 = vor.u32 %v542, %v538
      %v544 = vrot.slane %v543, 4
      %v546 = vshll.u32 %v254, 16
      %v548 = vrot.slane %v546, 5
      %v549 = vsel %vm261, %v544, %v548
      %v551 = vshrl.u32 %v234, 16
      %v553 = vrot.slane %v551, 4
      %v554 = vshll.u32 %v234, 16
      %v556 = vrot.slane %v554, 5
      %v557 = vor.u32 %v553, %v556
      %v558 = vrot.slane %v557, 4
      %v560 = vshll.u32 %v235, 16
      %v562 = vrot.slane %v560, 5
      %v563 = vsel %vm261, %v558, %v562
      %v564 = vshrl.u32 %v235, 16
      %v566 = vrot.slane %v564, 4
      %v567 = vor.u32 %v566, %v562
      %v568 = vrot.slane %v567, 4
      %v570 = vshll.u32 %v255, 16
      %v572 = vrot.slane %v570, 5
      %v573 = vsel %vm261, %v568, %v572
      %v575 = vshrl.u32 %v236, 16
      %v577 = vrot.slane %v575, 4
      %v578 = vshll.u32 %v236, 16
      %v580 = vrot.slane %v578, 5
      %v581 = vor.u32 %v577, %v580
      %v582 = vrot.slane %v581, 4
      %v584 = vshll.u32 %v237, 16
      %v586 = vrot.slane %v584, 5
      %v587 = vsel %vm261, %v582, %v586
      %v588 = vshrl.u32 %v237, 16
      %v590 = vrot.slane %v588, 4
      %v591 = vor.u32 %v590, %v586
      %v592 = vrot.slane %v591, 4
      %v594 = vshll.u32 %v256, 16
      %v596 = vrot.slane %v594, 5
      %v597 = vsel %vm261, %v592, %v596
      %v599 = vshrl.u32 %v238, 16
      %v601 = vrot.slane %v599, 4
      %v602 = vshll.u32 %v238, 16
      %v604 = vrot.slane %v602, 5
      %v605 = vor.u32 %v601, %v604
      %v606 = vrot.slane %v605, 4
      %v608 = vshll.u32 %v239, 16
      %v610 = vrot.slane %v608, 5
      %v611 = vsel %vm261, %v606, %v610
      %v612 = vshrl.u32 %v239, 16
      %v614 = vrot.slane %v612, 4
      %v615 = vor.u32 %v614, %v610
      %v616 = vrot.slane %v615, 4
      %v618 = vshll.u32 %v257, 16
      %v620 = vrot.slane %v618, 5
      %v621 = vsel %vm261, %v616, %v620
      %v623 = vshrl.u32 %v240, 16
      %v625 = vrot.slane %v623, 4
      %v626 = vshll.u32 %v240, 16
      %v628 = vrot.slane %v626, 5
      %v629 = vor.u32 %v625, %v628
      %v630 = vrot.slane %v629, 4
      %v632 = vshll.u32 %v241, 16
      %v634 = vrot.slane %v632, 5
      %v635 = vsel %vm261, %v630, %v634
      %v636 = vshrl.u32 %v241, 16
      %v638 = vrot.slane %v636, 4
      %v639 = vor.u32 %v638, %v634
      %v640 = vrot.slane %v639, 4
      %v642 = vshll.u32 %v258, 16
      %v644 = vrot.slane %v642, 5
      %v645 = vsel %vm261, %v640, %v644
      %s646 = scalar_lea.vmem %s1, 2
      %v647 = vld [vmem:[%s646] sm:$0x3]
      %v648 = vunpack.c.l.b16 %v275
      %v649 = vunpack.c.l.b16 %v285
      %v650 = vunpack.c.l.b16 %v299
      %v651 = vunpack.c.l.b16 %v309
      %v652 = vunpack.c.l.b16 %v323
      %v653 = vunpack.c.l.b16 %v333
      %v654 = vunpack.c.l.b16 %v347
      %v655 = vunpack.c.l.b16 %v357
      %v656 = vunpack.c.l.b16 %v371
      %v657 = vunpack.c.l.b16 %v381
      %v658 = vunpack.c.l.b16 %v395
      %v659 = vunpack.c.l.b16 %v405
      %v660 = vunpack.c.l.b16 %v419
      %v661 = vunpack.c.l.b16 %v429
      %v662 = vunpack.c.l.b16 %v443
      %v663 = vunpack.c.l.b16 %v453
      %v664 = vunpack.c.l.b16 %v467
      %v665 = vunpack.c.l.b16 %v477
      %v666 = vunpack.c.l.b16 %v491
      %v667 = vunpack.c.l.b16 %v501
      %v668 = vunpack.c.l.b16 %v515
      %v669 = vunpack.c.l.b16 %v525
      %v670 = vunpack.c.l.b16 %v539
      %v671 = vunpack.c.l.b16 %v549
      %v672 = vunpack.c.l.b16 %v563
      %v673 = vunpack.c.l.b16 %v573
      %v674 = vunpack.c.l.b16 %v587
      %v675 = vunpack.c.l.b16 %v597
      %v676 = vunpack.c.l.b16 %v611
      %v677 = vunpack.c.l.b16 %v621
      %v678 = vunpack.c.l.b16 %v635
      %v679 = vunpack.c.l.b16 %v645
      %v680 = vpack.c.b16 %v649, %v648
      %v681 = vpack.c.b16 %v651, %v650
      %v682 = vpack.c.b16 %v653, %v652
      %v683 = vpack.c.b16 %v655, %v654
      %v684 = vpack.c.b16 %v657, %v656
      %v685 = vpack.c.b16 %v659, %v658
      %v686 = vpack.c.b16 %v661, %v660
      %v687 = vpack.c.b16 %v663, %v662
      %v688 = vpack.c.b16 %v665, %v664
      %v689 = vpack.c.b16 %v667, %v666
      %v690 = vpack.c.b16 %v669, %v668
      %v691 = vpack.c.b16 %v671, %v670
      %v692 = vpack.c.b16 %v673, %v672
      %v693 = vpack.c.b16 %v675, %v674
      %v694 = vpack.c.b16 %v677, %v676
      %v695 = vpack.c.b16 %v679, %v678
      %vm696 = vcmask 31744
      %v698 = vsel %vm696, %v680, 0
      %v701 = vsel %vm696, %v681, 0
      %v704 = vsel %vm696, %v682, 0
      %v707 = vsel %vm696, %v683, 0
      %v710 = vsel %vm696, %v684, 0
      %v713 = vsel %vm696, %v685, 0
      %v716 = vsel %vm696, %v686, 0
      %v719 = vsel %vm696, %v687, 0
      %v722 = vsel %vm696, %v688, 0
      %v725 = vsel %vm696, %v689, 0
      %v728 = vsel %vm696, %v690, 0
      %v731 = vsel %vm696, %v691, 0
      %v734 = vsel %vm696, %v692, 0
      %v737 = vsel %vm696, %v693, 0
      %v740 = vsel %vm696, %v694, 0
      %v743 = vsel %vm696, %v695, 0
      %vm745 = vcmask 1041408
      %v747 = vsel %vm745, %v647, 0
      %749 = vmatprep.subr.bf16.mxu0 0
      %750 = vmatpush1.bf16.msra.mxu0 %v747
      %751 = vmatprep.subr.bf16.mxu0 0
      %752 = vmatpush1.bf16.msra.mxu0 0
      %753 = vmatprep.subr.bf16.mxu0 0
      %754 = vmatpush1.bf16.msra.mxu0 0
      %755 = vmatprep.subr.bf16.mxu0 0
      %756 = vmatpush1.bf16.msra.mxu0 0
      %757 = vmatprep.subr.bf16.mxu0 0
      %758 = vmatpush1.bf16.msra.mxu0 0
      %759 = vmatprep.subr.bf16.mxu0 0
      %760 = vmatpush1.bf16.msra.mxu0 0
      %761 = vmatprep.subr.bf16.mxu0 0
      %762 = vmatpush1.bf16.msra.mxu0 0
      %763 = vmatprep.subr.bf16.mxu0 0
      %764 = vmatpush1.bf16.msra.mxu0 0
      %765 = vmatprep.subr.bf16.mxu0 0
      %766 = vmatpush1.bf16.msra.mxu0 0
      %767 = vmatprep.subr.bf16.mxu0 0
      %768 = vmatpush1.bf16.msra.mxu0 0
      %769 = vmatprep.subr.bf16.mxu0 0
      %770 = vmatpush1.bf16.msra.mxu0 0
      %771 = vmatprep.subr.bf16.mxu0 0
      %772 = vmatpush1.bf16.msra.mxu0 0
      %773 = vmatprep.subr.bf16.mxu0 0
      %774 = vmatpush1.bf16.msra.mxu0 0
      %775 = vmatprep.subr.bf16.mxu0 0
      %776 = vmatpush1.bf16.msra.mxu0 0
      %777 = vmatprep.subr.bf16.mxu0 0
      %778 = vmatpush1.bf16.msra.mxu0 0
      %779 = vmatprep.subr.bf16.mxu0 0
      %780 = vmatpush1.bf16.msra.mxu0 0
      %781 = vmatprep.mubr.bf16.mxu0 0
      %782 = vmatmul.mubr.bf16.gmra.mrb[0].mxu0 %v698
      %v783 = vpop.f32.mrb[0].mxu0
      %v784 = vadd.f32 0.0, %v783
      %v785 = vpop.f32.mrb[0].mxu0
      %v786 = vpop.f32.mrb[0].mxu0
      %v787 = vadd.f32 0.0, %v786
      %v788 = vpop.f32.mrb[0].mxu0
      %789 = vmatprep.mubr.bf16.mxu0 0
      %790 = vmatmul.mubr.bf16.gmra.mrb[0].mxu0 %v701
      %v791 = vpop.f32.mrb[0].mxu0
      %v792 = vadd.f32 0.0, %v791
      %v793 = vpop.f32.mrb[0].mxu0
      %v794 = vpop.f32.mrb[0].mxu0
      %v795 = vadd.f32 0.0, %v794
      %v796 = vpop.f32.mrb[0].mxu0
      %797 = vmatprep.mubr.bf16.mxu0 0
      %798 = vmatmul.mubr.bf16.gmra.mrb[0].mxu0 %v704
      %v799 = vpop.f32.mrb[0].mxu0
      %v800 = vadd.f32 0.0, %v799
      %v801 = vpop.f32.mrb[0].mxu0
      %v802 = vpop.f32.mrb[0].mxu0
      %v803 = vadd.f32 0.0, %v802
      %v804 = vpop.f32.mrb[0].mxu0
      %805 = vmatprep.mubr.bf16.mxu0 0
      %806 = vmatmul.mubr.bf16.gmra.mrb[0].mxu0 %v707
      %v807 = vpop.f32.mrb[0].mxu0
      %v808 = vadd.f32 0.0, %v807
      %v809 = vpop.f32.mrb[0].mxu0
      %v810 = vpop.f32.mrb[0].mxu0
      %v811 = vadd.f32 0.0, %v810
      %v812 = vpop.f32.mrb[0].mxu0
      %813 = vmatprep.mubr.bf16.mxu0 0
      %814 = vmatmul.mubr.bf16.gmra.mrb[0].mxu0 %v710
      %v815 = vpop.f32.mrb[0].mxu0
      %v816 = vadd.f32 0.0, %v815
      %v817 = vpop.f32.mrb[0].mxu0
      %v818 = vpop.f32.mrb[0].mxu0
      %v819 = vadd.f32 0.0, %v818
      %v820 = vpop.f32.mrb[0].mxu0
      %821 = vmatprep.mubr.bf16.mxu0 0
      %822 = vmatmul.mubr.bf16.gmra.mrb[0].mxu0 %v713
      %v823 = vpop.f32.mrb[0].mxu0
      %v824 = vadd.f32 0.0, %v823
      %v825 = vpop.f32.mrb[0].mxu0
      %v826 = vpop.f32.mrb[0].mxu0
      %v827 = vadd.f32 0.0, %v826
      %v828 = vpop.f32.mrb[0].mxu0
      %829 = vmatprep.mubr.bf16.mxu0 0
      %830 = vmatmul.mubr.bf16.gmra.mrb[0].mxu0 %v716
      %v831 = vpop.f32.mrb[0].mxu0
      %v832 = vadd.f32 0.0, %v831
      %v833 = vpop.f32.mrb[0].mxu0
      %v834 = vpop.f32.mrb[0].mxu0
      %v835 = vadd.f32 0.0, %v834
      %v836 = vpop.f32.mrb[0].mxu0
      %837 = vmatprep.mubr.bf16.mxu0 0
      %838 = vmatmul.mubr.bf16.gmra.mrb[0].mxu0 %v719
      %v839 = vpop.f32.mrb[0].mxu0
      %v840 = vadd.f32 0.0, %v839
      %v841 = vpop.f32.mrb[0].mxu0
      %v842 = vpop.f32.mrb[0].mxu0
      %v843 = vadd.f32 0.0, %v842
      %v844 = vpop.f32.mrb[0].mxu0
      %845 = vmatprep.mubr.bf16.mxu0 0
      %846 = vmatmul.mubr.bf16.gmra.mrb[0].mxu0 %v722
      %v847 = vpop.f32.mrb[0].mxu0
      %v848 = vadd.f32 0.0, %v847
      %v849 = vpop.f32.mrb[0].mxu0
      %v850 = vpop.f32.mrb[0].mxu0
      %v851 = vadd.f32 0.0, %v850
      %v852 = vpop.f32.mrb[0].mxu0
      %853 = vmatprep.mubr.bf16.mxu0 0
      %854 = vmatmul.mubr.bf16.gmra.mrb[0].mxu0 %v725
      %v855 = vpop.f32.mrb[0].mxu0
      %v856 = vadd.f32 0.0, %v855
      %v857 = vpop.f32.mrb[0].mxu0
      %v858 = vpop.f32.mrb[0].mxu0
      %v859 = vadd.f32 0.0, %v858
      %v860 = vpop.f32.mrb[0].mxu0
      %861 = vmatprep.mubr.bf16.mxu0 0
      %862 = vmatmul.mubr.bf16.gmra.mrb[0].mxu0 %v728
      %v863 = vpop.f32.mrb[0].mxu0
      %v864 = vadd.f32 0.0, %v863
      %v865 = vpop.f32.mrb[0].mxu0
      %v866 = vpop.f32.mrb[0].mxu0
      %v867 = vadd.f32 0.0, %v866
      %v868 = vpop.f32.mrb[0].mxu0
      %869 = vmatprep.mubr.bf16.mxu0 0
      %870 = vmatmul.mubr.bf16.gmra.mrb[0].mxu0 %v731
      %v871 = vpop.f32.mrb[0].mxu0
      %v872 = vadd.f32 0.0, %v871
      %v873 = vpop.f32.mrb[0].mxu0
      %v874 = vpop.f32.mrb[0].mxu0
      %v875 = vadd.f32 0.0, %v874
      %v876 = vpop.f32.mrb[0].mxu0
      %877 = vmatprep.mubr.bf16.mxu0 0
      %878 = vmatmul.mubr.bf16.gmra.mrb[0].mxu0 %v734
      %v879 = vpop.f32.mrb[0].mxu0
      %v880 = vadd.f32 0.0, %v879
      %v881 = vpop.f32.mrb[0].mxu0
      %v882 = vpop.f32.mrb[0].mxu0
      %v883 = vadd.f32 0.0, %v882
      %v884 = vpop.f32.mrb[0].mxu0
      %885 = vmatprep.mubr.bf16.mxu0 0
      %886 = vmatmul.mubr.bf16.gmra.mrb[0].mxu0 %v737
      %v887 = vpop.f32.mrb[0].mxu0
      %v888 = vadd.f32 0.0, %v887
      %v889 = vpop.f32.mrb[0].mxu0
      %v890 = vpop.f32.mrb[0].mxu0
      %v891 = vadd.f32 0.0, %v890
      %v892 = vpop.f32.mrb[0].mxu0
      %893 = vmatprep.mubr.bf16.mxu0 0
      %894 = vmatmul.mubr.bf16.gmra.mrb[0].mxu0 %v740
      %v895 = vpop.f32.mrb[0].mxu0
      %v896 = vadd.f32 0.0, %v895
      %v897 = vpop.f32.mrb[0].mxu0
      %v898 = vpop.f32.mrb[0].mxu0
      %v899 = vadd.f32 0.0, %v898
      %v900 = vpop.f32.mrb[0].mxu0
      %901 = vmatprep.mubr.bf16.mxu0 0
      %902 = vmatmul.mubr.bf16.gmra.mrb[0].mxu0 %v743
      %v903 = vpop.f32.mrb[0].mxu0
      %v904 = vadd.f32 0.0, %v903
      %v905 = vpop.f32.mrb[0].mxu0
      %v906 = vpop.f32.mrb[0].mxu0
      %v907 = vadd.f32 0.0, %v906
      %v908 = vpop.f32.mrb[0].mxu0
      %909 = vdwg.mxu0
      %v942 = vunpack.c.l.b16 %v210
      %v943 = vunpack.c.l.b16 %v211
      %v944 = vunpack.c.l.b16 %v212
      %v945 = vunpack.c.l.b16 %v213
      %v946 = vunpack.c.l.b16 %v214
      %v947 = vunpack.c.l.b16 %v215
      %v948 = vunpack.c.l.b16 %v216
      %v949 = vunpack.c.l.b16 %v217
      %v950 = vunpack.c.l.b16 %v218
      %v951 = vunpack.c.l.b16 %v219
      %v952 = vunpack.c.l.b16 %v220
      %v953 = vunpack.c.l.b16 %v221
      %v954 = vunpack.c.l.b16 %v222
      %v955 = vunpack.c.l.b16 %v223
      %v956 = vunpack.c.l.b16 %v224
      %v957 = vunpack.c.l.b16 %v225
      %v958 = vunpack.c.l.b16 %v226
      %v959 = vunpack.c.l.b16 %v227
      %v960 = vunpack.c.l.b16 %v228
      %v961 = vunpack.c.l.b16 %v229
      %v962 = vunpack.c.l.b16 %v230
      %v963 = vunpack.c.l.b16 %v231
      %v964 = vunpack.c.l.b16 %v232
      %v965 = vunpack.c.l.b16 %v233
      %v966 = vunpack.c.l.b16 %v234
      %v967 = vunpack.c.l.b16 %v235
      %v968 = vunpack.c.l.b16 %v236
      %v969 = vunpack.c.l.b16 %v237
      %v970 = vunpack.c.l.b16 %v238
      %v971 = vunpack.c.l.b16 %v239
      %v972 = vunpack.c.l.b16 %v240
      %v973 = vunpack.c.l.b16 %v241
      %v974 = vpack.c.b16 %v943, %v942
      %v975 = vpack.c.b16 %v945, %v944
      %v976 = vpack.c.b16 %v947, %v946
      %v977 = vpack.c.b16 %v949, %v948
      %v978 = vpack.c.b16 %v951, %v950
      %v979 = vpack.c.b16 %v953, %v952
      %v980 = vpack.c.b16 %v955, %v954
      %v981 = vpack.c.b16 %v957, %v956
      %v982 = vpack.c.b16 %v959, %v958
      %v983 = vpack.c.b16 %v961, %v960
      %v984 = vpack.c.b16 %v963, %v962
      %v985 = vpack.c.b16 %v965, %v964
      %v986 = vpack.c.b16 %v967, %v966
      %v987 = vpack.c.b16 %v969, %v968
      %v988 = vpack.c.b16 %v971, %v970
      %v989 = vpack.c.b16 %v973, %v972
      %v991 = vsel %vm696, %v974, 0
      %v994 = vsel %vm696, %v975, 0
      %v997 = vsel %vm696, %v976, 0
      %v1000 = vsel %vm696, %v977, 0
      %v1003 = vsel %vm696, %v978, 0
      %v1006 = vsel %vm696, %v979, 0
      %v1009 = vsel %vm696, %v980, 0
      %v1012 = vsel %vm696, %v981, 0
      %v1015 = vsel %vm696, %v982, 0
      %v1018 = vsel %vm696, %v983, 0
      %v1021 = vsel %vm696, %v984, 0
      %v1024 = vsel %vm696, %v985, 0
      %v1027 = vsel %vm696, %v986, 0
      %v1030 = vsel %vm696, %v987, 0
      %v1033 = vsel %vm696, %v988, 0
      %v1036 = vsel %vm696, %v989, 0
      %v1039 = vsel %vm745, %v242, 0
      %1041 = vmatprep.subr.bf16.mxu0 0
      %1042 = vmatpush1.bf16.msra.mxu0 %v1039
      %1043 = vmatprep.subr.bf16.mxu0 0
      %1044 = vmatpush1.bf16.msra.mxu0 0
      %1045 = vmatprep.subr.bf16.mxu0 0
      %1046 = vmatpush1.bf16.msra.mxu0 0
      %1047 = vmatprep.subr.bf16.mxu0 0
      %1048 = vmatpush1.bf16.msra.mxu0 0
      %1049 = vmatprep.subr.bf16.mxu0 0
      %1050 = vmatpush1.bf16.msra.mxu0 0
      %1051 = vmatprep.subr.bf16.mxu0 0
      %1052 = vmatpush1.bf16.msra.mxu0 0
      %1053 = vmatprep.subr.bf16.mxu0 0
      %1054 = vmatpush1.bf16.msra.mxu0 0
      %1055 = vmatprep.subr.bf16.mxu0 0
      %1056 = vmatpush1.bf16.msra.mxu0 0
      %1057 = vmatprep.subr.bf16.mxu0 0
      %1058 = vmatpush1.bf16.msra.mxu0 0
      %1059 = vmatprep.subr.bf16.mxu0 0
      %1060 = vmatpush1.bf16.msra.mxu0 0
      %1061 = vmatprep.subr.bf16.mxu0 0
      %1062 = vmatpush1.bf16.msra.mxu0 0
      %1063 = vmatprep.subr.bf16.mxu0 0
      %1064 = vmatpush1.bf16.msra.mxu0 0
      %1065 = vmatprep.subr.bf16.mxu0 0
      %1066 = vmatpush1.bf16.msra.mxu0 0
      %1067 = vmatprep.subr.bf16.mxu0 0
      %1068 = vmatpush1.bf16.msra.mxu0 0
      %1069 = vmatprep.subr.bf16.mxu0 0
      %1070 = vmatpush1.bf16.msra.mxu0 0
      %1071 = vmatprep.subr.bf16.mxu0 0
      %1072 = vmatpush1.bf16.msra.mxu0 0
      %1073 = vmatprep.mubr.bf16.mxu0 0
      %1074 = vmatmul.mubr.bf16.gmra.mrb[0].mxu0 %v991
      %v1075 = vpop.f32.mrb[0].mxu0
      %v1076 = vadd.f32 %v784, %v1075
      %v1077 = vpop.f32.mrb[0].mxu0
      %v1078 = vpop.f32.mrb[0].mxu0
      %v1079 = vadd.f32 %v787, %v1078
      %v1080 = vpop.f32.mrb[0].mxu0
      %1081 = vmatprep.mubr.bf16.mxu0 0
      %1082 = vmatmul.mubr.bf16.gmra.mrb[0].mxu0 %v994
      %v1083 = vpop.f32.mrb[0].mxu0
      %v1084 = vadd.f32 %v792, %v1083
      %v1085 = vpop.f32.mrb[0].mxu0
      %v1086 = vpop.f32.mrb[0].mxu0
      %v1087 = vadd.f32 %v795, %v1086
      %v1088 = vpop.f32.mrb[0].mxu0
      %1089 = vmatprep.mubr.bf16.mxu0 0
      %1090 = vmatmul.mubr.bf16.gmra.mrb[0].mxu0 %v997
      %v1091 = vpop.f32.mrb[0].mxu0
      %v1092 = vadd.f32 %v800, %v1091
      %v1093 = vpop.f32.mrb[0].mxu0
      %v1094 = vpop.f32.mrb[0].mxu0
      %v1095 = vadd.f32 %v803, %v1094
      %v1096 = vpop.f32.mrb[0].mxu0
      %1097 = vmatprep.mubr.bf16.mxu0 0
      %1098 = vmatmul.mubr.bf16.gmra.mrb[0].mxu0 %v1000
      %v1099 = vpop.f32.mrb[0].mxu0
      %v1100 = vadd.f32 %v808, %v1099
      %v1101 = vpop.f32.mrb[0].mxu0
      %v1102 = vpop.f32.mrb[0].mxu0
      %v1103 = vadd.f32 %v811, %v1102
      %v1104 = vpop.f32.mrb[0].mxu0
      %1105 = vmatprep.mubr.bf16.mxu0 0
      %1106 = vmatmul.mubr.bf16.gmra.mrb[0].mxu0 %v1003
      %v1107 = vpop.f32.mrb[0].mxu0
      %v1108 = vadd.f32 %v816, %v1107
      %v1109 = vpop.f32.mrb[0].mxu0
      %v1110 = vpop.f32.mrb[0].mxu0
      %v1111 = vadd.f32 %v819, %v1110
      %v1112 = vpop.f32.mrb[0].mxu0
      %1113 = vmatprep.mubr.bf16.mxu0 0
      %1114 = vmatmul.mubr.bf16.gmra.mrb[0].mxu0 %v1006
      %v1115 = vpop.f32.mrb[0].mxu0
      %v1116 = vadd.f32 %v824, %v1115
      %v1117 = vpop.f32.mrb[0].mxu0
      %v1118 = vpop.f32.mrb[0].mxu0
      %v1119 = vadd.f32 %v827, %v1118
      %v1120 = vpop.f32.mrb[0].mxu0
      %1121 = vmatprep.mubr.bf16.mxu0 0
      %1122 = vmatmul.mubr.bf16.gmra.mrb[0].mxu0 %v1009
      %v1123 = vpop.f32.mrb[0].mxu0
      %v1124 = vadd.f32 %v832, %v1123
      %v1125 = vpop.f32.mrb[0].mxu0
      %v1126 = vpop.f32.mrb[0].mxu0
      %v1127 = vadd.f32 %v835, %v1126
      %v1128 = vpop.f32.mrb[0].mxu0
      %1129 = vmatprep.mubr.bf16.mxu0 0
      %1130 = vmatmul.mubr.bf16.gmra.mrb[0].mxu0 %v1012
      %v1131 = vpop.f32.mrb[0].mxu0
      %v1132 = vadd.f32 %v840, %v1131
      %v1133 = vpop.f32.mrb[0].mxu0
      %v1134 = vpop.f32.mrb[0].mxu0
      %v1135 = vadd.f32 %v843, %v1134
      %v1136 = vpop.f32.mrb[0].mxu0
      %1137 = vmatprep.mubr.bf16.mxu0 0
      %1138 = vmatmul.mubr.bf16.gmra.mrb[0].mxu0 %v1015
      %v1139 = vpop.f32.mrb[0].mxu0
      %v1140 = vadd.f32 %v848, %v1139
      %v1141 = vpop.f32.mrb[0].mxu0
      %v1142 = vpop.f32.mrb[0].mxu0
      %v1143 = vadd.f32 %v851, %v1142
      %v1144 = vpop.f32.mrb[0].mxu0
      %1145 = vmatprep.mubr.bf16.mxu0 0
      %1146 = vmatmul.mubr.bf16.gmra.mrb[0].mxu0 %v1018
      %v1147 = vpop.f32.mrb[0].mxu0
      %v1148 = vadd.f32 %v856, %v1147
      %v1149 = vpop.f32.mrb[0].mxu0
      %v1150 = vpop.f32.mrb[0].mxu0
      %v1151 = vadd.f32 %v859, %v1150
      %v1152 = vpop.f32.mrb[0].mxu0
      %1153 = vmatprep.mubr.bf16.mxu0 0
      %1154 = vmatmul.mubr.bf16.gmra.mrb[0].mxu0 %v1021
      %v1155 = vpop.f32.mrb[0].mxu0
      %v1156 = vadd.f32 %v864, %v1155
      %v1157 = vpop.f32.mrb[0].mxu0
      %v1158 = vpop.f32.mrb[0].mxu0
      %v1159 = vadd.f32 %v867, %v1158
      %v1160 = vpop.f32.mrb[0].mxu0
      %1161 = vmatprep.mubr.bf16.mxu0 0
      %1162 = vmatmul.mubr.bf16.gmra.mrb[0].mxu0 %v1024
      %v1163 = vpop.f32.mrb[0].mxu0
      %v1164 = vadd.f32 %v872, %v1163
      %v1165 = vpop.f32.mrb[0].mxu0
      %v1166 = vpop.f32.mrb[0].mxu0
      %v1167 = vadd.f32 %v875, %v1166
      %v1168 = vpop.f32.mrb[0].mxu0
      %1169 = vmatprep.mubr.bf16.mxu0 0
      %1170 = vmatmul.mubr.bf16.gmra.mrb[0].mxu0 %v1027
      %v1171 = vpop.f32.mrb[0].mxu0
      %v1172 = vadd.f32 %v880, %v1171
      %v1173 = vpop.f32.mrb[0].mxu0
      %v1174 = vpop.f32.mrb[0].mxu0
      %v1175 = vadd.f32 %v883, %v1174
      %v1176 = vpop.f32.mrb[0].mxu0
      %1177 = vmatprep.mubr.bf16.mxu0 0
      %1178 = vmatmul.mubr.bf16.gmra.mrb[0].mxu0 %v1030
      %v1179 = vpop.f32.mrb[0].mxu0
      %v1180 = vadd.f32 %v888, %v1179
      %v1181 = vpop.f32.mrb[0].mxu0
      %v1182 = vpop.f32.mrb[0].mxu0
      %v1183 = vadd.f32 %v891, %v1182
      %v1184 = vpop.f32.mrb[0].mxu0
      %1185 = vmatprep.mubr.bf16.mxu0 0
      %1186 = vmatmul.mubr.bf16.gmra.mrb[0].mxu0 %v1033
      %v1187 = vpop.f32.mrb[0].mxu0
      %v1188 = vadd.f32 %v896, %v1187
      %v1189 = vpop.f32.mrb[0].mxu0
      %v1190 = vpop.f32.mrb[0].mxu0
      %v1191 = vadd.f32 %v899, %v1190
      %v1192 = vpop.f32.mrb[0].mxu0
      %1193 = vmatprep.mubr.bf16.mxu0 0
      %1194 = vmatmul.mubr.bf16.gmra.mrb[0].mxu0 %v1036
      %v1195 = vpop.f32.mrb[0].mxu0
      %v1196 = vadd.f32 %v904, %v1195
      %v1197 = vpop.f32.mrb[0].mxu0
      %v1198 = vpop.f32.mrb[0].mxu0
      %v1199 = vadd.f32 %v907, %v1198
      %v1200 = vpop.f32.mrb[0].mxu0
      %1201 = vdwg.mxu0
      %v1202 = vld [vmem:[%s199] sm:$0xe]
      %v1203 = vld [vmem:[%s199 + $0xc] sm:$0xe]
      %v1204 = vld [vmem:[%s199 + $0x18] sm:$0xe]
      %v1205 = vld [vmem:[%s199 + $0x24] sm:$0xe]
      %v1206 = vld [vmem:[%s199 + $0x30] sm:$0xe]
      %v1207 = vld [vmem:[%s199 + $0x3c] sm:$0xe]
      %v1208 = vld [vmem:[%s199 + $0x48] sm:$0xe]
      %v1209 = vld [vmem:[%s199 + $0x54] sm:$0xe]
      %v1210 = vld [vmem:[%s199 + $0x60] sm:$0xe]
      %v1211 = vld [vmem:[%s199 + $0x6c] sm:$0xe]
      %v1212 = vld [vmem:[%s199 + $0x78] sm:$0xe]
      %v1213 = vld [vmem:[%s199 + $0x84] sm:$0xe]
      %v1214 = vld [vmem:[%s199 + $0x90] sm:$0xe]
      %v1215 = vld [vmem:[%s199 + $0x9c] sm:$0xe]
      %v1216 = vld [vmem:[%s199 + $0xa8] sm:$0xe]
      %v1217 = vld [vmem:[%s199 + $0xb4] sm:$0xe]
      %vm1250 = vcmask 1042432
      %vm1251 = vcmask 1046532
      %vm1252 = vmor %vm1250, %vm1251
      %v1253 = vrot.slane %v1202, 5
      %v1254 = vrot.slane %v1253, 4
      %v1255 = vrot.slane %v211, 5
      %v1256 = vsel %vm1252, %v1254, %v1255
      %v1257 = vrot.slane %v1255, 4
      %v1258 = vrot.slane %v243, 5
      %v1259 = vsel %vm1252, %v1257, %v1258
      %v1260 = vrot.slane %v1203, 5
      %v1261 = vrot.slane %v1260, 4
      %v1262 = vrot.slane %v213, 5
      %v1263 = vsel %vm1252, %v1261, %v1262
      %v1264 = vrot.slane %v1262, 4
      %v1265 = vrot.slane %v244, 5
      %v1266 = vsel %vm1252, %v1264, %v1265
      %v1267 = vrot.slane %v1204, 5
      %v1268 = vrot.slane %v1267, 4
      %v1269 = vrot.slane %v215, 5
      %v1270 = vsel %vm1252, %v1268, %v1269
      %v1271 = vrot.slane %v1269, 4
      %v1272 = vrot.slane %v245, 5
      %v1273 = vsel %vm1252, %v1271, %v1272
      %v1274 = vrot.slane %v1205, 5
      %v1275 = vrot.slane %v1274, 4
      %v1276 = vrot.slane %v217, 5
      %v1277 = vsel %vm1252, %v1275, %v1276
      %v1278 = vrot.slane %v1276, 4
      %v1279 = vrot.slane %v246, 5
      %v1280 = vsel %vm1252, %v1278, %v1279
      %v1281 = vrot.slane %v1206, 5
      %v1282 = vrot.slane %v1281, 4
      %v1283 = vrot.slane %v219, 5
      %v1284 = vsel %vm1252, %v1282, %v1283
      %v1285 = vrot.slane %v1283, 4
      %v1286 = vrot.slane %v247, 5
      %v1287 = vsel %vm1252, %v1285, %v1286
      %v1288 = vrot.slane %v1207, 5
      %v1289 = vrot.slane %v1288, 4
      %v1290 = vrot.slane %v221, 5
      %v1291 = vsel %vm1252, %v1289, %v1290
      %v1292 = vrot.slane %v1290, 4
      %v1293 = vrot.slane %v248, 5
      %v1294 = vsel %vm1252, %v1292, %v1293
      %v1295 = vrot.slane %v1208, 5
      %v1296 = vrot.slane %v1295, 4
      %v1297 = vrot.slane %v223, 5
      %v1298 = vsel %vm1252, %v1296, %v1297
      %v1299 = vrot.slane %v1297, 4
      %v1300 = vrot.slane %v249, 5
      %v1301 = vsel %vm1252, %v1299, %v1300
      %v1302 = vrot.slane %v1209, 5
      %v1303 = vrot.slane %v1302, 4
      %v1304 = vrot.slane %v225, 5
      %v1305 = vsel %vm1252, %v1303, %v1304
      %v1306 = vrot.slane %v1304, 4
      %v1307 = vrot.slane %v250, 5
      %v1308 = vsel %vm1252, %v1306, %v1307
      %v1309 = vrot.slane %v1210, 5
      %v1310 = vrot.slane %v1309, 4
      %v1311 = vrot.slane %v227, 5
      %v1312 = vsel %vm1252, %v1310, %v1311
      %v1313 = vrot.slane %v1311, 4
      %v1314 = vrot.slane %v251, 5
      %v1315 = vsel %vm1252, %v1313, %v1314
      %v1316 = vrot.slane %v1211, 5
      %v1317 = vrot.slane %v1316, 4
      %v1318 = vrot.slane %v229, 5
      %v1319 = vsel %vm1252, %v1317, %v1318
      %v1320 = vrot.slane %v1318, 4
      %v1321 = vrot.slane %v252, 5
      %v1322 = vsel %vm1252, %v1320, %v1321
      %v1323 = vrot.slane %v1212, 5
      %v1324 = vrot.slane %v1323, 4
      %v1325 = vrot.slane %v231, 5
      %v1326 = vsel %vm1252, %v1324, %v1325
      %v1327 = vrot.slane %v1325, 4
      %v1328 = vrot.slane %v253, 5
      %v1329 = vsel %vm1252, %v1327, %v1328
      %v1330 = vrot.slane %v1213, 5
      %v1331 = vrot.slane %v1330, 4
      %v1332 = vrot.slane %v233, 5
      %v1333 = vsel %vm1252, %v1331, %v1332
      %v1334 = vrot.slane %v1332, 4
      %v1335 = vrot.slane %v254, 5
      %v1336 = vsel %vm1252, %v1334, %v1335
      %v1337 = vrot.slane %v1214, 5
      %v1338 = vrot.slane %v1337, 4
      %v1339 = vrot.slane %v235, 5
      %v1340 = vsel %vm1252, %v1338, %v1339
      %v1341 = vrot.slane %v1339, 4
      %v1342 = vrot.slane %v255, 5
      %v1343 = vsel %vm1252, %v1341, %v1342
      %v1344 = vrot.slane %v1215, 5
      %v1345 = vrot.slane %v1344, 4
      %v1346 = vrot.slane %v237, 5
      %v1347 = vsel %vm1252, %v1345, %v1346
      %v1348 = vrot.slane %v1346, 4
      %v1349 = vrot.slane %v256, 5
      %v1350 = vsel %vm1252, %v1348, %v1349
      %v1351 = vrot.slane %v1216, 5
      %v1352 = vrot.slane %v1351, 4
      %v1353 = vrot.slane %v239, 5
      %v1354 = vsel %vm1252, %v1352, %v1353
      %v1355 = vrot.slane %v1353, 4
      %v1356 = vrot.slane %v257, 5
      %v1357 = vsel %vm1252, %v1355, %v1356
      %v1358 = vrot.slane %v1217, 5
      %v1359 = vrot.slane %v1358, 4
      %v1360 = vrot.slane %v241, 5
      %v1361 = vsel %vm1252, %v1359, %v1360
      %v1362 = vrot.slane %v1360, 4
      %v1363 = vrot.slane %v258, 5
      %v1364 = vsel %vm1252, %v1362, %v1363
      %s1365 = scalar_lea.vmem %s1, 4
      %v1366 = vld [vmem:[%s1365] sm:$0x3]
      %v1367 = vunpack.c.l.b16 %v1256
      %v1368 = vunpack.c.l.b16 %v1259
      %v1369 = vunpack.c.l.b16 %v1263
      %v1370 = vunpack.c.l.b16 %v1266
      %v1371 = vunpack.c.l.b16 %v1270
      %v1372 = vunpack.c.l.b16 %v1273
      %v1373 = vunpack.c.l.b16 %v1277
      %v1374 = vunpack.c.l.b16 %v1280
      %v1375 = vunpack.c.l.b16 %v1284
      %v1376 = vunpack.c.l.b16 %v1287
      %v1377 = vunpack.c.l.b16 %v1291
      %v1378 = vunpack.c.l.b16 %v1294
      %v1379 = vunpack.c.l.b16 %v1298
      %v1380 = vunpack.c.l.b16 %v1301
      %v1381 = vunpack.c.l.b16 %v1305
      %v1382 = vunpack.c.l.b16 %v1308
      %v1383 = vunpack.c.l.b16 %v1312
      %v1384 = vunpack.c.l.b16 %v1315
      %v1385 = vunpack.c.l.b16 %v1319
      %v1386 = vunpack.c.l.b16 %v1322
      %v1387 = vunpack.c.l.b16 %v1326
      %v1388 = vunpack.c.l.b16 %v1329
      %v1389 = vunpack.c.l.b16 %v1333
      %v1390 = vunpack.c.l.b16 %v1336
      %v1391 = vunpack.c.l.b16 %v1340
      %v1392 = vunpack.c.l.b16 %v1343
      %v1393 = vunpack.c.l.b16 %v1347
      %v1394 = vunpack.c.l.b16 %v1350
      %v1395 = vunpack.c.l.b16 %v1354
      %v1396 = vunpack.c.l.b16 %v1357
      %v1397 = vunpack.c.l.b16 %v1361
      %v1398 = vunpack.c.l.b16 %v1364
      %v1399 = vpack.c.b16 %v1368, %v1367
      %v1400 = vpack.c.b16 %v1370, %v1369
      %v1401 = vpack.c.b16 %v1372, %v1371
      %v1402 = vpack.c.b16 %v1374, %v1373
      %v1403 = vpack.c.b16 %v1376, %v1375
      %v1404 = vpack.c.b16 %v1378, %v1377
      %v1405 = vpack.c.b16 %v1380, %v1379
      %v1406 = vpack.c.b16 %v1382, %v1381
      %v1407 = vpack.c.b16 %v1384, %v1383
      %v1408 = vpack.c.b16 %v1386, %v1385
      %v1409 = vpack.c.b16 %v1388, %v1387
      %v1410 = vpack.c.b16 %v1390, %v1389
      %v1411 = vpack.c.b16 %v1392, %v1391
      %v1412 = vpack.c.b16 %v1394, %v1393
      %v1413 = vpack.c.b16 %v1396, %v1395
      %v1414 = vpack.c.b16 %v1398, %v1397
      %v1416 = vsel %vm696, %v1399, 0
      %v1419 = vsel %vm696, %v1400, 0
      %v1422 = vsel %vm696, %v1401, 0
      %v1425 = vsel %vm696, %v1402, 0
      %v1428 = vsel %vm696, %v1403, 0
      %v1431 = vsel %vm696, %v1404, 0
      %v1434 = vsel %vm696, %v1405, 0
      %v1437 = vsel %vm696, %v1406, 0
      %v1440 = vsel %vm696, %v1407, 0
      %v1443 = vsel %vm696, %v1408, 0
      %v1446 = vsel %vm696, %v1409, 0
      %v1449 = vsel %vm696, %v1410, 0
      %v1452 = vsel %vm696, %v1411, 0
      %v1455 = vsel %vm696, %v1412, 0
      %v1458 = vsel %vm696, %v1413, 0
      %v1461 = vsel %vm696, %v1414, 0
      %v1464 = vsel %vm745, %v1366, 0
      %1466 = vmatprep.subr.bf16.mxu0 0
      %1467 = vmatpush1.bf16.msra.mxu0 %v1464
      %1468 = vmatprep.subr.bf16.mxu0 0
      %1469 = vmatpush1.bf16.msra.mxu0 0
      %1470 = vmatprep.subr.bf16.mxu0 0
      %1471 = vmatpush1.bf16.msra.mxu0 0
      %1472 = vmatprep.subr.bf16.mxu0 0
      %1473 = vmatpush1.bf16.msra.mxu0 0
      %1474 = vmatprep.subr.bf16.mxu0 0
      %1475 = vmatpush1.bf16.msra.mxu0 0
      %1476 = vmatprep.subr.bf16.mxu0 0
      %1477 = vmatpush1.bf16.msra.mxu0 0
      %1478 = vmatprep.subr.bf16.mxu0 0
      %1479 = vmatpush1.bf16.msra.mxu0 0
      %1480 = vmatprep.subr.bf16.mxu0 0
      %1481 = vmatpush1.bf16.msra.mxu0 0
      %1482 = vmatprep.subr.bf16.mxu0 0
      %1483 = vmatpush1.bf16.msra.mxu0 0
      %1484 = vmatprep.subr.bf16.mxu0 0
      %1485 = vmatpush1.bf16.msra.mxu0 0
      %1486 = vmatprep.subr.bf16.mxu0 0
      %1487 = vmatpush1.bf16.msra.mxu0 0
      %1488 = vmatprep.subr.bf16.mxu0 0
      %1489 = vmatpush1.bf16.msra.mxu0 0
      %1490 = vmatprep.subr.bf16.mxu0 0
      %1491 = vmatpush1.bf16.msra.mxu0 0
      %1492 = vmatprep.subr.bf16.mxu0 0
      %1493 = vmatpush1.bf16.msra.mxu0 0
      %1494 = vmatprep.subr.bf16.mxu0 0
      %1495 = vmatpush1.bf16.msra.mxu0 0
      %1496 = vmatprep.subr.bf16.mxu0 0
      %1497 = vmatpush1.bf16.msra.mxu0 0
      %1498 = vmatprep.mubr.bf16.mxu0 0
      %1499 = vmatmul.mubr.bf16.gmra.mrb[0].mxu0 %v1416
      %v1500 = vpop.f32.mrb[0].mxu0
      %v1501 = vadd.f32 0.0, %v1500
      %v1502 = vpop.f32.mrb[0].mxu0
      %v1503 = vpop.f32.mrb[0].mxu0
      %v1504 = vadd.f32 0.0, %v1503
      %v1505 = vpop.f32.mrb[0].mxu0
      %1506 = vmatprep.mubr.bf16.mxu0 0
      %1507 = vmatmul.mubr.bf16.gmra.mrb[0].mxu0 %v1419
      %v1508 = vpop.f32.mrb[0].mxu0
      %v1509 = vadd.f32 0.0, %v1508
      %v1510 = vpop.f32.mrb[0].mxu0
      %v1511 = vpop.f32.mrb[0].mxu0
      %v1512 = vadd.f32 0.0, %v1511
      %v1513 = vpop.f32.mrb[0].mxu0
      %1514 = vmatprep.mubr.bf16.mxu0 0
      %1515 = vmatmul.mubr.bf16.gmra.mrb[0].mxu0 %v1422
      %v1516 = vpop.f32.mrb[0].mxu0
      %v1517 = vadd.f32 0.0, %v1516
      %v1518 = vpop.f32.mrb[0].mxu0
      %v1519 = vpop.f32.mrb[0].mxu0
      %v1520 = vadd.f32 0.0, %v1519
      %v1521 = vpop.f32.mrb[0].mxu0
      %1522 = vmatprep.mubr.bf16.mxu0 0
      %1523 = vmatmul.mubr.bf16.gmra.mrb[0].mxu0 %v1425
      %v1524 = vpop.f32.mrb[0].mxu0
      %v1525 = vadd.f32 0.0, %v1524
      %v1526 = vpop.f32.mrb[0].mxu0
      %v1527 = vpop.f32.mrb[0].mxu0
      %v1528 = vadd.f32 0.0, %v1527
      %v1529 = vpop.f32.mrb[0].mxu0
      %1530 = vmatprep.mubr.bf16.mxu0 0
      %1531 = vmatmul.mubr.bf16.gmra.mrb[0].mxu0 %v1428
      %v1532 = vpop.f32.mrb[0].mxu0
      %v1533 = vadd.f32 0.0, %v1532
      %v1534 = vpop.f32.mrb[0].mxu0
      %v1535 = vpop.f32.mrb[0].mxu0
      %v1536 = vadd.f32 0.0, %v1535
      %v1537 = vpop.f32.mrb[0].mxu0
      %1538 = vmatprep.mubr.bf16.mxu0 0
      %1539 = vmatmul.mubr.bf16.gmra.mrb[0].mxu0 %v1431
      %v1540 = vpop.f32.mrb[0].mxu0
      %v1541 = vadd.f32 0.0, %v1540
      %v1542 = vpop.f32.mrb[0].mxu0
      %v1543 = vpop.f32.mrb[0].mxu0
      %v1544 = vadd.f32 0.0, %v1543
      %v1545 = vpop.f32.mrb[0].mxu0
      %1546 = vmatprep.mubr.bf16.mxu0 0
      %1547 = vmatmul.mubr.bf16.gmra.mrb[0].mxu0 %v1434
      %v1548 = vpop.f32.mrb[0].mxu0
      %v1549 = vadd.f32 0.0, %v1548
      %v1550 = vpop.f32.mrb[0].mxu0
      %v1551 = vpop.f32.mrb[0].mxu0
      %v1552 = vadd.f32 0.0, %v1551
      %v1553 = vpop.f32.mrb[0].mxu0
      %1554 = vmatprep.mubr.bf16.mxu0 0
      %1555 = vmatmul.mubr.bf16.gmra.mrb[0].mxu0 %v1437
      %v1556 = vpop.f32.mrb[0].mxu0
      %v1557 = vadd.f32 0.0, %v1556
      %v1558 = vpop.f32.mrb[0].mxu0
      %v1559 = vpop.f32.mrb[0].mxu0
      %v1560 = vadd.f32 0.0, %v1559
      %v1561 = vpop.f32.mrb[0].mxu0
      %1562 = vmatprep.mubr.bf16.mxu0 0
      %1563 = vmatmul.mubr.bf16.gmra.mrb[0].mxu0 %v1440
      %v1564 = vpop.f32.mrb[0].mxu0
      %v1565 = vadd.f32 0.0, %v1564
      %v1566 = vpop.f32.mrb[0].mxu0
      %v1567 = vpop.f32.mrb[0].mxu0
      %v1568 = vadd.f32 0.0, %v1567
      %v1569 = vpop.f32.mrb[0].mxu0
      %1570 = vmatprep.mubr.bf16.mxu0 0
      %1571 = vmatmul.mubr.bf16.gmra.mrb[0].mxu0 %v1443
      %v1572 = vpop.f32.mrb[0].mxu0
      %v1573 = vadd.f32 0.0, %v1572
      %v1574 = vpop.f32.mrb[0].mxu0
      %v1575 = vpop.f32.mrb[0].mxu0
      %v1576 = vadd.f32 0.0, %v1575
      %v1577 = vpop.f32.mrb[0].mxu0
      %1578 = vmatprep.mubr.bf16.mxu0 0
      %1579 = vmatmul.mubr.bf16.gmra.mrb[0].mxu0 %v1446
      %v1580 = vpop.f32.mrb[0].mxu0
      %v1581 = vadd.f32 0.0, %v1580
      %v1582 = vpop.f32.mrb[0].mxu0
      %v1583 = vpop.f32.mrb[0].mxu0
      %v1584 = vadd.f32 0.0, %v1583
      %v1585 = vpop.f32.mrb[0].mxu0
      %1586 = vmatprep.mubr.bf16.mxu0 0
      %1587 = vmatmul.mubr.bf16.gmra.mrb[0].mxu0 %v1449
      %v1588 = vpop.f32.mrb[0].mxu0
      %v1589 = vadd.f32 0.0, %v1588
      %v1590 = vpop.f32.mrb[0].mxu0
      %v1591 = vpop.f32.mrb[0].mxu0
      %v1592 = vadd.f32 0.0, %v1591
      %v1593 = vpop.f32.mrb[0].mxu0
      %1594 = vmatprep.mubr.bf16.mxu0 0
      %1595 = vmatmul.mubr.bf16.gmra.mrb[0].mxu0 %v1452
      %v1596 = vpop.f32.mrb[0].mxu0
      %v1597 = vadd.f32 0.0, %v1596
      %v1598 = vpop.f32.mrb[0].mxu0
      %v1599 = vpop.f32.mrb[0].mxu0
      %v1600 = vadd.f32 0.0, %v1599
      %v1601 = vpop.f32.mrb[0].mxu0
      %1602 = vmatprep.mubr.bf16.mxu0 0
      %1603 = vmatmul.mubr.bf16.gmra.mrb[0].mxu0 %v1455
      %v1604 = vpop.f32.mrb[0].mxu0
      %v1605 = vadd.f32 0.0, %v1604
      %v1606 = vpop.f32.mrb[0].mxu0
      %v1607 = vpop.f32.mrb[0].mxu0
      %v1608 = vadd.f32 0.0, %v1607
      %v1609 = vpop.f32.mrb[0].mxu0
      %1610 = vmatprep.mubr.bf16.mxu0 0
      %1611 = vmatmul.mubr.bf16.gmra.mrb[0].mxu0 %v1458
      %v1612 = vpop.f32.mrb[0].mxu0
      %v1613 = vadd.f32 0.0, %v1612
      %v1614 = vpop.f32.mrb[0].mxu0
      %v1615 = vpop.f32.mrb[0].mxu0
      %v1616 = vadd.f32 0.0, %v1615
      %v1617 = vpop.f32.mrb[0].mxu0
      %1618 = vmatprep.mubr.bf16.mxu0 0
      %1619 = vmatmul.mubr.bf16.gmra.mrb[0].mxu0 %v1461
      %v1620 = vpop.f32.mrb[0].mxu0
      %v1621 = vadd.f32 0.0, %v1620
      %v1622 = vpop.f32.mrb[0].mxu0
      %v1623 = vpop.f32.mrb[0].mxu0
      %v1624 = vadd.f32 0.0, %v1623
      %v1625 = vpop.f32.mrb[0].mxu0
      %1626 = vdwg.mxu0
      %v1627 = vadd.f32 %v1076, %v1501
      %v1628 = vadd.f32 %v1079, %v1504
      %v1629 = vadd.f32 %v1084, %v1509
      %v1630 = vadd.f32 %v1087, %v1512
      %v1631 = vadd.f32 %v1092, %v1517
      %v1632 = vadd.f32 %v1095, %v1520
      %v1633 = vadd.f32 %v1100, %v1525
      %v1634 = vadd.f32 %v1103, %v1528
      %v1635 = vadd.f32 %v1108, %v1533
      %v1636 = vadd.f32 %v1111, %v1536
      %v1637 = vadd.f32 %v1116, %v1541
      %v1638 = vadd.f32 %v1119, %v1544
      %v1639 = vadd.f32 %v1124, %v1549
      %v1640 = vadd.f32 %v1127, %v1552
      %v1641 = vadd.f32 %v1132, %v1557
      %v1642 = vadd.f32 %v1135, %v1560
      %v1643 = vadd.f32 %v1140, %v1565
      %v1644 = vadd.f32 %v1143, %v1568
      %v1645 = vadd.f32 %v1148, %v1573
      %v1646 = vadd.f32 %v1151, %v1576
      %v1647 = vadd.f32 %v1156, %v1581
      %v1648 = vadd.f32 %v1159, %v1584
      %v1649 = vadd.f32 %v1164, %v1589
      %v1650 = vadd.f32 %v1167, %v1592
      %v1651 = vadd.f32 %v1172, %v1597
      %v1652 = vadd.f32 %v1175, %v1600
      %v1653 = vadd.f32 %v1180, %v1605
      %v1654 = vadd.f32 %v1183, %v1608
      %v1655 = vadd.f32 %v1188, %v1613
      %v1656 = vadd.f32 %v1191, %v1616
      %v1657 = vadd.f32 %v1196, %v1621
      %v1658 = vadd.f32 %v1199, %v1624
      %s1659 = scalar_lea.vmem %s199, 12
      %v1660 = vld [vmem:[%s1659] sm:$0xf]
      %v1661 = vld [vmem:[%s1659 + $0x4] sm:$0xf]
      %v1662 = vld [vmem:[%s1659 + $0xc] sm:$0xf]
      %v1663 = vld [vmem:[%s1659 + $0x10] sm:$0xf]
      %v1664 = vld [vmem:[%s1659 + $0x18] sm:$0xf]
      %v1665 = vld [vmem:[%s1659 + $0x1c] sm:$0xf]
      %v1666 = vld [vmem:[%s1659 + $0x24] sm:$0xf]
      %v1667 = vld [vmem:[%s1659 + $0x28] sm:$0xf]
      %v1668 = vld [vmem:[%s1659 + $0x30] sm:$0xf]
      %v1669 = vld [vmem:[%s1659 + $0x34] sm:$0xf]
      %v1670 = vld [vmem:[%s1659 + $0x3c] sm:$0xf]
      %v1671 = vld [vmem:[%s1659 + $0x40] sm:$0xf]
      %v1672 = vld [vmem:[%s1659 + $0x48] sm:$0xf]
      %v1673 = vld [vmem:[%s1659 + $0x4c] sm:$0xf]
      %v1674 = vld [vmem:[%s1659 + $0x54] sm:$0xf]
      %v1675 = vld [vmem:[%s1659 + $0x58] sm:$0xf]
      %v1676 = vld [vmem:[%s1659 + $0x60] sm:$0xf]
      %v1677 = vld [vmem:[%s1659 + $0x64] sm:$0xf]
      %v1678 = vld [vmem:[%s1659 + $0x6c] sm:$0xf]
      %v1679 = vld [vmem:[%s1659 + $0x70] sm:$0xf]
      %v1680 = vld [vmem:[%s1659 + $0x78] sm:$0xf]
      %v1681 = vld [vmem:[%s1659 + $0x7c] sm:$0xf]
      %v1682 = vld [vmem:[%s1659 + $0x84] sm:$0xf]
      %v1683 = vld [vmem:[%s1659 + $0x88] sm:$0xf]
      %v1684 = vld [vmem:[%s1659 + $0x90] sm:$0xf]
      %v1685 = vld [vmem:[%s1659 + $0x94] sm:$0xf]
      %v1686 = vld [vmem:[%s1659 + $0x9c] sm:$0xf]
      %v1687 = vld [vmem:[%s1659 + $0xa0] sm:$0xf]
      %v1688 = vld [vmem:[%s1659 + $0xa8] sm:$0xf]
      %v1689 = vld [vmem:[%s1659 + $0xac] sm:$0xf]
      %v1690 = vld [vmem:[%s1659 + $0xb4] sm:$0xf]
      %v1691 = vld [vmem:[%s1659 + $0xb8] sm:$0xf]
      %s1692 = scalar_lea.vmem %s1, 6
      %v1693 = vld [vmem:[%s1692] sm:$0x3]
      %v1726 = vunpack.c.l.b16 %v1660
      %v1727 = vunpack.c.l.b16 %v1661
      %v1728 = vunpack.c.l.b16 %v1662
      %v1729 = vunpack.c.l.b16 %v1663
      %v1730 = vunpack.c.l.b16 %v1664
      %v1731 = vunpack.c.l.b16 %v1665
      %v1732 = vunpack.c.l.b16 %v1666
      %v1733 = vunpack.c.l.b16 %v1667
      %v1734 = vunpack.c.l.b16 %v1668
      %v1735 = vunpack.c.l.b16 %v1669
      %v1736 = vunpack.c.l.b16 %v1670
      %v1737 = vunpack.c.l.b16 %v1671
      %v1738 = vunpack.c.l.b16 %v1672
      %v1739 = vunpack.c.l.b16 %v1673
      %v1740 = vunpack.c.l.b16 %v1674
      %v1741 = vunpack.c.l.b16 %v1675
      %v1742 = vunpack.c.l.b16 %v1676
      %v1743 = vunpack.c.l.b16 %v1677
      %v1744 = vunpack.c.l.b16 %v1678
      %v1745 = vunpack.c.l.b16 %v1679
      %v1746 = vunpack.c.l.b16 %v1680
      %v1747 = vunpack.c.l.b16 %v1681
      %v1748 = vunpack.c.l.b16 %v1682
      %v1749 = vunpack.c.l.b16 %v1683
      %v1750 = vunpack.c.l.b16 %v1684
      %v1751 = vunpack.c.l.b16 %v1685
      %v1752 = vunpack.c.l.b16 %v1686
      %v1753 = vunpack.c.l.b16 %v1687
      %v1754 = vunpack.c.l.b16 %v1688
      %v1755 = vunpack.c.l.b16 %v1689
      %v1756 = vunpack.c.l.b16 %v1690
      %v1757 = vunpack.c.l.b16 %v1691
      %v1758 = vpack.c.b16 %v1727, %v1726
      %v1759 = vpack.c.b16 %v1729, %v1728
      %v1760 = vpack.c.b16 %v1731, %v1730
      %v1761 = vpack.c.b16 %v1733, %v1732
      %v1762 = vpack.c.b16 %v1735, %v1734
      %v1763 = vpack.c.b16 %v1737, %v1736
      %v1764 = vpack.c.b16 %v1739, %v1738
      %v1765 = vpack.c.b16 %v1741, %v1740
      %v1766 = vpack.c.b16 %v1743, %v1742
      %v1767 = vpack.c.b16 %v1745, %v1744
      %v1768 = vpack.c.b16 %v1747, %v1746
      %v1769 = vpack.c.b16 %v1749, %v1748
      %v1770 = vpack.c.b16 %v1751, %v1750
      %v1771 = vpack.c.b16 %v1753, %v1752
      %v1772 = vpack.c.b16 %v1755, %v1754
      %v1773 = vpack.c.b16 %v1757, %v1756
      %v1775 = vsel %vm696, %v1758, 0
      %v1778 = vsel %vm696, %v1759, 0
      %v1781 = vsel %vm696, %v1760, 0
      %v1784 = vsel %vm696, %v1761, 0
      %v1787 = vsel %vm696, %v1762, 0
      %v1790 = vsel %vm696, %v1763, 0
      %v1793 = vsel %vm696, %v1764, 0
      %v1796 = vsel %vm696, %v1765, 0
      %v1799 = vsel %vm696, %v1766, 0
      %v1802 = vsel %vm696, %v1767, 0
      %v1805 = vsel %vm696, %v1768, 0
      %v1808 = vsel %vm696, %v1769, 0
      %v1811 = vsel %vm696, %v1770, 0
      %v1814 = vsel %vm696, %v1771, 0
      %v1817 = vsel %vm696, %v1772, 0
      %v1820 = vsel %vm696, %v1773, 0
      %v1823 = vsel %vm745, %v1693, 0
      %1825 = vmatprep.subr.bf16.mxu0 0
      %1826 = vmatpush1.bf16.msra.mxu0 %v1823
      %1827 = vmatprep.subr.bf16.mxu0 0
      %1828 = vmatpush1.bf16.msra.mxu0 0
      %1829 = vmatprep.subr.bf16.mxu0 0
      %1830 = vmatpush1.bf16.msra.mxu0 0
      %1831 = vmatprep.subr.bf16.mxu0 0
      %1832 = vmatpush1.bf16.msra.mxu0 0
      %1833 = vmatprep.subr.bf16.mxu0 0
      %1834 = vmatpush1.bf16.msra.mxu0 0
      %1835 = vmatprep.subr.bf16.mxu0 0
      %1836 = vmatpush1.bf16.msra.mxu0 0
      %1837 = vmatprep.subr.bf16.mxu0 0
      %1838 = vmatpush1.bf16.msra.mxu0 0
      %1839 = vmatprep.subr.bf16.mxu0 0
      %1840 = vmatpush1.bf16.msra.mxu0 0
      %1841 = vmatprep.subr.bf16.mxu0 0
      %1842 = vmatpush1.bf16.msra.mxu0 0
      %1843 = vmatprep.subr.bf16.mxu0 0
      %1844 = vmatpush1.bf16.msra.mxu0 0
      %1845 = vmatprep.subr.bf16.mxu0 0
      %1846 = vmatpush1.bf16.msra.mxu0 0
      %1847 = vmatprep.subr.bf16.mxu0 0
      %1848 = vmatpush1.bf16.msra.mxu0 0
      %1849 = vmatprep.subr.bf16.mxu0 0
      %1850 = vmatpush1.bf16.msra.mxu0 0
      %1851 = vmatprep.subr.bf16.mxu0 0
      %1852 = vmatpush1.bf16.msra.mxu0 0
      %1853 = vmatprep.subr.bf16.mxu0 0
      %1854 = vmatpush1.bf16.msra.mxu0 0
      %1855 = vmatprep.subr.bf16.mxu0 0
      %1856 = vmatpush1.bf16.msra.mxu0 0
      %1857 = vmatprep.mubr.bf16.mxu0 0
      %1858 = vmatmul.mubr.bf16.gmra.mrb[0].mxu0 %v1775
      %v1859 = vpop.f32.mrb[0].mxu0
      %v1860 = vadd.f32 0.0, %v1859
      %v1861 = vpop.f32.mrb[0].mxu0
      %v1862 = vpop.f32.mrb[0].mxu0
      %v1863 = vadd.f32 0.0, %v1862
      %v1864 = vpop.f32.mrb[0].mxu0
      %1865 = vmatprep.mubr.bf16.mxu0 0
      %1866 = vmatmul.mubr.bf16.gmra.mrb[0].mxu0 %v1778
      %v1867 = vpop.f32.mrb[0].mxu0
      %v1868 = vadd.f32 0.0, %v1867
      %v1869 = vpop.f32.mrb[0].mxu0
      %v1870 = vpop.f32.mrb[0].mxu0
      %v1871 = vadd.f32 0.0, %v1870
      %v1872 = vpop.f32.mrb[0].mxu0
      %1873 = vmatprep.mubr.bf16.mxu0 0
      %1874 = vmatmul.mubr.bf16.gmra.mrb[0].mxu0 %v1781
      %v1875 = vpop.f32.mrb[0].mxu0
      %v1876 = vadd.f32 0.0, %v1875
      %v1877 = vpop.f32.mrb[0].mxu0
      %v1878 = vpop.f32.mrb[0].mxu0
      %v1879 = vadd.f32 0.0, %v1878
      %v1880 = vpop.f32.mrb[0].mxu0
      %1881 = vmatprep.mubr.bf16.mxu0 0
      %1882 = vmatmul.mubr.bf16.gmra.mrb[0].mxu0 %v1784
      %v1883 = vpop.f32.mrb[0].mxu0
      %v1884 = vadd.f32 0.0, %v1883
      %v1885 = vpop.f32.mrb[0].mxu0
      %v1886 = vpop.f32.mrb[0].mxu0
      %v1887 = vadd.f32 0.0, %v1886
      %v1888 = vpop.f32.mrb[0].mxu0
      %1889 = vmatprep.mubr.bf16.mxu0 0
      %1890 = vmatmul.mubr.bf16.gmra.mrb[0].mxu0 %v1787
      %v1891 = vpop.f32.mrb[0].mxu0
      %v1892 = vadd.f32 0.0, %v1891
      %v1893 = vpop.f32.mrb[0].mxu0
      %v1894 = vpop.f32.mrb[0].mxu0
      %v1895 = vadd.f32 0.0, %v1894
      %v1896 = vpop.f32.mrb[0].mxu0
      %1897 = vmatprep.mubr.bf16.mxu0 0
      %1898 = vmatmul.mubr.bf16.gmra.mrb[0].mxu0 %v1790
      %v1899 = vpop.f32.mrb[0].mxu0
      %v1900 = vadd.f32 0.0, %v1899
      %v1901 = vpop.f32.mrb[0].mxu0
      %v1902 = vpop.f32.mrb[0].mxu0
      %v1903 = vadd.f32 0.0, %v1902
      %v1904 = vpop.f32.mrb[0].mxu0
      %1905 = vmatprep.mubr.bf16.mxu0 0
      %1906 = vmatmul.mubr.bf16.gmra.mrb[0].mxu0 %v1793
      %v1907 = vpop.f32.mrb[0].mxu0
      %v1908 = vadd.f32 0.0, %v1907
      %v1909 = vpop.f32.mrb[0].mxu0
      %v1910 = vpop.f32.mrb[0].mxu0
      %v1911 = vadd.f32 0.0, %v1910
      %v1912 = vpop.f32.mrb[0].mxu0
      %1913 = vmatprep.mubr.bf16.mxu0 0
      %1914 = vmatmul.mubr.bf16.gmra.mrb[0].mxu0 %v1796
      %v1915 = vpop.f32.mrb[0].mxu0
      %v1916 = vadd.f32 0.0, %v1915
      %v1917 = vpop.f32.mrb[0].mxu0
      %v1918 = vpop.f32.mrb[0].mxu0
      %v1919 = vadd.f32 0.0, %v1918
      %v1920 = vpop.f32.mrb[0].mxu0
      %1921 = vmatprep.mubr.bf16.mxu0 0
      %1922 = vmatmul.mubr.bf16.gmra.mrb[0].mxu0 %v1799
      %v1923 = vpop.f32.mrb[0].mxu0
      %v1924 = vadd.f32 0.0, %v1923
      %v1925 = vpop.f32.mrb[0].mxu0
      %v1926 = vpop.f32.mrb[0].mxu0
      %v1927 = vadd.f32 0.0, %v1926
      %v1928 = vpop.f32.mrb[0].mxu0
      %1929 = vmatprep.mubr.bf16.mxu0 0
      %1930 = vmatmul.mubr.bf16.gmra.mrb[0].mxu0 %v1802
      %v1931 = vpop.f32.mrb[0].mxu0
      %v1932 = vadd.f32 0.0, %v1931
      %v1933 = vpop.f32.mrb[0].mxu0
      %v1934 = vpop.f32.mrb[0].mxu0
      %v1935 = vadd.f32 0.0, %v1934
      %v1936 = vpop.f32.mrb[0].mxu0
      %1937 = vmatprep.mubr.bf16.mxu0 0
      %1938 = vmatmul.mubr.bf16.gmra.mrb[0].mxu0 %v1805
      %v1939 = vpop.f32.mrb[0].mxu0
      %v1940 = vadd.f32 0.0, %v1939
      %v1941 = vpop.f32.mrb[0].mxu0
      %v1942 = vpop.f32.mrb[0].mxu0
      %v1943 = vadd.f32 0.0, %v1942
      %v1944 = vpop.f32.mrb[0].mxu0
      %1945 = vmatprep.mubr.bf16.mxu0 0
      %1946 = vmatmul.mubr.bf16.gmra.mrb[0].mxu0 %v1808
      %v1947 = vpop.f32.mrb[0].mxu0
      %v1948 = vadd.f32 0.0, %v1947
      %v1949 = vpop.f32.mrb[0].mxu0
      %v1950 = vpop.f32.mrb[0].mxu0
      %v1951 = vadd.f32 0.0, %v1950
      %v1952 = vpop.f32.mrb[0].mxu0
      %1953 = vmatprep.mubr.bf16.mxu0 0
      %1954 = vmatmul.mubr.bf16.gmra.mrb[0].mxu0 %v1811
      %v1955 = vpop.f32.mrb[0].mxu0
      %v1956 = vadd.f32 0.0, %v1955
      %v1957 = vpop.f32.mrb[0].mxu0
      %v1958 = vpop.f32.mrb[0].mxu0
      %v1959 = vadd.f32 0.0, %v1958
      %v1960 = vpop.f32.mrb[0].mxu0
      %1961 = vmatprep.mubr.bf16.mxu0 0
      %1962 = vmatmul.mubr.bf16.gmra.mrb[0].mxu0 %v1814
      %v1963 = vpop.f32.mrb[0].mxu0
      %v1964 = vadd.f32 0.0, %v1963
      %v1965 = vpop.f32.mrb[0].mxu0
      %v1966 = vpop.f32.mrb[0].mxu0
      %v1967 = vadd.f32 0.0, %v1966
      %v1968 = vpop.f32.mrb[0].mxu0
      %1969 = vmatprep.mubr.bf16.mxu0 0
      %1970 = vmatmul.mubr.bf16.gmra.mrb[0].mxu0 %v1817
      %v1971 = vpop.f32.mrb[0].mxu0
      %v1972 = vadd.f32 0.0, %v1971
      %v1973 = vpop.f32.mrb[0].mxu0
      %v1974 = vpop.f32.mrb[0].mxu0
      %v1975 = vadd.f32 0.0, %v1974
      %v1976 = vpop.f32.mrb[0].mxu0
      %1977 = vmatprep.mubr.bf16.mxu0 0
      %1978 = vmatmul.mubr.bf16.gmra.mrb[0].mxu0 %v1820
      %v1979 = vpop.f32.mrb[0].mxu0
      %v1980 = vadd.f32 0.0, %v1979
      %v1981 = vpop.f32.mrb[0].mxu0
      %v1982 = vpop.f32.mrb[0].mxu0
      %v1983 = vadd.f32 0.0, %v1982
      %v1984 = vpop.f32.mrb[0].mxu0
      %1985 = vdwg.mxu0
      %v1986 = vadd.f32 %v1627, %v1860
      %v1987 = vadd.f32 %v1628, %v1863
      %v1988 = vadd.f32 %v1629, %v1868
      %v1989 = vadd.f32 %v1630, %v1871
      %v1990 = vadd.f32 %v1631, %v1876
      %v1991 = vadd.f32 %v1632, %v1879
      %v1992 = vadd.f32 %v1633, %v1884
      %v1993 = vadd.f32 %v1634, %v1887
      %v1994 = vadd.f32 %v1635, %v1892
      %v1995 = vadd.f32 %v1636, %v1895
      %v1996 = vadd.f32 %v1637, %v1900
      %v1997 = vadd.f32 %v1638, %v1903
      %v1998 = vadd.f32 %v1639, %v1908
      %v1999 = vadd.f32 %v1640, %v1911
      %v2000 = vadd.f32 %v1641, %v1916
      %v2001 = vadd.f32 %v1642, %v1919
      %v2002 = vadd.f32 %v1643, %v1924
      %v2003 = vadd.f32 %v1644, %v1927
      %v2004 = vadd.f32 %v1645, %v1932
      %v2005 = vadd.f32 %v1646, %v1935
      %v2006 = vadd.f32 %v1647, %v1940
      %v2007 = vadd.f32 %v1648, %v1943
      %v2008 = vadd.f32 %v1649, %v1948
      %v2009 = vadd.f32 %v1650, %v1951
      %v2010 = vadd.f32 %v1651, %v1956
      %v2011 = vadd.f32 %v1652, %v1959
      %v2012 = vadd.f32 %v1653, %v1964
      %v2013 = vadd.f32 %v1654, %v1967
      %v2014 = vadd.f32 %v1655, %v1972
      %v2015 = vadd.f32 %v1656, %v1975
      %v2016 = vadd.f32 %v1657, %v1980
      %v2017 = vadd.f32 %v1658, %v1983
      %v2018 = vld [vmem:[%s1659] sm:$0xf]
      %v2019 = vld [vmem:[%s1659 + $0x4] sm:$0xf]
      %v2020 = vld [vmem:[%s1659 + $0x8] sm:$0x1]
      %v2021 = vld [vmem:[%s1659 + $0xc] sm:$0xf]
      %v2022 = vld [vmem:[%s1659 + $0x10] sm:$0xf]
      %v2023 = vld [vmem:[%s1659 + $0x14] sm:$0x1]
      %v2024 = vld [vmem:[%s1659 + $0x18] sm:$0xf]
      %v2025 = vld [vmem:[%s1659 + $0x1c] sm:$0xf]
      %v2026 = vld [vmem:[%s1659 + $0x20] sm:$0x1]
      %v2027 = vld [vmem:[%s1659 + $0x24] sm:$0xf]
      %v2028 = vld [vmem:[%s1659 + $0x28] sm:$0xf]
      %v2029 = vld [vmem:[%s1659 + $0x2c] sm:$0x1]
      %v2030 = vld [vmem:[%s1659 + $0x30] sm:$0xf]
      %v2031 = vld [vmem:[%s1659 + $0x34] sm:$0xf]
      %v2032 = vld [vmem:[%s1659 + $0x38] sm:$0x1]
      %v2033 = vld [vmem:[%s1659 + $0x3c] sm:$0xf]
      %v2034 = vld [vmem:[%s1659 + $0x40] sm:$0xf]
      %v2035 = vld [vmem:[%s1659 + $0x44] sm:$0x1]
      %v2036 = vld [vmem:[%s1659 + $0x48] sm:$0xf]
      %v2037 = vld [vmem:[%s1659 + $0x4c] sm:$0xf]
      %v2038 = vld [vmem:[%s1659 + $0x50] sm:$0x1]
      %v2039 = vld [vmem:[%s1659 + $0x54] sm:$0xf]
      %v2040 = vld [vmem:[%s1659 + $0x58] sm:$0xf]
      %v2041 = vld [vmem:[%s1659 + $0x5c] sm:$0x1]
      %v2042 = vld [vmem:[%s1659 + $0x60] sm:$0xf]
      %v2043 = vld [vmem:[%s1659 + $0x64] sm:$0xf]
      %v2044 = vld [vmem:[%s1659 + $0x68] sm:$0x1]
      %v2045 = vld [vmem:[%s1659 + $0x6c] sm:$0xf]
      %v2046 = vld [vmem:[%s1659 + $0x70] sm:$0xf]
      %v2047 = vld [vmem:[%s1659 + $0x74] sm:$0x1]
      %v2048 = vld [vmem:[%s1659 + $0x78] sm:$0xf]
      %v2049 = vld [vmem:[%s1659 + $0x7c] sm:$0xf]
      %v2050 = vld [vmem:[%s1659 + $0x80] sm:$0x1]
      %v2051 = vld [vmem:[%s1659 + $0x84] sm:$0xf]
      %v2052 = vld [vmem:[%s1659 + $0x88] sm:$0xf]
      %v2053 = vld [vmem:[%s1659 + $0x8c] sm:$0x1]
      %v2054 = vld [vmem:[%s1659 + $0x90] sm:$0xf]
      %v2055 = vld [vmem:[%s1659 + $0x94] sm:$0xf]
      %v2056 = vld [vmem:[%s1659 + $0x98] sm:$0x1]
      %v2057 = vld [vmem:[%s1659 + $0x9c] sm:$0xf]
      %v2058 = vld [vmem:[%s1659 + $0xa0] sm:$0xf]
      %v2059 = vld [vmem:[%s1659 + $0xa4] sm:$0x1]
      %v2060 = vld [vmem:[%s1659 + $0xa8] sm:$0xf]
      %v2061 = vld [vmem:[%s1659 + $0xac] sm:$0xf]
      %v2062 = vld [vmem:[%s1659 + $0xb0] sm:$0x1]
      %v2063 = vld [vmem:[%s1659 + $0xb4] sm:$0xf]
      %v2064 = vld [vmem:[%s1659 + $0xb8] sm:$0xf]
      %v2065 = vld [vmem:[%s1659 + $0xbc] sm:$0x1]
      %v2067 = vshrl.u32 %v2018, 16
      %v2069 = vrot.slane %v2067, 4
      %v2070 = vshll.u32 %v2018, 16
      %v2072 = vrot.slane %v2070, 5
      %v2073 = vor.u32 %v2069, %v2072
      %v2074 = vrot.slane %v2073, 4
      %v2076 = vshll.u32 %v2019, 16
      %v2078 = vrot.slane %v2076, 5
      %v2079 = vsel %vm261, %v2074, %v2078
      %v2080 = vshrl.u32 %v2019, 16
      %v2082 = vrot.slane %v2080, 4
      %v2083 = vor.u32 %v2082, %v2078
      %v2084 = vrot.slane %v2083, 4
      %v2086 = vshll.u32 %v2020, 16
      %v2088 = vrot.slane %v2086, 5
      %v2089 = vsel %vm261, %v2084, %v2088
      %v2091 = vshrl.u32 %v2021, 16
      %v2093 = vrot.slane %v2091, 4
      %v2094 = vshll.u32 %v2021, 16
      %v2096 = vrot.slane %v2094, 5
      %v2097 = vor.u32 %v2093, %v2096
      %v2098 = vrot.slane %v2097, 4
      %v2100 = vshll.u32 %v2022, 16
      %v2102 = vrot.slane %v2100, 5
      %v2103 = vsel %vm261, %v2098, %v2102
      %v2104 = vshrl.u32 %v2022, 16
      %v2106 = vrot.slane %v2104, 4
      %v2107 = vor.u32 %v2106, %v2102
      %v2108 = vrot.slane %v2107, 4
      %v2110 = vshll.u32 %v2023, 16
      %v2112 = vrot.slane %v2110, 5
      %v2113 = vsel %vm261, %v2108, %v2112
      %v2115 = vshrl.u32 %v2024, 16
      %v2117 = vrot.slane %v2115, 4
      %v2118 = vshll.u32 %v2024, 16
      %v2120 = vrot.slane %v2118, 5
      %v2121 = vor.u32 %v2117, %v2120
      %v2122 = vrot.slane %v2121, 4
      %v2124 = vshll.u32 %v2025, 16
      %v2126 = vrot.slane %v2124, 5
      %v2127 = vsel %vm261, %v2122, %v2126
      %v2128 = vshrl.u32 %v2025, 16
      %v2130 = vrot.slane %v2128, 4
      %v2131 = vor.u32 %v2130, %v2126
      %v2132 = vrot.slane %v2131, 4
      %v2134 = vshll.u32 %v2026, 16
      %v2136 = vrot.slane %v2134, 5
      %v2137 = vsel %vm261, %v2132, %v2136
      %v2139 = vshrl.u32 %v2027, 16
      %v2141 = vrot.slane %v2139, 4
      %v2142 = vshll.u32 %v2027, 16
      %v2144 = vrot.slane %v2142, 5
      %v2145 = vor.u32 %v2141, %v2144
      %v2146 = vrot.slane %v2145, 4
      %v2148 = vshll.u32 %v2028, 16
      %v2150 = vrot.slane %v2148, 5
      %v2151 = vsel %vm261, %v2146, %v2150
      %v2152 = vshrl.u32 %v2028, 16
      %v2154 = vrot.slane %v2152, 4
      %v2155 = vor.u32 %v2154, %v2150
      %v2156 = vrot.slane %v2155, 4
      %v2158 = vshll.u32 %v2029, 16
      %v2160 = vrot.slane %v2158, 5
      %v2161 = vsel %vm261, %v2156, %v2160
      %v2163 = vshrl.u32 %v2030, 16
      %v2165 = vrot.slane %v2163, 4
      %v2166 = vshll.u32 %v2030, 16
      %v2168 = vrot.slane %v2166, 5
      %v2169 = vor.u32 %v2165, %v2168
      %v2170 = vrot.slane %v2169, 4
      %v2172 = vshll.u32 %v2031, 16
      %v2174 = vrot.slane %v2172, 5
      %v2175 = vsel %vm261, %v2170, %v2174
      %v2176 = vshrl.u32 %v2031, 16
      %v2178 = vrot.slane %v2176, 4
      %v2179 = vor.u32 %v2178, %v2174
      %v2180 = vrot.slane %v2179, 4
      %v2182 = vshll.u32 %v2032, 16
      %v2184 = vrot.slane %v2182, 5
      %v2185 = vsel %vm261, %v2180, %v2184
      %v2187 = vshrl.u32 %v2033, 16
      %v2189 = vrot.slane %v2187, 4
      %v2190 = vshll.u32 %v2033, 16
      %v2192 = vrot.slane %v2190, 5
      %v2193 = vor.u32 %v2189, %v2192
      %v2194 = vrot.slane %v2193, 4
      %v2196 = vshll.u32 %v2034, 16
      %v2198 = vrot.slane %v2196, 5
      %v2199 = vsel %vm261, %v2194, %v2198
      %v2200 = vshrl.u32 %v2034, 16
      %v2202 = vrot.slane %v2200, 4
      %v2203 = vor.u32 %v2202, %v2198
      %v2204 = vrot.slane %v2203, 4
      %v2206 = vshll.u32 %v2035, 16
      %v2208 = vrot.slane %v2206, 5
      %v2209 = vsel %vm261, %v2204, %v2208
      %v2211 = vshrl.u32 %v2036, 16
      %v2213 = vrot.slane %v2211, 4
      %v2214 = vshll.u32 %v2036, 16
      %v2216 = vrot.slane %v2214, 5
      %v2217 = vor.u32 %v2213, %v2216
      %v2218 = vrot.slane %v2217, 4
      %v2220 = vshll.u32 %v2037, 16
      %v2222 = vrot.slane %v2220, 5
      %v2223 = vsel %vm261, %v2218, %v2222
      %v2224 = vshrl.u32 %v2037, 16
      %v2226 = vrot.slane %v2224, 4
      %v2227 = vor.u32 %v2226, %v2222
      %v2228 = vrot.slane %v2227, 4
      %v2230 = vshll.u32 %v2038, 16
      %v2232 = vrot.slane %v2230, 5
      %v2233 = vsel %vm261, %v2228, %v2232
      %v2235 = vshrl.u32 %v2039, 16
      %v2237 = vrot.slane %v2235, 4
      %v2238 = vshll.u32 %v2039, 16
      %v2240 = vrot.slane %v2238, 5
      %v2241 = vor.u32 %v2237, %v2240
      %v2242 = vrot.slane %v2241, 4
      %v2244 = vshll.u32 %v2040, 16
      %v2246 = vrot.slane %v2244, 5
      %v2247 = vsel %vm261, %v2242, %v2246
      %v2248 = vshrl.u32 %v2040, 16
      %v2250 = vrot.slane %v2248, 4
      %v2251 = vor.u32 %v2250, %v2246
      %v2252 = vrot.slane %v2251, 4
      %v2254 = vshll.u32 %v2041, 16
      %v2256 = vrot.slane %v2254, 5
      %v2257 = vsel %vm261, %v2252, %v2256
      %v2259 = vshrl.u32 %v2042, 16
      %v2261 = vrot.slane %v2259, 4
      %v2262 = vshll.u32 %v2042, 16
      %v2264 = vrot.slane %v2262, 5
      %v2265 = vor.u32 %v2261, %v2264
      %v2266 = vrot.slane %v2265, 4
      %v2268 = vshll.u32 %v2043, 16
      %v2270 = vrot.slane %v2268, 5
      %v2271 = vsel %vm261, %v2266, %v2270
      %v2272 = vshrl.u32 %v2043, 16
      %v2274 = vrot.slane %v2272, 4
      %v2275 = vor.u32 %v2274, %v2270
      %v2276 = vrot.slane %v2275, 4
      %v2278 = vshll.u32 %v2044, 16
      %v2280 = vrot.slane %v2278, 5
      %v2281 = vsel %vm261, %v2276, %v2280
      %v2283 = vshrl.u32 %v2045, 16
      %v2285 = vrot.slane %v2283, 4
      %v2286 = vshll.u32 %v2045, 16
      %v2288 = vrot.slane %v2286, 5
      %v2289 = vor.u32 %v2285, %v2288
      %v2290 = vrot.slane %v2289, 4
      %v2292 = vshll.u32 %v2046, 16
      %v2294 = vrot.slane %v2292, 5
      %v2295 = vsel %vm261, %v2290, %v2294
      %v2296 = vshrl.u32 %v2046, 16
      %v2298 = vrot.slane %v2296, 4
      %v2299 = vor.u32 %v2298, %v2294
      %v2300 = vrot.slane %v2299, 4
      %v2302 = vshll.u32 %v2047, 16
      %v2304 = vrot.slane %v2302, 5
      %v2305 = vsel %vm261, %v2300, %v2304
      %v2307 = vshrl.u32 %v2048, 16
      %v2309 = vrot.slane %v2307, 4
      %v2310 = vshll.u32 %v2048, 16
      %v2312 = vrot.slane %v2310, 5
      %v2313 = vor.u32 %v2309, %v2312
      %v2314 = vrot.slane %v2313, 4
      %v2316 = vshll.u32 %v2049, 16
      %v2318 = vrot.slane %v2316, 5
      %v2319 = vsel %vm261, %v2314, %v2318
      %v2320 = vshrl.u32 %v2049, 16
      %v2322 = vrot.slane %v2320, 4
      %v2323 = vor.u32 %v2322, %v2318
      %v2324 = vrot.slane %v2323, 4
      %v2326 = vshll.u32 %v2050, 16
      %v2328 = vrot.slane %v2326, 5
      %v2329 = vsel %vm261, %v2324, %v2328
      %v2331 = vshrl.u32 %v2051, 16
      %v2333 = vrot.slane %v2331, 4
      %v2334 = vshll.u32 %v2051, 16
      %v2336 = vrot.slane %v2334, 5
      %v2337 = vor.u32 %v2333, %v2336
      %v2338 = vrot.slane %v2337, 4
      %v2340 = vshll.u32 %v2052, 16
      %v2342 = vrot.slane %v2340, 5
      %v2343 = vsel %vm261, %v2338, %v2342
      %v2344 = vshrl.u32 %v2052, 16
      %v2346 = vrot.slane %v2344, 4
      %v2347 = vor.u32 %v2346, %v2342
      %v2348 = vrot.slane %v2347, 4
      %v2350 = vshll.u32 %v2053, 16
      %v2352 = vrot.slane %v2350, 5
      %v2353 = vsel %vm261, %v2348, %v2352
      %v2355 = vshrl.u32 %v2054, 16
      %v2357 = vrot.slane %v2355, 4
      %v2358 = vshll.u32 %v2054, 16
      %v2360 = vrot.slane %v2358, 5
      %v2361 = vor.u32 %v2357, %v2360
      %v2362 = vrot.slane %v2361, 4
      %v2364 = vshll.u32 %v2055, 16
      %v2366 = vrot.slane %v2364, 5
      %v2367 = vsel %vm261, %v2362, %v2366
      %v2368 = vshrl.u32 %v2055, 16
      %v2370 = vrot.slane %v2368, 4
      %v2371 = vor.u32 %v2370, %v2366
      %v2372 = vrot.slane %v2371, 4
      %v2374 = vshll.u32 %v2056, 16
      %v2376 = vrot.slane %v2374, 5
      %v2377 = vsel %vm261, %v2372, %v2376
      %v2379 = vshrl.u32 %v2057, 16
      %v2381 = vrot.slane %v2379, 4
      %v2382 = vshll.u32 %v2057, 16
      %v2384 = vrot.slane %v2382, 5
      %v2385 = vor.u32 %v2381, %v2384
      %v2386 = vrot.slane %v2385, 4
      %v2388 = vshll.u32 %v2058, 16
      %v2390 = vrot.slane %v2388, 5
      %v2391 = vsel %vm261, %v2386, %v2390
      %v2392 = vshrl.u32 %v2058, 16
      %v2394 = vrot.slane %v2392, 4
      %v2395 = vor.u32 %v2394, %v2390
      %v2396 = vrot.slane %v2395, 4
      %v2398 = vshll.u32 %v2059, 16
      %v2400 = vrot.slane %v2398, 5
      %v2401 = vsel %vm261, %v2396, %v2400
      %v2403 = vshrl.u32 %v2060, 16
      %v2405 = vrot.slane %v2403, 4
      %v2406 = vshll.u32 %v2060, 16
      %v2408 = vrot.slane %v2406, 5
      %v2409 = vor.u32 %v2405, %v2408
      %v2410 = vrot.slane %v2409, 4
      %v2412 = vshll.u32 %v2061, 16
      %v2414 = vrot.slane %v2412, 5
      %v2415 = vsel %vm261, %v2410, %v2414
      %v2416 = vshrl.u32 %v2061, 16
      %v2418 = vrot.slane %v2416, 4
      %v2419 = vor.u32 %v2418, %v2414
      %v2420 = vrot.slane %v2419, 4
      %v2422 = vshll.u32 %v2062, 16
      %v2424 = vrot.slane %v2422, 5
      %v2425 = vsel %vm261, %v2420, %v2424
      %v2427 = vshrl.u32 %v2063, 16
      %v2429 = vrot.slane %v2427, 4
      %v2430 = vshll.u32 %v2063, 16
      %v2432 = vrot.slane %v2430, 5
      %v2433 = vor.u32 %v2429, %v2432
      %v2434 = vrot.slane %v2433, 4
      %v2436 = vshll.u32 %v2064, 16
      %v2438 = vrot.slane %v2436, 5
      %v2439 = vsel %vm261, %v2434, %v2438
      %v2440 = vshrl.u32 %v2064, 16
      %v2442 = vrot.slane %v2440, 4
      %v2443 = vor.u32 %v2442, %v2438
      %v2444 = vrot.slane %v2443, 4
      %v2446 = vshll.u32 %v2065, 16
      %v2448 = vrot.slane %v2446, 5
      %v2449 = vsel %vm261, %v2444, %v2448
      %s2450 = scalar_lea.vmem %s1, 8
      %v2451 = vld [vmem:[%s2450] sm:$0x3]
      %v2452 = vunpack.c.l.b16 %v2079
      %v2453 = vunpack.c.l.b16 %v2089
      %v2454 = vunpack.c.l.b16 %v2103
      %v2455 = vunpack.c.l.b16 %v2113
      %v2456 = vunpack.c.l.b16 %v2127
      %v2457 = vunpack.c.l.b16 %v2137
      %v2458 = vunpack.c.l.b16 %v2151
      %v2459 = vunpack.c.l.b16 %v2161
      %v2460 = vunpack.c.l.b16 %v2175
      %v2461 = vunpack.c.l.b16 %v2185
      %v2462 = vunpack.c.l.b16 %v2199
      %v2463 = vunpack.c.l.b16 %v2209
      %v2464 = vunpack.c.l.b16 %v2223
      %v2465 = vunpack.c.l.b16 %v2233
      %v2466 = vunpack.c.l.b16 %v2247
      %v2467 = vunpack.c.l.b16 %v2257
      %v2468 = vunpack.c.l.b16 %v2271
      %v2469 = vunpack.c.l.b16 %v2281
      %v2470 = vunpack.c.l.b16 %v2295
      %v2471 = vunpack.c.l.b16 %v2305
      %v2472 = vunpack.c.l.b16 %v2319
      %v2473 = vunpack.c.l.b16 %v2329
      %v2474 = vunpack.c.l.b16 %v2343
      %v2475 = vunpack.c.l.b16 %v2353
      %v2476 = vunpack.c.l.b16 %v2367
      %v2477 = vunpack.c.l.b16 %v2377
      %v2478 = vunpack.c.l.b16 %v2391
      %v2479 = vunpack.c.l.b16 %v2401
      %v2480 = vunpack.c.l.b16 %v2415
      %v2481 = vunpack.c.l.b16 %v2425
      %v2482 = vunpack.c.l.b16 %v2439
      %v2483 = vunpack.c.l.b16 %v2449
      %v2484 = vpack.c.b16 %v2453, %v2452
      %v2485 = vpack.c.b16 %v2455, %v2454
      %v2486 = vpack.c.b16 %v2457, %v2456
      %v2487 = vpack.c.b16 %v2459, %v2458
      %v2488 = vpack.c.b16 %v2461, %v2460
      %v2489 = vpack.c.b16 %v2463, %v2462
      %v2490 = vpack.c.b16 %v2465, %v2464
      %v2491 = vpack.c.b16 %v2467, %v2466
      %v2492 = vpack.c.b16 %v2469, %v2468
      %v2493 = vpack.c.b16 %v2471, %v2470
      %v2494 = vpack.c.b16 %v2473, %v2472
      %v2495 = vpack.c.b16 %v2475, %v2474
      %v2496 = vpack.c.b16 %v2477, %v2476
      %v2497 = vpack.c.b16 %v2479, %v2478
      %v2498 = vpack.c.b16 %v2481, %v2480
      %v2499 = vpack.c.b16 %v2483, %v2482
      %v2501 = vsel %vm696, %v2484, 0
      %v2504 = vsel %vm696, %v2485, 0
      %v2507 = vsel %vm696, %v2486, 0
      %v2510 = vsel %vm696, %v2487, 0
      %v2513 = vsel %vm696, %v2488, 0
      %v2516 = vsel %vm696, %v2489, 0
      %v2519 = vsel %vm696, %v2490, 0
      %v2522 = vsel %vm696, %v2491, 0
      %v2525 = vsel %vm696, %v2492, 0
      %v2528 = vsel %vm696, %v2493, 0
      %v2531 = vsel %vm696, %v2494, 0
      %v2534 = vsel %vm696, %v2495, 0
      %v2537 = vsel %vm696, %v2496, 0
      %v2540 = vsel %vm696, %v2497, 0
      %v2543 = vsel %vm696, %v2498, 0
      %v2546 = vsel %vm696, %v2499, 0
      %v2549 = vsel %vm745, %v2451, 0
      %2551 = vmatprep.subr.bf16.mxu0 0
      %2552 = vmatpush1.bf16.msra.mxu0 %v2549
      %2553 = vmatprep.subr.bf16.mxu0 0
      %2554 = vmatpush1.bf16.msra.mxu0 0
      %2555 = vmatprep.subr.bf16.mxu0 0
      %2556 = vmatpush1.bf16.msra.mxu0 0
      %2557 = vmatprep.subr.bf16.mxu0 0
      %2558 = vmatpush1.bf16.msra.mxu0 0
      %2559 = vmatprep.subr.bf16.mxu0 0
      %2560 = vmatpush1.bf16.msra.mxu0 0
      %2561 = vmatprep.subr.bf16.mxu0 0
      %2562 = vmatpush1.bf16.msra.mxu0 0
      %2563 = vmatprep.subr.bf16.mxu0 0
      %2564 = vmatpush1.bf16.msra.mxu0 0
      %2565 = vmatprep.subr.bf16.mxu0 0
      %2566 = vmatpush1.bf16.msra.mxu0 0
      %2567 = vmatprep.subr.bf16.mxu0 0
      %2568 = vmatpush1.bf16.msra.mxu0 0
      %2569 = vmatprep.subr.bf16.mxu0 0
      %2570 = vmatpush1.bf16.msra.mxu0 0
      %2571 = vmatprep.subr.bf16.mxu0 0
      %2572 = vmatpush1.bf16.msra.mxu0 0
      %2573 = vmatprep.subr.bf16.mxu0 0
      %2574 = vmatpush1.bf16.msra.mxu0 0
      %2575 = vmatprep.subr.bf16.mxu0 0
      %2576 = vmatpush1.bf16.msra.mxu0 0
      %2577 = vmatprep.subr.bf16.mxu0 0
      %2578 = vmatpush1.bf16.msra.mxu0 0
      %2579 = vmatprep.subr.bf16.mxu0 0
      %2580 = vmatpush1.bf16.msra.mxu0 0
      %2581 = vmatprep.subr.bf16.mxu0 0
      %2582 = vmatpush1.bf16.msra.mxu0 0
      %2583 = vmatprep.mubr.bf16.mxu0 0
      %2584 = vmatmul.mubr.bf16.gmra.mrb[0].mxu0 %v2501
      %v2585 = vpop.f32.mrb[0].mxu0
      %v2586 = vadd.f32 0.0, %v2585
      %v2587 = vpop.f32.mrb[0].mxu0
      %v2588 = vpop.f32.mrb[0].mxu0
      %v2589 = vadd.f32 0.0, %v2588
      %v2590 = vpop.f32.mrb[0].mxu0
      %2591 = vmatprep.mubr.bf16.mxu0 0
      %2592 = vmatmul.mubr.bf16.gmra.mrb[0].mxu0 %v2504
      %v2593 = vpop.f32.mrb[0].mxu0
      %v2594 = vadd.f32 0.0, %v2593
      %v2595 = vpop.f32.mrb[0].mxu0
      %v2596 = vpop.f32.mrb[0].mxu0
      %v2597 = vadd.f32 0.0, %v2596
      %v2598 = vpop.f32.mrb[0].mxu0
      %2599 = vmatprep.mubr.bf16.mxu0 0
      %2600 = vmatmul.mubr.bf16.gmra.mrb[0].mxu0 %v2507
      %v2601 = vpop.f32.mrb[0].mxu0
      %v2602 = vadd.f32 0.0, %v2601
      %v2603 = vpop.f32.mrb[0].mxu0
      %v2604 = vpop.f32.mrb[0].mxu0
      %v2605 = vadd.f32 0.0, %v2604
      %v2606 = vpop.f32.mrb[0].mxu0
      %2607 = vmatprep.mubr.bf16.mxu0 0
      %2608 = vmatmul.mubr.bf16.gmra.mrb[0].mxu0 %v2510
      %v2609 = vpop.f32.mrb[0].mxu0
      %v2610 = vadd.f32 0.0, %v2609
      %v2611 = vpop.f32.mrb[0].mxu0
      %v2612 = vpop.f32.mrb[0].mxu0
      %v2613 = vadd.f32 0.0, %v2612
      %v2614 = vpop.f32.mrb[0].mxu0
      %2615 = vmatprep.mubr.bf16.mxu0 0
      %2616 = vmatmul.mubr.bf16.gmra.mrb[0].mxu0 %v2513
      %v2617 = vpop.f32.mrb[0].mxu0
      %v2618 = vadd.f32 0.0, %v2617
      %v2619 = vpop.f32.mrb[0].mxu0
      %v2620 = vpop.f32.mrb[0].mxu0
      %v2621 = vadd.f32 0.0, %v2620
      %v2622 = vpop.f32.mrb[0].mxu0
      %2623 = vmatprep.mubr.bf16.mxu0 0
      %2624 = vmatmul.mubr.bf16.gmra.mrb[0].mxu0 %v2516
      %v2625 = vpop.f32.mrb[0].mxu0
      %v2626 = vadd.f32 0.0, %v2625
      %v2627 = vpop.f32.mrb[0].mxu0
      %v2628 = vpop.f32.mrb[0].mxu0
      %v2629 = vadd.f32 0.0, %v2628
      %v2630 = vpop.f32.mrb[0].mxu0
      %2631 = vmatprep.mubr.bf16.mxu0 0
      %2632 = vmatmul.mubr.bf16.gmra.mrb[0].mxu0 %v2519
      %v2633 = vpop.f32.mrb[0].mxu0
      %v2634 = vadd.f32 0.0, %v2633
      %v2635 = vpop.f32.mrb[0].mxu0
      %v2636 = vpop.f32.mrb[0].mxu0
      %v2637 = vadd.f32 0.0, %v2636
      %v2638 = vpop.f32.mrb[0].mxu0
      %2639 = vmatprep.mubr.bf16.mxu0 0
      %2640 = vmatmul.mubr.bf16.gmra.mrb[0].mxu0 %v2522
      %v2641 = vpop.f32.mrb[0].mxu0
      %v2642 = vadd.f32 0.0, %v2641
      %v2643 = vpop.f32.mrb[0].mxu0
      %v2644 = vpop.f32.mrb[0].mxu0
      %v2645 = vadd.f32 0.0, %v2644
      %v2646 = vpop.f32.mrb[0].mxu0
      %2647 = vmatprep.mubr.bf16.mxu0 0
      %2648 = vmatmul.mubr.bf16.gmra.mrb[0].mxu0 %v2525
      %v2649 = vpop.f32.mrb[0].mxu0
      %v2650 = vadd.f32 0.0, %v2649
      %v2651 = vpop.f32.mrb[0].mxu0
      %v2652 = vpop.f32.mrb[0].mxu0
      %v2653 = vadd.f32 0.0, %v2652
      %v2654 = vpop.f32.mrb[0].mxu0
      %2655 = vmatprep.mubr.bf16.mxu0 0
      %2656 = vmatmul.mubr.bf16.gmra.mrb[0].mxu0 %v2528
      %v2657 = vpop.f32.mrb[0].mxu0
      %v2658 = vadd.f32 0.0, %v2657
      %v2659 = vpop.f32.mrb[0].mxu0
      %v2660 = vpop.f32.mrb[0].mxu0
      %v2661 = vadd.f32 0.0, %v2660
      %v2662 = vpop.f32.mrb[0].mxu0
      %2663 = vmatprep.mubr.bf16.mxu0 0
      %2664 = vmatmul.mubr.bf16.gmra.mrb[0].mxu0 %v2531
      %v2665 = vpop.f32.mrb[0].mxu0
      %v2666 = vadd.f32 0.0, %v2665
      %v2667 = vpop.f32.mrb[0].mxu0
      %v2668 = vpop.f32.mrb[0].mxu0
      %v2669 = vadd.f32 0.0, %v2668
      %v2670 = vpop.f32.mrb[0].mxu0
      %2671 = vmatprep.mubr.bf16.mxu0 0
      %2672 = vmatmul.mubr.bf16.gmra.mrb[0].mxu0 %v2534
      %v2673 = vpop.f32.mrb[0].mxu0
      %v2674 = vadd.f32 0.0, %v2673
      %v2675 = vpop.f32.mrb[0].mxu0
      %v2676 = vpop.f32.mrb[0].mxu0
      %v2677 = vadd.f32 0.0, %v2676
      %v2678 = vpop.f32.mrb[0].mxu0
      %2679 = vmatprep.mubr.bf16.mxu0 0
      %2680 = vmatmul.mubr.bf16.gmra.mrb[0].mxu0 %v2537
      %v2681 = vpop.f32.mrb[0].mxu0
      %v2682 = vadd.f32 0.0, %v2681
      %v2683 = vpop.f32.mrb[0].mxu0
      %v2684 = vpop.f32.mrb[0].mxu0
      %v2685 = vadd.f32 0.0, %v2684
      %v2686 = vpop.f32.mrb[0].mxu0
      %2687 = vmatprep.mubr.bf16.mxu0 0
      %2688 = vmatmul.mubr.bf16.gmra.mrb[0].mxu0 %v2540
      %v2689 = vpop.f32.mrb[0].mxu0
      %v2690 = vadd.f32 0.0, %v2689
      %v2691 = vpop.f32.mrb[0].mxu0
      %v2692 = vpop.f32.mrb[0].mxu0
      %v2693 = vadd.f32 0.0, %v2692
      %v2694 = vpop.f32.mrb[0].mxu0
      %2695 = vmatprep.mubr.bf16.mxu0 0
      %2696 = vmatmul.mubr.bf16.gmra.mrb[0].mxu0 %v2543
      %v2697 = vpop.f32.mrb[0].mxu0
      %v2698 = vadd.f32 0.0, %v2697
      %v2699 = vpop.f32.mrb[0].mxu0
      %v2700 = vpop.f32.mrb[0].mxu0
      %v2701 = vadd.f32 0.0, %v2700
      %v2702 = vpop.f32.mrb[0].mxu0
      %2703 = vmatprep.mubr.bf16.mxu0 0
      %2704 = vmatmul.mubr.bf16.gmra.mrb[0].mxu0 %v2546
      %v2705 = vpop.f32.mrb[0].mxu0
      %v2706 = vadd.f32 0.0, %v2705
      %v2707 = vpop.f32.mrb[0].mxu0
      %v2708 = vpop.f32.mrb[0].mxu0
      %v2709 = vadd.f32 0.0, %v2708
      %v2710 = vpop.f32.mrb[0].mxu0
      %2711 = vdwg.mxu0
      %v2712 = vadd.f32 %v1986, %v2586
      %v2713 = vadd.f32 %v1987, %v2589
      %v2714 = vadd.f32 %v1988, %v2594
      %v2715 = vadd.f32 %v1989, %v2597
      %v2716 = vadd.f32 %v1990, %v2602
      %v2717 = vadd.f32 %v1991, %v2605
      %v2718 = vadd.f32 %v1992, %v2610
      %v2719 = vadd.f32 %v1993, %v2613
      %v2720 = vadd.f32 %v1994, %v2618
      %v2721 = vadd.f32 %v1995, %v2621
      %v2722 = vadd.f32 %v1996, %v2626
      %v2723 = vadd.f32 %v1997, %v2629
      %v2724 = vadd.f32 %v1998, %v2634
      %v2725 = vadd.f32 %v1999, %v2637
      %v2726 = vadd.f32 %v2000, %v2642
      %v2727 = vadd.f32 %v2001, %v2645
      %v2728 = vadd.f32 %v2002, %v2650
      %v2729 = vadd.f32 %v2003, %v2653
      %v2730 = vadd.f32 %v2004, %v2658
      %v2731 = vadd.f32 %v2005, %v2661
      %v2732 = vadd.f32 %v2006, %v2666
      %v2733 = vadd.f32 %v2007, %v2669
      %v2734 = vadd.f32 %v2008, %v2674
      %v2735 = vadd.f32 %v2009, %v2677
      %v2736 = vadd.f32 %v2010, %v2682
      %v2737 = vadd.f32 %v2011, %v2685
      %v2738 = vadd.f32 %v2012, %v2690
      %v2739 = vadd.f32 %v2013, %v2693
      %v2740 = vadd.f32 %v2014, %v2698
      %v2741 = vadd.f32 %v2015, %v2701
      %v2742 = vadd.f32 %v2016, %v2706
      %v2743 = vadd.f32 %v2017, %v2709
      %v2744 = vld [vmem:[%s1659] sm:$0xe]
      %v2745 = vld [vmem:[%s1659 + $0xc] sm:$0xe]
      %v2746 = vld [vmem:[%s1659 + $0x18] sm:$0xe]
      %v2747 = vld [vmem:[%s1659 + $0x24] sm:$0xe]
      %v2748 = vld [vmem:[%s1659 + $0x30] sm:$0xe]
      %v2749 = vld [vmem:[%s1659 + $0x3c] sm:$0xe]
      %v2750 = vld [vmem:[%s1659 + $0x48] sm:$0xe]
      %v2751 = vld [vmem:[%s1659 + $0x54] sm:$0xe]
      %v2752 = vld [vmem:[%s1659 + $0x60] sm:$0xe]
      %v2753 = vld [vmem:[%s1659 + $0x6c] sm:$0xe]
      %v2754 = vld [vmem:[%s1659 + $0x78] sm:$0xe]
      %v2755 = vld [vmem:[%s1659 + $0x84] sm:$0xe]
      %v2756 = vld [vmem:[%s1659 + $0x90] sm:$0xe]
      %v2757 = vld [vmem:[%s1659 + $0x9c] sm:$0xe]
      %v2758 = vld [vmem:[%s1659 + $0xa8] sm:$0xe]
      %v2759 = vld [vmem:[%s1659 + $0xb4] sm:$0xe]
      %v2808 = vrot.slane %v2744, 5
      %v2809 = vrot.slane %v2808, 4
      %v2810 = vrot.slane %v2019, 5
      %v2811 = vsel %vm1252, %v2809, %v2810
      %v2812 = vrot.slane %v2810, 4
      %v2813 = vrot.slane %v2020, 5
      %v2814 = vsel %vm1252, %v2812, %v2813
      %v2815 = vrot.slane %v2745, 5
      %v2816 = vrot.slane %v2815, 4
      %v2817 = vrot.slane %v2022, 5
      %v2818 = vsel %vm1252, %v2816, %v2817
      %v2819 = vrot.slane %v2817, 4
      %v2820 = vrot.slane %v2023, 5
      %v2821 = vsel %vm1252, %v2819, %v2820
      %v2822 = vrot.slane %v2746, 5
      %v2823 = vrot.slane %v2822, 4
      %v2824 = vrot.slane %v2025, 5
      %v2825 = vsel %vm1252, %v2823, %v2824
      %v2826 = vrot.slane %v2824, 4
      %v2827 = vrot.slane %v2026, 5
      %v2828 = vsel %vm1252, %v2826, %v2827
      %v2829 = vrot.slane %v2747, 5
      %v2830 = vrot.slane %v2829, 4
      %v2831 = vrot.slane %v2028, 5
      %v2832 = vsel %vm1252, %v2830, %v2831
      %v2833 = vrot.slane %v2831, 4
      %v2834 = vrot.slane %v2029, 5
      %v2835 = vsel %vm1252, %v2833, %v2834
      %v2836 = vrot.slane %v2748, 5
      %v2837 = vrot.slane %v2836, 4
      %v2838 = vrot.slane %v2031, 5
      %v2839 = vsel %vm1252, %v2837, %v2838
      %v2840 = vrot.slane %v2838, 4
      %v2841 = vrot.slane %v2032, 5
      %v2842 = vsel %vm1252, %v2840, %v2841
      %v2843 = vrot.slane %v2749, 5
      %v2844 = vrot.slane %v2843, 4
      %v2845 = vrot.slane %v2034, 5
      %v2846 = vsel %vm1252, %v2844, %v2845
      %v2847 = vrot.slane %v2845, 4
      %v2848 = vrot.slane %v2035, 5
      %v2849 = vsel %vm1252, %v2847, %v2848
      %v2850 = vrot.slane %v2750, 5
      %v2851 = vrot.slane %v2850, 4
      %v2852 = vrot.slane %v2037, 5
      %v2853 = vsel %vm1252, %v2851, %v2852
      %v2854 = vrot.slane %v2852, 4
      %v2855 = vrot.slane %v2038, 5
      %v2856 = vsel %vm1252, %v2854, %v2855
      %v2857 = vrot.slane %v2751, 5
      %v2858 = vrot.slane %v2857, 4
      %v2859 = vrot.slane %v2040, 5
      %v2860 = vsel %vm1252, %v2858, %v2859
      %v2861 = vrot.slane %v2859, 4
      %v2862 = vrot.slane %v2041, 5
      %v2863 = vsel %vm1252, %v2861, %v2862
      %v2864 = vrot.slane %v2752, 5
      %v2865 = vrot.slane %v2864, 4
      %v2866 = vrot.slane %v2043, 5
      %v2867 = vsel %vm1252, %v2865, %v2866
      %v2868 = vrot.slane %v2866, 4
      %v2869 = vrot.slane %v2044, 5
      %v2870 = vsel %vm1252, %v2868, %v2869
      %v2871 = vrot.slane %v2753, 5
      %v2872 = vrot.slane %v2871, 4
      %v2873 = vrot.slane %v2046, 5
      %v2874 = vsel %vm1252, %v2872, %v2873
      %v2875 = vrot.slane %v2873, 4
      %v2876 = vrot.slane %v2047, 5
      %v2877 = vsel %vm1252, %v2875, %v2876
      %v2878 = vrot.slane %v2754, 5
      %v2879 = vrot.slane %v2878, 4
      %v2880 = vrot.slane %v2049, 5
      %v2881 = vsel %vm1252, %v2879, %v2880
      %v2882 = vrot.slane %v2880, 4
      %v2883 = vrot.slane %v2050, 5
      %v2884 = vsel %vm1252, %v2882, %v2883
      %v2885 = vrot.slane %v2755, 5
      %v2886 = vrot.slane %v2885, 4
      %v2887 = vrot.slane %v2052, 5
      %v2888 = vsel %vm1252, %v2886, %v2887
      %v2889 = vrot.slane %v2887, 4
      %v2890 = vrot.slane %v2053, 5
      %v2891 = vsel %vm1252, %v2889, %v2890
      %v2892 = vrot.slane %v2756, 5
      %v2893 = vrot.slane %v2892, 4
      %v2894 = vrot.slane %v2055, 5
      %v2895 = vsel %vm1252, %v2893, %v2894
      %v2896 = vrot.slane %v2894, 4
      %v2897 = vrot.slane %v2056, 5
      %v2898 = vsel %vm1252, %v2896, %v2897
      %v2899 = vrot.slane %v2757, 5
      %v2900 = vrot.slane %v2899, 4
      %v2901 = vrot.slane %v2058, 5
      %v2902 = vsel %vm1252, %v2900, %v2901
      %v2903 = vrot.slane %v2901, 4
      %v2904 = vrot.slane %v2059, 5
      %v2905 = vsel %vm1252, %v2903, %v2904
      %v2906 = vrot.slane %v2758, 5
      %v2907 = vrot.slane %v2906, 4
      %v2908 = vrot.slane %v2061, 5
      %v2909 = vsel %vm1252, %v2907, %v2908
      %v2910 = vrot.slane %v2908, 4
      %v2911 = vrot.slane %v2062, 5
      %v2912 = vsel %vm1252, %v2910, %v2911
      %v2913 = vrot.slane %v2759, 5
      %v2914 = vrot.slane %v2913, 4
      %v2915 = vrot.slane %v2064, 5
      %v2916 = vsel %vm1252, %v2914, %v2915
      %v2917 = vrot.slane %v2915, 4
      %v2918 = vrot.slane %v2065, 5
      %v2919 = vsel %vm1252, %v2917, %v2918
      %s2920 = scalar_lea.vmem %s1, 10
      %v2921 = vld [vmem:[%s2920] sm:$0x3]
      %v2922 = vunpack.c.l.b16 %v2811
      %v2923 = vunpack.c.l.b16 %v2814
      %v2924 = vunpack.c.l.b16 %v2818
      %v2925 = vunpack.c.l.b16 %v2821
      %v2926 = vunpack.c.l.b16 %v2825
      %v2927 = vunpack.c.l.b16 %v2828
      %v2928 = vunpack.c.l.b16 %v2832
      %v2929 = vunpack.c.l.b16 %v2835
      %v2930 = vunpack.c.l.b16 %v2839
      %v2931 = vunpack.c.l.b16 %v2842
      %v2932 = vunpack.c.l.b16 %v2846
      %v2933 = vunpack.c.l.b16 %v2849
      %v2934 = vunpack.c.l.b16 %v2853
      %v2935 = vunpack.c.l.b16 %v2856
      %v2936 = vunpack.c.l.b16 %v2860
      %v2937 = vunpack.c.l.b16 %v2863
      %v2938 = vunpack.c.l.b16 %v2867
      %v2939 = vunpack.c.l.b16 %v2870
      %v2940 = vunpack.c.l.b16 %v2874
      %v2941 = vunpack.c.l.b16 %v2877
      %v2942 = vunpack.c.l.b16 %v2881
      %v2943 = vunpack.c.l.b16 %v2884
      %v2944 = vunpack.c.l.b16 %v2888
      %v2945 = vunpack.c.l.b16 %v2891
      %v2946 = vunpack.c.l.b16 %v2895
      %v2947 = vunpack.c.l.b16 %v2898
      %v2948 = vunpack.c.l.b16 %v2902
      %v2949 = vunpack.c.l.b16 %v2905
      %v2950 = vunpack.c.l.b16 %v2909
      %v2951 = vunpack.c.l.b16 %v2912
      %v2952 = vunpack.c.l.b16 %v2916
      %v2953 = vunpack.c.l.b16 %v2919
      %v2954 = vpack.c.b16 %v2923, %v2922
      %v2955 = vpack.c.b16 %v2925, %v2924
      %v2956 = vpack.c.b16 %v2927, %v2926
      %v2957 = vpack.c.b16 %v2929, %v2928
      %v2958 = vpack.c.b16 %v2931, %v2930
      %v2959 = vpack.c.b16 %v2933, %v2932
      %v2960 = vpack.c.b16 %v2935, %v2934
      %v2961 = vpack.c.b16 %v2937, %v2936
      %v2962 = vpack.c.b16 %v2939, %v2938
      %v2963 = vpack.c.b16 %v2941, %v2940
      %v2964 = vpack.c.b16 %v2943, %v2942
      %v2965 = vpack.c.b16 %v2945, %v2944
      %v2966 = vpack.c.b16 %v2947, %v2946
      %v2967 = vpack.c.b16 %v2949, %v2948
      %v2968 = vpack.c.b16 %v2951, %v2950
      %v2969 = vpack.c.b16 %v2953, %v2952
      %v2971 = vsel %vm696, %v2954, 0
      %v2974 = vsel %vm696, %v2955, 0
      %v2977 = vsel %vm696, %v2956, 0
      %v2980 = vsel %vm696, %v2957, 0
      %v2983 = vsel %vm696, %v2958, 0
      %v2986 = vsel %vm696, %v2959, 0
      %v2989 = vsel %vm696, %v2960, 0
      %v2992 = vsel %vm696, %v2961, 0
      %v2995 = vsel %vm696, %v2962, 0
      %v2998 = vsel %vm696, %v2963, 0
      %v3001 = vsel %vm696, %v2964, 0
      %v3004 = vsel %vm696, %v2965, 0
      %v3007 = vsel %vm696, %v2966, 0
      %v3010 = vsel %vm696, %v2967, 0
      %v3013 = vsel %vm696, %v2968, 0
      %v3016 = vsel %vm696, %v2969, 0
      %v3019 = vsel %vm745, %v2921, 0
      %3021 = vmatprep.subr.bf16.mxu0 0
      %3022 = vmatpush1.bf16.msra.mxu0 %v3019
      %3023 = vmatprep.subr.bf16.mxu0 0
      %3024 = vmatpush1.bf16.msra.mxu0 0
      %3025 = vmatprep.subr.bf16.mxu0 0
      %3026 = vmatpush1.bf16.msra.mxu0 0
      %3027 = vmatprep.subr.bf16.mxu0 0
      %3028 = vmatpush1.bf16.msra.mxu0 0
      %3029 = vmatprep.subr.bf16.mxu0 0
      %3030 = vmatpush1.bf16.msra.mxu0 0
      %3031 = vmatprep.subr.bf16.mxu0 0
      %3032 = vmatpush1.bf16.msra.mxu0 0
      %3033 = vmatprep.subr.bf16.mxu0 0
      %3034 = vmatpush1.bf16.msra.mxu0 0
      %3035 = vmatprep.subr.bf16.mxu0 0
      %3036 = vmatpush1.bf16.msra.mxu0 0
      %3037 = vmatprep.subr.bf16.mxu0 0
      %3038 = vmatpush1.bf16.msra.mxu0 0
      %3039 = vmatprep.subr.bf16.mxu0 0
      %3040 = vmatpush1.bf16.msra.mxu0 0
      %3041 = vmatprep.subr.bf16.mxu0 0
      %3042 = vmatpush1.bf16.msra.mxu0 0
      %3043 = vmatprep.subr.bf16.mxu0 0
      %3044 = vmatpush1.bf16.msra.mxu0 0
      %3045 = vmatprep.subr.bf16.mxu0 0
      %3046 = vmatpush1.bf16.msra.mxu0 0
      %3047 = vmatprep.subr.bf16.mxu0 0
      %3048 = vmatpush1.bf16.msra.mxu0 0
      %3049 = vmatprep.subr.bf16.mxu0 0
      %3050 = vmatpush1.bf16.msra.mxu0 0
      %3051 = vmatprep.subr.bf16.mxu0 0
      %3052 = vmatpush1.bf16.msra.mxu0 0
      %3053 = vmatprep.mubr.bf16.mxu0 0
      %3054 = vmatmul.mubr.bf16.gmra.mrb[0].mxu0 %v2971
      %v3055 = vpop.f32.mrb[0].mxu0
      %v3056 = vadd.f32 0.0, %v3055
      %v3057 = vpop.f32.mrb[0].mxu0
      %v3058 = vpop.f32.mrb[0].mxu0
      %v3059 = vadd.f32 0.0, %v3058
      %v3060 = vpop.f32.mrb[0].mxu0
      %3061 = vmatprep.mubr.bf16.mxu0 0
      %3062 = vmatmul.mubr.bf16.gmra.mrb[0].mxu0 %v2974
      %v3063 = vpop.f32.mrb[0].mxu0
      %v3064 = vadd.f32 0.0, %v3063
      %v3065 = vpop.f32.mrb[0].mxu0
      %v3066 = vpop.f32.mrb[0].mxu0
      %v3067 = vadd.f32 0.0, %v3066
      %v3068 = vpop.f32.mrb[0].mxu0
      %3069 = vmatprep.mubr.bf16.mxu0 0
      %3070 = vmatmul.mubr.bf16.gmra.mrb[0].mxu0 %v2977
      %v3071 = vpop.f32.mrb[0].mxu0
      %v3072 = vadd.f32 0.0, %v3071
      %v3073 = vpop.f32.mrb[0].mxu0
      %v3074 = vpop.f32.mrb[0].mxu0
      %v3075 = vadd.f32 0.0, %v3074
      %v3076 = vpop.f32.mrb[0].mxu0
      %3077 = vmatprep.mubr.bf16.mxu0 0
      %3078 = vmatmul.mubr.bf16.gmra.mrb[0].mxu0 %v2980
      %v3079 = vpop.f32.mrb[0].mxu0
      %v3080 = vadd.f32 0.0, %v3079
      %v3081 = vpop.f32.mrb[0].mxu0
      %v3082 = vpop.f32.mrb[0].mxu0
      %v3083 = vadd.f32 0.0, %v3082
      %v3084 = vpop.f32.mrb[0].mxu0
      %3085 = vmatprep.mubr.bf16.mxu0 0
      %3086 = vmatmul.mubr.bf16.gmra.mrb[0].mxu0 %v2983
      %v3087 = vpop.f32.mrb[0].mxu0
      %v3088 = vadd.f32 0.0, %v3087
      %v3089 = vpop.f32.mrb[0].mxu0
      %v3090 = vpop.f32.mrb[0].mxu0
      %v3091 = vadd.f32 0.0, %v3090
      %v3092 = vpop.f32.mrb[0].mxu0
      %3093 = vmatprep.mubr.bf16.mxu0 0
      %3094 = vmatmul.mubr.bf16.gmra.mrb[0].mxu0 %v2986
      %v3095 = vpop.f32.mrb[0].mxu0
      %v3096 = vadd.f32 0.0, %v3095
      %v3097 = vpop.f32.mrb[0].mxu0
      %v3098 = vpop.f32.mrb[0].mxu0
      %v3099 = vadd.f32 0.0, %v3098
      %v3100 = vpop.f32.mrb[0].mxu0
      %3101 = vmatprep.mubr.bf16.mxu0 0
      %3102 = vmatmul.mubr.bf16.gmra.mrb[0].mxu0 %v2989
      %v3103 = vpop.f32.mrb[0].mxu0
      %v3104 = vadd.f32 0.0, %v3103
      %v3105 = vpop.f32.mrb[0].mxu0
      %v3106 = vpop.f32.mrb[0].mxu0
      %v3107 = vadd.f32 0.0, %v3106
      %v3108 = vpop.f32.mrb[0].mxu0
      %3109 = vmatprep.mubr.bf16.mxu0 0
      %3110 = vmatmul.mubr.bf16.gmra.mrb[0].mxu0 %v2992
      %v3111 = vpop.f32.mrb[0].mxu0
      %v3112 = vadd.f32 0.0, %v3111
      %v3113 = vpop.f32.mrb[0].mxu0
      %v3114 = vpop.f32.mrb[0].mxu0
      %v3115 = vadd.f32 0.0, %v3114
      %v3116 = vpop.f32.mrb[0].mxu0
      %3117 = vmatprep.mubr.bf16.mxu0 0
      %3118 = vmatmul.mubr.bf16.gmra.mrb[0].mxu0 %v2995
      %v3119 = vpop.f32.mrb[0].mxu0
      %v3120 = vadd.f32 0.0, %v3119
      %v3121 = vpop.f32.mrb[0].mxu0
      %v3122 = vpop.f32.mrb[0].mxu0
      %v3123 = vadd.f32 0.0, %v3122
      %v3124 = vpop.f32.mrb[0].mxu0
      %3125 = vmatprep.mubr.bf16.mxu0 0
      %3126 = vmatmul.mubr.bf16.gmra.mrb[0].mxu0 %v2998
      %v3127 = vpop.f32.mrb[0].mxu0
      %v3128 = vadd.f32 0.0, %v3127
      %v3129 = vpop.f32.mrb[0].mxu0
      %v3130 = vpop.f32.mrb[0].mxu0
      %v3131 = vadd.f32 0.0, %v3130
      %v3132 = vpop.f32.mrb[0].mxu0
      %3133 = vmatprep.mubr.bf16.mxu0 0
      %3134 = vmatmul.mubr.bf16.gmra.mrb[0].mxu0 %v3001
      %v3135 = vpop.f32.mrb[0].mxu0
      %v3136 = vadd.f32 0.0, %v3135
      %v3137 = vpop.f32.mrb[0].mxu0
      %v3138 = vpop.f32.mrb[0].mxu0
      %v3139 = vadd.f32 0.0, %v3138
      %v3140 = vpop.f32.mrb[0].mxu0
      %3141 = vmatprep.mubr.bf16.mxu0 0
      %3142 = vmatmul.mubr.bf16.gmra.mrb[0].mxu0 %v3004
      %v3143 = vpop.f32.mrb[0].mxu0
      %v3144 = vadd.f32 0.0, %v3143
      %v3145 = vpop.f32.mrb[0].mxu0
      %v3146 = vpop.f32.mrb[0].mxu0
      %v3147 = vadd.f32 0.0, %v3146
      %v3148 = vpop.f32.mrb[0].mxu0
      %3149 = vmatprep.mubr.bf16.mxu0 0
      %3150 = vmatmul.mubr.bf16.gmra.mrb[0].mxu0 %v3007
      %v3151 = vpop.f32.mrb[0].mxu0
      %v3152 = vadd.f32 0.0, %v3151
      %v3153 = vpop.f32.mrb[0].mxu0
      %v3154 = vpop.f32.mrb[0].mxu0
      %v3155 = vadd.f32 0.0, %v3154
      %v3156 = vpop.f32.mrb[0].mxu0
      %3157 = vmatprep.mubr.bf16.mxu0 0
      %3158 = vmatmul.mubr.bf16.gmra.mrb[0].mxu0 %v3010
      %v3159 = vpop.f32.mrb[0].mxu0
      %v3160 = vadd.f32 0.0, %v3159
      %v3161 = vpop.f32.mrb[0].mxu0
      %v3162 = vpop.f32.mrb[0].mxu0
      %v3163 = vadd.f32 0.0, %v3162
      %v3164 = vpop.f32.mrb[0].mxu0
      %3165 = vmatprep.mubr.bf16.mxu0 0
      %3166 = vmatmul.mubr.bf16.gmra.mrb[0].mxu0 %v3013
      %v3167 = vpop.f32.mrb[0].mxu0
      %v3168 = vadd.f32 0.0, %v3167
      %v3169 = vpop.f32.mrb[0].mxu0
      %v3170 = vpop.f32.mrb[0].mxu0
      %v3171 = vadd.f32 0.0, %v3170
      %v3172 = vpop.f32.mrb[0].mxu0
      %3173 = vmatprep.mubr.bf16.mxu0 0
      %3174 = vmatmul.mubr.bf16.gmra.mrb[0].mxu0 %v3016
      %v3175 = vpop.f32.mrb[0].mxu0
      %v3176 = vadd.f32 0.0, %v3175
      %v3177 = vpop.f32.mrb[0].mxu0
      %v3178 = vpop.f32.mrb[0].mxu0
      %v3179 = vadd.f32 0.0, %v3178
      %v3180 = vpop.f32.mrb[0].mxu0
      %3181 = vdwg.mxu0
      %v3182 = vadd.f32 %v2712, %v3056
      %v3183 = vadd.f32 %v2713, %v3059
      %v3184 = vadd.f32 %v2714, %v3064
      %v3185 = vadd.f32 %v2715, %v3067
      %v3186 = vadd.f32 %v2716, %v3072
      %v3187 = vadd.f32 %v2717, %v3075
      %v3188 = vadd.f32 %v2718, %v3080
      %v3189 = vadd.f32 %v2719, %v3083
      %v3190 = vadd.f32 %v2720, %v3088
      %v3191 = vadd.f32 %v2721, %v3091
      %v3192 = vadd.f32 %v2722, %v3096
      %v3193 = vadd.f32 %v2723, %v3099
      %v3194 = vadd.f32 %v2724, %v3104
      %v3195 = vadd.f32 %v2725, %v3107
      %v3196 = vadd.f32 %v2726, %v3112
      %v3197 = vadd.f32 %v2727, %v3115
      %v3198 = vadd.f32 %v2728, %v3120
      %v3199 = vadd.f32 %v2729, %v3123
      %v3200 = vadd.f32 %v2730, %v3128
      %v3201 = vadd.f32 %v2731, %v3131
      %v3202 = vadd.f32 %v2732, %v3136
      %v3203 = vadd.f32 %v2733, %v3139
      %v3204 = vadd.f32 %v2734, %v3144
      %v3205 = vadd.f32 %v2735, %v3147
      %v3206 = vadd.f32 %v2736, %v3152
      %v3207 = vadd.f32 %v2737, %v3155
      %v3208 = vadd.f32 %v2738, %v3160
      %v3209 = vadd.f32 %v2739, %v3163
      %v3210 = vadd.f32 %v2740, %v3168
      %v3211 = vadd.f32 %v2741, %v3171
      %v3212 = vadd.f32 %v2742, %v3176
      %v3213 = vadd.f32 %v2743, %v3179
      %s3214 = scalar_lea.vmem %s199, 24
      %v3215 = vld [vmem:[%s3214] sm:$0xf]
      %v3216 = vld [vmem:[%s3214 + $0x4] sm:$0xf]
      %v3217 = vld [vmem:[%s3214 + $0xc] sm:$0xf]
      %v3218 = vld [vmem:[%s3214 + $0x10] sm:$0xf]
      %v3219 = vld [vmem:[%s3214 + $0x18] sm:$0xf]
      %v3220 = vld [vmem:[%s3214 + $0x1c] sm:$0xf]
      %v3221 = vld [vmem:[%s3214 + $0x24] sm:$0xf]
      %v3222 = vld [vmem:[%s3214 + $0x28] sm:$0xf]
      %v3223 = vld [vmem:[%s3214 + $0x30] sm:$0xf]
      %v3224 = vld [vmem:[%s3214 + $0x34] sm:$0xf]
      %v3225 = vld [vmem:[%s3214 + $0x3c] sm:$0xf]
      %v3226 = vld [vmem:[%s3214 + $0x40] sm:$0xf]
      %v3227 = vld [vmem:[%s3214 + $0x48] sm:$0xf]
      %v3228 = vld [vmem:[%s3214 + $0x4c] sm:$0xf]
      %v3229 = vld [vmem:[%s3214 + $0x54] sm:$0xf]
      %v3230 = vld [vmem:[%s3214 + $0x58] sm:$0xf]
      %v3231 = vld [vmem:[%s3214 + $0x60] sm:$0xf]
      %v3232 = vld [vmem:[%s3214 + $0x64] sm:$0xf]
      %v3233 = vld [vmem:[%s3214 + $0x6c] sm:$0xf]
      %v3234 = vld [vmem:[%s3214 + $0x70] sm:$0xf]
      %v3235 = vld [vmem:[%s3214 + $0x78] sm:$0xf]
      %v3236 = vld [vmem:[%s3214 + $0x7c] sm:$0xf]
      %v3237 = vld [vmem:[%s3214 + $0x84] sm:$0xf]
      %v3238 = vld [vmem:[%s3214 + $0x88] sm:$0xf]
      %v3239 = vld [vmem:[%s3214 + $0x90] sm:$0xf]
      %v3240 = vld [vmem:[%s3214 + $0x94] sm:$0xf]
      %v3241 = vld [vmem:[%s3214 + $0x9c] sm:$0xf]
      %v3242 = vld [vmem:[%s3214 + $0xa0] sm:$0xf]
      %v3243 = vld [vmem:[%s3214 + $0xa8] sm:$0xf]
      %v3244 = vld [vmem:[%s3214 + $0xac] sm:$0xf]
      %v3245 = vld [vmem:[%s3214 + $0xb4] sm:$0xf]
      %v3246 = vld [vmem:[%s3214 + $0xb8] sm:$0xf]
      %s3247 = scalar_lea.vmem %s1, 12
      %v3248 = vld [vmem:[%s3247] sm:$0x3]
      %v3281 = vunpack.c.l.b16 %v3215
      %v3282 = vunpack.c.l.b16 %v3216
      %v3283 = vunpack.c.l.b16 %v3217
      %v3284 = vunpack.c.l.b16 %v3218
      %v3285 = vunpack.c.l.b16 %v3219
      %v3286 = vunpack.c.l.b16 %v3220
      %v3287 = vunpack.c.l.b16 %v3221
      %v3288 = vunpack.c.l.b16 %v3222
      %v3289 = vunpack.c.l.b16 %v3223
      %v3290 = vunpack.c.l.b16 %v3224
      %v3291 = vunpack.c.l.b16 %v3225
      %v3292 = vunpack.c.l.b16 %v3226
      %v3293 = vunpack.c.l.b16 %v3227
      %v3294 = vunpack.c.l.b16 %v3228
      %v3295 = vunpack.c.l.b16 %v3229
      %v3296 = vunpack.c.l.b16 %v3230
      %v3297 = vunpack.c.l.b16 %v3231
      %v3298 = vunpack.c.l.b16 %v3232
      %v3299 = vunpack.c.l.b16 %v3233
      %v3300 = vunpack.c.l.b16 %v3234
      %v3301 = vunpack.c.l.b16 %v3235
      %v3302 = vunpack.c.l.b16 %v3236
      %v3303 = vunpack.c.l.b16 %v3237
      %v3304 = vunpack.c.l.b16 %v3238
      %v3305 = vunpack.c.l.b16 %v3239
      %v3306 = vunpack.c.l.b16 %v3240
      %v3307 = vunpack.c.l.b16 %v3241
      %v3308 = vunpack.c.l.b16 %v3242
      %v3309 = vunpack.c.l.b16 %v3243
      %v3310 = vunpack.c.l.b16 %v3244
      %v3311 = vunpack.c.l.b16 %v3245
      %v3312 = vunpack.c.l.b16 %v3246
      %v3313 = vpack.c.b16 %v3282, %v3281
      %v3314 = vpack.c.b16 %v3284, %v3283
      %v3315 = vpack.c.b16 %v3286, %v3285
      %v3316 = vpack.c.b16 %v3288, %v3287
      %v3317 = vpack.c.b16 %v3290, %v3289
      %v3318 = vpack.c.b16 %v3292, %v3291
      %v3319 = vpack.c.b16 %v3294, %v3293
      %v3320 = vpack.c.b16 %v3296, %v3295
      %v3321 = vpack.c.b16 %v3298, %v3297
      %v3322 = vpack.c.b16 %v3300, %v3299
      %v3323 = vpack.c.b16 %v3302, %v3301
      %v3324 = vpack.c.b16 %v3304, %v3303
      %v3325 = vpack.c.b16 %v3306, %v3305
      %v3326 = vpack.c.b16 %v3308, %v3307
      %v3327 = vpack.c.b16 %v3310, %v3309
      %v3328 = vpack.c.b16 %v3312, %v3311
      %v3330 = vsel %vm696, %v3313, 0
      %v3333 = vsel %vm696, %v3314, 0
      %v3336 = vsel %vm696, %v3315, 0
      %v3339 = vsel %vm696, %v3316, 0
      %v3342 = vsel %vm696, %v3317, 0
      %v3345 = vsel %vm696, %v3318, 0
      %v3348 = vsel %vm696, %v3319, 0
      %v3351 = vsel %vm696, %v3320, 0
      %v3354 = vsel %vm696, %v3321, 0
      %v3357 = vsel %vm696, %v3322, 0
      %v3360 = vsel %vm696, %v3323, 0
      %v3363 = vsel %vm696, %v3324, 0
      %v3366 = vsel %vm696, %v3325, 0
      %v3369 = vsel %vm696, %v3326, 0
      %v3372 = vsel %vm696, %v3327, 0
      %v3375 = vsel %vm696, %v3328, 0
      %v3378 = vsel %vm745, %v3248, 0
      %3380 = vmatprep.subr.bf16.mxu0 0
      %3381 = vmatpush1.bf16.msra.mxu0 %v3378
      %3382 = vmatprep.subr.bf16.mxu0 0
      %3383 = vmatpush1.bf16.msra.mxu0 0
      %3384 = vmatprep.subr.bf16.mxu0 0
      %3385 = vmatpush1.bf16.msra.mxu0 0
      %3386 = vmatprep.subr.bf16.mxu0 0
      %3387 = vmatpush1.bf16.msra.mxu0 0
      %3388 = vmatprep.subr.bf16.mxu0 0
      %3389 = vmatpush1.bf16.msra.mxu0 0
      %3390 = vmatprep.subr.bf16.mxu0 0
      %3391 = vmatpush1.bf16.msra.mxu0 0
      %3392 = vmatprep.subr.bf16.mxu0 0
      %3393 = vmatpush1.bf16.msra.mxu0 0
      %3394 = vmatprep.subr.bf16.mxu0 0
      %3395 = vmatpush1.bf16.msra.mxu0 0
      %3396 = vmatprep.subr.bf16.mxu0 0
      %3397 = vmatpush1.bf16.msra.mxu0 0
      %3398 = vmatprep.subr.bf16.mxu0 0
      %3399 = vmatpush1.bf16.msra.mxu0 0
      %3400 = vmatprep.subr.bf16.mxu0 0
      %3401 = vmatpush1.bf16.msra.mxu0 0
      %3402 = vmatprep.subr.bf16.mxu0 0
      %3403 = vmatpush1.bf16.msra.mxu0 0
      %3404 = vmatprep.subr.bf16.mxu0 0
      %3405 = vmatpush1.bf16.msra.mxu0 0
      %3406 = vmatprep.subr.bf16.mxu0 0
      %3407 = vmatpush1.bf16.msra.mxu0 0
      %3408 = vmatprep.subr.bf16.mxu0 0
      %3409 = vmatpush1.bf16.msra.mxu0 0
      %3410 = vmatprep.subr.bf16.mxu0 0
      %3411 = vmatpush1.bf16.msra.mxu0 0
      %3412 = vmatprep.mubr.bf16.mxu0 0
      %3413 = vmatmul.mubr.bf16.gmra.mrb[0].mxu0 %v3330
      %v3414 = vpop.f32.mrb[0].mxu0
      %v3415 = vadd.f32 0.0, %v3414
      %v3416 = vpop.f32.mrb[0].mxu0
      %v3417 = vpop.f32.mrb[0].mxu0
      %v3418 = vadd.f32 0.0, %v3417
      %v3419 = vpop.f32.mrb[0].mxu0
      %3420 = vmatprep.mubr.bf16.mxu0 0
      %3421 = vmatmul.mubr.bf16.gmra.mrb[0].mxu0 %v3333
      %v3422 = vpop.f32.mrb[0].mxu0
      %v3423 = vadd.f32 0.0, %v3422
      %v3424 = vpop.f32.mrb[0].mxu0
      %v3425 = vpop.f32.mrb[0].mxu0
      %v3426 = vadd.f32 0.0, %v3425
      %v3427 = vpop.f32.mrb[0].mxu0
      %3428 = vmatprep.mubr.bf16.mxu0 0
      %3429 = vmatmul.mubr.bf16.gmra.mrb[0].mxu0 %v3336
      %v3430 = vpop.f32.mrb[0].mxu0
      %v3431 = vadd.f32 0.0, %v3430
      %v3432 = vpop.f32.mrb[0].mxu0
      %v3433 = vpop.f32.mrb[0].mxu0
      %v3434 = vadd.f32 0.0, %v3433
      %v3435 = vpop.f32.mrb[0].mxu0
      %3436 = vmatprep.mubr.bf16.mxu0 0
      %3437 = vmatmul.mubr.bf16.gmra.mrb[0].mxu0 %v3339
      %v3438 = vpop.f32.mrb[0].mxu0
      %v3439 = vadd.f32 0.0, %v3438
      %v3440 = vpop.f32.mrb[0].mxu0
      %v3441 = vpop.f32.mrb[0].mxu0
      %v3442 = vadd.f32 0.0, %v3441
      %v3443 = vpop.f32.mrb[0].mxu0
      %3444 = vmatprep.mubr.bf16.mxu0 0
      %3445 = vmatmul.mubr.bf16.gmra.mrb[0].mxu0 %v3342
      %v3446 = vpop.f32.mrb[0].mxu0
      %v3447 = vadd.f32 0.0, %v3446
      %v3448 = vpop.f32.mrb[0].mxu0
      %v3449 = vpop.f32.mrb[0].mxu0
      %v3450 = vadd.f32 0.0, %v3449
      %v3451 = vpop.f32.mrb[0].mxu0
      %3452 = vmatprep.mubr.bf16.mxu0 0
      %3453 = vmatmul.mubr.bf16.gmra.mrb[0].mxu0 %v3345
      %v3454 = vpop.f32.mrb[0].mxu0
      %v3455 = vadd.f32 0.0, %v3454
      %v3456 = vpop.f32.mrb[0].mxu0
      %v3457 = vpop.f32.mrb[0].mxu0
      %v3458 = vadd.f32 0.0, %v3457
      %v3459 = vpop.f32.mrb[0].mxu0
      %3460 = vmatprep.mubr.bf16.mxu0 0
      %3461 = vmatmul.mubr.bf16.gmra.mrb[0].mxu0 %v3348
      %v3462 = vpop.f32.mrb[0].mxu0
      %v3463 = vadd.f32 0.0, %v3462
      %v3464 = vpop.f32.mrb[0].mxu0
      %v3465 = vpop.f32.mrb[0].mxu0
      %v3466 = vadd.f32 0.0, %v3465
      %v3467 = vpop.f32.mrb[0].mxu0
      %3468 = vmatprep.mubr.bf16.mxu0 0
      %3469 = vmatmul.mubr.bf16.gmra.mrb[0].mxu0 %v3351
      %v3470 = vpop.f32.mrb[0].mxu0
      %v3471 = vadd.f32 0.0, %v3470
      %v3472 = vpop.f32.mrb[0].mxu0
      %v3473 = vpop.f32.mrb[0].mxu0
      %v3474 = vadd.f32 0.0, %v3473
      %v3475 = vpop.f32.mrb[0].mxu0
      %3476 = vmatprep.mubr.bf16.mxu0 0
      %3477 = vmatmul.mubr.bf16.gmra.mrb[0].mxu0 %v3354
      %v3478 = vpop.f32.mrb[0].mxu0
      %v3479 = vadd.f32 0.0, %v3478
      %v3480 = vpop.f32.mrb[0].mxu0
      %v3481 = vpop.f32.mrb[0].mxu0
      %v3482 = vadd.f32 0.0, %v3481
      %v3483 = vpop.f32.mrb[0].mxu0
      %3484 = vmatprep.mubr.bf16.mxu0 0
      %3485 = vmatmul.mubr.bf16.gmra.mrb[0].mxu0 %v3357
      %v3486 = vpop.f32.mrb[0].mxu0
      %v3487 = vadd.f32 0.0, %v3486
      %v3488 = vpop.f32.mrb[0].mxu0
      %v3489 = vpop.f32.mrb[0].mxu0
      %v3490 = vadd.f32 0.0, %v3489
      %v3491 = vpop.f32.mrb[0].mxu0
      %3492 = vmatprep.mubr.bf16.mxu0 0
      %3493 = vmatmul.mubr.bf16.gmra.mrb[0].mxu0 %v3360
      %v3494 = vpop.f32.mrb[0].mxu0
      %v3495 = vadd.f32 0.0, %v3494
      %v3496 = vpop.f32.mrb[0].mxu0
      %v3497 = vpop.f32.mrb[0].mxu0
      %v3498 = vadd.f32 0.0, %v3497
      %v3499 = vpop.f32.mrb[0].mxu0
      %3500 = vmatprep.mubr.bf16.mxu0 0
      %3501 = vmatmul.mubr.bf16.gmra.mrb[0].mxu0 %v3363
      %v3502 = vpop.f32.mrb[0].mxu0
      %v3503 = vadd.f32 0.0, %v3502
      %v3504 = vpop.f32.mrb[0].mxu0
      %v3505 = vpop.f32.mrb[0].mxu0
      %v3506 = vadd.f32 0.0, %v3505
      %v3507 = vpop.f32.mrb[0].mxu0
      %3508 = vmatprep.mubr.bf16.mxu0 0
      %3509 = vmatmul.mubr.bf16.gmra.mrb[0].mxu0 %v3366
      %v3510 = vpop.f32.mrb[0].mxu0
      %v3511 = vadd.f32 0.0, %v3510
      %v3512 = vpop.f32.mrb[0].mxu0
      %v3513 = vpop.f32.mrb[0].mxu0
      %v3514 = vadd.f32 0.0, %v3513
      %v3515 = vpop.f32.mrb[0].mxu0
      %3516 = vmatprep.mubr.bf16.mxu0 0
      %3517 = vmatmul.mubr.bf16.gmra.mrb[0].mxu0 %v3369
      %v3518 = vpop.f32.mrb[0].mxu0
      %v3519 = vadd.f32 0.0, %v3518
      %v3520 = vpop.f32.mrb[0].mxu0
      %v3521 = vpop.f32.mrb[0].mxu0
      %v3522 = vadd.f32 0.0, %v3521
      %v3523 = vpop.f32.mrb[0].mxu0
      %3524 = vmatprep.mubr.bf16.mxu0 0
      %3525 = vmatmul.mubr.bf16.gmra.mrb[0].mxu0 %v3372
      %v3526 = vpop.f32.mrb[0].mxu0
      %v3527 = vadd.f32 0.0, %v3526
      %v3528 = vpop.f32.mrb[0].mxu0
      %v3529 = vpop.f32.mrb[0].mxu0
      %v3530 = vadd.f32 0.0, %v3529
      %v3531 = vpop.f32.mrb[0].mxu0
      %3532 = vmatprep.mubr.bf16.mxu0 0
      %3533 = vmatmul.mubr.bf16.gmra.mrb[0].mxu0 %v3375
      %v3534 = vpop.f32.mrb[0].mxu0
      %v3535 = vadd.f32 0.0, %v3534
      %v3536 = vpop.f32.mrb[0].mxu0
      %v3537 = vpop.f32.mrb[0].mxu0
      %v3538 = vadd.f32 0.0, %v3537
      %v3539 = vpop.f32.mrb[0].mxu0
      %3540 = vdwg.mxu0
      %v3541 = vadd.f32 %v3182, %v3415
      %v3542 = vadd.f32 %v3183, %v3418
      %v3543 = vadd.f32 %v3184, %v3423
      %v3544 = vadd.f32 %v3185, %v3426
      %v3545 = vadd.f32 %v3186, %v3431
      %v3546 = vadd.f32 %v3187, %v3434
      %v3547 = vadd.f32 %v3188, %v3439
      %v3548 = vadd.f32 %v3189, %v3442
      %v3549 = vadd.f32 %v3190, %v3447
      %v3550 = vadd.f32 %v3191, %v3450
      %v3551 = vadd.f32 %v3192, %v3455
      %v3552 = vadd.f32 %v3193, %v3458
      %v3553 = vadd.f32 %v3194, %v3463
      %v3554 = vadd.f32 %v3195, %v3466
      %v3555 = vadd.f32 %v3196, %v3471
      %v3556 = vadd.f32 %v3197, %v3474
      %v3557 = vadd.f32 %v3198, %v3479
      %v3558 = vadd.f32 %v3199, %v3482
      %v3559 = vadd.f32 %v3200, %v3487
      %v3560 = vadd.f32 %v3201, %v3490
      %v3561 = vadd.f32 %v3202, %v3495
      %v3562 = vadd.f32 %v3203, %v3498
      %v3563 = vadd.f32 %v3204, %v3503
      %v3564 = vadd.f32 %v3205, %v3506
      %v3565 = vadd.f32 %v3206, %v3511
      %v3566 = vadd.f32 %v3207, %v3514
      %v3567 = vadd.f32 %v3208, %v3519
      %v3568 = vadd.f32 %v3209, %v3522
      %v3569 = vadd.f32 %v3210, %v3527
      %v3570 = vadd.f32 %v3211, %v3530
      %v3571 = vadd.f32 %v3212, %v3535
      %v3572 = vadd.f32 %v3213, %v3538
      %v3573 = vld [vmem:[%s3214] sm:$0xf]
      %v3574 = vld [vmem:[%s3214 + $0x4] sm:$0xf]
      %v3575 = vld [vmem:[%s3214 + $0x8] sm:$0x1]
      %v3576 = vld [vmem:[%s3214 + $0xc] sm:$0xf]
      %v3577 = vld [vmem:[%s3214 + $0x10] sm:$0xf]
      %v3578 = vld [vmem:[%s3214 + $0x14] sm:$0x1]
      %v3579 = vld [vmem:[%s3214 + $0x18] sm:$0xf]
      %v3580 = vld [vmem:[%s3214 + $0x1c] sm:$0xf]
      %v3581 = vld [vmem:[%s3214 + $0x20] sm:$0x1]
      %v3582 = vld [vmem:[%s3214 + $0x24] sm:$0xf]
      %v3583 = vld [vmem:[%s3214 + $0x28] sm:$0xf]
      %v3584 = vld [vmem:[%s3214 + $0x2c] sm:$0x1]
      %v3585 = vld [vmem:[%s3214 + $0x30] sm:$0xf]
      %v3586 = vld [vmem:[%s3214 + $0x34] sm:$0xf]
      %v3587 = vld [vmem:[%s3214 + $0x38] sm:$0x1]
      %v3588 = vld [vmem:[%s3214 + $0x3c] sm:$0xf]
      %v3589 = vld [vmem:[%s3214 + $0x40] sm:$0xf]
      %v3590 = vld [vmem:[%s3214 + $0x44] sm:$0x1]
      %v3591 = vld [vmem:[%s3214 + $0x48] sm:$0xf]
      %v3592 = vld [vmem:[%s3214 + $0x4c] sm:$0xf]
      %v3593 = vld [vmem:[%s3214 + $0x50] sm:$0x1]
      %v3594 = vld [vmem:[%s3214 + $0x54] sm:$0xf]
      %v3595 = vld [vmem:[%s3214 + $0x58] sm:$0xf]
      %v3596 = vld [vmem:[%s3214 + $0x5c] sm:$0x1]
      %v3597 = vld [vmem:[%s3214 + $0x60] sm:$0xf]
      %v3598 = vld [vmem:[%s3214 + $0x64] sm:$0xf]
      %v3599 = vld [vmem:[%s3214 + $0x68] sm:$0x1]
      %v3600 = vld [vmem:[%s3214 + $0x6c] sm:$0xf]
      %v3601 = vld [vmem:[%s3214 + $0x70] sm:$0xf]
      %v3602 = vld [vmem:[%s3214 + $0x74] sm:$0x1]
      %v3603 = vld [vmem:[%s3214 + $0x78] sm:$0xf]
      %v3604 = vld [vmem:[%s3214 + $0x7c] sm:$0xf]
      %v3605 = vld [vmem:[%s3214 + $0x80] sm:$0x1]
      %v3606 = vld [vmem:[%s3214 + $0x84] sm:$0xf]
      %v3607 = vld [vmem:[%s3214 + $0x88] sm:$0xf]
      %v3608 = vld [vmem:[%s3214 + $0x8c] sm:$0x1]
      %v3609 = vld [vmem:[%s3214 + $0x90] sm:$0xf]
      %v3610 = vld [vmem:[%s3214 + $0x94] sm:$0xf]
      %v3611 = vld [vmem:[%s3214 + $0x98] sm:$0x1]
      %v3612 = vld [vmem:[%s3214 + $0x9c] sm:$0xf]
      %v3613 = vld [vmem:[%s3214 + $0xa0] sm:$0xf]
      %v3614 = vld [vmem:[%s3214 + $0xa4] sm:$0x1]
      %v3615 = vld [vmem:[%s3214 + $0xa8] sm:$0xf]
      %v3616 = vld [vmem:[%s3214 + $0xac] sm:$0xf]
      %v3617 = vld [vmem:[%s3214 + $0xb0] sm:$0x1]
      %v3618 = vld [vmem:[%s3214 + $0xb4] sm:$0xf]
      %v3619 = vld [vmem:[%s3214 + $0xb8] sm:$0xf]
      %v3620 = vld [vmem:[%s3214 + $0xbc] sm:$0x1]
      %v3622 = vshrl.u32 %v3573, 16
      %v3624 = vrot.slane %v3622, 4
      %v3625 = vshll.u32 %v3573, 16
      %v3627 = vrot.slane %v3625, 5
      %v3628 = vor.u32 %v3624, %v3627
      %v3629 = vrot.slane %v3628, 4
      %v3631 = vshll.u32 %v3574, 16
      %v3633 = vrot.slane %v3631, 5
      %v3634 = vsel %vm261, %v3629, %v3633
      %v3635 = vshrl.u32 %v3574, 16
      %v3637 = vrot.slane %v3635, 4
      %v3638 = vor.u32 %v3637, %v3633
      %v3639 = vrot.slane %v3638, 4
      %v3641 = vshll.u32 %v3575, 16
      %v3643 = vrot.slane %v3641, 5
      %v3644 = vsel %vm261, %v3639, %v3643
      %v3646 = vshrl.u32 %v3576, 16
      %v3648 = vrot.slane %v3646, 4
      %v3649 = vshll.u32 %v3576, 16
      %v3651 = vrot.slane %v3649, 5
      %v3652 = vor.u32 %v3648, %v3651
      %v3653 = vrot.slane %v3652, 4
      %v3655 = vshll.u32 %v3577, 16
      %v3657 = vrot.slane %v3655, 5
      %v3658 = vsel %vm261, %v3653, %v3657
      %v3659 = vshrl.u32 %v3577, 16
      %v3661 = vrot.slane %v3659, 4
      %v3662 = vor.u32 %v3661, %v3657
      %v3663 = vrot.slane %v3662, 4
      %v3665 = vshll.u32 %v3578, 16
      %v3667 = vrot.slane %v3665, 5
      %v3668 = vsel %vm261, %v3663, %v3667
      %v3670 = vshrl.u32 %v3579, 16
      %v3672 = vrot.slane %v3670, 4
      %v3673 = vshll.u32 %v3579, 16
      %v3675 = vrot.slane %v3673, 5
      %v3676 = vor.u32 %v3672, %v3675
      %v3677 = vrot.slane %v3676, 4
      %v3679 = vshll.u32 %v3580, 16
      %v3681 = vrot.slane %v3679, 5
      %v3682 = vsel %vm261, %v3677, %v3681
      %v3683 = vshrl.u32 %v3580, 16
      %v3685 = vrot.slane %v3683, 4
      %v3686 = vor.u32 %v3685, %v3681
      %v3687 = vrot.slane %v3686, 4
      %v3689 = vshll.u32 %v3581, 16
      %v3691 = vrot.slane %v3689, 5
      %v3692 = vsel %vm261, %v3687, %v3691
      %v3694 = vshrl.u32 %v3582, 16
      %v3696 = vrot.slane %v3694, 4
      %v3697 = vshll.u32 %v3582, 16
      %v3699 = vrot.slane %v3697, 5
      %v3700 = vor.u32 %v3696, %v3699
      %v3701 = vrot.slane %v3700, 4
      %v3703 = vshll.u32 %v3583, 16
      %v3705 = vrot.slane %v3703, 5
      %v3706 = vsel %vm261, %v3701, %v3705
      %v3707 = vshrl.u32 %v3583, 16
      %v3709 = vrot.slane %v3707, 4
      %v3710 = vor.u32 %v3709, %v3705
      %v3711 = vrot.slane %v3710, 4
      %v3713 = vshll.u32 %v3584, 16
      %v3715 = vrot.slane %v3713, 5
      %v3716 = vsel %vm261, %v3711, %v3715
      %v3718 = vshrl.u32 %v3585, 16
      %v3720 = vrot.slane %v3718, 4
      %v3721 = vshll.u32 %v3585, 16
      %v3723 = vrot.slane %v3721, 5
      %v3724 = vor.u32 %v3720, %v3723
      %v3725 = vrot.slane %v3724, 4
      %v3727 = vshll.u32 %v3586, 16
      %v3729 = vrot.slane %v3727, 5
      %v3730 = vsel %vm261, %v3725, %v3729
      %v3731 = vshrl.u32 %v3586, 16
      %v3733 = vrot.slane %v3731, 4
      %v3734 = vor.u32 %v3733, %v3729
      %v3735 = vrot.slane %v3734, 4
      %v3737 = vshll.u32 %v3587, 16
      %v3739 = vrot.slane %v3737, 5
      %v3740 = vsel %vm261, %v3735, %v3739
      %v3742 = vshrl.u32 %v3588, 16
      %v3744 = vrot.slane %v3742, 4
      %v3745 = vshll.u32 %v3588, 16
      %v3747 = vrot.slane %v3745, 5
      %v3748 = vor.u32 %v3744, %v3747
      %v3749 = vrot.slane %v3748, 4
      %v3751 = vshll.u32 %v3589, 16
      %v3753 = vrot.slane %v3751, 5
      %v3754 = vsel %vm261, %v3749, %v3753
      %v3755 = vshrl.u32 %v3589, 16
      %v3757 = vrot.slane %v3755, 4
      %v3758 = vor.u32 %v3757, %v3753
      %v3759 = vrot.slane %v3758, 4
      %v3761 = vshll.u32 %v3590, 16
      %v3763 = vrot.slane %v3761, 5
      %v3764 = vsel %vm261, %v3759, %v3763
      %v3766 = vshrl.u32 %v3591, 16
      %v3768 = vrot.slane %v3766, 4
      %v3769 = vshll.u32 %v3591, 16
      %v3771 = vrot.slane %v3769, 5
      %v3772 = vor.u32 %v3768, %v3771
      %v3773 = vrot.slane %v3772, 4
      %v3775 = vshll.u32 %v3592, 16
      %v3777 = vrot.slane %v3775, 5
      %v3778 = vsel %vm261, %v3773, %v3777
      %v3779 = vshrl.u32 %v3592, 16
      %v3781 = vrot.slane %v3779, 4
      %v3782 = vor.u32 %v3781, %v3777
      %v3783 = vrot.slane %v3782, 4
      %v3785 = vshll.u32 %v3593, 16
      %v3787 = vrot.slane %v3785, 5
      %v3788 = vsel %vm261, %v3783, %v3787
      %v3790 = vshrl.u32 %v3594, 16
      %v3792 = vrot.slane %v3790, 4
      %v3793 = vshll.u32 %v3594, 16
      %v3795 = vrot.slane %v3793, 5
      %v3796 = vor.u32 %v3792, %v3795
      %v3797 = vrot.slane %v3796, 4
      %v3799 = vshll.u32 %v3595, 16
      %v3801 = vrot.slane %v3799, 5
      %v3802 = vsel %vm261, %v3797, %v3801
      %v3803 = vshrl.u32 %v3595, 16
      %v3805 = vrot.slane %v3803, 4
      %v3806 = vor.u32 %v3805, %v3801
      %v3807 = vrot.slane %v3806, 4
      %v3809 = vshll.u32 %v3596, 16
      %v3811 = vrot.slane %v3809, 5
      %v3812 = vsel %vm261, %v3807, %v3811
      %v3814 = vshrl.u32 %v3597, 16
      %v3816 = vrot.slane %v3814, 4
      %v3817 = vshll.u32 %v3597, 16
      %v3819 = vrot.slane %v3817, 5
      %v3820 = vor.u32 %v3816, %v3819
      %v3821 = vrot.slane %v3820, 4
      %v3823 = vshll.u32 %v3598, 16
      %v3825 = vrot.slane %v3823, 5
      %v3826 = vsel %vm261, %v3821, %v3825
      %v3827 = vshrl.u32 %v3598, 16
      %v3829 = vrot.slane %v3827, 4
      %v3830 = vor.u32 %v3829, %v3825
      %v3831 = vrot.slane %v3830, 4
      %v3833 = vshll.u32 %v3599, 16
      %v3835 = vrot.slane %v3833, 5
      %v3836 = vsel %vm261, %v3831, %v3835
      %v3838 = vshrl.u32 %v3600, 16
      %v3840 = vrot.slane %v3838, 4
      %v3841 = vshll.u32 %v3600, 16
      %v3843 = vrot.slane %v3841, 5
      %v3844 = vor.u32 %v3840, %v3843
      %v3845 = vrot.slane %v3844, 4
      %v3847 = vshll.u32 %v3601, 16
      %v3849 = vrot.slane %v3847, 5
      %v3850 = vsel %vm261, %v3845, %v3849
      %v3851 = vshrl.u32 %v3601, 16
      %v3853 = vrot.slane %v3851, 4
      %v3854 = vor.u32 %v3853, %v3849
      %v3855 = vrot.slane %v3854, 4
      %v3857 = vshll.u32 %v3602, 16
      %v3859 = vrot.slane %v3857, 5
      %v3860 = vsel %vm261, %v3855, %v3859
      %v3862 = vshrl.u32 %v3603, 16
      %v3864 = vrot.slane %v3862, 4
      %v3865 = vshll.u32 %v3603, 16
      %v3867 = vrot.slane %v3865, 5
      %v3868 = vor.u32 %v3864, %v3867
      %v3869 = vrot.slane %v3868, 4
      %v3871 = vshll.u32 %v3604, 16
      %v3873 = vrot.slane %v3871, 5
      %v3874 = vsel %vm261, %v3869, %v3873
      %v3875 = vshrl.u32 %v3604, 16
      %v3877 = vrot.slane %v3875, 4
      %v3878 = vor.u32 %v3877, %v3873
      %v3879 = vrot.slane %v3878, 4
      %v3881 = vshll.u32 %v3605, 16
      %v3883 = vrot.slane %v3881, 5
      %v3884 = vsel %vm261, %v3879, %v3883
      %v3886 = vshrl.u32 %v3606, 16
      %v3888 = vrot.slane %v3886, 4
      %v3889 = vshll.u32 %v3606, 16
      %v3891 = vrot.slane %v3889, 5
      %v3892 = vor.u32 %v3888, %v3891
      %v3893 = vrot.slane %v3892, 4
      %v3895 = vshll.u32 %v3607, 16
      %v3897 = vrot.slane %v3895, 5
      %v3898 = vsel %vm261, %v3893, %v3897
      %v3899 = vshrl.u32 %v3607, 16
      %v3901 = vrot.slane %v3899, 4
      %v3902 = vor.u32 %v3901, %v3897
      %v3903 = vrot.slane %v3902, 4
      %v3905 = vshll.u32 %v3608, 16
      %v3907 = vrot.slane %v3905, 5
      %v3908 = vsel %vm261, %v3903, %v3907
      %v3910 = vshrl.u32 %v3609, 16
      %v3912 = vrot.slane %v3910, 4
      %v3913 = vshll.u32 %v3609, 16
      %v3915 = vrot.slane %v3913, 5
      %v3916 = vor.u32 %v3912, %v3915
      %v3917 = vrot.slane %v3916, 4
      %v3919 = vshll.u32 %v3610, 16
      %v3921 = vrot.slane %v3919, 5
      %v3922 = vsel %vm261, %v3917, %v3921
      %v3923 = vshrl.u32 %v3610, 16
      %v3925 = vrot.slane %v3923, 4
      %v3926 = vor.u32 %v3925, %v3921
      %v3927 = vrot.slane %v3926, 4
      %v3929 = vshll.u32 %v3611, 16
      %v3931 = vrot.slane %v3929, 5
      %v3932 = vsel %vm261, %v3927, %v3931
      %v3934 = vshrl.u32 %v3612, 16
      %v3936 = vrot.slane %v3934, 4
      %v3937 = vshll.u32 %v3612, 16
      %v3939 = vrot.slane %v3937, 5
      %v3940 = vor.u32 %v3936, %v3939
      %v3941 = vrot.slane %v3940, 4
      %v3943 = vshll.u32 %v3613, 16
      %v3945 = vrot.slane %v3943, 5
      %v3946 = vsel %vm261, %v3941, %v3945
      %v3947 = vshrl.u32 %v3613, 16
      %v3949 = vrot.slane %v3947, 4
      %v3950 = vor.u32 %v3949, %v3945
      %v3951 = vrot.slane %v3950, 4
      %v3953 = vshll.u32 %v3614, 16
      %v3955 = vrot.slane %v3953, 5
      %v3956 = vsel %vm261, %v3951, %v3955
      %v3958 = vshrl.u32 %v3615, 16
      %v3960 = vrot.slane %v3958, 4
      %v3961 = vshll.u32 %v3615, 16
      %v3963 = vrot.slane %v3961, 5
      %v3964 = vor.u32 %v3960, %v3963
      %v3965 = vrot.slane %v3964, 4
      %v3967 = vshll.u32 %v3616, 16
      %v3969 = vrot.slane %v3967, 5
      %v3970 = vsel %vm261, %v3965, %v3969
      %v3971 = vshrl.u32 %v3616, 16
      %v3973 = vrot.slane %v3971, 4
      %v3974 = vor.u32 %v3973, %v3969
      %v3975 = vrot.slane %v3974, 4
      %v3977 = vshll.u32 %v3617, 16
      %v3979 = vrot.slane %v3977, 5
      %v3980 = vsel %vm261, %v3975, %v3979
      %v3982 = vshrl.u32 %v3618, 16
      %v3984 = vrot.slane %v3982, 4
      %v3985 = vshll.u32 %v3618, 16
      %v3987 = vrot.slane %v3985, 5
      %v3988 = vor.u32 %v3984, %v3987
      %v3989 = vrot.slane %v3988, 4
      %v3991 = vshll.u32 %v3619, 16
      %v3993 = vrot.slane %v3991, 5
      %v3994 = vsel %vm261, %v3989, %v3993
      %v3995 = vshrl.u32 %v3619, 16
      %v3997 = vrot.slane %v3995, 4
      %v3998 = vor.u32 %v3997, %v3993
      %v3999 = vrot.slane %v3998, 4
      %v4001 = vshll.u32 %v3620, 16
      %v4003 = vrot.slane %v4001, 5
      %v4004 = vsel %vm261, %v3999, %v4003
      %s4005 = scalar_lea.vmem %s1, 14
      %v4006 = vld [vmem:[%s4005] sm:$0x3]
      %v4007 = vunpack.c.l.b16 %v3634
      %v4008 = vunpack.c.l.b16 %v3644
      %v4009 = vunpack.c.l.b16 %v3658
      %v4010 = vunpack.c.l.b16 %v3668
      %v4011 = vunpack.c.l.b16 %v3682
      %v4012 = vunpack.c.l.b16 %v3692
      %v4013 = vunpack.c.l.b16 %v3706
      %v4014 = vunpack.c.l.b16 %v3716
      %v4015 = vunpack.c.l.b16 %v3730
      %v4016 = vunpack.c.l.b16 %v3740
      %v4017 = vunpack.c.l.b16 %v3754
      %v4018 = vunpack.c.l.b16 %v3764
      %v4019 = vunpack.c.l.b16 %v3778
      %v4020 = vunpack.c.l.b16 %v3788
      %v4021 = vunpack.c.l.b16 %v3802
      %v4022 = vunpack.c.l.b16 %v3812
      %v4023 = vunpack.c.l.b16 %v3826
      %v4024 = vunpack.c.l.b16 %v3836
      %v4025 = vunpack.c.l.b16 %v3850
      %v4026 = vunpack.c.l.b16 %v3860
      %v4027 = vunpack.c.l.b16 %v3874
      %v4028 = vunpack.c.l.b16 %v3884
      %v4029 = vunpack.c.l.b16 %v3898
      %v4030 = vunpack.c.l.b16 %v3908
      %v4031 = vunpack.c.l.b16 %v3922
      %v4032 = vunpack.c.l.b16 %v3932
      %v4033 = vunpack.c.l.b16 %v3946
      %v4034 = vunpack.c.l.b16 %v3956
      %v4035 = vunpack.c.l.b16 %v3970
      %v4036 = vunpack.c.l.b16 %v3980
      %v4037 = vunpack.c.l.b16 %v3994
      %v4038 = vunpack.c.l.b16 %v4004
      %v4039 = vpack.c.b16 %v4008, %v4007
      %v4040 = vpack.c.b16 %v4010, %v4009
      %v4041 = vpack.c.b16 %v4012, %v4011
      %v4042 = vpack.c.b16 %v4014, %v4013
      %v4043 = vpack.c.b16 %v4016, %v4015
      %v4044 = vpack.c.b16 %v4018, %v4017
      %v4045 = vpack.c.b16 %v4020, %v4019
      %v4046 = vpack.c.b16 %v4022, %v4021
      %v4047 = vpack.c.b16 %v4024, %v4023
      %v4048 = vpack.c.b16 %v4026, %v4025
      %v4049 = vpack.c.b16 %v4028, %v4027
      %v4050 = vpack.c.b16 %v4030, %v4029
      %v4051 = vpack.c.b16 %v4032, %v4031
      %v4052 = vpack.c.b16 %v4034, %v4033
      %v4053 = vpack.c.b16 %v4036, %v4035
      %v4054 = vpack.c.b16 %v4038, %v4037
      %v4056 = vsel %vm696, %v4039, 0
      %v4059 = vsel %vm696, %v4040, 0
      %v4062 = vsel %vm696, %v4041, 0
      %v4065 = vsel %vm696, %v4042, 0
      %v4068 = vsel %vm696, %v4043, 0
      %v4071 = vsel %vm696, %v4044, 0
      %v4074 = vsel %vm696, %v4045, 0
      %v4077 = vsel %vm696, %v4046, 0
      %v4080 = vsel %vm696, %v4047, 0
      %v4083 = vsel %vm696, %v4048, 0
      %v4086 = vsel %vm696, %v4049, 0
      %v4089 = vsel %vm696, %v4050, 0
      %v4092 = vsel %vm696, %v4051, 0
      %v4095 = vsel %vm696, %v4052, 0
      %v4098 = vsel %vm696, %v4053, 0
      %v4101 = vsel %vm696, %v4054, 0
      %v4104 = vsel %vm745, %v4006, 0
      %4106 = vmatprep.subr.bf16.mxu0 0
      %4107 = vmatpush1.bf16.msra.mxu0 %v4104
      %4108 = vmatprep.subr.bf16.mxu0 0
      %4109 = vmatpush1.bf16.msra.mxu0 0
      %4110 = vmatprep.subr.bf16.mxu0 0
      %4111 = vmatpush1.bf16.msra.mxu0 0
      %4112 = vmatprep.subr.bf16.mxu0 0
      %4113 = vmatpush1.bf16.msra.mxu0 0
      %4114 = vmatprep.subr.bf16.mxu0 0
      %4115 = vmatpush1.bf16.msra.mxu0 0
      %4116 = vmatprep.subr.bf16.mxu0 0
      %4117 = vmatpush1.bf16.msra.mxu0 0
      %4118 = vmatprep.subr.bf16.mxu0 0
      %4119 = vmatpush1.bf16.msra.mxu0 0
      %4120 = vmatprep.subr.bf16.mxu0 0
      %4121 = vmatpush1.bf16.msra.mxu0 0
      %4122 = vmatprep.subr.bf16.mxu0 0
      %4123 = vmatpush1.bf16.msra.mxu0 0
      %4124 = vmatprep.subr.bf16.mxu0 0
      %4125 = vmatpush1.bf16.msra.mxu0 0
      %4126 = vmatprep.subr.bf16.mxu0 0
      %4127 = vmatpush1.bf16.msra.mxu0 0
      %4128 = vmatprep.subr.bf16.mxu0 0
      %4129 = vmatpush1.bf16.msra.mxu0 0
      %4130 = vmatprep.subr.bf16.mxu0 0
      %4131 = vmatpush1.bf16.msra.mxu0 0
      %4132 = vmatprep.subr.bf16.mxu0 0
      %4133 = vmatpush1.bf16.msra.mxu0 0
      %4134 = vmatprep.subr.bf16.mxu0 0
      %4135 = vmatpush1.bf16.msra.mxu0 0
      %4136 = vmatprep.subr.bf16.mxu0 0
      %4137 = vmatpush1.bf16.msra.mxu0 0
      %4138 = vmatprep.mubr.bf16.mxu0 0
      %4139 = vmatmul.mubr.bf16.gmra.mrb[0].mxu0 %v4056
      %v4140 = vpop.f32.mrb[0].mxu0
      %v4141 = vadd.f32 0.0, %v4140
      %v4142 = vpop.f32.mrb[0].mxu0
      %v4143 = vpop.f32.mrb[0].mxu0
      %v4144 = vadd.f32 0.0, %v4143
      %v4145 = vpop.f32.mrb[0].mxu0
      %4146 = vmatprep.mubr.bf16.mxu0 0
      %4147 = vmatmul.mubr.bf16.gmra.mrb[0].mxu0 %v4059
      %v4148 = vpop.f32.mrb[0].mxu0
      %v4149 = vadd.f32 0.0, %v4148
      %v4150 = vpop.f32.mrb[0].mxu0
      %v4151 = vpop.f32.mrb[0].mxu0
      %v4152 = vadd.f32 0.0, %v4151
      %v4153 = vpop.f32.mrb[0].mxu0
      %4154 = vmatprep.mubr.bf16.mxu0 0
      %4155 = vmatmul.mubr.bf16.gmra.mrb[0].mxu0 %v4062
      %v4156 = vpop.f32.mrb[0].mxu0
      %v4157 = vadd.f32 0.0, %v4156
      %v4158 = vpop.f32.mrb[0].mxu0
      %v4159 = vpop.f32.mrb[0].mxu0
      %v4160 = vadd.f32 0.0, %v4159
      %v4161 = vpop.f32.mrb[0].mxu0
      %4162 = vmatprep.mubr.bf16.mxu0 0
      %4163 = vmatmul.mubr.bf16.gmra.mrb[0].mxu0 %v4065
      %v4164 = vpop.f32.mrb[0].mxu0
      %v4165 = vadd.f32 0.0, %v4164
      %v4166 = vpop.f32.mrb[0].mxu0
      %v4167 = vpop.f32.mrb[0].mxu0
      %v4168 = vadd.f32 0.0, %v4167
      %v4169 = vpop.f32.mrb[0].mxu0
      %4170 = vmatprep.mubr.bf16.mxu0 0
      %4171 = vmatmul.mubr.bf16.gmra.mrb[0].mxu0 %v4068
      %v4172 = vpop.f32.mrb[0].mxu0
      %v4173 = vadd.f32 0.0, %v4172
      %v4174 = vpop.f32.mrb[0].mxu0
      %v4175 = vpop.f32.mrb[0].mxu0
      %v4176 = vadd.f32 0.0, %v4175
      %v4177 = vpop.f32.mrb[0].mxu0
      %4178 = vmatprep.mubr.bf16.mxu0 0
      %4179 = vmatmul.mubr.bf16.gmra.mrb[0].mxu0 %v4071
      %v4180 = vpop.f32.mrb[0].mxu0
      %v4181 = vadd.f32 0.0, %v4180
      %v4182 = vpop.f32.mrb[0].mxu0
      %v4183 = vpop.f32.mrb[0].mxu0
      %v4184 = vadd.f32 0.0, %v4183
      %v4185 = vpop.f32.mrb[0].mxu0
      %4186 = vmatprep.mubr.bf16.mxu0 0
      %4187 = vmatmul.mubr.bf16.gmra.mrb[0].mxu0 %v4074
      %v4188 = vpop.f32.mrb[0].mxu0
      %v4189 = vadd.f32 0.0, %v4188
      %v4190 = vpop.f32.mrb[0].mxu0
      %v4191 = vpop.f32.mrb[0].mxu0
      %v4192 = vadd.f32 0.0, %v4191
      %v4193 = vpop.f32.mrb[0].mxu0
      %4194 = vmatprep.mubr.bf16.mxu0 0
      %4195 = vmatmul.mubr.bf16.gmra.mrb[0].mxu0 %v4077
      %v4196 = vpop.f32.mrb[0].mxu0
      %v4197 = vadd.f32 0.0, %v4196
      %v4198 = vpop.f32.mrb[0].mxu0
      %v4199 = vpop.f32.mrb[0].mxu0
      %v4200 = vadd.f32 0.0, %v4199
      %v4201 = vpop.f32.mrb[0].mxu0
      %4202 = vmatprep.mubr.bf16.mxu0 0
      %4203 = vmatmul.mubr.bf16.gmra.mrb[0].mxu0 %v4080
      %v4204 = vpop.f32.mrb[0].mxu0
      %v4205 = vadd.f32 0.0, %v4204
      %v4206 = vpop.f32.mrb[0].mxu0
      %v4207 = vpop.f32.mrb[0].mxu0
      %v4208 = vadd.f32 0.0, %v4207
      %v4209 = vpop.f32.mrb[0].mxu0
      %4210 = vmatprep.mubr.bf16.mxu0 0
      %4211 = vmatmul.mubr.bf16.gmra.mrb[0].mxu0 %v4083
      %v4212 = vpop.f32.mrb[0].mxu0
      %v4213 = vadd.f32 0.0, %v4212
      %v4214 = vpop.f32.mrb[0].mxu0
      %v4215 = vpop.f32.mrb[0].mxu0
      %v4216 = vadd.f32 0.0, %v4215
      %v4217 = vpop.f32.mrb[0].mxu0
      %4218 = vmatprep.mubr.bf16.mxu0 0
      %4219 = vmatmul.mubr.bf16.gmra.mrb[0].mxu0 %v4086
      %v4220 = vpop.f32.mrb[0].mxu0
      %v4221 = vadd.f32 0.0, %v4220
      %v4222 = vpop.f32.mrb[0].mxu0
      %v4223 = vpop.f32.mrb[0].mxu0
      %v4224 = vadd.f32 0.0, %v4223
      %v4225 = vpop.f32.mrb[0].mxu0
      %4226 = vmatprep.mubr.bf16.mxu0 0
      %4227 = vmatmul.mubr.bf16.gmra.mrb[0].mxu0 %v4089
      %v4228 = vpop.f32.mrb[0].mxu0
      %v4229 = vadd.f32 0.0, %v4228
      %v4230 = vpop.f32.mrb[0].mxu0
      %v4231 = vpop.f32.mrb[0].mxu0
      %v4232 = vadd.f32 0.0, %v4231
      %v4233 = vpop.f32.mrb[0].mxu0
      %4234 = vmatprep.mubr.bf16.mxu0 0
      %4235 = vmatmul.mubr.bf16.gmra.mrb[0].mxu0 %v4092
      %v4236 = vpop.f32.mrb[0].mxu0
      %v4237 = vadd.f32 0.0, %v4236
      %v4238 = vpop.f32.mrb[0].mxu0
      %v4239 = vpop.f32.mrb[0].mxu0
      %v4240 = vadd.f32 0.0, %v4239
      %v4241 = vpop.f32.mrb[0].mxu0
      %4242 = vmatprep.mubr.bf16.mxu0 0
      %4243 = vmatmul.mubr.bf16.gmra.mrb[0].mxu0 %v4095
      %v4244 = vpop.f32.mrb[0].mxu0
      %v4245 = vadd.f32 0.0, %v4244
      %v4246 = vpop.f32.mrb[0].mxu0
      %v4247 = vpop.f32.mrb[0].mxu0
      %v4248 = vadd.f32 0.0, %v4247
      %v4249 = vpop.f32.mrb[0].mxu0
      %4250 = vmatprep.mubr.bf16.mxu0 0
      %4251 = vmatmul.mubr.bf16.gmra.mrb[0].mxu0 %v4098
      %v4252 = vpop.f32.mrb[0].mxu0
      %v4253 = vadd.f32 0.0, %v4252
      %v4254 = vpop.f32.mrb[0].mxu0
      %v4255 = vpop.f32.mrb[0].mxu0
      %v4256 = vadd.f32 0.0, %v4255
      %v4257 = vpop.f32.mrb[0].mxu0
      %4258 = vmatprep.mubr.bf16.mxu0 0
      %4259 = vmatmul.mubr.bf16.gmra.mrb[0].mxu0 %v4101
      %v4260 = vpop.f32.mrb[0].mxu0
      %v4261 = vadd.f32 0.0, %v4260
      %v4262 = vpop.f32.mrb[0].mxu0
      %v4263 = vpop.f32.mrb[0].mxu0
      %v4264 = vadd.f32 0.0, %v4263
      %v4265 = vpop.f32.mrb[0].mxu0
      %4266 = vdwg.mxu0
      %v4267 = vadd.f32 %v3541, %v4141
      %v4268 = vadd.f32 %v3542, %v4144
      %v4269 = vadd.f32 %v3543, %v4149
      %v4270 = vadd.f32 %v3544, %v4152
      %v4271 = vadd.f32 %v3545, %v4157
      %v4272 = vadd.f32 %v3546, %v4160
      %v4273 = vadd.f32 %v3547, %v4165
      %v4274 = vadd.f32 %v3548, %v4168
      %v4275 = vadd.f32 %v3549, %v4173
      %v4276 = vadd.f32 %v3550, %v4176
      %v4277 = vadd.f32 %v3551, %v4181
      %v4278 = vadd.f32 %v3552, %v4184
      %v4279 = vadd.f32 %v3553, %v4189
      %v4280 = vadd.f32 %v3554, %v4192
      %v4281 = vadd.f32 %v3555, %v4197
      %v4282 = vadd.f32 %v3556, %v4200
      %v4283 = vadd.f32 %v3557, %v4205
      %v4284 = vadd.f32 %v3558, %v4208
      %v4285 = vadd.f32 %v3559, %v4213
      %v4286 = vadd.f32 %v3560, %v4216
      %v4287 = vadd.f32 %v3561, %v4221
      %v4288 = vadd.f32 %v3562, %v4224
      %v4289 = vadd.f32 %v3563, %v4229
      %v4290 = vadd.f32 %v3564, %v4232
      %v4291 = vadd.f32 %v3565, %v4237
      %v4292 = vadd.f32 %v3566, %v4240
      %v4293 = vadd.f32 %v3567, %v4245
      %v4294 = vadd.f32 %v3568, %v4248
      %v4295 = vadd.f32 %v3569, %v4253
      %v4296 = vadd.f32 %v3570, %v4256
      %v4297 = vadd.f32 %v3571, %v4261
      %v4298 = vadd.f32 %v3572, %v4264
      %v4299 = vld [vmem:[%s3214] sm:$0xe]
      %v4300 = vld [vmem:[%s3214 + $0xc] sm:$0xe]
      %v4301 = vld [vmem:[%s3214 + $0x18] sm:$0xe]
      %v4302 = vld [vmem:[%s3214 + $0x24] sm:$0xe]
      %v4303 = vld [vmem:[%s3214 + $0x30] sm:$0xe]
      %v4304 = vld [vmem:[%s3214 + $0x3c] sm:$0xe]
      %v4305 = vld [vmem:[%s3214 + $0x48] sm:$0xe]
      %v4306 = vld [vmem:[%s3214 + $0x54] sm:$0xe]
      %v4307 = vld [vmem:[%s3214 + $0x60] sm:$0xe]
      %v4308 = vld [vmem:[%s3214 + $0x6c] sm:$0xe]
      %v4309 = vld [vmem:[%s3214 + $0x78] sm:$0xe]
      %v4310 = vld [vmem:[%s3214 + $0x84] sm:$0xe]
      %v4311 = vld [vmem:[%s3214 + $0x90] sm:$0xe]
      %v4312 = vld [vmem:[%s3214 + $0x9c] sm:$0xe]
      %v4313 = vld [vmem:[%s3214 + $0xa8] sm:$0xe]
      %v4314 = vld [vmem:[%s3214 + $0xb4] sm:$0xe]
      %v4363 = vrot.slane %v4299, 5
      %v4364 = vrot.slane %v4363, 4
      %v4365 = vrot.slane %v3574, 5
      %v4366 = vsel %vm1252, %v4364, %v4365
      %v4367 = vrot.slane %v4365, 4
      %v4368 = vrot.slane %v3575, 5
      %v4369 = vsel %vm1252, %v4367, %v4368
      %v4370 = vrot.slane %v4300, 5
      %v4371 = vrot.slane %v4370, 4
      %v4372 = vrot.slane %v3577, 5
      %v4373 = vsel %vm1252, %v4371, %v4372
      %v4374 = vrot.slane %v4372, 4
      %v4375 = vrot.slane %v3578, 5
      %v4376 = vsel %vm1252, %v4374, %v4375
      %v4377 = vrot.slane %v4301, 5
      %v4378 = vrot.slane %v4377, 4
      %v4379 = vrot.slane %v3580, 5
      %v4380 = vsel %vm1252, %v4378, %v4379
      %v4381 = vrot.slane %v4379, 4
      %v4382 = vrot.slane %v3581, 5
      %v4383 = vsel %vm1252, %v4381, %v4382
      %v4384 = vrot.slane %v4302, 5
      %v4385 = vrot.slane %v4384, 4
      %v4386 = vrot.slane %v3583, 5
      %v4387 = vsel %vm1252, %v4385, %v4386
      %v4388 = vrot.slane %v4386, 4
      %v4389 = vrot.slane %v3584, 5
      %v4390 = vsel %vm1252, %v4388, %v4389
      %v4391 = vrot.slane %v4303, 5
      %v4392 = vrot.slane %v4391, 4
      %v4393 = vrot.slane %v3586, 5
      %v4394 = vsel %vm1252, %v4392, %v4393
      %v4395 = vrot.slane %v4393, 4
      %v4396 = vrot.slane %v3587, 5
      %v4397 = vsel %vm1252, %v4395, %v4396
      %v4398 = vrot.slane %v4304, 5
      %v4399 = vrot.slane %v4398, 4
      %v4400 = vrot.slane %v3589, 5
      %v4401 = vsel %vm1252, %v4399, %v4400
      %v4402 = vrot.slane %v4400, 4
      %v4403 = vrot.slane %v3590, 5
      %v4404 = vsel %vm1252, %v4402, %v4403
      %v4405 = vrot.slane %v4305, 5
      %v4406 = vrot.slane %v4405, 4
      %v4407 = vrot.slane %v3592, 5
      %v4408 = vsel %vm1252, %v4406, %v4407
      %v4409 = vrot.slane %v4407, 4
      %v4410 = vrot.slane %v3593, 5
      %v4411 = vsel %vm1252, %v4409, %v4410
      %v4412 = vrot.slane %v4306, 5
      %v4413 = vrot.slane %v4412, 4
      %v4414 = vrot.slane %v3595, 5
      %v4415 = vsel %vm1252, %v4413, %v4414
      %v4416 = vrot.slane %v4414, 4
      %v4417 = vrot.slane %v3596, 5
      %v4418 = vsel %vm1252, %v4416, %v4417
      %v4419 = vrot.slane %v4307, 5
      %v4420 = vrot.slane %v4419, 4
      %v4421 = vrot.slane %v3598, 5
      %v4422 = vsel %vm1252, %v4420, %v4421
      %v4423 = vrot.slane %v4421, 4
      %v4424 = vrot.slane %v3599, 5
      %v4425 = vsel %vm1252, %v4423, %v4424
      %v4426 = vrot.slane %v4308, 5
      %v4427 = vrot.slane %v4426, 4
      %v4428 = vrot.slane %v3601, 5
      %v4429 = vsel %vm1252, %v4427, %v4428
      %v4430 = vrot.slane %v4428, 4
      %v4431 = vrot.slane %v3602, 5
      %v4432 = vsel %vm1252, %v4430, %v4431
      %v4433 = vrot.slane %v4309, 5
      %v4434 = vrot.slane %v4433, 4
      %v4435 = vrot.slane %v3604, 5
      %v4436 = vsel %vm1252, %v4434, %v4435
      %v4437 = vrot.slane %v4435, 4
      %v4438 = vrot.slane %v3605, 5
      %v4439 = vsel %vm1252, %v4437, %v4438
      %v4440 = vrot.slane %v4310, 5
      %v4441 = vrot.slane %v4440, 4
      %v4442 = vrot.slane %v3607, 5
      %v4443 = vsel %vm1252, %v4441, %v4442
      %v4444 = vrot.slane %v4442, 4
      %v4445 = vrot.slane %v3608, 5
      %v4446 = vsel %vm1252, %v4444, %v4445
      %v4447 = vrot.slane %v4311, 5
      %v4448 = vrot.slane %v4447, 4
      %v4449 = vrot.slane %v3610, 5
      %v4450 = vsel %vm1252, %v4448, %v4449
      %v4451 = vrot.slane %v4449, 4
      %v4452 = vrot.slane %v3611, 5
      %v4453 = vsel %vm1252, %v4451, %v4452
      %v4454 = vrot.slane %v4312, 5
      %v4455 = vrot.slane %v4454, 4
      %v4456 = vrot.slane %v3613, 5
      %v4457 = vsel %vm1252, %v4455, %v4456
      %v4458 = vrot.slane %v4456, 4
      %v4459 = vrot.slane %v3614, 5
      %v4460 = vsel %vm1252, %v4458, %v4459
      %v4461 = vrot.slane %v4313, 5
      %v4462 = vrot.slane %v4461, 4
      %v4463 = vrot.slane %v3616, 5
      %v4464 = vsel %vm1252, %v4462, %v4463
      %v4465 = vrot.slane %v4463, 4
      %v4466 = vrot.slane %v3617, 5
      %v4467 = vsel %vm1252, %v4465, %v4466
      %v4468 = vrot.slane %v4314, 5
      %v4469 = vrot.slane %v4468, 4
      %v4470 = vrot.slane %v3619, 5
      %v4471 = vsel %vm1252, %v4469, %v4470
      %v4472 = vrot.slane %v4470, 4
      %v4473 = vrot.slane %v3620, 5
      %v4474 = vsel %vm1252, %v4472, %v4473
      %s4475 = scalar_lea.vmem %s1, 16
      %v4476 = vld [vmem:[%s4475] sm:$0x3]
      %v4477 = vunpack.c.l.b16 %v4366
      %v4478 = vunpack.c.l.b16 %v4369
      %v4479 = vunpack.c.l.b16 %v4373
      %v4480 = vunpack.c.l.b16 %v4376
      %v4481 = vunpack.c.l.b16 %v4380
      %v4482 = vunpack.c.l.b16 %v4383
      %v4483 = vunpack.c.l.b16 %v4387
      %v4484 = vunpack.c.l.b16 %v4390
      %v4485 = vunpack.c.l.b16 %v4394
      %v4486 = vunpack.c.l.b16 %v4397
      %v4487 = vunpack.c.l.b16 %v4401
      %v4488 = vunpack.c.l.b16 %v4404
      %v4489 = vunpack.c.l.b16 %v4408
      %v4490 = vunpack.c.l.b16 %v4411
      %v4491 = vunpack.c.l.b16 %v4415
      %v4492 = vunpack.c.l.b16 %v4418
      %v4493 = vunpack.c.l.b16 %v4422
      %v4494 = vunpack.c.l.b16 %v4425
      %v4495 = vunpack.c.l.b16 %v4429
      %v4496 = vunpack.c.l.b16 %v4432
      %v4497 = vunpack.c.l.b16 %v4436
      %v4498 = vunpack.c.l.b16 %v4439
      %v4499 = vunpack.c.l.b16 %v4443
      %v4500 = vunpack.c.l.b16 %v4446
      %v4501 = vunpack.c.l.b16 %v4450
      %v4502 = vunpack.c.l.b16 %v4453
      %v4503 = vunpack.c.l.b16 %v4457
      %v4504 = vunpack.c.l.b16 %v4460
      %v4505 = vunpack.c.l.b16 %v4464
      %v4506 = vunpack.c.l.b16 %v4467
      %v4507 = vunpack.c.l.b16 %v4471
      %v4508 = vunpack.c.l.b16 %v4474
      %v4509 = vpack.c.b16 %v4478, %v4477
      %v4510 = vpack.c.b16 %v4480, %v4479
      %v4511 = vpack.c.b16 %v4482, %v4481
      %v4512 = vpack.c.b16 %v4484, %v4483
      %v4513 = vpack.c.b16 %v4486, %v4485
      %v4514 = vpack.c.b16 %v4488, %v4487
      %v4515 = vpack.c.b16 %v4490, %v4489
      %v4516 = vpack.c.b16 %v4492, %v4491
      %v4517 = vpack.c.b16 %v4494, %v4493
      %v4518 = vpack.c.b16 %v4496, %v4495
      %v4519 = vpack.c.b16 %v4498, %v4497
      %v4520 = vpack.c.b16 %v4500, %v4499
      %v4521 = vpack.c.b16 %v4502, %v4501
      %v4522 = vpack.c.b16 %v4504, %v4503
      %v4523 = vpack.c.b16 %v4506, %v4505
      %v4524 = vpack.c.b16 %v4508, %v4507
      %v4526 = vsel %vm696, %v4509, 0
      %v4529 = vsel %vm696, %v4510, 0
      %v4532 = vsel %vm696, %v4511, 0
      %v4535 = vsel %vm696, %v4512, 0
      %v4538 = vsel %vm696, %v4513, 0
      %v4541 = vsel %vm696, %v4514, 0
      %v4544 = vsel %vm696, %v4515, 0
      %v4547 = vsel %vm696, %v4516, 0
      %v4550 = vsel %vm696, %v4517, 0
      %v4553 = vsel %vm696, %v4518, 0
      %v4556 = vsel %vm696, %v4519, 0
      %v4559 = vsel %vm696, %v4520, 0
      %v4562 = vsel %vm696, %v4521, 0
      %v4565 = vsel %vm696, %v4522, 0
      %v4568 = vsel %vm696, %v4523, 0
      %v4571 = vsel %vm696, %v4524, 0
      %v4574 = vsel %vm745, %v4476, 0
      %4576 = vmatprep.subr.bf16.mxu0 0
      %4577 = vmatpush1.bf16.msra.mxu0 %v4574
      %4578 = vmatprep.subr.bf16.mxu0 0
      %4579 = vmatpush1.bf16.msra.mxu0 0
      %4580 = vmatprep.subr.bf16.mxu0 0
      %4581 = vmatpush1.bf16.msra.mxu0 0
      %4582 = vmatprep.subr.bf16.mxu0 0
      %4583 = vmatpush1.bf16.msra.mxu0 0
      %4584 = vmatprep.subr.bf16.mxu0 0
      %4585 = vmatpush1.bf16.msra.mxu0 0
      %4586 = vmatprep.subr.bf16.mxu0 0
      %4587 = vmatpush1.bf16.msra.mxu0 0
      %4588 = vmatprep.subr.bf16.mxu0 0
      %4589 = vmatpush1.bf16.msra.mxu0 0
      %4590 = vmatprep.subr.bf16.mxu0 0
      %4591 = vmatpush1.bf16.msra.mxu0 0
      %4592 = vmatprep.subr.bf16.mxu0 0
      %4593 = vmatpush1.bf16.msra.mxu0 0
      %4594 = vmatprep.subr.bf16.mxu0 0
      %4595 = vmatpush1.bf16.msra.mxu0 0
      %4596 = vmatprep.subr.bf16.mxu0 0
      %4597 = vmatpush1.bf16.msra.mxu0 0
      %4598 = vmatprep.subr.bf16.mxu0 0
      %4599 = vmatpush1.bf16.msra.mxu0 0
      %4600 = vmatprep.subr.bf16.mxu0 0
      %4601 = vmatpush1.bf16.msra.mxu0 0
      %4602 = vmatprep.subr.bf16.mxu0 0
      %4603 = vmatpush1.bf16.msra.mxu0 0
      %4604 = vmatprep.subr.bf16.mxu0 0
      %4605 = vmatpush1.bf16.msra.mxu0 0
      %4606 = vmatprep.subr.bf16.mxu0 0
      %4607 = vmatpush1.bf16.msra.mxu0 0
      %4608 = vmatprep.mubr.bf16.mxu0 0
      %4609 = vmatmul.mubr.bf16.gmra.mrb[0].mxu0 %v4526
      %v4610 = vpop.f32.mrb[0].mxu0
      %v4611 = vadd.f32 0.0, %v4610
      %v4612 = vpop.f32.mrb[0].mxu0
      %v4613 = vpop.f32.mrb[0].mxu0
      %v4614 = vadd.f32 0.0, %v4613
      %v4615 = vpop.f32.mrb[0].mxu0
      %4616 = vmatprep.mubr.bf16.mxu0 0
      %4617 = vmatmul.mubr.bf16.gmra.mrb[0].mxu0 %v4529
      %v4618 = vpop.f32.mrb[0].mxu0
      %v4619 = vadd.f32 0.0, %v4618
      %v4620 = vpop.f32.mrb[0].mxu0
      %v4621 = vpop.f32.mrb[0].mxu0
      %v4622 = vadd.f32 0.0, %v4621
      %v4623 = vpop.f32.mrb[0].mxu0
      %4624 = vmatprep.mubr.bf16.mxu0 0
      %4625 = vmatmul.mubr.bf16.gmra.mrb[0].mxu0 %v4532
      %v4626 = vpop.f32.mrb[0].mxu0
      %v4627 = vadd.f32 0.0, %v4626
      %v4628 = vpop.f32.mrb[0].mxu0
      %v4629 = vpop.f32.mrb[0].mxu0
      %v4630 = vadd.f32 0.0, %v4629
      %v4631 = vpop.f32.mrb[0].mxu0
      %4632 = vmatprep.mubr.bf16.mxu0 0
      %4633 = vmatmul.mubr.bf16.gmra.mrb[0].mxu0 %v4535
      %v4634 = vpop.f32.mrb[0].mxu0
      %v4635 = vadd.f32 0.0, %v4634
      %v4636 = vpop.f32.mrb[0].mxu0
      %v4637 = vpop.f32.mrb[0].mxu0
      %v4638 = vadd.f32 0.0, %v4637
      %v4639 = vpop.f32.mrb[0].mxu0
      %4640 = vmatprep.mubr.bf16.mxu0 0
      %4641 = vmatmul.mubr.bf16.gmra.mrb[0].mxu0 %v4538
      %v4642 = vpop.f32.mrb[0].mxu0
      %v4643 = vadd.f32 0.0, %v4642
      %v4644 = vpop.f32.mrb[0].mxu0
      %v4645 = vpop.f32.mrb[0].mxu0
      %v4646 = vadd.f32 0.0, %v4645
      %v4647 = vpop.f32.mrb[0].mxu0
      %4648 = vmatprep.mubr.bf16.mxu0 0
      %4649 = vmatmul.mubr.bf16.gmra.mrb[0].mxu0 %v4541
      %v4650 = vpop.f32.mrb[0].mxu0
      %v4651 = vadd.f32 0.0, %v4650
      %v4652 = vpop.f32.mrb[0].mxu0
      %v4653 = vpop.f32.mrb[0].mxu0
      %v4654 = vadd.f32 0.0, %v4653
      %v4655 = vpop.f32.mrb[0].mxu0
      %4656 = vmatprep.mubr.bf16.mxu0 0
      %4657 = vmatmul.mubr.bf16.gmra.mrb[0].mxu0 %v4544
      %v4658 = vpop.f32.mrb[0].mxu0
      %v4659 = vadd.f32 0.0, %v4658
      %v4660 = vpop.f32.mrb[0].mxu0
      %v4661 = vpop.f32.mrb[0].mxu0
      %v4662 = vadd.f32 0.0, %v4661
      %v4663 = vpop.f32.mrb[0].mxu0
      %4664 = vmatprep.mubr.bf16.mxu0 0
      %4665 = vmatmul.mubr.bf16.gmra.mrb[0].mxu0 %v4547
      %v4666 = vpop.f32.mrb[0].mxu0
      %v4667 = vadd.f32 0.0, %v4666
      %v4668 = vpop.f32.mrb[0].mxu0
      %v4669 = vpop.f32.mrb[0].mxu0
      %v4670 = vadd.f32 0.0, %v4669
      %v4671 = vpop.f32.mrb[0].mxu0
      %4672 = vmatprep.mubr.bf16.mxu0 0
      %4673 = vmatmul.mubr.bf16.gmra.mrb[0].mxu0 %v4550
      %v4674 = vpop.f32.mrb[0].mxu0
      %v4675 = vadd.f32 0.0, %v4674
      %v4676 = vpop.f32.mrb[0].mxu0
      %v4677 = vpop.f32.mrb[0].mxu0
      %v4678 = vadd.f32 0.0, %v4677
      %v4679 = vpop.f32.mrb[0].mxu0
      %4680 = vmatprep.mubr.bf16.mxu0 0
      %4681 = vmatmul.mubr.bf16.gmra.mrb[0].mxu0 %v4553
      %v4682 = vpop.f32.mrb[0].mxu0
      %v4683 = vadd.f32 0.0, %v4682
      %v4684 = vpop.f32.mrb[0].mxu0
      %v4685 = vpop.f32.mrb[0].mxu0
      %v4686 = vadd.f32 0.0, %v4685
      %v4687 = vpop.f32.mrb[0].mxu0
      %4688 = vmatprep.mubr.bf16.mxu0 0
      %4689 = vmatmul.mubr.bf16.gmra.mrb[0].mxu0 %v4556
      %v4690 = vpop.f32.mrb[0].mxu0
      %v4691 = vadd.f32 0.0, %v4690
      %v4692 = vpop.f32.mrb[0].mxu0
      %v4693 = vpop.f32.mrb[0].mxu0
      %v4694 = vadd.f32 0.0, %v4693
      %v4695 = vpop.f32.mrb[0].mxu0
      %4696 = vmatprep.mubr.bf16.mxu0 0
      %4697 = vmatmul.mubr.bf16.gmra.mrb[0].mxu0 %v4559
      %v4698 = vpop.f32.mrb[0].mxu0
      %v4699 = vadd.f32 0.0, %v4698
      %v4700 = vpop.f32.mrb[0].mxu0
      %v4701 = vpop.f32.mrb[0].mxu0
      %v4702 = vadd.f32 0.0, %v4701
      %v4703 = vpop.f32.mrb[0].mxu0
      %4704 = vmatprep.mubr.bf16.mxu0 0
      %4705 = vmatmul.mubr.bf16.gmra.mrb[0].mxu0 %v4562
      %v4706 = vpop.f32.mrb[0].mxu0
      %v4707 = vadd.f32 0.0, %v4706
      %v4708 = vpop.f32.mrb[0].mxu0
      %v4709 = vpop.f32.mrb[0].mxu0
      %v4710 = vadd.f32 0.0, %v4709
      %v4711 = vpop.f32.mrb[0].mxu0
      %4712 = vmatprep.mubr.bf16.mxu0 0
      %4713 = vmatmul.mubr.bf16.gmra.mrb[0].mxu0 %v4565
      %v4714 = vpop.f32.mrb[0].mxu0
      %v4715 = vadd.f32 0.0, %v4714
      %v4716 = vpop.f32.mrb[0].mxu0
      %v4717 = vpop.f32.mrb[0].mxu0
      %v4718 = vadd.f32 0.0, %v4717
      %v4719 = vpop.f32.mrb[0].mxu0
      %4720 = vmatprep.mubr.bf16.mxu0 0
      %4721 = vmatmul.mubr.bf16.gmra.mrb[0].mxu0 %v4568
      %v4722 = vpop.f32.mrb[0].mxu0
      %v4723 = vadd.f32 0.0, %v4722
      %v4724 = vpop.f32.mrb[0].mxu0
      %v4725 = vpop.f32.mrb[0].mxu0
      %v4726 = vadd.f32 0.0, %v4725
      %v4727 = vpop.f32.mrb[0].mxu0
      %4728 = vmatprep.mubr.bf16.mxu0 0
      %4729 = vmatmul.mubr.bf16.gmra.mrb[0].mxu0 %v4571
      %v4730 = vpop.f32.mrb[0].mxu0
      %v4731 = vadd.f32 0.0, %v4730
      %v4732 = vpop.f32.mrb[0].mxu0
      %v4733 = vpop.f32.mrb[0].mxu0
      %v4734 = vadd.f32 0.0, %v4733
      %v4735 = vpop.f32.mrb[0].mxu0
      %4736 = vdwg.mxu0
      %v4737 = vadd.f32 %v4267, %v4611
      %v4738 = vadd.f32 %v4268, %v4614
      %v4739 = vadd.f32 %v4269, %v4619
      %v4740 = vadd.f32 %v4270, %v4622
      %v4741 = vadd.f32 %v4271, %v4627
      %v4742 = vadd.f32 %v4272, %v4630
      %v4743 = vadd.f32 %v4273, %v4635
      %v4744 = vadd.f32 %v4274, %v4638
      %v4745 = vadd.f32 %v4275, %v4643
      %v4746 = vadd.f32 %v4276, %v4646
      %v4747 = vadd.f32 %v4277, %v4651
      %v4748 = vadd.f32 %v4278, %v4654
      %v4749 = vadd.f32 %v4279, %v4659
      %v4750 = vadd.f32 %v4280, %v4662
      %v4751 = vadd.f32 %v4281, %v4667
      %v4752 = vadd.f32 %v4282, %v4670
      %v4753 = vadd.f32 %v4283, %v4675
      %v4754 = vadd.f32 %v4284, %v4678
      %v4755 = vadd.f32 %v4285, %v4683
      %v4756 = vadd.f32 %v4286, %v4686
      %v4757 = vadd.f32 %v4287, %v4691
      %v4758 = vadd.f32 %v4288, %v4694
      %v4759 = vadd.f32 %v4289, %v4699
      %v4760 = vadd.f32 %v4290, %v4702
      %v4761 = vadd.f32 %v4291, %v4707
      %v4762 = vadd.f32 %v4292, %v4710
      %v4763 = vadd.f32 %v4293, %v4715
      %v4764 = vadd.f32 %v4294, %v4718
      %v4765 = vadd.f32 %v4295, %v4723
      %v4766 = vadd.f32 %v4296, %v4726
      %v4767 = vadd.f32 %v4297, %v4731
      %v4768 = vadd.f32 %v4298, %v4734
      %v4769 = vadd.f32 %v4737, %v4738
      %v4770 = vadd.f32 %v4769, %v4739
      %v4771 = vadd.f32 %v4770, %v4740
      %v4772 = vadd.f32 %v4771, %v4741
      %v4773 = vadd.f32 %v4772, %v4742
      %v4774 = vadd.f32 %v4773, %v4743
      %v4775 = vadd.f32 %v4774, %v4744
      %v4776 = vadd.f32 %v4775, %v4745
      %v4777 = vadd.f32 %v4776, %v4746
      %v4778 = vadd.f32 %v4777, %v4747
      %v4779 = vadd.f32 %v4778, %v4748
      %v4780 = vadd.f32 %v4779, %v4749
      %v4781 = vadd.f32 %v4780, %v4750
      %v4782 = vadd.f32 %v4781, %v4751
      %v4783 = vadd.f32 %v4782, %v4752
      %v4784 = vadd.f32 %v4783, %v4753
      %v4785 = vadd.f32 %v4784, %v4754
      %v4786 = vadd.f32 %v4785, %v4755
      %v4787 = vadd.f32 %v4786, %v4756
      %v4788 = vadd.f32 %v4787, %v4757
      %v4789 = vadd.f32 %v4788, %v4758
      %v4790 = vadd.f32 %v4789, %v4759
      %v4791 = vadd.f32 %v4790, %v4760
      %v4792 = vadd.f32 %v4791, %v4761
      %v4793 = vadd.f32 %v4792, %v4762
      %v4794 = vadd.f32 %v4793, %v4763
      %v4795 = vadd.f32 %v4794, %v4764
      %v4796 = vadd.f32 %v4795, %v4765
      %v4797 = vadd.f32 %v4796, %v4766
      %v4798 = vadd.f32 %v4797, %v4767
      %v4799 = vadd.f32 %v4798, %v4768
      %v4800 = vrot.slane %v4799, 4
      %v4801 = vadd.f32 %v4799, %v4800
      %v4802 = vrot.slane %v4801, 2
      %v4803 = vadd.f32 %v4801, %v4802
      %v4804 = vrot.slane %v4803, 1
      %v4805 = vadd.f32 %v4803, %v4804
      %v4806 = vmul.f32 %v4737, %v4737
      %v4807 = vmul.f32 %v4738, %v4738
      %v4808 = vmul.f32 %v4739, %v4739
      %v4809 = vmul.f32 %v4740, %v4740
      %v4810 = vmul.f32 %v4741, %v4741
      %v4811 = vmul.f32 %v4742, %v4742
      %v4812 = vmul.f32 %v4743, %v4743
      %v4813 = vmul.f32 %v4744, %v4744
      %v4814 = vmul.f32 %v4745, %v4745
      %v4815 = vmul.f32 %v4746, %v4746
      %v4816 = vmul.f32 %v4747, %v4747
      %v4817 = vmul.f32 %v4748, %v4748
      %v4818 = vmul.f32 %v4749, %v4749
      %v4819 = vmul.f32 %v4750, %v4750
      %v4820 = vmul.f32 %v4751, %v4751
      %v4821 = vmul.f32 %v4752, %v4752
      %v4822 = vmul.f32 %v4753, %v4753
      %v4823 = vmul.f32 %v4754, %v4754
      %v4824 = vmul.f32 %v4755, %v4755
      %v4825 = vmul.f32 %v4756, %v4756
      %v4826 = vmul.f32 %v4757, %v4757
      %v4827 = vmul.f32 %v4758, %v4758
      %v4828 = vmul.f32 %v4759, %v4759
      %v4829 = vmul.f32 %v4760, %v4760
      %v4830 = vmul.f32 %v4761, %v4761
      %v4831 = vmul.f32 %v4762, %v4762
      %v4832 = vmul.f32 %v4763, %v4763
      %v4833 = vmul.f32 %v4764, %v4764
      %v4834 = vmul.f32 %v4765, %v4765
      %v4835 = vmul.f32 %v4766, %v4766
      %v4836 = vmul.f32 %v4767, %v4767
      %v4837 = vmul.f32 %v4768, %v4768
      %v4838 = vadd.f32 %v4806, %v4807
      %v4839 = vadd.f32 %v4838, %v4808
      %v4840 = vadd.f32 %v4839, %v4809
      %v4841 = vadd.f32 %v4840, %v4810
      %v4842 = vadd.f32 %v4841, %v4811
      %v4843 = vadd.f32 %v4842, %v4812
      %v4844 = vadd.f32 %v4843, %v4813
      %v4845 = vadd.f32 %v4844, %v4814
      %v4846 = vadd.f32 %v4845, %v4815
      %v4847 = vadd.f32 %v4846, %v4816
      %v4848 = vadd.f32 %v4847, %v4817
      %v4849 = vadd.f32 %v4848, %v4818
      %v4850 = vadd.f32 %v4849, %v4819
      %v4851 = vadd.f32 %v4850, %v4820
      %v4852 = vadd.f32 %v4851, %v4821
      %v4853 = vadd.f32 %v4852, %v4822
      %v4854 = vadd.f32 %v4853, %v4823
      %v4855 = vadd.f32 %v4854, %v4824
      %v4856 = vadd.f32 %v4855, %v4825
      %v4857 = vadd.f32 %v4856, %v4826
      %v4858 = vadd.f32 %v4857, %v4827
      %v4859 = vadd.f32 %v4858, %v4828
      %v4860 = vadd.f32 %v4859, %v4829
      %v4861 = vadd.f32 %v4860, %v4830
      %v4862 = vadd.f32 %v4861, %v4831
      %v4863 = vadd.f32 %v4862, %v4832
      %v4864 = vadd.f32 %v4863, %v4833
      %v4865 = vadd.f32 %v4864, %v4834
      %v4866 = vadd.f32 %v4865, %v4835
      %v4867 = vadd.f32 %v4866, %v4836
      %v4868 = vadd.f32 %v4867, %v4837
      %v4869 = vrot.slane %v4868, 4
      %v4870 = vadd.f32 %v4868, %v4869
      %v4871 = vrot.slane %v4870, 2
      %v4872 = vadd.f32 %v4870, %v4871
      %v4873 = vrot.slane %v4872, 1
      %v4874 = vadd.f32 %v4872, %v4873
      %vm4875 = vcmask 1040384
      %v4876 = vsel %vm4875, %v4805, %v4874
      %4877 = vst [vmem:[%s208] sm:$0x3] %v4876
      %v4878 = vld [vmem:[%s2] sm:$0x1]
      %v4880 = vlaneseq
      %v4881 = vshrl.u32 %v4880, 7
      %v4882 = vsub.s32 0, %v4881
      %v4883 = vrot.slane %v4878, %v4882
      %v4885 = vadd.f32 %v4737, %v4883
      %v4886 = vadd.f32 %v4738, %v4883
      %v4887 = vadd.f32 %v4739, %v4883
      %v4888 = vadd.f32 %v4740, %v4883
      %v4889 = vadd.f32 %v4741, %v4883
      %v4890 = vadd.f32 %v4742, %v4883
      %v4891 = vadd.f32 %v4743, %v4883
      %v4892 = vadd.f32 %v4744, %v4883
      %v4893 = vadd.f32 %v4745, %v4883
      %v4894 = vadd.f32 %v4746, %v4883
      %v4895 = vadd.f32 %v4747, %v4883
      %v4896 = vadd.f32 %v4748, %v4883
      %v4897 = vadd.f32 %v4749, %v4883
      %v4898 = vadd.f32 %v4750, %v4883
      %v4899 = vadd.f32 %v4751, %v4883
      %v4900 = vadd.f32 %v4752, %v4883
      %v4901 = vadd.f32 %v4753, %v4883
      %v4902 = vadd.f32 %v4754, %v4883
      %v4903 = vadd.f32 %v4755, %v4883
      %v4904 = vadd.f32 %v4756, %v4883
      %v4905 = vadd.f32 %v4757, %v4883
      %v4906 = vadd.f32 %v4758, %v4883
      %v4907 = vadd.f32 %v4759, %v4883
      %v4908 = vadd.f32 %v4760, %v4883
      %v4909 = vadd.f32 %v4761, %v4883
      %v4910 = vadd.f32 %v4762, %v4883
      %v4911 = vadd.f32 %v4763, %v4883
      %v4912 = vadd.f32 %v4764, %v4883
      %v4913 = vadd.f32 %v4765, %v4883
      %v4914 = vadd.f32 %v4766, %v4883
      %v4915 = vadd.f32 %v4767, %v4883
      %v4916 = vadd.f32 %v4768, %v4883
      %v4917 = vpack.c.bf16 %v4886, %v4885
      %v4918 = vpack.c.bf16 %v4888, %v4887
      %v4919 = vpack.c.bf16 %v4890, %v4889
      %v4920 = vpack.c.bf16 %v4892, %v4891
      %v4921 = vpack.c.bf16 %v4894, %v4893
      %v4922 = vpack.c.bf16 %v4896, %v4895
      %v4923 = vpack.c.bf16 %v4898, %v4897
      %v4924 = vpack.c.bf16 %v4900, %v4899
      %v4925 = vpack.c.bf16 %v4902, %v4901
      %v4926 = vpack.c.bf16 %v4904, %v4903
      %v4927 = vpack.c.bf16 %v4906, %v4905
      %v4928 = vpack.c.bf16 %v4908, %v4907
      %v4929 = vpack.c.bf16 %v4910, %v4909
      %v4930 = vpack.c.bf16 %v4912, %v4911
      %v4931 = vpack.c.bf16 %v4914, %v4913
      %v4932 = vpack.c.bf16 %v4916, %v4915
      %v4949 = vunpack.c.l.b16 %v4917
      %v4950 = vunpack.c.h.b16 %v4917
      %v4951 = vunpack.c.l.b16 %v4918
      %v4952 = vunpack.c.h.b16 %v4918
      %v4953 = vunpack.c.l.b16 %v4919
      %v4954 = vunpack.c.h.b16 %v4919
      %v4955 = vunpack.c.l.b16 %v4920
      %v4956 = vunpack.c.h.b16 %v4920
      %v4957 = vunpack.c.l.b16 %v4921
      %v4958 = vunpack.c.h.b16 %v4921
      %v4959 = vunpack.c.l.b16 %v4922
      %v4960 = vunpack.c.h.b16 %v4922
      %v4961 = vunpack.c.l.b16 %v4923
      %v4962 = vunpack.c.h.b16 %v4923
      %v4963 = vunpack.c.l.b16 %v4924
      %v4964 = vunpack.c.h.b16 %v4924
      %v4965 = vunpack.c.l.b16 %v4925
      %v4966 = vunpack.c.h.b16 %v4925
      %v4967 = vunpack.c.l.b16 %v4926
      %v4968 = vunpack.c.h.b16 %v4926
      %v4969 = vunpack.c.l.b16 %v4927
      %v4970 = vunpack.c.h.b16 %v4927
      %v4971 = vunpack.c.l.b16 %v4928
      %v4972 = vunpack.c.h.b16 %v4928
      %v4973 = vunpack.c.l.b16 %v4929
      %v4974 = vunpack.c.h.b16 %v4929
      %v4975 = vunpack.c.l.b16 %v4930
      %v4976 = vunpack.c.h.b16 %v4930
      %v4977 = vunpack.c.l.b16 %v4931
      %v4978 = vunpack.c.h.b16 %v4931
      %v4979 = vunpack.c.l.b16 %v4932
      %v4980 = vunpack.c.h.b16 %v4932
      %v4981 = vpack.c.b16 %v4949, %v4949
      %v4982 = vpack.c.b16 %v4950, %v4950
      %v4983 = vpack.c.b16 %v4951, %v4951
      %v4984 = vpack.c.b16 %v4952, %v4952
      %v4985 = vpack.c.b16 %v4953, %v4953
      %v4986 = vpack.c.b16 %v4954, %v4954
      %v4987 = vpack.c.b16 %v4955, %v4955
      %v4988 = vpack.c.b16 %v4956, %v4956
      %v4989 = vpack.c.b16 %v4957, %v4957
      %v4990 = vpack.c.b16 %v4958, %v4958
      %v4991 = vpack.c.b16 %v4959, %v4959
      %v4992 = vpack.c.b16 %v4960, %v4960
      %v4993 = vpack.c.b16 %v4961, %v4961
      %v4994 = vpack.c.b16 %v4962, %v4962
      %v4995 = vpack.c.b16 %v4963, %v4963
      %v4996 = vpack.c.b16 %v4964, %v4964
      %v4997 = vpack.c.b16 %v4965, %v4965
      %v4998 = vpack.c.b16 %v4966, %v4966
      %v4999 = vpack.c.b16 %v4967, %v4967
      %v5000 = vpack.c.b16 %v4968, %v4968
      %v5001 = vpack.c.b16 %v4969, %v4969
      %v5002 = vpack.c.b16 %v4970, %v4970
      %v5003 = vpack.c.b16 %v4971, %v4971
      %v5004 = vpack.c.b16 %v4972, %v4972
      %v5005 = vpack.c.b16 %v4973, %v4973
      %v5006 = vpack.c.b16 %v4974, %v4974
      %v5007 = vpack.c.b16 %v4975, %v4975
      %v5008 = vpack.c.b16 %v4976, %v4976
      %v5009 = vpack.c.b16 %v4977, %v4977
      %v5010 = vpack.c.b16 %v4978, %v4978
      %v5011 = vpack.c.b16 %v4979, %v4979
      %v5012 = vpack.c.b16 %v4980, %v4980
      %5045 = vst [vmem:[%s204] sm:$0xf] %v4981
      %5046 = vst [vmem:[%s204 + $0x4] sm:$0xf] %v4982
      %5047 = vst [vmem:[%s204 + $0x8] sm:$0xf] %v4983
      %5048 = vst [vmem:[%s204 + $0xc] sm:$0xf] %v4984
      %5049 = vst [vmem:[%s204 + $0x10] sm:$0xf] %v4985
      %5050 = vst [vmem:[%s204 + $0x14] sm:$0xf] %v4986
      %5051 = vst [vmem:[%s204 + $0x18] sm:$0xf] %v4987
      %5052 = vst [vmem:[%s204 + $0x1c] sm:$0xf] %v4988
      %5053 = vst [vmem:[%s204 + $0x20] sm:$0xf] %v4989
      %5054 = vst [vmem:[%s204 + $0x24] sm:$0xf] %v4990
      %5055 = vst [vmem:[%s204 + $0x28] sm:$0xf] %v4991
      %5056 = vst [vmem:[%s204 + $0x2c] sm:$0xf] %v4992
      %5057 = vst [vmem:[%s204 + $0x30] sm:$0xf] %v4993
      %5058 = vst [vmem:[%s204 + $0x34] sm:$0xf] %v4994
      %5059 = vst [vmem:[%s204 + $0x38] sm:$0xf] %v4995
      %5060 = vst [vmem:[%s204 + $0x3c] sm:$0xf] %v4996
      %5061 = vst [vmem:[%s204 + $0x40] sm:$0xf] %v4997
      %5062 = vst [vmem:[%s204 + $0x44] sm:$0xf] %v4998
      %5063 = vst [vmem:[%s204 + $0x48] sm:$0xf] %v4999
      %5064 = vst [vmem:[%s204 + $0x4c] sm:$0xf] %v5000
      %5065 = vst [vmem:[%s204 + $0x50] sm:$0xf] %v5001
      %5066 = vst [vmem:[%s204 + $0x54] sm:$0xf] %v5002
      %5067 = vst [vmem:[%s204 + $0x58] sm:$0xf] %v5003
      %5068 = vst [vmem:[%s204 + $0x5c] sm:$0xf] %v5004
      %5069 = vst [vmem:[%s204 + $0x60] sm:$0xf] %v5005
      %5070 = vst [vmem:[%s204 + $0x64] sm:$0xf] %v5006
      %5071 = vst [vmem:[%s204 + $0x68] sm:$0xf] %v5007
      %5072 = vst [vmem:[%s204 + $0x6c] sm:$0xf] %v5008
      %5073 = vst [vmem:[%s204 + $0x70] sm:$0xf] %v5009
      %5074 = vst [vmem:[%s204 + $0x74] sm:$0xf] %v5010
      %5075 = vst [vmem:[%s204 + $0x78] sm:$0xf] %v5011
      %5076 = vst [vmem:[%s204 + $0x7c] sm:$0xf] %v5012
      %p5077 = scmp.lt.s32.totalorder %s16, 1
      %s5078 = scalar_select %p5077, %s16, 1
      %s5079 = smul.addr %s5078, 32
      %s5080 = smul.addr %s5079, 4
      %s5081 = scalar_lea.vmem %s3, %s5080
      %p5082 = scmp.lt.s32.totalorder %s16, 1
      %s5083 = scalar_select %p5082, %s16, 1
      %s5084 = smul.addr %s5083, 2
      %s5085 = scalar_lea.vmem %s4, %s5084
      // Predicated region
      $region33: #{_up_conv_impl.1} parent=31 // pred_check
        %p5086 = pneg %p102
      $region34: #{_up_conv_impl.1} parent=31 // pred_check_branch
        %5088 = sbr.rel (%p5086) target = $region36
      $region35: #{_up_conv_impl.1} parent=31 // pred_region
        _
      $region36: #{_up_conv_impl.1} parent=31 // pred_fallthru
        _
      // Predicated region
      $region37: #{_up_conv_impl.1} parent=31 // pred_check
        %p5089 = pneg %p128
      $region38: #{_up_conv_impl.1} parent=31 // pred_check_branch
        %5091 = sbr.rel (%p5089) target = $region40
      $region39: #{_up_conv_impl.1} parent=31 // pred_region
        _
      $region40: #{_up_conv_impl.1} parent=31 // pred_fallthru
        _
    $region32: #{_up_conv_impl.1} parent=5 // pred_fallthru
      _
    %p5092 = scmp.le.s32.totalorder 2, %s11
    // Predicated region
    $region41: #{_up_conv_impl.1} parent=5 // pred_check
      %p5093 = pneg %p5092
    $region42: #{_up_conv_impl.1} parent=5 // pred_check_branch
      %5095 = sbr.rel (%p5093) target = $region44
    $region43: #{_up_conv_impl.1} parent=5 // pred_region
      %s5096 = ssub.s32 %s11, 2
      // Predicated region
      $region45: #{_up_conv_impl.1} parent=43 // pred_check
        %p5097 = pneg %p108
      $region46: #{_up_conv_impl.1} parent=43 // pred_check_branch
        %5099 = sbr.rel (%p5097) target = $region48
      $region47: #{_up_conv_impl.1} parent=43 // pred_region
        %p5100 = scmp.lt.s32.totalorder %s17, 1
        %s5101 = scalar_select %p5100, %s17, 1
        %s5102 = smul.addr %s5101, 32
        %s5103 = smul.addr %s5102, 4
        %s5104 = scalar_lea.vmem %s3, %s5103
      $region48: #{_up_conv_impl.1} parent=43 // pred_fallthru
        _
      // Predicated region
      $region49: #{_up_conv_impl.1} parent=43 // pred_check
        %p5105 = pneg %p134
      $region50: #{_up_conv_impl.1} parent=43 // pred_check_branch
        %5107 = sbr.rel (%p5105) target = $region52
      $region51: #{_up_conv_impl.1} parent=43 // pred_region
        %p5108 = scmp.lt.s32.totalorder %s17, 1
        %s5109 = scalar_select %p5108, %s17, 1
        %s5110 = smul.addr %s5109, 2
        %s5111 = scalar_lea.vmem %s4, %s5110
      $region52: #{_up_conv_impl.1} parent=43 // pred_fallthru
        _
    $region44: #{_up_conv_impl.1} parent=5 // pred_fallthru
      _
  $region6: #{_up_conv_impl.1} parent=0 // loop_footer
    %s15 = sadd.s32 1, %s11
  $region7: #{_up_conv_impl.1} parent=0 // loop_footer_branch
    %10 = sbr.rel target = $region3
  $region8: #{_up_conv_impl.1} parent=0 // loop_exit
    _

</llo_original>
